<compile_context>
chip_gen: v5e
topology: v5e:2x2
jax: 0.10.0
libtpu: 0.0.40
codegen_flags: <defaults>
</compile_context>

<pallas_src>
import functools

import jax
import jax.numpy as jnp
from jax import lax
from jax.experimental import pallas as pl
from jax.experimental.pallas import tpu as pltpu


def _pad_lanes(W):
    """Zero border (in lanes) on each side of the flat (C, HW) image scratch."""
    need = 2 * W + 2                      # largest |di*W + dj| a tap can reach
    return ((need + 127) // 128) * 128    # keep the interior store lane-aligned


# --------------------------------------------------------------------------
# Kernel 1: ConvTranspose2d(C, C, 2, stride 2) + GroupNorm(C, C), fused.
# Layout: (C, HW) with HW on lanes.  Output rows ordered (kh*2+kw)*C + cout.
# --------------------------------------------------------------------------
def upconv_gn_kernel(x_ref, w_ref, b_ref, g_ref, be_ref, o_ref, *, ch, count, eps):
    # x_ref: (1, C, HW1) f32; w_ref: (4C, C) bf16; b/g/be: (4C, 1) f32.
    y = jnp.dot(w_ref[...], x_ref[0].astype(jnp.bfloat16),
                preferred_element_type=jnp.float32) + b_ref[...]
    inv_n = 1.0 / count

    # GroupNorm with groups == channels: rows {c, C+c, 2C+c, 3C+c} of y all
    # belong to output channel c; pool over those 4 slabs and all HW (two-pass).
    def fold4(c2):                       # (4C,1) -> (C,1)
        return c2[0:ch] + c2[ch:2 * ch] + c2[2 * ch:3 * ch] + c2[3 * ch:4 * ch]

    s_col = jnp.sum(y, axis=-1, keepdims=True)                     # (4C, 1)
    mean_c = fold4(s_col) * inv_n                                  # (C, 1)
    mean = jnp.concatenate([mean_c] * 4, axis=0)                   # (4C, 1)
    cent = y - mean
    var_c = fold4(jnp.sum(cent * cent, axis=-1, keepdims=True)) * inv_n
    inv = jnp.concatenate([lax.rsqrt(var_c + eps)] * 4, axis=0)
    o_ref[0] = cent * (inv * g_ref[...]) + be_ref[...]


# --------------------------------------------------------------------------
# Kernel 2: everything after the channel concat, one batch sample per step.
# Layout: (C, HW) with HW on lanes.
# --------------------------------------------------------------------------
def rru_fused_kernel(xcat_ref, w1_ref, b1_ref, g1_ref, be1_ref,
                     w2_ref, b2_ref, g2_ref, be2_ref,
                     wres_ref, gr_ref, br_ref, wback_ref,
                     o_ref, pad_ref, *, H, W, eps):
    HW = H * W
    PADL = _pad_lanes(W)
    c_all = pad_ref.shape[0]

    # Zero only the lane borders of the tap scratch; interior is fully
    # rewritten by every dconv.  (Done every step: safe when the batch axis is
    # split across cores; it is only 2*PADL lanes of bf16 stores.)
    pad_ref[:, 0:PADL] = jnp.zeros((c_all, PADL), jnp.bfloat16)
    pad_ref[:, PADL + HW:PADL + HW + PADL] = jnp.zeros((c_all, PADL), jnp.bfloat16)

    # The only two distinct column-wrap masks (dj = +2 / -2), hoisted.
    col = lax.broadcasted_iota(jnp.int32, (1, HW), 1) % W
    mask_p2 = col < (W - 2)     # reading column j+2 is valid
    mask_m2 = col >= 2          # reading column j-2 is valid

    inv_hw = 1.0 / HW

    def dconv(x_f32, w_ref, b_col):
        """Dilated 3x3 conv (dilation=2, padding=2, 'same'): one K=9*Cin matmul."""
        cin = w_ref.shape[1] // 9
        pad_ref[0:cin, PADL:PADL + HW] = x_f32.astype(jnp.bfloat16)
        taps = []
        for t in range(9):
            di = 2 * (t // 3 - 1)
            dj = 2 * (t % 3 - 1)
            start = PADL + di * W + dj
            tap = pad_ref[0:cin, start:start + HW]          # (cin, HW) bf16
            if dj == 2:
                tap = jnp.where(mask_p2, tap, 0.0)
            elif dj == -2:
                tap = jnp.where(mask_m2, tap, 0.0)
            taps.append(tap)
        im2col = jnp.concatenate(taps, axis=0)              # (9*cin, HW) bf16
        return jnp.dot(w_ref[...], im2col,
                       preferred_element_type=jnp.float32) + b_col

    def gn(y, g_col, b_col, relu):
        """GroupNorm, num_groups == channels: per-channel two-pass stats over HW."""
        mean = jnp.sum(y, axis=-1, keepdims=True) * inv_hw
        cent = y - mean
        var = jnp.sum(cent * cent, axis=-1, keepdims=True) * inv_hw
        out = cent * (lax.rsqrt(var + eps) * g_col) + b_col
        return jnp.maximum(out, 0.0) if relu else out

    def block(x_f32, x_bf16):
        # RRU_double_conv(x) + res_conv(x), relu of the sum.
        h = gn(dconv(x_f32, w1_ref, b1_ref[...]), g1_ref[...], be1_ref[...], True)
        h = gn(dconv(h, w2_ref, b2_ref[...]), g2_ref[...], be2_ref[...], False)
        res = gn(jnp.dot(wres_ref[...], x_bf16, preferred_element_type=jnp.float32),
                 gr_ref[...], br_ref[...], False)
        return jnp.maximum(h + res, 0.0)

    x = jnp.maximum(xcat_ref[0], 0.0)                       # relu(cat([x2, up(x1)]))
    r1 = block(x, x.astype(jnp.bfloat16))
    ft2 = jnp.dot(wback_ref[...], r1.astype(jnp.bfloat16),
                  preferred_element_type=jnp.float32)       # res_conv_back (1x1)
    xg = (1.0 + jax.nn.sigmoid(ft2)) * x                    # (1 + sigmoid) gate
    o_ref[0] = block(xg, xg.astype(jnp.bfloat16))           # r3


# ------------------------------- parameters ---------------------------------

def init_params(key, in_ch, out_ch):
    half = in_ch // 2
    ks = jax.random.split(key, 8)
    return {
        # up: ConvTranspose2d(half, half, 2, stride=2) + GroupNorm(32, half)
        "up_w": 0.1 * jax.random.normal(ks[0], (half, half, 2, 2), jnp.float32),
        "up_b": 0.01 * jax.random.normal(ks[1], (half,), jnp.float32),
        "up_gn_g": jnp.ones((half,), jnp.float32),
        "up_gn_b": jnp.zeros((half,), jnp.float32),
        # RRU_double_conv(in_ch, out_ch)
        "c1_w": 0.05 * jax.random.normal(ks[2], (out_ch, in_ch, 3, 3), jnp.float32),
        "c1_b": 0.01 * jax.random.normal(ks[3], (out_ch,), jnp.float32),
        "gn1_g": jnp.ones((out_ch,), jnp.float32),
        "gn1_b": jnp.zeros((out_ch,), jnp.float32),
        "c2_w": 0.05 * jax.random.normal(ks[4], (out_ch, out_ch, 3, 3), jnp.float32),
        "c2_b": 0.01 * jax.random.normal(ks[5], (out_ch,), jnp.float32),
        "gn2_g": jnp.ones((out_ch,), jnp.float32),
        "gn2_b": jnp.zeros((out_ch,), jnp.float32),
        # res_conv: Conv2d(in_ch, out_ch, 1, bias=False) + GroupNorm(32, out_ch)
        "res_w": 0.1 * jax.random.normal(ks[6], (out_ch, in_ch, 1, 1), jnp.float32),
        "res_gn_g": jnp.ones((out_ch,), jnp.float32),
        "res_gn_b": jnp.zeros((out_ch,), jnp.float32),
        # res_conv_back: Conv2d(out_ch, in_ch, 1, bias=False)
        "back_w": 0.1 * jax.random.normal(ks[7], (in_ch, out_ch, 1, 1), jnp.float32),
    }


# -------------------------------- forward -----------------------------------

def rru_up_forward(params, x1, x2):
    """x1: (N, in_ch//2, H1, W1), x2: (N, in_ch//2, H2, W2) — NCHW float32."""
    N, CH, H1, W1 = x1.shape
    _, CH2, H2, W2 = x2.shape
    CIN = CH + CH2
    CMID = params["c1_w"].shape[0]
    # GroupNorm(32, C) with C == 32 everywhere in this configuration.
    assert CH == 32 and CH2 == 32 and CMID == 32, \
        "kernel specializes GroupNorm to groups==channels"
    eps = 1e-5
    col = lambda v: v.astype(jnp.float32).reshape(-1, 1)
    bf16 = jnp.bfloat16
    vmem_cap = 64 * 1024 * 1024

    # ---- repack torch-layout weights into kernel-ready transposed matrices ----
    # ConvTranspose2d weight (Cin, Cout, kh, kw) -> (4C, C): row = (kh*2+kw)*C + cout
    up_w = jnp.transpose(params["up_w"], (2, 3, 1, 0)).reshape(4 * CH, CH).astype(bf16)
    up_b = col(jnp.tile(params["up_b"], 4))
    up_g = col(jnp.tile(params["up_gn_g"], 4))
    up_be = col(jnp.tile(params["up_gn_b"], 4))
    # Conv2d weight (Cout, Cin, kh, kw) -> (Cout, 9*Cin): col = (kh*3+kw)*Cin + cin
    c1_w = jnp.transpose(params["c1_w"], (0, 2, 3, 1)).reshape(CMID, 9 * CIN).astype(bf16)
    c2_w = jnp.transpose(params["c2_w"], (0, 2, 3, 1)).reshape(CMID, 9 * CMID).astype(bf16)
    wres = params["res_w"].reshape(CMID, CIN).astype(bf16)
    wback = params["back_w"].reshape(CIN, CMID).astype(bf16)

    # ---- 1) up(x1): ConvTranspose2d(2x2, stride 2) + GroupNorm, fused ----
    HW1 = H1 * W1
    up_out = pl.pallas_call(
        functools.partial(upconv_gn_kernel, ch=CH, count=float(4 * HW1), eps=eps),
        out_shape=jax.ShapeDtypeStruct((N, 4 * CH, HW1), jnp.float32),
        grid=(N,),
        in_specs=[
            pl.BlockSpec((1, CH, HW1), lambda n: (n, 0, 0)),
            pl.BlockSpec((4 * CH, CH), lambda n: (0, 0)),
            pl.BlockSpec((4 * CH, 1), lambda n: (0, 0)),
            pl.BlockSpec((4 * CH, 1), lambda n: (0, 0)),
            pl.BlockSpec((4 * CH, 1), lambda n: (0, 0)),
        ],
        out_specs=pl.BlockSpec((1, 4 * CH, HW1), lambda n: (n, 0, 0)),
        compiler_params=pltpu.CompilerParams(
            dimension_semantics=("parallel",), vmem_limit_bytes=vmem_cap),
    )(x1.reshape(N, CH, HW1), up_w, up_b, up_g, up_be)

    # ---- spatial re-interleave, F.pad(top/left), channel concat (tiny XLA glue) ----
    # TODO(synk): fuse this glue into kernel 2 to drop the xcat HBM round-trip.
    y = up_out.reshape(N, 2, 2, CH, H1, W1)
    y = jnp.transpose(y, (0, 3, 4, 1, 5, 2)).reshape(N, CH, 2 * H1, 2 * W1)
    diffX = H2 - 2 * H1
    diffY = W2 - 2 * W1
    y = jnp.pad(y, ((0, 0), (0, 0), (diffX, 0), (diffY, 0)))
    xcat = jnp.concatenate([x2, y], axis=1).reshape(N, CIN, H2 * W2)

    # ---- 2) everything after the concat, one fused kernel per sample ----
    HW = H2 * W2
    PADL = _pad_lanes(W2)
    r3 = pl.pallas_call(
        functools.partial(rru_fused_kernel, H=H2, W=W2, eps=eps),
        out_shape=jax.ShapeDtypeStruct((N, CMID, HW), jnp.float32),
        grid=(N,),
        in_specs=[
            pl.BlockSpec((1, CIN, HW), lambda n: (n, 0, 0)),
            pl.BlockSpec((CMID, 9 * CIN), lambda n: (0, 0)),
            pl.BlockSpec((CMID, 1), lambda n: (0, 0)),
            pl.BlockSpec((CMID, 1), lambda n: (0, 0)),
            pl.BlockSpec((CMID, 1), lambda n: (0, 0)),
            pl.BlockSpec((CMID, 9 * CMID), lambda n: (0, 0)),
            pl.BlockSpec((CMID, 1), lambda n: (0, 0)),
            pl.BlockSpec((CMID, 1), lambda n: (0, 0)),
            pl.BlockSpec((CMID, 1), lambda n: (0, 0)),
            pl.BlockSpec((CMID, CIN), lambda n: (0, 0)),
            pl.BlockSpec((CMID, 1), lambda n: (0, 0)),
            pl.BlockSpec((CMID, 1), lambda n: (0, 0)),
            pl.BlockSpec((CIN, CMID), lambda n: (0, 0)),
        ],
        out_specs=pl.BlockSpec((1, CMID, HW), lambda n: (n, 0, 0)),
        scratch_shapes=[pltpu.VMEM((CIN, HW + 2 * PADL), jnp.bfloat16)],
        compiler_params=pltpu.CompilerParams(
            dimension_semantics=("parallel",), vmem_limit_bytes=vmem_cap),
    )(xcat,
      c1_w, col(params["c1_b"]), col(params["gn1_g"]), col(params["gn1_b"]),
      c2_w, col(params["c2_b"]), col(params["gn2_g"]), col(params["gn2_b"]),
      wres, col(params["res_gn_g"]), col(params["res_gn_b"]),
      wback)
    return r3.reshape(N, CMID, H2, W2)


# ---------------------------------- main -------------------------------------

if __name__ == "__main__":
    in_ch, out_ch = 64, 32          # GroupNorm(32, .) needs channel multiples of 32
    N = 2
    key = jax.random.PRNGKey(0)
    kp, k1, k2 = jax.random.split(key, 3)

    params = init_params(kp, in_ch, out_ch)

    # PyTorch-convention NCHW inputs (kernels work natively in (C, HW) layout).
    x1 = jax.random.normal(k1, (N, in_ch // 2, 8, 8), jnp.float32)
    x2 = jax.random.normal(k2, (N, in_ch // 2, 16, 16), jnp.float32)

    fwd = jax.jit(rru_up_forward)
    out = jax.block_until_ready(fwd(params, x1, x2))   # NCHW: (2, 32, 16, 16)

    assert out.shape == (N, out_ch, 16, 16)
    assert bool(jnp.all(jnp.isfinite(out)))
    print("KERNEL_OK")
</pallas_src>

<mosaic_0001>
module attributes {stable_mosaic.version = 11 : i64} {
  func.func @upconv_gn_kernel(%arg0: i32, %arg1: memref<1x32x64xf32, #tpu.memory_space<vmem>>, %arg2: memref<128x32xbf16, #tpu.memory_space<vmem>>, %arg3: memref<128x1xf32, #tpu.memory_space<vmem>>, %arg4: memref<128x1xf32, #tpu.memory_space<vmem>>, %arg5: memref<128x1xf32, #tpu.memory_space<vmem>>, %arg6: memref<1x128x64xf32, #tpu.memory_space<vmem>>) attributes {dimension_semantics = [#tpu.dimension_semantics<parallel>], iteration_bounds = array<i64: 2>, scalar_prefetch = 0 : i64, scratch_operands = 0 : i64, tpu.core_type = #tpu.core_type<tc>, window_params = [{transform_indices = @transform_0, window_bounds = array<i64: 1, 32, 64>}, {pipeline_mode = #tpu.pipeline_mode<synchronous>, transform_indices = @transform_1, window_bounds = array<i64: 128, 32>}, {pipeline_mode = #tpu.pipeline_mode<synchronous>, transform_indices = @transform_2, window_bounds = array<i64: 128, 1>}, {pipeline_mode = #tpu.pipeline_mode<synchronous>, transform_indices = @transform_3, window_bounds = array<i64: 128, 1>}, {pipeline_mode = #tpu.pipeline_mode<synchronous>, transform_indices = @transform_4, window_bounds = array<i64: 128, 1>}, {transform_indices = @transform_5, window_bounds = array<i64: 1, 128, 64>}]} {
    %c0 = arith.constant 0 : index
    %c0_0 = arith.constant 0 : index
    %0 = vector.load %arg2[%c0, %c0_0] : memref<128x32xbf16, #tpu.memory_space<vmem>>, vector<128x32xbf16>
    %c0_1 = arith.constant 0 : index
    %c0_2 = arith.constant 0 : index
    %c0_3 = arith.constant 0 : index
    %1 = vector.load %arg1[%c0_1, %c0_2, %c0_3] : memref<1x32x64xf32, #tpu.memory_space<vmem>>, vector<1x32x64xf32>
    %2 = vector.shape_cast %1 : vector<1x32x64xf32> to vector<32x64xf32>
    %3 = arith.truncf %2 : vector<32x64xf32> to vector<32x64xbf16>
    %cst = arith.constant dense<0.000000e+00> : vector<128x64xf32>
    %4 = tpu.matmul %0, %3, %cst {dimension_numbers = #tpu.dot_dimension_numbers<[1], [0], [0], [1], [0, 0, 1, 1], [], []>} : vector<128x32xbf16>, vector<32x64xbf16>, vector<128x64xf32> -> vector<128x64xf32>
    %c0_4 = arith.constant 0 : index
    %c0_5 = arith.constant 0 : index
    %5 = vector.load %arg3[%c0_4, %c0_5] : memref<128x1xf32, #tpu.memory_space<vmem>>, vector<128x1xf32>
    %6 = vector.broadcast %5 : vector<128x1xf32> to vector<128x64xf32>
    %7 = arith.addf %4, %6 : vector<128x64xf32>
    %cst_6 = arith.constant dense<0.000000e+00> : vector<128xf32>
    %8 = vector.multi_reduction <add>, %7, %cst_6 [1] : vector<128x64xf32> to vector<128xf32>
    %9 = vector.shape_cast %8 : vector<128xf32> to vector<128x1xf32>
    %10 = vector.extract_strided_slice %9 {offsets = [0, 0], sizes = [32, 1], strides = [1, 1]} : vector<128x1xf32> to vector<32x1xf32>
    %11 = vector.extract_strided_slice %9 {offsets = [32, 0], sizes = [32, 1], strides = [1, 1]} : vector<128x1xf32> to vector<32x1xf32>
    %12 = arith.addf %10, %11 : vector<32x1xf32>
    %13 = vector.extract_strided_slice %9 {offsets = [64, 0], sizes = [32, 1], strides = [1, 1]} : vector<128x1xf32> to vector<32x1xf32>
    %14 = arith.addf %12, %13 : vector<32x1xf32>
    %15 = vector.extract_strided_slice %9 {offsets = [96, 0], sizes = [32, 1], strides = [1, 1]} : vector<128x1xf32> to vector<32x1xf32>
    %16 = arith.addf %14, %15 : vector<32x1xf32>
    %cst_7 = arith.constant 3.906250e-03 : f32
    %17 = vector.broadcast %cst_7 : f32 to vector<32x1xf32>
    %18 = arith.mulf %16, %17 : vector<32x1xf32>
    %19 = tpu.concatenate %18, %18, %18, %18 in 0 : vector<32x1xf32>, vector<32x1xf32>, vector<32x1xf32>, vector<32x1xf32> -> vector<128x1xf32>
    %20 = vector.broadcast %19 : vector<128x1xf32> to vector<128x64xf32>
    %21 = arith.subf %7, %20 : vector<128x64xf32>
    %22 = arith.mulf %21, %21 : vector<128x64xf32>
    %cst_8 = arith.constant dense<0.000000e+00> : vector<128xf32>
    %23 = vector.multi_reduction <add>, %22, %cst_8 [1] : vector<128x64xf32> to vector<128xf32>
    %24 = vector.shape_cast %23 : vector<128xf32> to vector<128x1xf32>
    %25 = vector.extract_strided_slice %24 {offsets = [0, 0], sizes = [32, 1], strides = [1, 1]} : vector<128x1xf32> to vector<32x1xf32>
    %26 = vector.extract_strided_slice %24 {offsets = [32, 0], sizes = [32, 1], strides = [1, 1]} : vector<128x1xf32> to vector<32x1xf32>
    %27 = arith.addf %25, %26 : vector<32x1xf32>
    %28 = vector.extract_strided_slice %24 {offsets = [64, 0], sizes = [32, 1], strides = [1, 1]} : vector<128x1xf32> to vector<32x1xf32>
    %29 = arith.addf %27, %28 : vector<32x1xf32>
    %30 = vector.extract_strided_slice %24 {offsets = [96, 0], sizes = [32, 1], strides = [1, 1]} : vector<128x1xf32> to vector<32x1xf32>
    %31 = arith.addf %29, %30 : vector<32x1xf32>
    %cst_9 = arith.constant 3.906250e-03 : f32
    %32 = vector.broadcast %cst_9 : f32 to vector<32x1xf32>
    %33 = arith.mulf %31, %32 : vector<32x1xf32>
    %cst_10 = arith.constant 9.99999974E-6 : f32
    %34 = vector.broadcast %cst_10 : f32 to vector<32x1xf32>
    %35 = arith.addf %33, %34 : vector<32x1xf32>
    %36 = math.rsqrt %35 : vector<32x1xf32>
    %37 = tpu.concatenate %36, %36, %36, %36 in 0 : vector<32x1xf32>, vector<32x1xf32>, vector<32x1xf32>, vector<32x1xf32> -> vector<128x1xf32>
    %c0_11 = arith.constant 0 : index
    %c0_12 = arith.constant 0 : index
    %38 = vector.load %arg4[%c0_11, %c0_12] : memref<128x1xf32, #tpu.memory_space<vmem>>, vector<128x1xf32>
    %39 = arith.mulf %37, %38 : vector<128x1xf32>
    %40 = vector.broadcast %39 : vector<128x1xf32> to vector<128x64xf32>
    %41 = arith.mulf %21, %40 : vector<128x64xf32>
    %c0_13 = arith.constant 0 : index
    %c0_14 = arith.constant 0 : index
    %42 = vector.load %arg5[%c0_13, %c0_14] : memref<128x1xf32, #tpu.memory_space<vmem>>, vector<128x1xf32>
    %43 = vector.broadcast %42 : vector<128x1xf32> to vector<128x64xf32>
    %44 = arith.addf %41, %43 : vector<128x64xf32>
    %c0_15 = arith.constant 0 : index
    %c0_16 = arith.constant 0 : index
    %c0_17 = arith.constant 0 : index
    %45 = vector.load %arg6[%c0_15, %c0_16, %c0_17] : memref<1x128x64xf32, #tpu.memory_space<vmem>>, vector<1x128x64xf32>
    %46 = vector.shape_cast %45 : vector<1x128x64xf32> to vector<128x64xf32>
    %47 = vector.shape_cast %44 : vector<128x64xf32> to vector<1x128x64xf32>
    tpu.vector_store %arg6[%c0_15, %c0_16, %c0_17], %47 {strides = array<i32>} : memref<1x128x64xf32, #tpu.memory_space<vmem>>, vector<1x128x64xf32>,
    return
  }
  func.func @transform_0(%arg0: i32) -> (i32, i32, i32) {
    %c0_i32 = arith.constant 0 : i32
    %c0_i32_0 = arith.constant 0 : i32
    %c0_i32_1 = arith.constant 0 : i32
    return %arg0, %c0_i32, %c0_i32_0 : i32, i32, i32
  }
  func.func @transform_1(%arg0: i32) -> (i32, i32) {
    %c0_i32 = arith.constant 0 : i32
    %c0_i32_0 = arith.constant 0 : i32
    %c0_i32_1 = arith.constant 0 : i32
    return %c0_i32, %c0_i32_0 : i32, i32
  }
  func.func @transform_2(%arg0: i32) -> (i32, i32) {
    %c0_i32 = arith.constant 0 : i32
    %c0_i32_0 = arith.constant 0 : i32
    %c0_i32_1 = arith.constant 0 : i32
    return %c0_i32, %c0_i32_0 : i32, i32
  }
  func.func @transform_3(%arg0: i32) -> (i32, i32) {
    %c0_i32 = arith.constant 0 : i32
    %c0_i32_0 = arith.constant 0 : i32
    %c0_i32_1 = arith.constant 0 : i32
    return %c0_i32, %c0_i32_0 : i32, i32
  }
  func.func @transform_4(%arg0: i32) -> (i32, i32) {
    %c0_i32 = arith.constant 0 : i32
    %c0_i32_0 = arith.constant 0 : i32
    %c0_i32_1 = arith.constant 0 : i32
    return %c0_i32, %c0_i32_0 : i32, i32
  }
  func.func @transform_5(%arg0: i32) -> (i32, i32, i32) {
    %c0_i32 = arith.constant 0 : i32
    %c0_i32_0 = arith.constant 0 : i32
    %c0_i32_1 = arith.constant 0 : i32
    return %arg0, %c0_i32, %c0_i32_0 : i32, i32, i32
  }
}

module attributes {stable_mosaic.version = 11 : i64} {
  func.func @rru_fused_kernel(%arg0: i32, %arg1: memref<1x64x256xf32, #tpu.memory_space<vmem>>, %arg2: memref<32x576xbf16, #tpu.memory_space<vmem>>, %arg3: memref<32x1xf32, #tpu.memory_space<vmem>>, %arg4: memref<32x1xf32, #tpu.memory_space<vmem>>, %arg5: memref<32x1xf32, #tpu.memory_space<vmem>>, %arg6: memref<32x288xbf16, #tpu.memory_space<vmem>>, %arg7: memref<32x1xf32, #tpu.memory_space<vmem>>, %arg8: memref<32x1xf32, #tpu.memory_space<vmem>>, %arg9: memref<32x1xf32, #tpu.memory_space<vmem>>, %arg10: memref<32x64xbf16, #tpu.memory_space<vmem>>, %arg11: memref<32x1xf32, #tpu.memory_space<vmem>>, %arg12: memref<32x1xf32, #tpu.memory_space<vmem>>, %arg13: memref<64x32xbf16, #tpu.memory_space<vmem>>, %arg14: memref<1x32x256xf32, #tpu.memory_space<vmem>>, %arg15: memref<64x512xbf16, #tpu.memory_space<vmem>>) attributes {dimension_semantics = [#tpu.dimension_semantics<parallel>], iteration_bounds = array<i64: 2>, scalar_prefetch = 0 : i64, scratch_operands = 1 : i64, tpu.core_type = #tpu.core_type<tc>, window_params = [{transform_indices = @transform_0, window_bounds = array<i64: 1, 64, 256>}, {pipeline_mode = #tpu.pipeline_mode<synchronous>, transform_indices = @transform_1, window_bounds = array<i64: 32, 576>}, {pipeline_mode = #tpu.pipeline_mode<synchronous>, transform_indices = @transform_2, window_bounds = array<i64: 32, 1>}, {pipeline_mode = #tpu.pipeline_mode<synchronous>, transform_indices = @transform_3, window_bounds = array<i64: 32, 1>}, {pipeline_mode = #tpu.pipeline_mode<synchronous>, transform_indices = @transform_4, window_bounds = array<i64: 32, 1>}, {pipeline_mode = #tpu.pipeline_mode<synchronous>, transform_indices = @transform_5, window_bounds = array<i64: 32, 288>}, {pipeline_mode = #tpu.pipeline_mode<synchronous>, transform_indices = @transform_6, window_bounds = array<i64: 32, 1>}, {pipeline_mode = #tpu.pipeline_mode<synchronous>, transform_indices = @transform_7, window_bounds = array<i64: 32, 1>}, {pipeline_mode = #tpu.pipeline_mode<synchronous>, transform_indices = @transform_8, window_bounds = array<i64: 32, 1>}, {pipeline_mode = #tpu.pipeline_mode<synchronous>, transform_indices = @transform_9, window_bounds = array<i64: 32, 64>}, {pipeline_mode = #tpu.pipeline_mode<synchronous>, transform_indices = @transform_10, window_bounds = array<i64: 32, 1>}, {pipeline_mode = #tpu.pipeline_mode<synchronous>, transform_indices = @transform_11, window_bounds = array<i64: 32, 1>}, {pipeline_mode = #tpu.pipeline_mode<synchronous>, transform_indices = @transform_12, window_bounds = array<i64: 64, 32>}, {transform_indices = @transform_13, window_bounds = array<i64: 1, 32, 256>}]} {
    %cst = arith.constant 0.000000e+00 : bf16
    %0 = vector.broadcast %cst : bf16 to vector<64x128xbf16>
    %c0 = arith.constant 0 : index
    %c0_0 = arith.constant 0 : index
    %1 = vector.load %arg15[%c0, %c0_0] : memref<64x512xbf16, #tpu.memory_space<vmem>>, vector<64x128xbf16>
    tpu.vector_store %arg15[%c0, %c0_0], %0 {strides = array<i32>} : memref<64x512xbf16, #tpu.memory_space<vmem>>, vector<64x128xbf16>,
    %cst_1 = arith.constant 0.000000e+00 : bf16
    %2 = vector.broadcast %cst_1 : bf16 to vector<64x128xbf16>
    %c0_2 = arith.constant 0 : index
    %c384 = arith.constant 384 : index
    %3 = vector.load %arg15[%c0_2, %c384] : memref<64x512xbf16, #tpu.memory_space<vmem>>, vector<64x128xbf16>
    tpu.vector_store %arg15[%c0_2, %c384], %2 {strides = array<i32>} : memref<64x512xbf16, #tpu.memory_space<vmem>>, vector<64x128xbf16>,
    %4 = tpu.iota {dimensions = array<i32: 1>} : vector<1x256xi32>
    %c16_i32 = arith.constant 16 : i32
    %c0_i32 = arith.constant 0 : i32
    %5 = arith.cmpi eq, %c16_i32, %c0_i32 : i32
    %c1_i32 = arith.constant 1 : i32
    %6 = arith.select %5, %c1_i32, %c16_i32 : i32
    %7 = vector.broadcast %6 : i32 to vector<1x256xi32>
    %8 = arith.remsi %4, %7 : vector<1x256xi32>
    %c0_i32_3 = arith.constant 0 : i32
    %9 = vector.broadcast %c0_i32_3 : i32 to vector<1x256xi32>
    %10 = arith.cmpi ne, %8, %9 : vector<1x256xi32>
    %c0_i32_4 = arith.constant 0 : i32
    %11 = vector.broadcast %c0_i32_4 : i32 to vector<1x256xi32>
    %12 = arith.cmpi slt, %8, %11 : vector<1x256xi32>
    %c0_i32_5 = arith.constant 0 : i32
    %13 = arith.cmpi slt, %6, %c0_i32_5 : i32
    %14 = vector.broadcast %13 : i1 to vector<1x256xi1>
    %15 = vector.broadcast %14 : vector<1x256xi1> to vector<1x256xi1>
    %16 = arith.xori %12, %15 : vector<1x256xi1>
    %17 = arith.andi %16, %10 : vector<1x256xi1>
    %18 = vector.broadcast %6 : i32 to vector<1x256xi32>
    %19 = arith.addi %8, %18 : vector<1x256xi32>
    %20 = arith.select %17, %19, %8 : vector<1x256xi1>, vector<1x256xi32>
    %c14_i32 = arith.constant 14 : i32
    %21 = vector.broadcast %c14_i32 : i32 to vector<1x256xi32>
    %22 = arith.cmpi slt, %20, %21 : vector<1x256xi32>
    %c2_i32 = arith.constant 2 : i32
    %23 = vector.broadcast %c2_i32 : i32 to vector<1x256xi32>
    %24 = arith.cmpi sge, %20, %23 : vector<1x256xi32>
    %c0_6 = arith.constant 0 : index
    %c0_7 = arith.constant 0 : index
    %c0_8 = arith.constant 0 : index
    %25 = vector.load %arg1[%c0_6, %c0_7, %c0_8] : memref<1x64x256xf32, #tpu.memory_space<vmem>>, vector<1x64x256xf32>
    %26 = vector.shape_cast %25 : vector<1x64x256xf32> to vector<64x256xf32>
    %cst_9 = arith.constant 0.000000e+00 : f32
    %27 = vector.broadcast %cst_9 : f32 to vector<64x256xf32>
    %28 = arith.maximumf %26, %27 : vector<64x256xf32>
    %29 = arith.truncf %28 : vector<64x256xf32> to vector<64x256xbf16>
    %c0_10 = arith.constant 0 : index
    %c0_11 = arith.constant 0 : index
    %30 = vector.load %arg3[%c0_10, %c0_11] : memref<32x1xf32, #tpu.memory_space<vmem>>, vector<32x1xf32>
    %31 = arith.truncf %28 : vector<64x256xf32> to vector<64x256xbf16>
    %c0_12 = arith.constant 0 : index
    %c128 = arith.constant 128 : index
    %32 = vector.load %arg15[%c0_12, %c128] : memref<64x512xbf16, #tpu.memory_space<vmem>>, vector<64x256xbf16>
    tpu.vector_store %arg15[%c0_12, %c128], %31 {strides = array<i32>} : memref<64x512xbf16, #tpu.memory_space<vmem>>, vector<64x256xbf16>,
    %c0_13 = arith.constant 0 : index
    %c94 = arith.constant 94 : index
    %33 = vector.load %arg15[%c0_13, %c94] : memref<64x512xbf16, #tpu.memory_space<vmem>>, vector<64x256xbf16>
    %cst_14 = arith.constant 0.000000e+00 : f32
    %34 = arith.truncf %cst_14 : f32 to bf16
    %35 = vector.shape_cast %24 : vector<1x256xi1> to vector<1x256xi1>
    %36 = vector.broadcast %35 : vector<1x256xi1> to vector<64x256xi1>
    %37 = vector.broadcast %34 : bf16 to vector<64x256xbf16>
    %38 = arith.select %36, %33, %37 : vector<64x256xi1>, vector<64x256xbf16>
    %c0_15 = arith.constant 0 : index
    %c96 = arith.constant 96 : index
    %39 = vector.load %arg15[%c0_15, %c96] : memref<64x512xbf16, #tpu.memory_space<vmem>>, vector<64x256xbf16>
    %c0_16 = arith.constant 0 : index
    %c98 = arith.constant 98 : index
    %40 = vector.load %arg15[%c0_16, %c98] : memref<64x512xbf16, #tpu.memory_space<vmem>>, vector<64x256xbf16>
    %cst_17 = arith.constant 0.000000e+00 : f32
    %41 = arith.truncf %cst_17 : f32 to bf16
    %42 = vector.shape_cast %22 : vector<1x256xi1> to vector<1x256xi1>
    %43 = vector.broadcast %42 : vector<1x256xi1> to vector<64x256xi1>
    %44 = vector.broadcast %41 : bf16 to vector<64x256xbf16>
    %45 = arith.select %43, %40, %44 : vector<64x256xi1>, vector<64x256xbf16>
    %c0_18 = arith.constant 0 : index
    %c126 = arith.constant 126 : index
    %46 = vector.load %arg15[%c0_18, %c126] : memref<64x512xbf16, #tpu.memory_space<vmem>>, vector<64x256xbf16>
    %cst_19 = arith.constant 0.000000e+00 : f32
    %47 = arith.truncf %cst_19 : f32 to bf16
    %48 = vector.shape_cast %24 : vector<1x256xi1> to vector<1x256xi1>
    %49 = vector.broadcast %48 : vector<1x256xi1> to vector<64x256xi1>
    %50 = vector.broadcast %47 : bf16 to vector<64x256xbf16>
    %51 = arith.select %49, %46, %50 : vector<64x256xi1>, vector<64x256xbf16>
    %c0_20 = arith.constant 0 : index
    %c128_21 = arith.constant 128 : index
    %52 = vector.load %arg15[%c0_20, %c128_21] : memref<64x512xbf16, #tpu.memory_space<vmem>>, vector<64x256xbf16>
    %c0_22 = arith.constant 0 : index
    %c130 = arith.constant 130 : index
    %53 = vector.load %arg15[%c0_22, %c130] : memref<64x512xbf16, #tpu.memory_space<vmem>>, vector<64x256xbf16>
    %cst_23 = arith.constant 0.000000e+00 : f32
    %54 = arith.truncf %cst_23 : f32 to bf16
    %55 = vector.shape_cast %22 : vector<1x256xi1> to vector<1x256xi1>
    %56 = vector.broadcast %55 : vector<1x256xi1> to vector<64x256xi1>
    %57 = vector.broadcast %54 : bf16 to vector<64x256xbf16>
    %58 = arith.select %56, %53, %57 : vector<64x256xi1>, vector<64x256xbf16>
    %c0_24 = arith.constant 0 : index
    %c158 = arith.constant 158 : index
    %59 = vector.load %arg15[%c0_24, %c158] : memref<64x512xbf16, #tpu.memory_space<vmem>>, vector<64x256xbf16>
    %cst_25 = arith.constant 0.000000e+00 : f32
    %60 = arith.truncf %cst_25 : f32 to bf16
    %61 = vector.shape_cast %24 : vector<1x256xi1> to vector<1x256xi1>
    %62 = vector.broadcast %61 : vector<1x256xi1> to vector<64x256xi1>
    %63 = vector.broadcast %60 : bf16 to vector<64x256xbf16>
    %64 = arith.select %62, %59, %63 : vector<64x256xi1>, vector<64x256xbf16>
    %c0_26 = arith.constant 0 : index
    %c160 = arith.constant 160 : index
    %65 = vector.load %arg15[%c0_26, %c160] : memref<64x512xbf16, #tpu.memory_space<vmem>>, vector<64x256xbf16>
    %c0_27 = arith.constant 0 : index
    %c162 = arith.constant 162 : index
    %66 = vector.load %arg15[%c0_27, %c162] : memref<64x512xbf16, #tpu.memory_space<vmem>>, vector<64x256xbf16>
    %cst_28 = arith.constant 0.000000e+00 : f32
    %67 = arith.truncf %cst_28 : f32 to bf16
    %68 = vector.shape_cast %22 : vector<1x256xi1> to vector<1x256xi1>
    %69 = vector.broadcast %68 : vector<1x256xi1> to vector<64x256xi1>
    %70 = vector.broadcast %67 : bf16 to vector<64x256xbf16>
    %71 = arith.select %69, %66, %70 : vector<64x256xi1>, vector<64x256xbf16>
    %72 = tpu.concatenate %38, %39, %45, %51, %52, %58, %64, %65, %71 in 0 : vector<64x256xbf16>, vector<64x256xbf16>, vector<64x256xbf16>, vector<64x256xbf16>, vector<64x256xbf16>, vector<64x256xbf16>, vector<64x256xbf16>, vector<64x256xbf16>, vector<64x256xbf16> -> vector<576x256xbf16>
    %c0_29 = arith.constant 0 : index
    %c0_30 = arith.constant 0 : index
    %73 = vector.load %arg2[%c0_29, %c0_30] : memref<32x576xbf16, #tpu.memory_space<vmem>>, vector<32x576xbf16>
    %cst_31 = arith.constant dense<0.000000e+00> : vector<32x256xf32>
    %74 = tpu.matmul %73, %72, %cst_31 {dimension_numbers = #tpu.dot_dimension_numbers<[1], [0], [0], [1], [0, 0, 1, 1], [], []>} : vector<32x576xbf16>, vector<576x256xbf16>, vector<32x256xf32> -> vector<32x256xf32>
    %75 = vector.broadcast %30 : vector<32x1xf32> to vector<32x256xf32>
    %76 = arith.addf %74, %75 : vector<32x256xf32>
    %c0_32 = arith.constant 0 : index
    %c0_33 = arith.constant 0 : index
    %77 = vector.load %arg4[%c0_32, %c0_33] : memref<32x1xf32, #tpu.memory_space<vmem>>, vector<32x1xf32>
    %c0_34 = arith.constant 0 : index
    %c0_35 = arith.constant 0 : index
    %78 = vector.load %arg5[%c0_34, %c0_35] : memref<32x1xf32, #tpu.memory_space<vmem>>, vector<32x1xf32>
    %cst_36 = arith.constant dense<0.000000e+00> : vector<32xf32>
    %79 = vector.multi_reduction <add>, %76, %cst_36 [1] : vector<32x256xf32> to vector<32xf32>
    %80 = vector.shape_cast %79 : vector<32xf32> to vector<32x1xf32>
    %cst_37 = arith.constant 3.906250e-03 : f32
    %81 = vector.broadcast %cst_37 : f32 to vector<32x1xf32>
    %82 = arith.mulf %80, %81 : vector<32x1xf32>
    %83 = vector.broadcast %82 : vector<32x1xf32> to vector<32x256xf32>
    %84 = arith.subf %76, %83 : vector<32x256xf32>
    %85 = arith.mulf %84, %84 : vector<32x256xf32>
    %cst_38 = arith.constant dense<0.000000e+00> : vector<32xf32>
    %86 = vector.multi_reduction <add>, %85, %cst_38 [1] : vector<32x256xf32> to vector<32xf32>
    %87 = vector.shape_cast %86 : vector<32xf32> to vector<32x1xf32>
    %cst_39 = arith.constant 3.906250e-03 : f32
    %88 = vector.broadcast %cst_39 : f32 to vector<32x1xf32>
    %89 = arith.mulf %87, %88 : vector<32x1xf32>
    %cst_40 = arith.constant 9.99999974E-6 : f32
    %90 = vector.broadcast %cst_40 : f32 to vector<32x1xf32>
    %91 = arith.addf %89, %90 : vector<32x1xf32>
    %92 = math.rsqrt %91 : vector<32x1xf32>
    %93 = arith.mulf %92, %77 : vector<32x1xf32>
    %94 = vector.broadcast %93 : vector<32x1xf32> to vector<32x256xf32>
    %95 = arith.mulf %84, %94 : vector<32x256xf32>
    %96 = vector.broadcast %78 : vector<32x1xf32> to vector<32x256xf32>
    %97 = arith.addf %95, %96 : vector<32x256xf32>
    %cst_41 = arith.constant 0.000000e+00 : f32
    %98 = vector.broadcast %cst_41 : f32 to vector<32x256xf32>
    %99 = arith.maximumf %97, %98 : vector<32x256xf32>
    %c0_42 = arith.constant 0 : index
    %c0_43 = arith.constant 0 : index
    %100 = vector.load %arg7[%c0_42, %c0_43] : memref<32x1xf32, #tpu.memory_space<vmem>>, vector<32x1xf32>
    %101 = arith.truncf %99 : vector<32x256xf32> to vector<32x256xbf16>
    %c0_44 = arith.constant 0 : index
    %c128_45 = arith.constant 128 : index
    %102 = vector.load %arg15[%c0_44, %c128_45] : memref<64x512xbf16, #tpu.memory_space<vmem>>, vector<32x256xbf16>
    tpu.vector_store %arg15[%c0_44, %c128_45], %101 {strides = array<i32>} : memref<64x512xbf16, #tpu.memory_space<vmem>>, vector<32x256xbf16>,
    %c0_46 = arith.constant 0 : index
    %c94_47 = arith.constant 94 : index
    %103 = vector.load %arg15[%c0_46, %c94_47] : memref<64x512xbf16, #tpu.memory_space<vmem>>, vector<32x256xbf16>
    %cst_48 = arith.constant 0.000000e+00 : f32
    %104 = arith.truncf %cst_48 : f32 to bf16
    %105 = vector.shape_cast %24 : vector<1x256xi1> to vector<1x256xi1>
    %106 = vector.broadcast %105 : vector<1x256xi1> to vector<32x256xi1>
    %107 = vector.broadcast %104 : bf16 to vector<32x256xbf16>
    %108 = arith.select %106, %103, %107 : vector<32x256xi1>, vector<32x256xbf16>
    %c0_49 = arith.constant 0 : index
    %c96_50 = arith.constant 96 : index
    %109 = vector.load %arg15[%c0_49, %c96_50] : memref<64x512xbf16, #tpu.memory_space<vmem>>, vector<32x256xbf16>
    %c0_51 = arith.constant 0 : index
    %c98_52 = arith.constant 98 : index
    %110 = vector.load %arg15[%c0_51, %c98_52] : memref<64x512xbf16, #tpu.memory_space<vmem>>, vector<32x256xbf16>
    %cst_53 = arith.constant 0.000000e+00 : f32
    %111 = arith.truncf %cst_53 : f32 to bf16
    %112 = vector.shape_cast %22 : vector<1x256xi1> to vector<1x256xi1>
    %113 = vector.broadcast %112 : vector<1x256xi1> to vector<32x256xi1>
    %114 = vector.broadcast %111 : bf16 to vector<32x256xbf16>
    %115 = arith.select %113, %110, %114 : vector<32x256xi1>, vector<32x256xbf16>
    %c0_54 = arith.constant 0 : index
    %c126_55 = arith.constant 126 : index
    %116 = vector.load %arg15[%c0_54, %c126_55] : memref<64x512xbf16, #tpu.memory_space<vmem>>, vector<32x256xbf16>
    %cst_56 = arith.constant 0.000000e+00 : f32
    %117 = arith.truncf %cst_56 : f32 to bf16
    %118 = vector.shape_cast %24 : vector<1x256xi1> to vector<1x256xi1>
    %119 = vector.broadcast %118 : vector<1x256xi1> to vector<32x256xi1>
    %120 = vector.broadcast %117 : bf16 to vector<32x256xbf16>
    %121 = arith.select %119, %116, %120 : vector<32x256xi1>, vector<32x256xbf16>
    %c0_57 = arith.constant 0 : index
    %c128_58 = arith.constant 128 : index
    %122 = vector.load %arg15[%c0_57, %c128_58] : memref<64x512xbf16, #tpu.memory_space<vmem>>, vector<32x256xbf16>
    %c0_59 = arith.constant 0 : index
    %c130_60 = arith.constant 130 : index
    %123 = vector.load %arg15[%c0_59, %c130_60] : memref<64x512xbf16, #tpu.memory_space<vmem>>, vector<32x256xbf16>
    %cst_61 = arith.constant 0.000000e+00 : f32
    %124 = arith.truncf %cst_61 : f32 to bf16
    %125 = vector.shape_cast %22 : vector<1x256xi1> to vector<1x256xi1>
    %126 = vector.broadcast %125 : vector<1x256xi1> to vector<32x256xi1>
    %127 = vector.broadcast %124 : bf16 to vector<32x256xbf16>
    %128 = arith.select %126, %123, %127 : vector<32x256xi1>, vector<32x256xbf16>
    %c0_62 = arith.constant 0 : index
    %c158_63 = arith.constant 158 : index
    %129 = vector.load %arg15[%c0_62, %c158_63] : memref<64x512xbf16, #tpu.memory_space<vmem>>, vector<32x256xbf16>
    %cst_64 = arith.constant 0.000000e+00 : f32
    %130 = arith.truncf %cst_64 : f32 to bf16
    %131 = vector.shape_cast %24 : vector<1x256xi1> to vector<1x256xi1>
    %132 = vector.broadcast %131 : vector<1x256xi1> to vector<32x256xi1>
    %133 = vector.broadcast %130 : bf16 to vector<32x256xbf16>
    %134 = arith.select %132, %129, %133 : vector<32x256xi1>, vector<32x256xbf16>
    %c0_65 = arith.constant 0 : index
    %c160_66 = arith.constant 160 : index
    %135 = vector.load %arg15[%c0_65, %c160_66] : memref<64x512xbf16, #tpu.memory_space<vmem>>, vector<32x256xbf16>
    %c0_67 = arith.constant 0 : index
    %c162_68 = arith.constant 162 : index
    %136 = vector.load %arg15[%c0_67, %c162_68] : memref<64x512xbf16, #tpu.memory_space<vmem>>, vector<32x256xbf16>
    %cst_69 = arith.constant 0.000000e+00 : f32
    %137 = arith.truncf %cst_69 : f32 to bf16
    %138 = vector.shape_cast %22 : vector<1x256xi1> to vector<1x256xi1>
    %139 = vector.broadcast %138 : vector<1x256xi1> to vector<32x256xi1>
    %140 = vector.broadcast %137 : bf16 to vector<32x256xbf16>
    %141 = arith.select %139, %136, %140 : vector<32x256xi1>, vector<32x256xbf16>
    %142 = tpu.concatenate %108, %109, %115, %121, %122, %128, %134, %135, %141 in 0 : vector<32x256xbf16>, vector<32x256xbf16>, vector<32x256xbf16>, vector<32x256xbf16>, vector<32x256xbf16>, vector<32x256xbf16>, vector<32x256xbf16>, vector<32x256xbf16>, vector<32x256xbf16> -> vector<288x256xbf16>
    %c0_70 = arith.constant 0 : index
    %c0_71 = arith.constant 0 : index
    %143 = vector.load %arg6[%c0_70, %c0_71] : memref<32x288xbf16, #tpu.memory_space<vmem>>, vector<32x288xbf16>
    %cst_72 = arith.constant dense<0.000000e+00> : vector<32x256xf32>
    %144 = tpu.matmul %143, %142, %cst_72 {dimension_numbers = #tpu.dot_dimension_numbers<[1], [0], [0], [1], [0, 0, 1, 1], [], []>} : vector<32x288xbf16>, vector<288x256xbf16>, vector<32x256xf32> -> vector<32x256xf32>
    %145 = vector.broadcast %100 : vector<32x1xf32> to vector<32x256xf32>
    %146 = arith.addf %144, %145 : vector<32x256xf32>
    %c0_73 = arith.constant 0 : index
    %c0_74 = arith.constant 0 : index
    %147 = vector.load %arg8[%c0_73, %c0_74] : memref<32x1xf32, #tpu.memory_space<vmem>>, vector<32x1xf32>
    %c0_75 = arith.constant 0 : index
    %c0_76 = arith.constant 0 : index
    %148 = vector.load %arg9[%c0_75, %c0_76] : memref<32x1xf32, #tpu.memory_space<vmem>>, vector<32x1xf32>
    %cst_77 = arith.constant dense<0.000000e+00> : vector<32xf32>
    %149 = vector.multi_reduction <add>, %146, %cst_77 [1] : vector<32x256xf32> to vector<32xf32>
    %150 = vector.shape_cast %149 : vector<32xf32> to vector<32x1xf32>
    %cst_78 = arith.constant 3.906250e-03 : f32
    %151 = vector.broadcast %cst_78 : f32 to vector<32x1xf32>
    %152 = arith.mulf %150, %151 : vector<32x1xf32>
    %153 = vector.broadcast %152 : vector<32x1xf32> to vector<32x256xf32>
    %154 = arith.subf %146, %153 : vector<32x256xf32>
    %155 = arith.mulf %154, %154 : vector<32x256xf32>
    %cst_79 = arith.constant dense<0.000000e+00> : vector<32xf32>
    %156 = vector.multi_reduction <add>, %155, %cst_79 [1] : vector<32x256xf32> to vector<32xf32>
    %157 = vector.shape_cast %156 : vector<32xf32> to vector<32x1xf32>
    %cst_80 = arith.constant 3.906250e-03 : f32
    %158 = vector.broadcast %cst_80 : f32 to vector<32x1xf32>
    %159 = arith.mulf %157, %158 : vector<32x1xf32>
    %cst_81 = arith.constant 9.99999974E-6 : f32
    %160 = vector.broadcast %cst_81 : f32 to vector<32x1xf32>
    %161 = arith.addf %159, %160 : vector<32x1xf32>
    %162 = math.rsqrt %161 : vector<32x1xf32>
    %163 = arith.mulf %162, %147 : vector<32x1xf32>
    %164 = vector.broadcast %163 : vector<32x1xf32> to vector<32x256xf32>
    %165 = arith.mulf %154, %164 : vector<32x256xf32>
    %166 = vector.broadcast %148 : vector<32x1xf32> to vector<32x256xf32>
    %167 = arith.addf %165, %166 : vector<32x256xf32>
    %c0_82 = arith.constant 0 : index
    %c0_83 = arith.constant 0 : index
    %168 = vector.load %arg10[%c0_82, %c0_83] : memref<32x64xbf16, #tpu.memory_space<vmem>>, vector<32x64xbf16>
    %cst_84 = arith.constant dense<0.000000e+00> : vector<32x256xf32>
    %169 = tpu.matmul %168, %29, %cst_84 {dimension_numbers = #tpu.dot_dimension_numbers<[1], [0], [0], [1], [0, 0, 1, 1], [], []>} : vector<32x64xbf16>, vector<64x256xbf16>, vector<32x256xf32> -> vector<32x256xf32>
    %c0_85 = arith.constant 0 : index
    %c0_86 = arith.constant 0 : index
    %170 = vector.load %arg11[%c0_85, %c0_86] : memref<32x1xf32, #tpu.memory_space<vmem>>, vector<32x1xf32>
    %c0_87 = arith.constant 0 : index
    %c0_88 = arith.constant 0 : index
    %171 = vector.load %arg12[%c0_87, %c0_88] : memref<32x1xf32, #tpu.memory_space<vmem>>, vector<32x1xf32>
    %cst_89 = arith.constant dense<0.000000e+00> : vector<32xf32>
    %172 = vector.multi_reduction <add>, %169, %cst_89 [1] : vector<32x256xf32> to vector<32xf32>
    %173 = vector.shape_cast %172 : vector<32xf32> to vector<32x1xf32>
    %cst_90 = arith.constant 3.906250e-03 : f32
    %174 = vector.broadcast %cst_90 : f32 to vector<32x1xf32>
    %175 = arith.mulf %173, %174 : vector<32x1xf32>
    %176 = vector.broadcast %175 : vector<32x1xf32> to vector<32x256xf32>
    %177 = arith.subf %169, %176 : vector<32x256xf32>
    %178 = arith.mulf %177, %177 : vector<32x256xf32>
    %cst_91 = arith.constant dense<0.000000e+00> : vector<32xf32>
    %179 = vector.multi_reduction <add>, %178, %cst_91 [1] : vector<32x256xf32> to vector<32xf32>
    %180 = vector.shape_cast %179 : vector<32xf32> to vector<32x1xf32>
    %cst_92 = arith.constant 3.906250e-03 : f32
    %181 = vector.broadcast %cst_92 : f32 to vector<32x1xf32>
    %182 = arith.mulf %180, %181 : vector<32x1xf32>
    %cst_93 = arith.constant 9.99999974E-6 : f32
    %183 = vector.broadcast %cst_93 : f32 to vector<32x1xf32>
    %184 = arith.addf %182, %183 : vector<32x1xf32>
    %185 = math.rsqrt %184 : vector<32x1xf32>
    %186 = arith.mulf %185, %170 : vector<32x1xf32>
    %187 = vector.broadcast %186 : vector<32x1xf32> to vector<32x256xf32>
    %188 = arith.mulf %177, %187 : vector<32x256xf32>
    %189 = vector.broadcast %171 : vector<32x1xf32> to vector<32x256xf32>
    %190 = arith.addf %188, %189 : vector<32x256xf32>
    %191 = arith.addf %167, %190 : vector<32x256xf32>
    %cst_94 = arith.constant 0.000000e+00 : f32
    %192 = vector.broadcast %cst_94 : f32 to vector<32x256xf32>
    %193 = arith.maximumf %191, %192 : vector<32x256xf32>
    %c0_95 = arith.constant 0 : index
    %c0_96 = arith.constant 0 : index
    %194 = vector.load %arg13[%c0_95, %c0_96] : memref<64x32xbf16, #tpu.memory_space<vmem>>, vector<64x32xbf16>
    %195 = arith.truncf %193 : vector<32x256xf32> to vector<32x256xbf16>
    %cst_97 = arith.constant dense<0.000000e+00> : vector<64x256xf32>
    %196 = tpu.matmul %194, %195, %cst_97 {dimension_numbers = #tpu.dot_dimension_numbers<[1], [0], [0], [1], [0, 0, 1, 1], [], []>} : vector<64x32xbf16>, vector<32x256xbf16>, vector<64x256xf32> -> vector<64x256xf32>
    %197 = arith.negf %196 : vector<64x256xf32>
    %198 = math.exp %197 : vector<64x256xf32>
    %cst_98 = arith.constant 1.000000e+00 : f32
    %199 = vector.broadcast %cst_98 : f32 to vector<64x256xf32>
    %200 = arith.addf %199, %198 : vector<64x256xf32>
    %201 = arith.divf %199, %200 : vector<64x256xf32>
    %cst_99 = arith.constant 1.000000e+00 : f32
    %202 = vector.broadcast %cst_99 : f32 to vector<64x256xf32>
    %203 = arith.addf %202, %201 : vector<64x256xf32>
    %204 = arith.mulf %203, %28 : vector<64x256xf32>
    %205 = arith.truncf %204 : vector<64x256xf32> to vector<64x256xbf16>
    %c0_100 = arith.constant 0 : index
    %c0_101 = arith.constant 0 : index
    %206 = vector.load %arg3[%c0_100, %c0_101] : memref<32x1xf32, #tpu.memory_space<vmem>>, vector<32x1xf32>
    %207 = arith.truncf %204 : vector<64x256xf32> to vector<64x256xbf16>
    %c0_102 = arith.constant 0 : index
    %c128_103 = arith.constant 128 : index
    %208 = vector.load %arg15[%c0_102, %c128_103] : memref<64x512xbf16, #tpu.memory_space<vmem>>, vector<64x256xbf16>
    tpu.vector_store %arg15[%c0_102, %c128_103], %207 {strides = array<i32>} : memref<64x512xbf16, #tpu.memory_space<vmem>>, vector<64x256xbf16>,
    %c0_104 = arith.constant 0 : index
    %c94_105 = arith.constant 94 : index
    %209 = vector.load %arg15[%c0_104, %c94_105] : memref<64x512xbf16, #tpu.memory_space<vmem>>, vector<64x256xbf16>
    %cst_106 = arith.constant 0.000000e+00 : f32
    %210 = arith.truncf %cst_106 : f32 to bf16
    %211 = vector.shape_cast %24 : vector<1x256xi1> to vector<1x256xi1>
    %212 = vector.broadcast %211 : vector<1x256xi1> to vector<64x256xi1>
    %213 = vector.broadcast %210 : bf16 to vector<64x256xbf16>
    %214 = arith.select %212, %209, %213 : vector<64x256xi1>, vector<64x256xbf16>
    %c0_107 = arith.constant 0 : index
    %c96_108 = arith.constant 96 : index
    %215 = vector.load %arg15[%c0_107, %c96_108] : memref<64x512xbf16, #tpu.memory_space<vmem>>, vector<64x256xbf16>
    %c0_109 = arith.constant 0 : index
    %c98_110 = arith.constant 98 : index
    %216 = vector.load %arg15[%c0_109, %c98_110] : memref<64x512xbf16, #tpu.memory_space<vmem>>, vector<64x256xbf16>
    %cst_111 = arith.constant 0.000000e+00 : f32
    %217 = arith.truncf %cst_111 : f32 to bf16
    %218 = vector.shape_cast %22 : vector<1x256xi1> to vector<1x256xi1>
    %219 = vector.broadcast %218 : vector<1x256xi1> to vector<64x256xi1>
    %220 = vector.broadcast %217 : bf16 to vector<64x256xbf16>
    %221 = arith.select %219, %216, %220 : vector<64x256xi1>, vector<64x256xbf16>
    %c0_112 = arith.constant 0 : index
    %c126_113 = arith.constant 126 : index
    %222 = vector.load %arg15[%c0_112, %c126_113] : memref<64x512xbf16, #tpu.memory_space<vmem>>, vector<64x256xbf16>
    %cst_114 = arith.constant 0.000000e+00 : f32
    %223 = arith.truncf %cst_114 : f32 to bf16
    %224 = vector.shape_cast %24 : vector<1x256xi1> to vector<1x256xi1>
    %225 = vector.broadcast %224 : vector<1x256xi1> to vector<64x256xi1>
    %226 = vector.broadcast %223 : bf16 to vector<64x256xbf16>
    %227 = arith.select %225, %222, %226 : vector<64x256xi1>, vector<64x256xbf16>
    %c0_115 = arith.constant 0 : index
    %c128_116 = arith.constant 128 : index
    %228 = vector.load %arg15[%c0_115, %c128_116] : memref<64x512xbf16, #tpu.memory_space<vmem>>, vector<64x256xbf16>
    %c0_117 = arith.constant 0 : index
    %c130_118 = arith.constant 130 : index
    %229 = vector.load %arg15[%c0_117, %c130_118] : memref<64x512xbf16, #tpu.memory_space<vmem>>, vector<64x256xbf16>
    %cst_119 = arith.constant 0.000000e+00 : f32
    %230 = arith.truncf %cst_119 : f32 to bf16
    %231 = vector.shape_cast %22 : vector<1x256xi1> to vector<1x256xi1>
    %232 = vector.broadcast %231 : vector<1x256xi1> to vector<64x256xi1>
    %233 = vector.broadcast %230 : bf16 to vector<64x256xbf16>
    %234 = arith.select %232, %229, %233 : vector<64x256xi1>, vector<64x256xbf16>
    %c0_120 = arith.constant 0 : index
    %c158_121 = arith.constant 158 : index
    %235 = vector.load %arg15[%c0_120, %c158_121] : memref<64x512xbf16, #tpu.memory_space<vmem>>, vector<64x256xbf16>
    %cst_122 = arith.constant 0.000000e+00 : f32
    %236 = arith.truncf %cst_122 : f32 to bf16
    %237 = vector.shape_cast %24 : vector<1x256xi1> to vector<1x256xi1>
    %238 = vector.broadcast %237 : vector<1x256xi1> to vector<64x256xi1>
    %239 = vector.broadcast %236 : bf16 to vector<64x256xbf16>
    %240 = arith.select %238, %235, %239 : vector<64x256xi1>, vector<64x256xbf16>
    %c0_123 = arith.constant 0 : index
    %c160_124 = arith.constant 160 : index
    %241 = vector.load %arg15[%c0_123, %c160_124] : memref<64x512xbf16, #tpu.memory_space<vmem>>, vector<64x256xbf16>
    %c0_125 = arith.constant 0 : index
    %c162_126 = arith.constant 162 : index
    %242 = vector.load %arg15[%c0_125, %c162_126] : memref<64x512xbf16, #tpu.memory_space<vmem>>, vector<64x256xbf16>
    %cst_127 = arith.constant 0.000000e+00 : f32
    %243 = arith.truncf %cst_127 : f32 to bf16
    %244 = vector.shape_cast %22 : vector<1x256xi1> to vector<1x256xi1>
    %245 = vector.broadcast %244 : vector<1x256xi1> to vector<64x256xi1>
    %246 = vector.broadcast %243 : bf16 to vector<64x256xbf16>
    %247 = arith.select %245, %242, %246 : vector<64x256xi1>, vector<64x256xbf16>
    %248 = tpu.concatenate %214, %215, %221, %227, %228, %234, %240, %241, %247 in 0 : vector<64x256xbf16>, vector<64x256xbf16>, vector<64x256xbf16>, vector<64x256xbf16>, vector<64x256xbf16>, vector<64x256xbf16>, vector<64x256xbf16>, vector<64x256xbf16>, vector<64x256xbf16> -> vector<576x256xbf16>
    %c0_128 = arith.constant 0 : index
    %c0_129 = arith.constant 0 : index
    %249 = vector.load %arg2[%c0_128, %c0_129] : memref<32x576xbf16, #tpu.memory_space<vmem>>, vector<32x576xbf16>
    %cst_130 = arith.constant dense<0.000000e+00> : vector<32x256xf32>
    %250 = tpu.matmul %249, %248, %cst_130 {dimension_numbers = #tpu.dot_dimension_numbers<[1], [0], [0], [1], [0, 0, 1, 1], [], []>} : vector<32x576xbf16>, vector<576x256xbf16>, vector<32x256xf32> -> vector<32x256xf32>
    %251 = vector.broadcast %206 : vector<32x1xf32> to vector<32x256xf32>
    %252 = arith.addf %250, %251 : vector<32x256xf32>
    %c0_131 = arith.constant 0 : index
    %c0_132 = arith.constant 0 : index
    %253 = vector.load %arg4[%c0_131, %c0_132] : memref<32x1xf32, #tpu.memory_space<vmem>>, vector<32x1xf32>
    %c0_133 = arith.constant 0 : index
    %c0_134 = arith.constant 0 : index
    %254 = vector.load %arg5[%c0_133, %c0_134] : memref<32x1xf32, #tpu.memory_space<vmem>>, vector<32x1xf32>
    %cst_135 = arith.constant dense<0.000000e+00> : vector<32xf32>
    %255 = vector.multi_reduction <add>, %252, %cst_135 [1] : vector<32x256xf32> to vector<32xf32>
    %256 = vector.shape_cast %255 : vector<32xf32> to vector<32x1xf32>
    %cst_136 = arith.constant 3.906250e-03 : f32
    %257 = vector.broadcast %cst_136 : f32 to vector<32x1xf32>
    %258 = arith.mulf %256, %257 : vector<32x1xf32>
    %259 = vector.broadcast %258 : vector<32x1xf32> to vector<32x256xf32>
    %260 = arith.subf %252, %259 : vector<32x256xf32>
    %261 = arith.mulf %260, %260 : vector<32x256xf32>
    %cst_137 = arith.constant dense<0.000000e+00> : vector<32xf32>
    %262 = vector.multi_reduction <add>, %261, %cst_137 [1] : vector<32x256xf32> to vector<32xf32>
    %263 = vector.shape_cast %262 : vector<32xf32> to vector<32x1xf32>
    %cst_138 = arith.constant 3.906250e-03 : f32
    %264 = vector.broadcast %cst_138 : f32 to vector<32x1xf32>
    %265 = arith.mulf %263, %264 : vector<32x1xf32>
    %cst_139 = arith.constant 9.99999974E-6 : f32
    %266 = vector.broadcast %cst_139 : f32 to vector<32x1xf32>
    %267 = arith.addf %265, %266 : vector<32x1xf32>
    %268 = math.rsqrt %267 : vector<32x1xf32>
    %269 = arith.mulf %268, %253 : vector<32x1xf32>
    %270 = vector.broadcast %269 : vector<32x1xf32> to vector<32x256xf32>
    %271 = arith.mulf %260, %270 : vector<32x256xf32>
    %272 = vector.broadcast %254 : vector<32x1xf32> to vector<32x256xf32>
    %273 = arith.addf %271, %272 : vector<32x256xf32>
    %cst_140 = arith.constant 0.000000e+00 : f32
    %274 = vector.broadcast %cst_140 : f32 to vector<32x256xf32>
    %275 = arith.maximumf %273, %274 : vector<32x256xf32>
    %c0_141 = arith.constant 0 : index
    %c0_142 = arith.constant 0 : index
    %276 = vector.load %arg7[%c0_141, %c0_142] : memref<32x1xf32, #tpu.memory_space<vmem>>, vector<32x1xf32>
    %277 = arith.truncf %275 : vector<32x256xf32> to vector<32x256xbf16>
    %c0_143 = arith.constant 0 : index
    %c128_144 = arith.constant 128 : index
    %278 = vector.load %arg15[%c0_143, %c128_144] : memref<64x512xbf16, #tpu.memory_space<vmem>>, vector<32x256xbf16>
    tpu.vector_store %arg15[%c0_143, %c128_144], %277 {strides = array<i32>} : memref<64x512xbf16, #tpu.memory_space<vmem>>, vector<32x256xbf16>,
    %c0_145 = arith.constant 0 : index
    %c94_146 = arith.constant 94 : index
    %279 = vector.load %arg15[%c0_145, %c94_146] : memref<64x512xbf16, #tpu.memory_space<vmem>>, vector<32x256xbf16>
    %cst_147 = arith.constant 0.000000e+00 : f32
    %280 = arith.truncf %cst_147 : f32 to bf16
    %281 = vector.shape_cast %24 : vector<1x256xi1> to vector<1x256xi1>
    %282 = vector.broadcast %281 : vector<1x256xi1> to vector<32x256xi1>
    %283 = vector.broadcast %280 : bf16 to vector<32x256xbf16>
    %284 = arith.select %282, %279, %283 : vector<32x256xi1>, vector<32x256xbf16>
    %c0_148 = arith.constant 0 : index
    %c96_149 = arith.constant 96 : index
    %285 = vector.load %arg15[%c0_148, %c96_149] : memref<64x512xbf16, #tpu.memory_space<vmem>>, vector<32x256xbf16>
    %c0_150 = arith.constant 0 : index
    %c98_151 = arith.constant 98 : index
    %286 = vector.load %arg15[%c0_150, %c98_151] : memref<64x512xbf16, #tpu.memory_space<vmem>>, vector<32x256xbf16>
    %cst_152 = arith.constant 0.000000e+00 : f32
    %287 = arith.truncf %cst_152 : f32 to bf16
    %288 = vector.shape_cast %22 : vector<1x256xi1> to vector<1x256xi1>
    %289 = vector.broadcast %288 : vector<1x256xi1> to vector<32x256xi1>
    %290 = vector.broadcast %287 : bf16 to vector<32x256xbf16>
    %291 = arith.select %289, %286, %290 : vector<32x256xi1>, vector<32x256xbf16>
    %c0_153 = arith.constant 0 : index
    %c126_154 = arith.constant 126 : index
    %292 = vector.load %arg15[%c0_153, %c126_154] : memref<64x512xbf16, #tpu.memory_space<vmem>>, vector<32x256xbf16>
    %cst_155 = arith.constant 0.000000e+00 : f32
    %293 = arith.truncf %cst_155 : f32 to bf16
    %294 = vector.shape_cast %24 : vector<1x256xi1> to vector<1x256xi1>
    %295 = vector.broadcast %294 : vector<1x256xi1> to vector<32x256xi1>
    %296 = vector.broadcast %293 : bf16 to vector<32x256xbf16>
    %297 = arith.select %295, %292, %296 : vector<32x256xi1>, vector<32x256xbf16>
    %c0_156 = arith.constant 0 : index
    %c128_157 = arith.constant 128 : index
    %298 = vector.load %arg15[%c0_156, %c128_157] : memref<64x512xbf16, #tpu.memory_space<vmem>>, vector<32x256xbf16>
    %c0_158 = arith.constant 0 : index
    %c130_159 = arith.constant 130 : index
    %299 = vector.load %arg15[%c0_158, %c130_159] : memref<64x512xbf16, #tpu.memory_space<vmem>>, vector<32x256xbf16>
    %cst_160 = arith.constant 0.000000e+00 : f32
    %300 = arith.truncf %cst_160 : f32 to bf16
    %301 = vector.shape_cast %22 : vector<1x256xi1> to vector<1x256xi1>
    %302 = vector.broadcast %301 : vector<1x256xi1> to vector<32x256xi1>
    %303 = vector.broadcast %300 : bf16 to vector<32x256xbf16>
    %304 = arith.select %302, %299, %303 : vector<32x256xi1>, vector<32x256xbf16>
    %c0_161 = arith.constant 0 : index
    %c158_162 = arith.constant 158 : index
    %305 = vector.load %arg15[%c0_161, %c158_162] : memref<64x512xbf16, #tpu.memory_space<vmem>>, vector<32x256xbf16>
    %cst_163 = arith.constant 0.000000e+00 : f32
    %306 = arith.truncf %cst_163 : f32 to bf16
    %307 = vector.shape_cast %24 : vector<1x256xi1> to vector<1x256xi1>
    %308 = vector.broadcast %307 : vector<1x256xi1> to vector<32x256xi1>
    %309 = vector.broadcast %306 : bf16 to vector<32x256xbf16>
    %310 = arith.select %308, %305, %309 : vector<32x256xi1>, vector<32x256xbf16>
    %c0_164 = arith.constant 0 : index
    %c160_165 = arith.constant 160 : index
    %311 = vector.load %arg15[%c0_164, %c160_165] : memref<64x512xbf16, #tpu.memory_space<vmem>>, vector<32x256xbf16>
    %c0_166 = arith.constant 0 : index
    %c162_167 = arith.constant 162 : index
    %312 = vector.load %arg15[%c0_166, %c162_167] : memref<64x512xbf16, #tpu.memory_space<vmem>>, vector<32x256xbf16>
    %cst_168 = arith.constant 0.000000e+00 : f32
    %313 = arith.truncf %cst_168 : f32 to bf16
    %314 = vector.shape_cast %22 : vector<1x256xi1> to vector<1x256xi1>
    %315 = vector.broadcast %314 : vector<1x256xi1> to vector<32x256xi1>
    %316 = vector.broadcast %313 : bf16 to vector<32x256xbf16>
    %317 = arith.select %315, %312, %316 : vector<32x256xi1>, vector<32x256xbf16>
    %318 = tpu.concatenate %284, %285, %291, %297, %298, %304, %310, %311, %317 in 0 : vector<32x256xbf16>, vector<32x256xbf16>, vector<32x256xbf16>, vector<32x256xbf16>, vector<32x256xbf16>, vector<32x256xbf16>, vector<32x256xbf16>, vector<32x256xbf16>, vector<32x256xbf16> -> vector<288x256xbf16>
    %c0_169 = arith.constant 0 : index
    %c0_170 = arith.constant 0 : index
    %319 = vector.load %arg6[%c0_169, %c0_170] : memref<32x288xbf16, #tpu.memory_space<vmem>>, vector<32x288xbf16>
    %cst_171 = arith.constant dense<0.000000e+00> : vector<32x256xf32>
    %320 = tpu.matmul %319, %318, %cst_171 {dimension_numbers = #tpu.dot_dimension_numbers<[1], [0], [0], [1], [0, 0, 1, 1], [], []>} : vector<32x288xbf16>, vector<288x256xbf16>, vector<32x256xf32> -> vector<32x256xf32>
    %321 = vector.broadcast %276 : vector<32x1xf32> to vector<32x256xf32>
    %322 = arith.addf %320, %321 : vector<32x256xf32>
    %c0_172 = arith.constant 0 : index
    %c0_173 = arith.constant 0 : index
    %323 = vector.load %arg8[%c0_172, %c0_173] : memref<32x1xf32, #tpu.memory_space<vmem>>, vector<32x1xf32>
    %c0_174 = arith.constant 0 : index
    %c0_175 = arith.constant 0 : index
    %324 = vector.load %arg9[%c0_174, %c0_175] : memref<32x1xf32, #tpu.memory_space<vmem>>, vector<32x1xf32>
    %cst_176 = arith.constant dense<0.000000e+00> : vector<32xf32>
    %325 = vector.multi_reduction <add>, %322, %cst_176 [1] : vector<32x256xf32> to vector<32xf32>
    %326 = vector.shape_cast %325 : vector<32xf32> to vector<32x1xf32>
    %cst_177 = arith.constant 3.906250e-03 : f32
    %327 = vector.broadcast %cst_177 : f32 to vector<32x1xf32>
    %328 = arith.mulf %326, %327 : vector<32x1xf32>
    %329 = vector.broadcast %328 : vector<32x1xf32> to vector<32x256xf32>
    %330 = arith.subf %322, %329 : vector<32x256xf32>
    %331 = arith.mulf %330, %330 : vector<32x256xf32>
    %cst_178 = arith.constant dense<0.000000e+00> : vector<32xf32>
    %332 = vector.multi_reduction <add>, %331, %cst_178 [1] : vector<32x256xf32> to vector<32xf32>
    %333 = vector.shape_cast %332 : vector<32xf32> to vector<32x1xf32>
    %cst_179 = arith.constant 3.906250e-03 : f32
    %334 = vector.broadcast %cst_179 : f32 to vector<32x1xf32>
    %335 = arith.mulf %333, %334 : vector<32x1xf32>
    %cst_180 = arith.constant 9.99999974E-6 : f32
    %336 = vector.broadcast %cst_180 : f32 to vector<32x1xf32>
    %337 = arith.addf %335, %336 : vector<32x1xf32>
    %338 = math.rsqrt %337 : vector<32x1xf32>
    %339 = arith.mulf %338, %323 : vector<32x1xf32>
    %340 = vector.broadcast %339 : vector<32x1xf32> to vector<32x256xf32>
    %341 = arith.mulf %330, %340 : vector<32x256xf32>
    %342 = vector.broadcast %324 : vector<32x1xf32> to vector<32x256xf32>
    %343 = arith.addf %341, %342 : vector<32x256xf32>
    %c0_181 = arith.constant 0 : index
    %c0_182 = arith.constant 0 : index
    %344 = vector.load %arg10[%c0_181, %c0_182] : memref<32x64xbf16, #tpu.memory_space<vmem>>, vector<32x64xbf16>
    %cst_183 = arith.constant dense<0.000000e+00> : vector<32x256xf32>
    %345 = tpu.matmul %344, %205, %cst_183 {dimension_numbers = #tpu.dot_dimension_numbers<[1], [0], [0], [1], [0, 0, 1, 1], [], []>} : vector<32x64xbf16>, vector<64x256xbf16>, vector<32x256xf32> -> vector<32x256xf32>
    %c0_184 = arith.constant 0 : index
    %c0_185 = arith.constant 0 : index
    %346 = vector.load %arg11[%c0_184, %c0_185] : memref<32x1xf32, #tpu.memory_space<vmem>>, vector<32x1xf32>
    %c0_186 = arith.constant 0 : index
    %c0_187 = arith.constant 0 : index
    %347 = vector.load %arg12[%c0_186, %c0_187] : memref<32x1xf32, #tpu.memory_space<vmem>>, vector<32x1xf32>
    %cst_188 = arith.constant dense<0.000000e+00> : vector<32xf32>
    %348 = vector.multi_reduction <add>, %345, %cst_188 [1] : vector<32x256xf32> to vector<32xf32>
    %349 = vector.shape_cast %348 : vector<32xf32> to vector<32x1xf32>
    %cst_189 = arith.constant 3.906250e-03 : f32
    %350 = vector.broadcast %cst_189 : f32 to vector<32x1xf32>
    %351 = arith.mulf %349, %350 : vector<32x1xf32>
    %352 = vector.broadcast %351 : vector<32x1xf32> to vector<32x256xf32>
    %353 = arith.subf %345, %352 : vector<32x256xf32>
    %354 = arith.mulf %353, %353 : vector<32x256xf32>
    %cst_190 = arith.constant dense<0.000000e+00> : vector<32xf32>
    %355 = vector.multi_reduction <add>, %354, %cst_190 [1] : vector<32x256xf32> to vector<32xf32>
    %356 = vector.shape_cast %355 : vector<32xf32> to vector<32x1xf32>
    %cst_191 = arith.constant 3.906250e-03 : f32
    %357 = vector.broadcast %cst_191 : f32 to vector<32x1xf32>
    %358 = arith.mulf %356, %357 : vector<32x1xf32>
    %cst_192 = arith.constant 9.99999974E-6 : f32
    %359 = vector.broadcast %cst_192 : f32 to vector<32x1xf32>
    %360 = arith.addf %358, %359 : vector<32x1xf32>
    %361 = math.rsqrt %360 : vector<32x1xf32>
    %362 = arith.mulf %361, %346 : vector<32x1xf32>
    %363 = vector.broadcast %362 : vector<32x1xf32> to vector<32x256xf32>
    %364 = arith.mulf %353, %363 : vector<32x256xf32>
    %365 = vector.broadcast %347 : vector<32x1xf32> to vector<32x256xf32>
    %366 = arith.addf %364, %365 : vector<32x256xf32>
    %367 = arith.addf %343, %366 : vector<32x256xf32>
    %cst_193 = arith.constant 0.000000e+00 : f32
    %368 = vector.broadcast %cst_193 : f32 to vector<32x256xf32>
    %369 = arith.maximumf %367, %368 : vector<32x256xf32>
    %c0_194 = arith.constant 0 : index
    %c0_195 = arith.constant 0 : index
    %c0_196 = arith.constant 0 : index
    %370 = vector.load %arg14[%c0_194, %c0_195, %c0_196] : memref<1x32x256xf32, #tpu.memory_space<vmem>>, vector<1x32x256xf32>
    %371 = vector.shape_cast %370 : vector<1x32x256xf32> to vector<32x256xf32>
    %372 = vector.shape_cast %369 : vector<32x256xf32> to vector<1x32x256xf32>
    tpu.vector_store %arg14[%c0_194, %c0_195, %c0_196], %372 {strides = array<i32>} : memref<1x32x256xf32, #tpu.memory_space<vmem>>, vector<1x32x256xf32>,
    return
  }
  func.func @transform_0(%arg0: i32) -> (i32, i32, i32) {
    %c0_i32 = arith.constant 0 : i32
    %c0_i32_0 = arith.constant 0 : i32
    %c0_i32_1 = arith.constant 0 : i32
    return %arg0, %c0_i32, %c0_i32_0 : i32, i32, i32
  }
  func.func @transform_1(%arg0: i32) -> (i32, i32) {
    %c0_i32 = arith.constant 0 : i32
    %c0_i32_0 = arith.constant 0 : i32
    %c0_i32_1 = arith.constant 0 : i32
    return %c0_i32, %c0_i32_0 : i32, i32
  }
  func.func @transform_2(%arg0: i32) -> (i32, i32) {
    %c0_i32 = arith.constant 0 : i32
    %c0_i32_0 = arith.constant 0 : i32
    %c0_i32_1 = arith.constant 0 : i32
    return %c0_i32, %c0_i32_0 : i32, i32
  }
  func.func @transform_3(%arg0: i32) -> (i32, i32) {
    %c0_i32 = arith.constant 0 : i32
    %c0_i32_0 = arith.constant 0 : i32
    %c0_i32_1 = arith.constant 0 : i32
    return %c0_i32, %c0_i32_0 : i32, i32
  }
  func.func @transform_4(%arg0: i32) -> (i32, i32) {
    %c0_i32 = arith.constant 0 : i32
    %c0_i32_0 = arith.constant 0 : i32
    %c0_i32_1 = arith.constant 0 : i32
    return %c0_i32, %c0_i32_0 : i32, i32
  }
  func.func @transform_5(%arg0: i32) -> (i32, i32) {
    %c0_i32 = arith.constant 0 : i32
    %c0_i32_0 = arith.constant 0 : i32
    %c0_i32_1 = arith.constant 0 : i32
    return %c0_i32, %c0_i32_0 : i32, i32
  }
  func.func @transform_6(%arg0: i32) -> (i32, i32) {
    %c0_i32 = arith.constant 0 : i32
    %c0_i32_0 = arith.constant 0 : i32
    %c0_i32_1 = arith.constant 0 : i32
    return %c0_i32, %c0_i32_0 : i32, i32
  }
  func.func @transform_7(%arg0: i32) -> (i32, i32) {
    %c0_i32 = arith.constant 0 : i32
    %c0_i32_0 = arith.constant 0 : i32
    %c0_i32_1 = arith.constant 0 : i32
    return %c0_i32, %c0_i32_0 : i32, i32
  }
  func.func @transform_8(%arg0: i32) -> (i32, i32) {
    %c0_i32 = arith.constant 0 : i32
    %c0_i32_0 = arith.constant 0 : i32
    %c0_i32_1 = arith.constant 0 : i32
    return %c0_i32, %c0_i32_0 : i32, i32
  }
  func.func @transform_9(%arg0: i32) -> (i32, i32) {
    %c0_i32 = arith.constant 0 : i32
    %c0_i32_0 = arith.constant 0 : i32
    %c0_i32_1 = arith.constant 0 : i32
    return %c0_i32, %c0_i32_0 : i32, i32
  }
  func.func @transform_10(%arg0: i32) -> (i32, i32) {
    %c0_i32 = arith.constant 0 : i32
    %c0_i32_0 = arith.constant 0 : i32
    %c0_i32_1 = arith.constant 0 : i32
    return %c0_i32, %c0_i32_0 : i32, i32
  }
  func.func @transform_11(%arg0: i32) -> (i32, i32) {
    %c0_i32 = arith.constant 0 : i32
    %c0_i32_0 = arith.constant 0 : i32
    %c0_i32_1 = arith.constant 0 : i32
    return %c0_i32, %c0_i32_0 : i32, i32
  }
  func.func @transform_12(%arg0: i32) -> (i32, i32) {
    %c0_i32 = arith.constant 0 : i32
    %c0_i32_0 = arith.constant 0 : i32
    %c0_i32_1 = arith.constant 0 : i32
    return %c0_i32, %c0_i32_0 : i32, i32
  }
  func.func @transform_13(%arg0: i32) -> (i32, i32, i32) {
    %c0_i32 = arith.constant 0 : i32
    %c0_i32_0 = arith.constant 0 : i32
    %c0_i32_1 = arith.constant 0 : i32
    return %arg0, %c0_i32, %c0_i32_0 : i32, i32, i32
  }
}

</mosaic_0001>

<llo_original>
// kernel: tile.18
$region0: #{tile.18}
  #allocation0 [shape = 's32[1]{0}', space=sflag, size = 0x4, scoped, tag = 'scoped memory for tile.18']
  %s0 = inlined_call_operand.vmem [shape: f32[32], index: 0, kind: input, shape index: {}]
  %s1 = inlined_call_operand.vmem [shape: f32[4,32], index: 1, kind: output, shape index: {}]
  // Predicated region
  $region2: #{tile.18} parent=0 // pred_check
    _
  $region3: #{tile.18} parent=0 // pred_check_branch
    %3 = sbr.rel (0) target = $region5
  $region4: #{tile.18} parent=0 // pred_region
    _
  $region5: #{tile.18} parent=0 // pred_fallthru
    _
  %v4 = vld [vmem:[%s0] ss:$0 sm:$0xff]
  %5 = vst [vmem:[%s1] sm:$0xf] %v4

// kernel: tile.0
$region0: #{tile.0}
  %s0 = inlined_call_operand.vmem [shape: f32[4,32], index: 0, kind: input, shape index: {}]
  %s1 = inlined_call_operand.vmem [shape: f32[128,1], index: 1, kind: output, shape index: {}]
  $region1: #{tile.0} parent=0
    #allocation0 [shape = 'u8[4096]{0}', space=vmem, size = 0x1000, scoped, tag = 'scoped mem for input reshape']
    %s3 = ssub.s32 16, 1
    %v4 = vld [vmem:[%s0] sm:%s3]
    %5 = vst [vmem:[#allocation0] sm:%s3] %v4
    %v6 = vld [vmem:[#allocation0] sm:$0xf]
    %vm7 = vcmask 7168
    %8 = vst.msk [vmem:[%s1] sm:$0x1] %vm7, %v6
    %s9 = scalar_lea.vmem %s1, 31
    %10 = vst.msk [vmem:[%s9] sm:$0x2] %vm7, %v6
    %s11 = scalar_lea.vmem %s1, 62
    %12 = vst.msk [vmem:[%s11] sm:$0x4] %vm7, %v6
    %s13 = scalar_lea.vmem %s1, 93
    %14 = vst.msk [vmem:[%s13] sm:$0x8] %vm7, %v6
    %v15 = vld [vmem:[#allocation0] sm:$0xf]
    %16 = vrot.lane.b32.xlu0 %v15, 127
    %v17 = vpop.permute.xlu0 %16
    %vm18 = vcmask 7168
    %s19 = scalar_lea.vmem %s1, 1
    %20 = vst.msk [vmem:[%s19] sm:$0x1] %vm18, %v17
    %s21 = scalar_lea.vmem %s1, 32
    %22 = vst.msk [vmem:[%s21] sm:$0x2] %vm18, %v17
    %s23 = scalar_lea.vmem %s1, 63
    %24 = vst.msk [vmem:[%s23] sm:$0x4] %vm18, %v17
    %s25 = scalar_lea.vmem %s1, 94
    %26 = vst.msk [vmem:[%s25] sm:$0x8] %vm18, %v17
    %v27 = vld [vmem:[#allocation0] sm:$0xf]
    %28 = vrot.lane.b32.xlu0 %v27, 126
    %v29 = vpop.permute.xlu0 %28
    %vm30 = vcmask 7168
    %s31 = scalar_lea.vmem %s1, 2
    %32 = vst.msk [vmem:[%s31] sm:$0x1] %vm30, %v29
    %s33 = scalar_lea.vmem %s1, 33
    %34 = vst.msk [vmem:[%s33] sm:$0x2] %vm30, %v29
    %s35 = scalar_lea.vmem %s1, 64
    %36 = vst.msk [vmem:[%s35] sm:$0x4] %vm30, %v29
    %s37 = scalar_lea.vmem %s1, 95
    %38 = vst.msk [vmem:[%s37] sm:$0x8] %vm30, %v29
    %v39 = vld [vmem:[#allocation0] sm:$0xf]
    %40 = vrot.lane.b32.xlu0 %v39, 125
    %v41 = vpop.permute.xlu0 %40
    %vm42 = vcmask 7168
    %s43 = scalar_lea.vmem %s1, 3
    %44 = vst.msk [vmem:[%s43] sm:$0x1] %vm42, %v41
    %s45 = scalar_lea.vmem %s1, 34
    %46 = vst.msk [vmem:[%s45] sm:$0x2] %vm42, %v41
    %s47 = scalar_lea.vmem %s1, 65
    %48 = vst.msk [vmem:[%s47] sm:$0x4] %vm42, %v41
    %s49 = scalar_lea.vmem %s1, 96
    %50 = vst.msk [vmem:[%s49] sm:$0x8] %vm42, %v41
    %v51 = vld [vmem:[#allocation0] sm:$0xf]
    %52 = vrot.lane.b32.xlu0 %v51, 124
    %v53 = vpop.permute.xlu0 %52
    %vm54 = vcmask 7168
    %s55 = scalar_lea.vmem %s1, 4
    %56 = vst.msk [vmem:[%s55] sm:$0x1] %vm54, %v53
    %s57 = scalar_lea.vmem %s1, 35
    %58 = vst.msk [vmem:[%s57] sm:$0x2] %vm54, %v53
    %s59 = scalar_lea.vmem %s1, 66
    %60 = vst.msk [vmem:[%s59] sm:$0x4] %vm54, %v53
    %s61 = scalar_lea.vmem %s1, 97
    %62 = vst.msk [vmem:[%s61] sm:$0x8] %vm54, %v53
    %v63 = vld [vmem:[#allocation0] sm:$0xf]
    %64 = vrot.lane.b32.xlu0 %v63, 123
    %v65 = vpop.permute.xlu0 %64
    %vm66 = vcmask 7168
    %s67 = scalar_lea.vmem %s1, 5
    %68 = vst.msk [vmem:[%s67] sm:$0x1] %vm66, %v65
    %s69 = scalar_lea.vmem %s1, 36
    %70 = vst.msk [vmem:[%s69] sm:$0x2] %vm66, %v65
    %s71 = scalar_lea.vmem %s1, 67
    %72 = vst.msk [vmem:[%s71] sm:$0x4] %vm66, %v65
    %s73 = scalar_lea.vmem %s1, 98
    %74 = vst.msk [vmem:[%s73] sm:$0x8] %vm66, %v65
    %v75 = vld [vmem:[#allocation0] sm:$0xf]
    %76 = vrot.lane.b32.xlu0 %v75, 122
    %v77 = vpop.permute.xlu0 %76
    %vm78 = vcmask 7168
    %s79 = scalar_lea.vmem %s1, 6
    %80 = vst.msk [vmem:[%s79] sm:$0x1] %vm78, %v77
    %s81 = scalar_lea.vmem %s1, 37
    %82 = vst.msk [vmem:[%s81] sm:$0x2] %vm78, %v77
    %s83 = scalar_lea.vmem %s1, 68
    %84 = vst.msk [vmem:[%s83] sm:$0x4] %vm78, %v77
    %s85 = scalar_lea.vmem %s1, 99
    %86 = vst.msk [vmem:[%s85] sm:$0x8] %vm78, %v77
    %v87 = vld [vmem:[#allocation0] sm:$0xf]
    %88 = vrot.lane.b32.xlu0 %v87, 121
    %v89 = vpop.permute.xlu0 %88
    %vm90 = vcmask 7168
    %s91 = scalar_lea.vmem %s1, 7
    %92 = vst.msk [vmem:[%s91] sm:$0x1] %vm90, %v89
    %s93 = scalar_lea.vmem %s1, 38
    %94 = vst.msk [vmem:[%s93] sm:$0x2] %vm90, %v89
    %s95 = scalar_lea.vmem %s1, 69
    %96 = vst.msk [vmem:[%s95] sm:$0x4] %vm90, %v89
    %s97 = scalar_lea.vmem %s1, 100
    %98 = vst.msk [vmem:[%s97] sm:$0x8] %vm90, %v89
    %v99 = vld [vmem:[#allocation0] sm:$0xf]
    %100 = vrot.lane.b32.xlu0 %v99, 120
    %v101 = vpop.permute.xlu0 %100
    %vm102 = vcmask 7168
    %s103 = scalar_lea.vmem %s1, 8
    %104 = vst.msk [vmem:[%s103] sm:$0x1] %vm102, %v101
    %s105 = scalar_lea.vmem %s1, 39
    %106 = vst.msk [vmem:[%s105] sm:$0x2] %vm102, %v101
    %s107 = scalar_lea.vmem %s1, 70
    %108 = vst.msk [vmem:[%s107] sm:$0x4] %vm102, %v101
    %s109 = scalar_lea.vmem %s1, 101
    %110 = vst.msk [vmem:[%s109] sm:$0x8] %vm102, %v101
    %v111 = vld [vmem:[#allocation0] sm:$0xf]
    %112 = vrot.lane.b32.xlu0 %v111, 119
    %v113 = vpop.permute.xlu0 %112
    %vm114 = vcmask 7168
    %s115 = scalar_lea.vmem %s1, 9
    %116 = vst.msk [vmem:[%s115] sm:$0x1] %vm114, %v113
    %s117 = scalar_lea.vmem %s1, 40
    %118 = vst.msk [vmem:[%s117] sm:$0x2] %vm114, %v113
    %s119 = scalar_lea.vmem %s1, 71
    %120 = vst.msk [vmem:[%s119] sm:$0x4] %vm114, %v113
    %s121 = scalar_lea.vmem %s1, 102
    %122 = vst.msk [vmem:[%s121] sm:$0x8] %vm114, %v113
    %v123 = vld [vmem:[#allocation0] sm:$0xf]
    %124 = vrot.lane.b32.xlu0 %v123, 118
    %v125 = vpop.permute.xlu0 %124
    %vm126 = vcmask 7168
    %s127 = scalar_lea.vmem %s1, 10
    %128 = vst.msk [vmem:[%s127] sm:$0x1] %vm126, %v125
    %s129 = scalar_lea.vmem %s1, 41
    %130 = vst.msk [vmem:[%s129] sm:$0x2] %vm126, %v125
    %s131 = scalar_lea.vmem %s1, 72
    %132 = vst.msk [vmem:[%s131] sm:$0x4] %vm126, %v125
    %s133 = scalar_lea.vmem %s1, 103
    %134 = vst.msk [vmem:[%s133] sm:$0x8] %vm126, %v125
    %v135 = vld [vmem:[#allocation0] sm:$0xf]
    %136 = vrot.lane.b32.xlu0 %v135, 117
    %v137 = vpop.permute.xlu0 %136
    %vm138 = vcmask 7168
    %s139 = scalar_lea.vmem %s1, 11
    %140 = vst.msk [vmem:[%s139] sm:$0x1] %vm138, %v137
    %s141 = scalar_lea.vmem %s1, 42
    %142 = vst.msk [vmem:[%s141] sm:$0x2] %vm138, %v137
    %s143 = scalar_lea.vmem %s1, 73
    %144 = vst.msk [vmem:[%s143] sm:$0x4] %vm138, %v137
    %s145 = scalar_lea.vmem %s1, 104
    %146 = vst.msk [vmem:[%s145] sm:$0x8] %vm138, %v137
    %v147 = vld [vmem:[#allocation0] sm:$0xf]
    %148 = vrot.lane.b32.xlu0 %v147, 116
    %v149 = vpop.permute.xlu0 %148
    %vm150 = vcmask 7168
    %s151 = scalar_lea.vmem %s1, 12
    %152 = vst.msk [vmem:[%s151] sm:$0x1] %vm150, %v149
    %s153 = scalar_lea.vmem %s1, 43
    %154 = vst.msk [vmem:[%s153] sm:$0x2] %vm150, %v149
    %s155 = scalar_lea.vmem %s1, 74
    %156 = vst.msk [vmem:[%s155] sm:$0x4] %vm150, %v149
    %s157 = scalar_lea.vmem %s1, 105
    %158 = vst.msk [vmem:[%s157] sm:$0x8] %vm150, %v149
    %v159 = vld [vmem:[#allocation0] sm:$0xf]
    %160 = vrot.lane.b32.xlu0 %v159, 115
    %v161 = vpop.permute.xlu0 %160
    %vm162 = vcmask 7168
    %s163 = scalar_lea.vmem %s1, 13
    %164 = vst.msk [vmem:[%s163] sm:$0x1] %vm162, %v161
    %s165 = scalar_lea.vmem %s1, 44
    %166 = vst.msk [vmem:[%s165] sm:$0x2] %vm162, %v161
    %s167 = scalar_lea.vmem %s1, 75
    %168 = vst.msk [vmem:[%s167] sm:$0x4] %vm162, %v161
    %s169 = scalar_lea.vmem %s1, 106
    %170 = vst.msk [vmem:[%s169] sm:$0x8] %vm162, %v161
    %v171 = vld [vmem:[#allocation0] sm:$0xf]
    %172 = vrot.lane.b32.xlu0 %v171, 114
    %v173 = vpop.permute.xlu0 %172
    %vm174 = vcmask 7168
    %s175 = scalar_lea.vmem %s1, 14
    %176 = vst.msk [vmem:[%s175] sm:$0x1] %vm174, %v173
    %s177 = scalar_lea.vmem %s1, 45
    %178 = vst.msk [vmem:[%s177] sm:$0x2] %vm174, %v173
    %s179 = scalar_lea.vmem %s1, 76
    %180 = vst.msk [vmem:[%s179] sm:$0x4] %vm174, %v173
    %s181 = scalar_lea.vmem %s1, 107
    %182 = vst.msk [vmem:[%s181] sm:$0x8] %vm174, %v173
    %v183 = vld [vmem:[#allocation0] sm:$0xf]
    %184 = vrot.lane.b32.xlu0 %v183, 113
    %v185 = vpop.permute.xlu0 %184
    %vm186 = vcmask 7168
    %s187 = scalar_lea.vmem %s1, 15
    %188 = vst.msk [vmem:[%s187] sm:$0x1] %vm186, %v185
    %s189 = scalar_lea.vmem %s1, 46
    %190 = vst.msk [vmem:[%s189] sm:$0x2] %vm186, %v185
    %s191 = scalar_lea.vmem %s1, 77
    %192 = vst.msk [vmem:[%s191] sm:$0x4] %vm186, %v185
    %s193 = scalar_lea.vmem %s1, 108
    %194 = vst.msk [vmem:[%s193] sm:$0x8] %vm186, %v185
    %v195 = vld [vmem:[#allocation0] sm:$0xf]
    %196 = vrot.lane.b32.xlu0 %v195, 112
    %v197 = vpop.permute.xlu0 %196
    %vm198 = vcmask 7168
    %s199 = scalar_lea.vmem %s1, 16
    %200 = vst.msk [vmem:[%s199] sm:$0x1] %vm198, %v197
    %s201 = scalar_lea.vmem %s1, 47
    %202 = vst.msk [vmem:[%s201] sm:$0x2] %vm198, %v197
    %s203 = scalar_lea.vmem %s1, 78
    %204 = vst.msk [vmem:[%s203] sm:$0x4] %vm198, %v197
    %s205 = scalar_lea.vmem %s1, 109
    %206 = vst.msk [vmem:[%s205] sm:$0x8] %vm198, %v197
    %v207 = vld [vmem:[#allocation0] sm:$0xf]
    %208 = vrot.lane.b32.xlu0 %v207, 111
    %v209 = vpop.permute.xlu0 %208
    %vm210 = vcmask 7168
    %s211 = scalar_lea.vmem %s1, 17
    %212 = vst.msk [vmem:[%s211] sm:$0x1] %vm210, %v209
    %s213 = scalar_lea.vmem %s1, 48
    %214 = vst.msk [vmem:[%s213] sm:$0x2] %vm210, %v209
    %s215 = scalar_lea.vmem %s1, 79
    %216 = vst.msk [vmem:[%s215] sm:$0x4] %vm210, %v209
    %s217 = scalar_lea.vmem %s1, 110
    %218 = vst.msk [vmem:[%s217] sm:$0x8] %vm210, %v209
    %v219 = vld [vmem:[#allocation0] sm:$0xf]
    %220 = vrot.lane.b32.xlu0 %v219, 110
    %v221 = vpop.permute.xlu0 %220
    %vm222 = vcmask 7168
    %s223 = scalar_lea.vmem %s1, 18
    %224 = vst.msk [vmem:[%s223] sm:$0x1] %vm222, %v221
    %s225 = scalar_lea.vmem %s1, 49
    %226 = vst.msk [vmem:[%s225] sm:$0x2] %vm222, %v221
    %s227 = scalar_lea.vmem %s1, 80
    %228 = vst.msk [vmem:[%s227] sm:$0x4] %vm222, %v221
    %s229 = scalar_lea.vmem %s1, 111
    %230 = vst.msk [vmem:[%s229] sm:$0x8] %vm222, %v221
    %v231 = vld [vmem:[#allocation0] sm:$0xf]
    %232 = vrot.lane.b32.xlu0 %v231, 109
    %v233 = vpop.permute.xlu0 %232
    %vm234 = vcmask 7168
    %s235 = scalar_lea.vmem %s1, 19
    %236 = vst.msk [vmem:[%s235] sm:$0x1] %vm234, %v233
    %s237 = scalar_lea.vmem %s1, 50
    %238 = vst.msk [vmem:[%s237] sm:$0x2] %vm234, %v233
    %s239 = scalar_lea.vmem %s1, 81
    %240 = vst.msk [vmem:[%s239] sm:$0x4] %vm234, %v233
    %s241 = scalar_lea.vmem %s1, 112
    %242 = vst.msk [vmem:[%s241] sm:$0x8] %vm234, %v233
    %v243 = vld [vmem:[#allocation0] sm:$0xf]
    %244 = vrot.lane.b32.xlu0 %v243, 108
    %v245 = vpop.permute.xlu0 %244
    %vm246 = vcmask 7168
    %s247 = scalar_lea.vmem %s1, 20
    %248 = vst.msk [vmem:[%s247] sm:$0x1] %vm246, %v245
    %s249 = scalar_lea.vmem %s1, 51
    %250 = vst.msk [vmem:[%s249] sm:$0x2] %vm246, %v245
    %s251 = scalar_lea.vmem %s1, 82
    %252 = vst.msk [vmem:[%s251] sm:$0x4] %vm246, %v245
    %s253 = scalar_lea.vmem %s1, 113
    %254 = vst.msk [vmem:[%s253] sm:$0x8] %vm246, %v245
    %v255 = vld [vmem:[#allocation0] sm:$0xf]
    %256 = vrot.lane.b32.xlu0 %v255, 107
    %v257 = vpop.permute.xlu0 %256
    %vm258 = vcmask 7168
    %s259 = scalar_lea.vmem %s1, 21
    %260 = vst.msk [vmem:[%s259] sm:$0x1] %vm258, %v257
    %s261 = scalar_lea.vmem %s1, 52
    %262 = vst.msk [vmem:[%s261] sm:$0x2] %vm258, %v257
    %s263 = scalar_lea.vmem %s1, 83
    %264 = vst.msk [vmem:[%s263] sm:$0x4] %vm258, %v257
    %s265 = scalar_lea.vmem %s1, 114
    %266 = vst.msk [vmem:[%s265] sm:$0x8] %vm258, %v257
    %v267 = vld [vmem:[#allocation0] sm:$0xf]
    %268 = vrot.lane.b32.xlu0 %v267, 106
    %v269 = vpop.permute.xlu0 %268
    %vm270 = vcmask 7168
    %s271 = scalar_lea.vmem %s1, 22
    %272 = vst.msk [vmem:[%s271] sm:$0x1] %vm270, %v269
    %s273 = scalar_lea.vmem %s1, 53
    %274 = vst.msk [vmem:[%s273] sm:$0x2] %vm270, %v269
    %s275 = scalar_lea.vmem %s1, 84
    %276 = vst.msk [vmem:[%s275] sm:$0x4] %vm270, %v269
    %s277 = scalar_lea.vmem %s1, 115
    %278 = vst.msk [vmem:[%s277] sm:$0x8] %vm270, %v269
    %v279 = vld [vmem:[#allocation0] sm:$0xf]
    %280 = vrot.lane.b32.xlu0 %v279, 105
    %v281 = vpop.permute.xlu0 %280
    %vm282 = vcmask 7168
    %s283 = scalar_lea.vmem %s1, 23
    %284 = vst.msk [vmem:[%s283] sm:$0x1] %vm282, %v281
    %s285 = scalar_lea.vmem %s1, 54
    %286 = vst.msk [vmem:[%s285] sm:$0x2] %vm282, %v281
    %s287 = scalar_lea.vmem %s1, 85
    %288 = vst.msk [vmem:[%s287] sm:$0x4] %vm282, %v281
    %s289 = scalar_lea.vmem %s1, 116
    %290 = vst.msk [vmem:[%s289] sm:$0x8] %vm282, %v281
    %v291 = vld [vmem:[#allocation0] sm:$0xf]
    %292 = vrot.lane.b32.xlu0 %v291, 104
    %v293 = vpop.permute.xlu0 %292
    %vm294 = vcmask 7168
    %s295 = scalar_lea.vmem %s1, 24
    %296 = vst.msk [vmem:[%s295] sm:$0x1] %vm294, %v293
    %s297 = scalar_lea.vmem %s1, 55
    %298 = vst.msk [vmem:[%s297] sm:$0x2] %vm294, %v293
    %s299 = scalar_lea.vmem %s1, 86
    %300 = vst.msk [vmem:[%s299] sm:$0x4] %vm294, %v293
    %s301 = scalar_lea.vmem %s1, 117
    %302 = vst.msk [vmem:[%s301] sm:$0x8] %vm294, %v293
    %v303 = vld [vmem:[#allocation0] sm:$0xf]
    %304 = vrot.lane.b32.xlu0 %v303, 103
    %v305 = vpop.permute.xlu0 %304
    %vm306 = vcmask 7168
    %s307 = scalar_lea.vmem %s1, 25
    %308 = vst.msk [vmem:[%s307] sm:$0x1] %vm306, %v305
    %s309 = scalar_lea.vmem %s1, 56
    %310 = vst.msk [vmem:[%s309] sm:$0x2] %vm306, %v305
    %s311 = scalar_lea.vmem %s1, 87
    %312 = vst.msk [vmem:[%s311] sm:$0x4] %vm306, %v305
    %s313 = scalar_lea.vmem %s1, 118
    %314 = vst.msk [vmem:[%s313] sm:$0x8] %vm306, %v305
    %v315 = vld [vmem:[#allocation0] sm:$0xf]
    %316 = vrot.lane.b32.xlu0 %v315, 102
    %v317 = vpop.permute.xlu0 %316
    %vm318 = vcmask 7168
    %s319 = scalar_lea.vmem %s1, 26
    %320 = vst.msk [vmem:[%s319] sm:$0x1] %vm318, %v317
    %s321 = scalar_lea.vmem %s1, 57
    %322 = vst.msk [vmem:[%s321] sm:$0x2] %vm318, %v317
    %s323 = scalar_lea.vmem %s1, 88
    %324 = vst.msk [vmem:[%s323] sm:$0x4] %vm318, %v317
    %s325 = scalar_lea.vmem %s1, 119
    %326 = vst.msk [vmem:[%s325] sm:$0x8] %vm318, %v317
    %v327 = vld [vmem:[#allocation0] sm:$0xf]
    %328 = vrot.lane.b32.xlu0 %v327, 101
    %v329 = vpop.permute.xlu0 %328
    %vm330 = vcmask 7168
    %s331 = scalar_lea.vmem %s1, 27
    %332 = vst.msk [vmem:[%s331] sm:$0x1] %vm330, %v329
    %s333 = scalar_lea.vmem %s1, 58
    %334 = vst.msk [vmem:[%s333] sm:$0x2] %vm330, %v329
    %s335 = scalar_lea.vmem %s1, 89
    %336 = vst.msk [vmem:[%s335] sm:$0x4] %vm330, %v329
    %s337 = scalar_lea.vmem %s1, 120
    %338 = vst.msk [vmem:[%s337] sm:$0x8] %vm330, %v329
    %v339 = vld [vmem:[#allocation0] sm:$0xf]
    %340 = vrot.lane.b32.xlu0 %v339, 100
    %v341 = vpop.permute.xlu0 %340
    %vm342 = vcmask 7168
    %s343 = scalar_lea.vmem %s1, 28
    %344 = vst.msk [vmem:[%s343] sm:$0x1] %vm342, %v341
    %s345 = scalar_lea.vmem %s1, 59
    %346 = vst.msk [vmem:[%s345] sm:$0x2] %vm342, %v341
    %s347 = scalar_lea.vmem %s1, 90
    %348 = vst.msk [vmem:[%s347] sm:$0x4] %vm342, %v341
    %s349 = scalar_lea.vmem %s1, 121
    %350 = vst.msk [vmem:[%s349] sm:$0x8] %vm342, %v341
    %v351 = vld [vmem:[#allocation0] sm:$0xf]
    %352 = vrot.lane.b32.xlu0 %v351, 99
    %v353 = vpop.permute.xlu0 %352
    %vm354 = vcmask 7168
    %s355 = scalar_lea.vmem %s1, 29
    %356 = vst.msk [vmem:[%s355] sm:$0x1] %vm354, %v353
    %s357 = scalar_lea.vmem %s1, 60
    %358 = vst.msk [vmem:[%s357] sm:$0x2] %vm354, %v353
    %s359 = scalar_lea.vmem %s1, 91
    %360 = vst.msk [vmem:[%s359] sm:$0x4] %vm354, %v353
    %s361 = scalar_lea.vmem %s1, 122
    %362 = vst.msk [vmem:[%s361] sm:$0x8] %vm354, %v353
    %v363 = vld [vmem:[#allocation0] sm:$0xf]
    %364 = vrot.lane.b32.xlu0 %v363, 98
    %v365 = vpop.permute.xlu0 %364
    %vm366 = vcmask 7168
    %s367 = scalar_lea.vmem %s1, 30
    %368 = vst.msk [vmem:[%s367] sm:$0x1] %vm366, %v365
    %s369 = scalar_lea.vmem %s1, 61
    %370 = vst.msk [vmem:[%s369] sm:$0x2] %vm366, %v365
    %s371 = scalar_lea.vmem %s1, 92
    %372 = vst.msk [vmem:[%s371] sm:$0x4] %vm366, %v365
    %s373 = scalar_lea.vmem %s1, 123
    %374 = vst.msk [vmem:[%s373] sm:$0x8] %vm366, %v365
    %v375 = vld [vmem:[#allocation0] sm:$0xf]
    %376 = vrot.lane.b32.xlu0 %v375, 97
    %v377 = vpop.permute.xlu0 %376
    %vm378 = vcmask 7168
    %s379 = scalar_lea.vmem %s1, 31
    %380 = vst.msk [vmem:[%s379] sm:$0x1] %vm378, %v377
    %s381 = scalar_lea.vmem %s1, 62
    %382 = vst.msk [vmem:[%s381] sm:$0x2] %vm378, %v377
    %s383 = scalar_lea.vmem %s1, 93
    %384 = vst.msk [vmem:[%s383] sm:$0x4] %vm378, %v377
    %s385 = scalar_lea.vmem %s1, 124
    %386 = vst.msk [vmem:[%s385] sm:$0x8] %vm378, %v377

// kernel: rru_up_forward.2
$region0: #{rru_up_forward.2}
  #allocation0 [shape = 'u32[]', space=smem, size = 0x4, offset = 0x4, fixed_abs, tag = 'smem constant byte address 0x4 - core index']
  #allocation1 [shape = 'u32[72,128]{1,0:T(1,128)}', space=vmem, size = 0x9000, scoped, tag = 'internal scratch']
  %s0 = inlined_call_operand.vmem [shape: f32[2,32,64], index: 0, kind: input, shape index: {}]
  %s1 = inlined_call_operand.vmem [shape: bf16[128,32], index: 1, kind: input, shape index: {}]
  %s2 = inlined_call_operand.vmem [shape: f32[128,1], index: 2, kind: input, shape index: {}]
  %s3 = inlined_call_operand.vmem [shape: f32[128,1], index: 3, kind: input, shape index: {}]
  %s4 = inlined_call_operand.vmem [shape: f32[128,1], index: 4, kind: input, shape index: {}]
  %s5 = inlined_call_operand.vmem [shape: f32[2,128,64], index: 5, kind: output, shape index: {}]
  %s6 = sld [smem:[#allocation0]]
  $region53: #{rru_up_forward.2} parent=0
    _
  %s8 = ssub.s32 1, %s6
  %s9 = scalar_select 0, %s8, %s6
  loop: start=0, step=1, limit=4
  $region2: #{rru_up_forward.2} parent=0 // loop_pre_header
    _
  $region3: #{rru_up_forward.2} parent=0 // loop_header
    %s11 = sphi 0, %s15
    %p12 = scmp.ge.s32.totalorder %s11, 4
    %s21 = sphi 0, %s23
    %s24 = sphi 0, %s21
    %s25 = sphi 0, %s24
    %s41 = sphi 0, %s25
    %s45 = sphi 0, %s45
    %s47 = sphi 0, %s45
    %s48 = sphi 0, %s47
    %s62 = sphi 0, %s48
    %s66 = sphi 0, %s66
    %s68 = sphi 0, %s66
    %s69 = sphi 0, %s68
    %s83 = sphi 0, %s69
    %s87 = sphi 0, %s87
    %s89 = sphi 0, %s87
    %s90 = sphi 0, %s89
    %s104 = sphi 0, %s90
    %s108 = sphi 0, %s108
    %s110 = sphi 0, %s108
    %s111 = sphi 0, %s110
    %s125 = sphi 0, %s111
    %s131 = sphi 0, %s133
    %s134 = sphi 0, %s131
    %s135 = sphi 0, %s134
    %s151 = sphi 0, %s135
  $region4: #{rru_up_forward.2} parent=0 // loop_header_branch
    %14 = sbr.rel (%p12) target = $region8
  $region5: #{rru_up_forward.2} parent=0 // loop_body
    %s16 = ssub.s32 %s11, 1
    %s17 = ssub.s32 %s11, 2
    %s18 = sadd.s32 %s11, 1
    %s19 = ssub.s32 %s11, %s18
    %p20 = scmp.eq.s32.totalorder %s19, 0
    %s22 = sadd.s32 %s21, 1
    %s23 = scalar_select %p20, %s21, %s22
    %p26 = pneg %p20
    %p27 = scmp.eq.s32.totalorder %s11, 1
    %p28 = por %p26, %p27
    %p29 = scmp.ne.s32.totalorder %s21, %s24
    %p30 = scmp.eq.s32.totalorder %s11, 0
    %p31 = por %p29, %p30
    %p32 = scmp.ne.s32.totalorder %s21, %s24
    %p33 = scmp.eq.s32.totalorder %s16, 1
    %p34 = por %p32, %p33
    %p35 = scmp.ne.s32.totalorder %s24, %s25
    %p36 = scmp.eq.s32.totalorder %s16, 0
    %p37 = por %p35, %p36
    %p38 = scmp.ne.s32.totalorder %s24, %s25
    %p39 = scmp.eq.s32.totalorder %s17, 1
    %p40 = por %p38, %p39
    %p42 = scmp.ne.s32.totalorder %s25, %s41
    %p43 = scmp.eq.s32.totalorder %s17, 0
    %p44 = por %p42, %p43
    %s46 = sadd.s32 %s45, 1
    %p49 = scmp.eq.s32.totalorder %s11, 1
    %p50 = scmp.ne.s32.totalorder %s45, %s47
    %p51 = scmp.eq.s32.totalorder %s11, 0
    %p52 = por %p50, %p51
    %p53 = scmp.ne.s32.totalorder %s45, %s47
    %p54 = scmp.eq.s32.totalorder %s16, 1
    %p55 = por %p53, %p54
    %p56 = scmp.ne.s32.totalorder %s47, %s48
    %p57 = scmp.eq.s32.totalorder %s16, 0
    %p58 = por %p56, %p57
    %p59 = scmp.ne.s32.totalorder %s47, %s48
    %p60 = scmp.eq.s32.totalorder %s17, 1
    %p61 = por %p59, %p60
    %p63 = scmp.ne.s32.totalorder %s48, %s62
    %p64 = scmp.eq.s32.totalorder %s17, 0
    %p65 = por %p63, %p64
    %s67 = sadd.s32 %s66, 1
    %p70 = scmp.eq.s32.totalorder %s11, 1
    %p71 = scmp.ne.s32.totalorder %s66, %s68
    %p72 = scmp.eq.s32.totalorder %s11, 0
    %p73 = por %p71, %p72
    %p74 = scmp.ne.s32.totalorder %s66, %s68
    %p75 = scmp.eq.s32.totalorder %s16, 1
    %p76 = por %p74, %p75
    %p77 = scmp.ne.s32.totalorder %s68, %s69
    %p78 = scmp.eq.s32.totalorder %s16, 0
    %p79 = por %p77, %p78
    %p80 = scmp.ne.s32.totalorder %s68, %s69
    %p81 = scmp.eq.s32.totalorder %s17, 1
    %p82 = por %p80, %p81
    %p84 = scmp.ne.s32.totalorder %s69, %s83
    %p85 = scmp.eq.s32.totalorder %s17, 0
    %p86 = por %p84, %p85
    %s88 = sadd.s32 %s87, 1
    %p91 = scmp.eq.s32.totalorder %s11, 1
    %p92 = scmp.ne.s32.totalorder %s87, %s89
    %p93 = scmp.eq.s32.totalorder %s11, 0
    %p94 = por %p92, %p93
    %p95 = scmp.ne.s32.totalorder %s87, %s89
    %p96 = scmp.eq.s32.totalorder %s16, 1
    %p97 = por %p95, %p96
    %p98 = scmp.ne.s32.totalorder %s89, %s90
    %p99 = scmp.eq.s32.totalorder %s16, 0
    %p100 = por %p98, %p99
    %p101 = scmp.ne.s32.totalorder %s89, %s90
    %p102 = scmp.eq.s32.totalorder %s17, 1
    %p103 = por %p101, %p102
    %p105 = scmp.ne.s32.totalorder %s90, %s104
    %p106 = scmp.eq.s32.totalorder %s17, 0
    %p107 = por %p105, %p106
    %s109 = sadd.s32 %s108, 1
    %p112 = scmp.eq.s32.totalorder %s11, 1
    %p113 = scmp.ne.s32.totalorder %s108, %s110
    %p114 = scmp.eq.s32.totalorder %s11, 0
    %p115 = por %p113, %p114
    %p116 = scmp.ne.s32.totalorder %s108, %s110
    %p117 = scmp.eq.s32.totalorder %s16, 1
    %p118 = por %p116, %p117
    %p119 = scmp.ne.s32.totalorder %s110, %s111
    %p120 = scmp.eq.s32.totalorder %s16, 0
    %p121 = por %p119, %p120
    %p122 = scmp.ne.s32.totalorder %s110, %s111
    %p123 = scmp.eq.s32.totalorder %s17, 1
    %p124 = por %p122, %p123
    %p126 = scmp.ne.s32.totalorder %s111, %s125
    %p127 = scmp.eq.s32.totalorder %s17, 0
    %p128 = por %p126, %p127
    %s129 = ssub.s32 %s11, %s18
    %p130 = scmp.eq.s32.totalorder %s129, 0
    %s132 = sadd.s32 %s131, 1
    %s133 = scalar_select %p130, %s131, %s132
    %p136 = pneg %p130
    %p137 = scmp.eq.s32.totalorder %s11, 1
    %p138 = por %p136, %p137
    %p139 = scmp.ne.s32.totalorder %s131, %s134
    %p140 = scmp.eq.s32.totalorder %s11, 0
    %p141 = por %p139, %p140
    %p142 = scmp.ne.s32.totalorder %s131, %s134
    %p143 = scmp.eq.s32.totalorder %s16, 1
    %p144 = por %p142, %p143
    %p145 = scmp.ne.s32.totalorder %s134, %s135
    %p146 = scmp.eq.s32.totalorder %s16, 0
    %p147 = por %p145, %p146
    %p148 = scmp.ne.s32.totalorder %s134, %s135
    %p149 = scmp.eq.s32.totalorder %s17, 1
    %p150 = por %p148, %p149
    %p152 = scmp.ne.s32.totalorder %s135, %s151
    %p153 = scmp.eq.s32.totalorder %s17, 0
    %p154 = por %p152, %p153
    %p155 = scmp.le.s32.totalorder 1, %s11
    %p156 = scmp.lt.s32.totalorder %s11, 3
    %p157 = pnand %p155, %p156
    %p158 = pneg %p157
    // Predicated region
    $region9: #{rru_up_forward.2} parent=5 // pred_check
      _
    $region10: #{rru_up_forward.2} parent=5 // pred_check_branch
      %160 = sbr.rel (%p157) target = $region12
    $region11: #{rru_up_forward.2} parent=5 // pred_region
      %s161 = ssub.s32 %s11, 1
      // Predicated region
      $region13: #{rru_up_forward.2} parent=11 // pred_check
        %p162 = pneg %p58
      $region14: #{rru_up_forward.2} parent=11 // pred_check_branch
        %164 = sbr.rel (%p162) target = $region16
      $region15: #{rru_up_forward.2} parent=11 // pred_region
        _
      $region16: #{rru_up_forward.2} parent=11 // pred_fallthru
        _
      // Predicated region
      $region17: #{rru_up_forward.2} parent=11 // pred_check
        %p165 = pneg %p79
      $region18: #{rru_up_forward.2} parent=11 // pred_check_branch
        %167 = sbr.rel (%p165) target = $region20
      $region19: #{rru_up_forward.2} parent=11 // pred_region
        _
      $region20: #{rru_up_forward.2} parent=11 // pred_fallthru
        _
      // Predicated region
      $region21: #{rru_up_forward.2} parent=11 // pred_check
        %p168 = pneg %p100
      $region22: #{rru_up_forward.2} parent=11 // pred_check_branch
        %170 = sbr.rel (%p168) target = $region24
      $region23: #{rru_up_forward.2} parent=11 // pred_region
        _
      $region24: #{rru_up_forward.2} parent=11 // pred_fallthru
        _
      // Predicated region
      $region25: #{rru_up_forward.2} parent=11 // pred_check
        %p171 = pneg %p121
      $region26: #{rru_up_forward.2} parent=11 // pred_check_branch
        %173 = sbr.rel (%p171) target = $region28
      $region27: #{rru_up_forward.2} parent=11 // pred_region
        _
      $region28: #{rru_up_forward.2} parent=11 // pred_fallthru
        _
    $region12: #{rru_up_forward.2} parent=5 // pred_fallthru
      _
    %p174 = scmp.lt.s32.totalorder %s11, 2
    // Predicated region
    $region29: #{rru_up_forward.2} parent=5 // pred_check
      %p175 = pneg %p174
    $region30: #{rru_up_forward.2} parent=5 // pred_check_branch
      %177 = sbr.rel (%p175) target = $region32
    $region31: #{rru_up_forward.2} parent=5 // pred_region
      // Predicated region
      $region33: #{rru_up_forward.2} parent=31 // pred_check
        %p178 = pneg %p31
      $region34: #{rru_up_forward.2} parent=31 // pred_check_branch
        %180 = sbr.rel (%p178) target = $region36
      $region35: #{rru_up_forward.2} parent=31 // pred_region
        %p181 = scmp.lt.s32.totalorder %s11, 1
        %s182 = scalar_select %p181, %s11, 1
        %s183 = smul.addr %s182, 4
        %s184 = smul.addr %s183, 8
        %s185 = scalar_lea.vmem %s0, %s184
      $region36: #{rru_up_forward.2} parent=31 // pred_fallthru
        _
    $region32: #{rru_up_forward.2} parent=5 // pred_fallthru
      _
    %p186 = scmp.le.s32.totalorder 1, %s11
    %p187 = scmp.lt.s32.totalorder %s11, 3
    %p188 = pnand %p186, %p187
    %p189 = pneg %p188
    // Predicated region
    $region37: #{rru_up_forward.2} parent=5 // pred_check
      _
    $region38: #{rru_up_forward.2} parent=5 // pred_check_branch
      %191 = sbr.rel (%p188) target = $region40
    $region39: #{rru_up_forward.2} parent=5 // pred_region
      %s192 = ssub.s32 %s11, 1
      %p193 = scmp.lt.s32.totalorder %s16, 1
      %s194 = scalar_select %p193, %s16, 1
      %s195 = smul.addr %s194, 4
      %s196 = smul.addr %s195, 8
      %s197 = scalar_lea.vmem %s0, %s196
      %p198 = pneg %p37
      %p199 = pneg %p34
      %p200 = pneg %p58
      %p201 = pneg %p55
      %p202 = pneg %p79
      %p203 = pneg %p76
      %p204 = pneg %p100
      %p205 = pneg %p97
      %p206 = pneg %p121
      %p207 = pneg %p118
      %p208 = pneg %p147
      %p209 = pneg %p144
      %p210 = scmp.lt.s32.totalorder %s16, 1
      %s211 = scalar_select %p210, %s16, 1
      %s212 = smul.addr %s211, 16
      %s213 = smul.addr %s212, 8
      %s214 = scalar_lea.vmem %s5, %s213
      %p215 = scmp.lt.s32.totalorder %s16, 1
      %s216 = scalar_select %p215, %s16, 1
      %s217 = smul.addr %s216, 4
      %s218 = smul.addr %s217, 8
      %s219 = scalar_lea.vmem %s0, %s218
      %p220 = scmp.lt.s32.totalorder %s16, 1
      %s221 = scalar_select %p220, %s16, 1
      %s222 = smul.addr %s221, 16
      %s223 = smul.addr %s222, 8
      %s224 = scalar_lea.vmem %s5, %s223
      %v226 = vld [vmem:[%s1] sm:$0xf]
      %v227 = vld [vmem:[%s1 + $0x4] sm:$0xf]
      %v228 = vld [vmem:[%s1 + $0x8] sm:$0xf]
      %v229 = vld [vmem:[%s1 + $0xc] sm:$0xf]
      %v230 = vld [vmem:[%s1 + $0x10] sm:$0xf]
      %v231 = vld [vmem:[%s1 + $0x14] sm:$0xf]
      %v232 = vld [vmem:[%s1 + $0x18] sm:$0xf]
      %v233 = vld [vmem:[%s1 + $0x1c] sm:$0xf]
      %v234 = vld [vmem:[%s1 + $0x20] sm:$0xf]
      %v235 = vld [vmem:[%s1 + $0x24] sm:$0xf]
      %v236 = vld [vmem:[%s1 + $0x28] sm:$0xf]
      %v237 = vld [vmem:[%s1 + $0x2c] sm:$0xf]
      %v238 = vld [vmem:[%s1 + $0x30] sm:$0xf]
      %v239 = vld [vmem:[%s1 + $0x34] sm:$0xf]
      %v240 = vld [vmem:[%s1 + $0x38] sm:$0xf]
      %v241 = vld [vmem:[%s1 + $0x3c] sm:$0xf]
      %v242 = vld [vmem:[%s219] sm:$0xff]
      %v243 = vld [vmem:[%s219 + $0x8] sm:$0xff]
      %v244 = vld [vmem:[%s219 + $0x10] sm:$0xff]
      %v245 = vld [vmem:[%s219 + $0x18] sm:$0xff]
      %v246 = vpack.c.bf16 %v243, %v242
      %v247 = vpack.c.bf16 %v245, %v244
      %v248 = vld [vmem:[%s2] sm:$0xff]
      %v249 = vld [vmem:[%s2 + $0x8] sm:$0xff]
      %v250 = vld [vmem:[%s2 + $0x10] sm:$0xff]
      %v251 = vld [vmem:[%s2 + $0x18] sm:$0xff]
      %v252 = vld [vmem:[%s2 + $0x20] sm:$0xff]
      %v253 = vld [vmem:[%s2 + $0x28] sm:$0xff]
      %v254 = vld [vmem:[%s2 + $0x30] sm:$0xff]
      %v255 = vld [vmem:[%s2 + $0x38] sm:$0xff]
      %v256 = vld [vmem:[%s2 + $0x40] sm:$0xff]
      %v257 = vld [vmem:[%s2 + $0x48] sm:$0xff]
      %v258 = vld [vmem:[%s2 + $0x50] sm:$0xff]
      %v259 = vld [vmem:[%s2 + $0x58] sm:$0xff]
      %v260 = vld [vmem:[%s2 + $0x60] sm:$0xff]
      %v261 = vld [vmem:[%s2 + $0x68] sm:$0xff]
      %v262 = vld [vmem:[%s2 + $0x70] sm:$0xff]
      %v263 = vld [vmem:[%s2 + $0x78] sm:$0xff]
      %265 = vset.pattern.permute.xlu0 0
      %266 = vperm.xlu0 %265, %v248
      %v267 = vpop.permute.xlu0 %266
      %270 = vset.pattern.permute.xlu0 0
      %271 = vperm.xlu0 %270, %v249
      %v272 = vpop.permute.xlu0 %271
      %275 = vset.pattern.permute.xlu0 0
      %276 = vperm.xlu0 %275, %v250
      %v277 = vpop.permute.xlu0 %276
      %280 = vset.pattern.permute.xlu0 0
      %281 = vperm.xlu0 %280, %v251
      %v282 = vpop.permute.xlu0 %281
      %285 = vset.pattern.permute.xlu0 0
      %286 = vperm.xlu0 %285, %v252
      %v287 = vpop.permute.xlu0 %286
      %290 = vset.pattern.permute.xlu0 0
      %291 = vperm.xlu0 %290, %v253
      %v292 = vpop.permute.xlu0 %291
      %295 = vset.pattern.permute.xlu0 0
      %296 = vperm.xlu0 %295, %v254
      %v297 = vpop.permute.xlu0 %296
      %300 = vset.pattern.permute.xlu0 0
      %301 = vperm.xlu0 %300, %v255
      %v302 = vpop.permute.xlu0 %301
      %305 = vset.pattern.permute.xlu0 0
      %306 = vperm.xlu0 %305, %v256
      %v307 = vpop.permute.xlu0 %306
      %310 = vset.pattern.permute.xlu0 0
      %311 = vperm.xlu0 %310, %v257
      %v312 = vpop.permute.xlu0 %311
      %315 = vset.pattern.permute.xlu0 0
      %316 = vperm.xlu0 %315, %v258
      %v317 = vpop.permute.xlu0 %316
      %320 = vset.pattern.permute.xlu0 0
      %321 = vperm.xlu0 %320, %v259
      %v322 = vpop.permute.xlu0 %321
      %325 = vset.pattern.permute.xlu0 0
      %326 = vperm.xlu0 %325, %v260
      %v327 = vpop.permute.xlu0 %326
      %330 = vset.pattern.permute.xlu0 0
      %331 = vperm.xlu0 %330, %v261
      %v332 = vpop.permute.xlu0 %331
      %335 = vset.pattern.permute.xlu0 0
      %336 = vperm.xlu0 %335, %v262
      %v337 = vpop.permute.xlu0 %336
      %340 = vset.pattern.permute.xlu0 0
      %341 = vperm.xlu0 %340, %v263
      %v342 = vpop.permute.xlu0 %341
      %v360 = vunpack.c.l.b16 %v226
      %v361 = vunpack.c.l.b16 %v227
      %v362 = vunpack.c.l.b16 %v228
      %v363 = vunpack.c.l.b16 %v229
      %v364 = vunpack.c.l.b16 %v230
      %v365 = vunpack.c.l.b16 %v231
      %v366 = vunpack.c.l.b16 %v232
      %v367 = vunpack.c.l.b16 %v233
      %v368 = vunpack.c.l.b16 %v234
      %v369 = vunpack.c.l.b16 %v235
      %v370 = vunpack.c.l.b16 %v236
      %v371 = vunpack.c.l.b16 %v237
      %v372 = vunpack.c.l.b16 %v238
      %v373 = vunpack.c.l.b16 %v239
      %v374 = vunpack.c.l.b16 %v240
      %v375 = vunpack.c.l.b16 %v241
      %v376 = vpack.c.b16 %v361, %v360
      %v377 = vpack.c.b16 %v363, %v362
      %v378 = vpack.c.b16 %v365, %v364
      %v379 = vpack.c.b16 %v367, %v366
      %v380 = vpack.c.b16 %v369, %v368
      %v381 = vpack.c.b16 %v371, %v370
      %v382 = vpack.c.b16 %v373, %v372
      %v383 = vpack.c.b16 %v375, %v374
      %vm384 = vcmask 261120
      %v386 = vsel %vm384, %v376, 0
      %v389 = vsel %vm384, %v377, 0
      %v392 = vsel %vm384, %v378, 0
      %v395 = vsel %vm384, %v379, 0
      %v398 = vsel %vm384, %v380, 0
      %v401 = vsel %vm384, %v381, 0
      %v404 = vsel %vm384, %v382, 0
      %v407 = vsel %vm384, %v383, 0
      %409 = vmatpush.bf16.msra.mxu0 0
      %410 = vmatpush.bf16.msra.mxu0 0
      %411 = vmatpush.bf16.msra.mxu0 0
      %412 = vmatpush.bf16.msra.mxu0 0
      %413 = vmatpush.bf16.msra.mxu0 0
      %414 = vmatpush.bf16.msra.mxu0 0
      %415 = vmatpush.bf16.msra.mxu0 %v247
      %416 = vmatpush.bf16.msra.mxu0 %v246
      %417 = vmatmul.bf16.gmra.mxu0 %v386
      %v418 = vpop.f32.mrf.mxu0
      %v419 = vadd.f32 %v267, %v418
      %v420 = vpop.f32.mrf.mxu0
      %v421 = vadd.f32 %v272, %v420
      %422 = vmatmul.bf16.gmra.mxu0 %v389
      %v423 = vpop.f32.mrf.mxu0
      %v424 = vadd.f32 %v277, %v423
      %v425 = vpop.f32.mrf.mxu0
      %v426 = vadd.f32 %v282, %v425
      %427 = vmatmul.bf16.gmra.mxu0 %v392
      %v428 = vpop.f32.mrf.mxu0
      %v429 = vadd.f32 %v287, %v428
      %v430 = vpop.f32.mrf.mxu0
      %v431 = vadd.f32 %v292, %v430
      %432 = vmatmul.bf16.gmra.mxu0 %v395
      %v433 = vpop.f32.mrf.mxu0
      %v434 = vadd.f32 %v297, %v433
      %v435 = vpop.f32.mrf.mxu0
      %v436 = vadd.f32 %v302, %v435
      %437 = vmatmul.bf16.gmra.mxu0 %v398
      %v438 = vpop.f32.mrf.mxu0
      %v439 = vadd.f32 %v307, %v438
      %v440 = vpop.f32.mrf.mxu0
      %v441 = vadd.f32 %v312, %v440
      %442 = vmatmul.bf16.gmra.mxu0 %v401
      %v443 = vpop.f32.mrf.mxu0
      %v444 = vadd.f32 %v317, %v443
      %v445 = vpop.f32.mrf.mxu0
      %v446 = vadd.f32 %v322, %v445
      %447 = vmatmul.bf16.gmra.mxu0 %v404
      %v448 = vpop.f32.mrf.mxu0
      %v449 = vadd.f32 %v327, %v448
      %v450 = vpop.f32.mrf.mxu0
      %v451 = vadd.f32 %v332, %v450
      %452 = vmatmul.bf16.gmra.mxu0 %v407
      %v453 = vpop.f32.mrf.mxu0
      %v454 = vadd.f32 %v337, %v453
      %v455 = vpop.f32.mrf.mxu0
      %v456 = vadd.f32 %v342, %v455
      %457 = vdwg.mxu0
      %vm458 = vcmask 523264
      %v459 = vsel %vm458, %v419, 0.0
      %460 = vadd.xlane.f32.xlu0 %v459
      %v461 = vpop.xlane.xlu0 %460
      %v462 = vsel %vm458, %v421, 0.0
      %463 = vadd.xlane.f32.xlu0 %v462
      %v464 = vpop.xlane.xlu0 %463
      %v465 = vsel %vm458, %v424, 0.0
      %466 = vadd.xlane.f32.xlu0 %v465
      %v467 = vpop.xlane.xlu0 %466
      %v468 = vsel %vm458, %v426, 0.0
      %469 = vadd.xlane.f32.xlu0 %v468
      %v470 = vpop.xlane.xlu0 %469
      %v471 = vsel %vm458, %v429, 0.0
      %472 = vadd.xlane.f32.xlu0 %v471
      %v473 = vpop.xlane.xlu0 %472
      %v474 = vsel %vm458, %v431, 0.0
      %475 = vadd.xlane.f32.xlu0 %v474
      %v476 = vpop.xlane.xlu0 %475
      %v477 = vsel %vm458, %v434, 0.0
      %478 = vadd.xlane.f32.xlu0 %v477
      %v479 = vpop.xlane.xlu0 %478
      %v480 = vsel %vm458, %v436, 0.0
      %481 = vadd.xlane.f32.xlu0 %v480
      %v482 = vpop.xlane.xlu0 %481
      %v483 = vsel %vm458, %v439, 0.0
      %484 = vadd.xlane.f32.xlu0 %v483
      %v485 = vpop.xlane.xlu0 %484
      %v486 = vsel %vm458, %v441, 0.0
      %487 = vadd.xlane.f32.xlu0 %v486
      %v488 = vpop.xlane.xlu0 %487
      %v489 = vsel %vm458, %v444, 0.0
      %490 = vadd.xlane.f32.xlu0 %v489
      %v491 = vpop.xlane.xlu0 %490
      %v492 = vsel %vm458, %v446, 0.0
      %493 = vadd.xlane.f32.xlu0 %v492
      %v494 = vpop.xlane.xlu0 %493
      %v495 = vsel %vm458, %v449, 0.0
      %496 = vadd.xlane.f32.xlu0 %v495
      %v497 = vpop.xlane.xlu0 %496
      %v498 = vsel %vm458, %v451, 0.0
      %499 = vadd.xlane.f32.xlu0 %v498
      %v500 = vpop.xlane.xlu0 %499
      %v501 = vsel %vm458, %v454, 0.0
      %502 = vadd.xlane.f32.xlu0 %v501
      %v503 = vpop.xlane.xlu0 %502
      %v504 = vsel %vm458, %v456, 0.0
      %505 = vadd.xlane.f32.xlu0 %v504
      %v506 = vpop.xlane.xlu0 %505
      %v507 = vadd.f32 %v461, %v473
      %v508 = vadd.f32 %v464, %v476
      %v509 = vadd.f32 %v467, %v479
      %v510 = vadd.f32 %v470, %v482
      %v511 = vadd.f32 %v507, %v485
      %v512 = vadd.f32 %v508, %v488
      %v513 = vadd.f32 %v509, %v491
      %v514 = vadd.f32 %v510, %v494
      %v515 = vadd.f32 %v511, %v497
      %v516 = vadd.f32 %v512, %v500
      %v517 = vadd.f32 %v513, %v503
      %v518 = vadd.f32 %v514, %v506
      %v519 = vmul.f32 %v515, 0.00390625
      %v520 = vmul.f32 %v516, 0.00390625
      %v521 = vmul.f32 %v517, 0.00390625
      %v522 = vmul.f32 %v518, 0.00390625
      %524 = vset.pattern.permute.xlu0 0
      %525 = vperm.xlu0 %524, %v519
      %v526 = vpop.permute.xlu0 %525
      %529 = vset.pattern.permute.xlu0 0
      %530 = vperm.xlu0 %529, %v520
      %v531 = vpop.permute.xlu0 %530
      %534 = vset.pattern.permute.xlu0 0
      %535 = vperm.xlu0 %534, %v521
      %v536 = vpop.permute.xlu0 %535
      %539 = vset.pattern.permute.xlu0 0
      %540 = vperm.xlu0 %539, %v522
      %v541 = vpop.permute.xlu0 %540
      %v543 = vsub.f32 %v419, %v526
      %v544 = vsub.f32 %v421, %v531
      %v545 = vsub.f32 %v424, %v536
      %v546 = vsub.f32 %v426, %v541
      %v547 = vsub.f32 %v429, %v526
      %v548 = vsub.f32 %v431, %v531
      %v549 = vsub.f32 %v434, %v536
      %v550 = vsub.f32 %v436, %v541
      %v551 = vsub.f32 %v439, %v526
      %v552 = vsub.f32 %v441, %v531
      %v553 = vsub.f32 %v444, %v536
      %v554 = vsub.f32 %v446, %v541
      %v555 = vsub.f32 %v449, %v526
      %v556 = vsub.f32 %v451, %v531
      %v557 = vsub.f32 %v454, %v536
      %v558 = vsub.f32 %v456, %v541
      %v559 = vmul.f32 %v543, %v543
      %v560 = vmul.f32 %v544, %v544
      %v561 = vmul.f32 %v545, %v545
      %v562 = vmul.f32 %v546, %v546
      %v563 = vmul.f32 %v547, %v547
      %v564 = vmul.f32 %v548, %v548
      %v565 = vmul.f32 %v549, %v549
      %v566 = vmul.f32 %v550, %v550
      %v567 = vmul.f32 %v551, %v551
      %v568 = vmul.f32 %v552, %v552
      %v569 = vmul.f32 %v553, %v553
      %v570 = vmul.f32 %v554, %v554
      %v571 = vmul.f32 %v555, %v555
      %v572 = vmul.f32 %v556, %v556
      %v573 = vmul.f32 %v557, %v557
      %v574 = vmul.f32 %v558, %v558
      %v575 = vsel %vm458, %v559, 0.0
      %576 = vadd.xlane.f32.xlu0 %v575
      %v577 = vpop.xlane.xlu0 %576
      %v578 = vsel %vm458, %v560, 0.0
      %579 = vadd.xlane.f32.xlu0 %v578
      %v580 = vpop.xlane.xlu0 %579
      %v581 = vsel %vm458, %v561, 0.0
      %582 = vadd.xlane.f32.xlu0 %v581
      %v583 = vpop.xlane.xlu0 %582
      %v584 = vsel %vm458, %v562, 0.0
      %585 = vadd.xlane.f32.xlu0 %v584
      %v586 = vpop.xlane.xlu0 %585
      %v587 = vsel %vm458, %v563, 0.0
      %588 = vadd.xlane.f32.xlu0 %v587
      %v589 = vpop.xlane.xlu0 %588
      %v590 = vsel %vm458, %v564, 0.0
      %591 = vadd.xlane.f32.xlu0 %v590
      %v592 = vpop.xlane.xlu0 %591
      %v593 = vsel %vm458, %v565, 0.0
      %594 = vadd.xlane.f32.xlu0 %v593
      %v595 = vpop.xlane.xlu0 %594
      %v596 = vsel %vm458, %v566, 0.0
      %597 = vadd.xlane.f32.xlu0 %v596
      %v598 = vpop.xlane.xlu0 %597
      %v599 = vsel %vm458, %v567, 0.0
      %600 = vadd.xlane.f32.xlu0 %v599
      %v601 = vpop.xlane.xlu0 %600
      %v602 = vsel %vm458, %v568, 0.0
      %603 = vadd.xlane.f32.xlu0 %v602
      %v604 = vpop.xlane.xlu0 %603
      %v605 = vsel %vm458, %v569, 0.0
      %606 = vadd.xlane.f32.xlu0 %v605
      %v607 = vpop.xlane.xlu0 %606
      %v608 = vsel %vm458, %v570, 0.0
      %609 = vadd.xlane.f32.xlu0 %v608
      %v610 = vpop.xlane.xlu0 %609
      %v611 = vsel %vm458, %v571, 0.0
      %612 = vadd.xlane.f32.xlu0 %v611
      %v613 = vpop.xlane.xlu0 %612
      %v614 = vsel %vm458, %v572, 0.0
      %615 = vadd.xlane.f32.xlu0 %v614
      %v616 = vpop.xlane.xlu0 %615
      %v617 = vsel %vm458, %v573, 0.0
      %618 = vadd.xlane.f32.xlu0 %v617
      %v619 = vpop.xlane.xlu0 %618
      %v620 = vsel %vm458, %v574, 0.0
      %621 = vadd.xlane.f32.xlu0 %v620
      %v622 = vpop.xlane.xlu0 %621
      %v623 = vadd.f32 %v577, %v589
      %v624 = vadd.f32 %v580, %v592
      %v625 = vadd.f32 %v583, %v595
      %v626 = vadd.f32 %v586, %v598
      %v627 = vadd.f32 %v623, %v601
      %v628 = vadd.f32 %v624, %v604
      %v629 = vadd.f32 %v625, %v607
      %v630 = vadd.f32 %v626, %v610
      %v631 = vadd.f32 %v627, %v613
      %v632 = vadd.f32 %v628, %v616
      %v633 = vadd.f32 %v629, %v619
      %v634 = vadd.f32 %v630, %v622
      %v635 = vmul.f32 %v631, 0.00390625
      %v636 = vmul.f32 %v632, 0.00390625
      %v637 = vmul.f32 %v633, 0.00390625
      %v638 = vmul.f32 %v634, 0.00390625
      %v639 = vadd.f32 %v635, 1e-05
      %v640 = vadd.f32 %v636, 1e-05
      %v641 = vadd.f32 %v637, 1e-05
      %v642 = vadd.f32 %v638, 1e-05
      %v643 = vrsqrt.pop %v639
      %v644 = vmul.f32 %v643, %v639
      %v645 = vmul.f32 %v644, %v643
      %v646 = vmul.f32 0.5, %v645
      %v647 = vsub.f32 1.5, %v646
      %v648 = vmul.f32 %v643, %v647
      %vm649 = vweird.f32 %v639
      %vm650 = vweird.f32 %v643
      %vm651 = vmor %vm649, %vm650
      %v652 = vsel %vm651, %v643, %v648
      %v653 = vrsqrt.pop %v640
      %v654 = vmul.f32 %v653, %v640
      %v655 = vmul.f32 %v654, %v653
      %v656 = vmul.f32 0.5, %v655
      %v657 = vsub.f32 1.5, %v656
      %v658 = vmul.f32 %v653, %v657
      %vm659 = vweird.f32 %v640
      %vm660 = vweird.f32 %v653
      %vm661 = vmor %vm659, %vm660
      %v662 = vsel %vm661, %v653, %v658
      %v663 = vrsqrt.pop %v641
      %v664 = vmul.f32 %v663, %v641
      %v665 = vmul.f32 %v664, %v663
      %v666 = vmul.f32 0.5, %v665
      %v667 = vsub.f32 1.5, %v666
      %v668 = vmul.f32 %v663, %v667
      %vm669 = vweird.f32 %v641
      %vm670 = vweird.f32 %v663
      %vm671 = vmor %vm669, %vm670
      %v672 = vsel %vm671, %v663, %v668
      %v673 = vrsqrt.pop %v642
      %v674 = vmul.f32 %v673, %v642
      %v675 = vmul.f32 %v674, %v673
      %v676 = vmul.f32 0.5, %v675
      %v677 = vsub.f32 1.5, %v676
      %v678 = vmul.f32 %v673, %v677
      %vm679 = vweird.f32 %v642
      %vm680 = vweird.f32 %v673
      %vm681 = vmor %vm679, %vm680
      %v682 = vsel %vm681, %v673, %v678
      %v683 = vld [vmem:[%s3] sm:$0xff]
      %v684 = vld [vmem:[%s3 + $0x8] sm:$0xff]
      %v685 = vld [vmem:[%s3 + $0x10] sm:$0xff]
      %v686 = vld [vmem:[%s3 + $0x18] sm:$0xff]
      %v687 = vld [vmem:[%s3 + $0x20] sm:$0xff]
      %v688 = vld [vmem:[%s3 + $0x28] sm:$0xff]
      %v689 = vld [vmem:[%s3 + $0x30] sm:$0xff]
      %v690 = vld [vmem:[%s3 + $0x38] sm:$0xff]
      %v691 = vld [vmem:[%s3 + $0x40] sm:$0xff]
      %v692 = vld [vmem:[%s3 + $0x48] sm:$0xff]
      %v693 = vld [vmem:[%s3 + $0x50] sm:$0xff]
      %v694 = vld [vmem:[%s3 + $0x58] sm:$0xff]
      %v695 = vld [vmem:[%s3 + $0x60] sm:$0xff]
      %v696 = vld [vmem:[%s3 + $0x68] sm:$0xff]
      %v697 = vld [vmem:[%s3 + $0x70] sm:$0xff]
      %v698 = vld [vmem:[%s3 + $0x78] sm:$0xff]
      %v699 = vmul.f32 %v652, %v683
      %v700 = vmul.f32 %v662, %v684
      %v701 = vmul.f32 %v672, %v685
      %v702 = vmul.f32 %v682, %v686
      %v703 = vmul.f32 %v652, %v687
      %v704 = vmul.f32 %v662, %v688
      %v705 = vmul.f32 %v672, %v689
      %v706 = vmul.f32 %v682, %v690
      %v707 = vmul.f32 %v652, %v691
      %v708 = vmul.f32 %v662, %v692
      %v709 = vmul.f32 %v672, %v693
      %v710 = vmul.f32 %v682, %v694
      %v711 = vmul.f32 %v652, %v695
      %v712 = vmul.f32 %v662, %v696
      %v713 = vmul.f32 %v672, %v697
      %v714 = vmul.f32 %v682, %v698
      %716 = vset.pattern.permute.xlu0 0
      %717 = vperm.xlu0 %716, %v699
      %v718 = vpop.permute.xlu0 %717
      %721 = vset.pattern.permute.xlu0 0
      %722 = vperm.xlu0 %721, %v700
      %v723 = vpop.permute.xlu0 %722
      %726 = vset.pattern.permute.xlu0 0
      %727 = vperm.xlu0 %726, %v701
      %v728 = vpop.permute.xlu0 %727
      %731 = vset.pattern.permute.xlu0 0
      %732 = vperm.xlu0 %731, %v702
      %v733 = vpop.permute.xlu0 %732
      %736 = vset.pattern.permute.xlu0 0
      %737 = vperm.xlu0 %736, %v703
      %v738 = vpop.permute.xlu0 %737
      %741 = vset.pattern.permute.xlu0 0
      %742 = vperm.xlu0 %741, %v704
      %v743 = vpop.permute.xlu0 %742
      %746 = vset.pattern.permute.xlu0 0
      %747 = vperm.xlu0 %746, %v705
      %v748 = vpop.permute.xlu0 %747
      %751 = vset.pattern.permute.xlu0 0
      %752 = vperm.xlu0 %751, %v706
      %v753 = vpop.permute.xlu0 %752
      %756 = vset.pattern.permute.xlu0 0
      %757 = vperm.xlu0 %756, %v707
      %v758 = vpop.permute.xlu0 %757
      %761 = vset.pattern.permute.xlu0 0
      %762 = vperm.xlu0 %761, %v708
      %v763 = vpop.permute.xlu0 %762
      %766 = vset.pattern.permute.xlu0 0
      %767 = vperm.xlu0 %766, %v709
      %v768 = vpop.permute.xlu0 %767
      %771 = vset.pattern.permute.xlu0 0
      %772 = vperm.xlu0 %771, %v710
      %v773 = vpop.permute.xlu0 %772
      %776 = vset.pattern.permute.xlu0 0
      %777 = vperm.xlu0 %776, %v711
      %v778 = vpop.permute.xlu0 %777
      %781 = vset.pattern.permute.xlu0 0
      %782 = vperm.xlu0 %781, %v712
      %v783 = vpop.permute.xlu0 %782
      %786 = vset.pattern.permute.xlu0 0
      %787 = vperm.xlu0 %786, %v713
      %v788 = vpop.permute.xlu0 %787
      %791 = vset.pattern.permute.xlu0 0
      %792 = vperm.xlu0 %791, %v714
      %v793 = vpop.permute.xlu0 %792
      %v795 = vmul.f32 %v543, %v718
      %v796 = vmul.f32 %v544, %v723
      %v797 = vmul.f32 %v545, %v728
      %v798 = vmul.f32 %v546, %v733
      %v799 = vmul.f32 %v547, %v738
      %v800 = vmul.f32 %v548, %v743
      %v801 = vmul.f32 %v549, %v748
      %v802 = vmul.f32 %v550, %v753
      %v803 = vmul.f32 %v551, %v758
      %v804 = vmul.f32 %v552, %v763
      %v805 = vmul.f32 %v553, %v768
      %v806 = vmul.f32 %v554, %v773
      %v807 = vmul.f32 %v555, %v778
      %v808 = vmul.f32 %v556, %v783
      %v809 = vmul.f32 %v557, %v788
      %v810 = vmul.f32 %v558, %v793
      %v811 = vld [vmem:[%s4] sm:$0xff]
      %v812 = vld [vmem:[%s4 + $0x8] sm:$0xff]
      %v813 = vld [vmem:[%s4 + $0x10] sm:$0xff]
      %v814 = vld [vmem:[%s4 + $0x18] sm:$0xff]
      %v815 = vld [vmem:[%s4 + $0x20] sm:$0xff]
      %v816 = vld [vmem:[%s4 + $0x28] sm:$0xff]
      %v817 = vld [vmem:[%s4 + $0x30] sm:$0xff]
      %v818 = vld [vmem:[%s4 + $0x38] sm:$0xff]
      %v819 = vld [vmem:[%s4 + $0x40] sm:$0xff]
      %v820 = vld [vmem:[%s4 + $0x48] sm:$0xff]
      %v821 = vld [vmem:[%s4 + $0x50] sm:$0xff]
      %v822 = vld [vmem:[%s4 + $0x58] sm:$0xff]
      %v823 = vld [vmem:[%s4 + $0x60] sm:$0xff]
      %v824 = vld [vmem:[%s4 + $0x68] sm:$0xff]
      %v825 = vld [vmem:[%s4 + $0x70] sm:$0xff]
      %v826 = vld [vmem:[%s4 + $0x78] sm:$0xff]
      %828 = vset.pattern.permute.xlu0 0
      %829 = vperm.xlu0 %828, %v811
      %v830 = vpop.permute.xlu0 %829
      %833 = vset.pattern.permute.xlu0 0
      %834 = vperm.xlu0 %833, %v812
      %v835 = vpop.permute.xlu0 %834
      %838 = vset.pattern.permute.xlu0 0
      %839 = vperm.xlu0 %838, %v813
      %v840 = vpop.permute.xlu0 %839
      %843 = vset.pattern.permute.xlu0 0
      %844 = vperm.xlu0 %843, %v814
      %v845 = vpop.permute.xlu0 %844
      %848 = vset.pattern.permute.xlu0 0
      %849 = vperm.xlu0 %848, %v815
      %v850 = vpop.permute.xlu0 %849
      %853 = vset.pattern.permute.xlu0 0
      %854 = vperm.xlu0 %853, %v816
      %v855 = vpop.permute.xlu0 %854
      %858 = vset.pattern.permute.xlu0 0
      %859 = vperm.xlu0 %858, %v817
      %v860 = vpop.permute.xlu0 %859
      %863 = vset.pattern.permute.xlu0 0
      %864 = vperm.xlu0 %863, %v818
      %v865 = vpop.permute.xlu0 %864
      %868 = vset.pattern.permute.xlu0 0
      %869 = vperm.xlu0 %868, %v819
      %v870 = vpop.permute.xlu0 %869
      %873 = vset.pattern.permute.xlu0 0
      %874 = vperm.xlu0 %873, %v820
      %v875 = vpop.permute.xlu0 %874
      %878 = vset.pattern.permute.xlu0 0
      %879 = vperm.xlu0 %878, %v821
      %v880 = vpop.permute.xlu0 %879
      %883 = vset.pattern.permute.xlu0 0
      %884 = vperm.xlu0 %883, %v822
      %v885 = vpop.permute.xlu0 %884
      %888 = vset.pattern.permute.xlu0 0
      %889 = vperm.xlu0 %888, %v823
      %v890 = vpop.permute.xlu0 %889
      %893 = vset.pattern.permute.xlu0 0
      %894 = vperm.xlu0 %893, %v824
      %v895 = vpop.permute.xlu0 %894
      %898 = vset.pattern.permute.xlu0 0
      %899 = vperm.xlu0 %898, %v825
      %v900 = vpop.permute.xlu0 %899
      %903 = vset.pattern.permute.xlu0 0
      %904 = vperm.xlu0 %903, %v826
      %v905 = vpop.permute.xlu0 %904
      %v907 = vadd.f32 %v795, %v830
      %v908 = vadd.f32 %v796, %v835
      %v909 = vadd.f32 %v797, %v840
      %v910 = vadd.f32 %v798, %v845
      %v911 = vadd.f32 %v799, %v850
      %v912 = vadd.f32 %v800, %v855
      %v913 = vadd.f32 %v801, %v860
      %v914 = vadd.f32 %v802, %v865
      %v915 = vadd.f32 %v803, %v870
      %v916 = vadd.f32 %v804, %v875
      %v917 = vadd.f32 %v805, %v880
      %v918 = vadd.f32 %v806, %v885
      %v919 = vadd.f32 %v807, %v890
      %v920 = vadd.f32 %v808, %v895
      %v921 = vadd.f32 %v809, %v900
      %v922 = vadd.f32 %v810, %v905
      %923 = vst.msk [vmem:[%s224] sm:$0xff] %vm458, %v907
      %924 = vst.msk [vmem:[%s224 + $0x8] sm:$0xff] %vm458, %v908
      %925 = vst.msk [vmem:[%s224 + $0x10] sm:$0xff] %vm458, %v909
      %926 = vst.msk [vmem:[%s224 + $0x18] sm:$0xff] %vm458, %v910
      %927 = vst.msk [vmem:[%s224 + $0x20] sm:$0xff] %vm458, %v911
      %928 = vst.msk [vmem:[%s224 + $0x28] sm:$0xff] %vm458, %v912
      %929 = vst.msk [vmem:[%s224 + $0x30] sm:$0xff] %vm458, %v913
      %930 = vst.msk [vmem:[%s224 + $0x38] sm:$0xff] %vm458, %v914
      %931 = vst.msk [vmem:[%s224 + $0x40] sm:$0xff] %vm458, %v915
      %932 = vst.msk [vmem:[%s224 + $0x48] sm:$0xff] %vm458, %v916
      %933 = vst.msk [vmem:[%s224 + $0x50] sm:$0xff] %vm458, %v917
      %934 = vst.msk [vmem:[%s224 + $0x58] sm:$0xff] %vm458, %v918
      %935 = vst.msk [vmem:[%s224 + $0x60] sm:$0xff] %vm458, %v919
      %936 = vst.msk [vmem:[%s224 + $0x68] sm:$0xff] %vm458, %v920
      %937 = vst.msk [vmem:[%s224 + $0x70] sm:$0xff] %vm458, %v921
      %938 = vst.msk [vmem:[%s224 + $0x78] sm:$0xff] %vm458, %v922
      %p939 = scmp.lt.s32.totalorder %s16, 1
      %s940 = scalar_select %p939, %s16, 1
      %s941 = smul.addr %s940, 16
      %s942 = smul.addr %s941, 8
      %s943 = scalar_lea.vmem %s5, %s942
      // Predicated region
      $region41: #{rru_up_forward.2} parent=39 // pred_check
        %p944 = pneg %p144
      $region42: #{rru_up_forward.2} parent=39 // pred_check_branch
        %946 = sbr.rel (%p944) target = $region44
      $region43: #{rru_up_forward.2} parent=39 // pred_region
        _
      $region44: #{rru_up_forward.2} parent=39 // pred_fallthru
        _
    $region40: #{rru_up_forward.2} parent=5 // pred_fallthru
      _
    %p947 = scmp.le.s32.totalorder 2, %s11
    // Predicated region
    $region45: #{rru_up_forward.2} parent=5 // pred_check
      %p948 = pneg %p947
    $region46: #{rru_up_forward.2} parent=5 // pred_check_branch
      %950 = sbr.rel (%p948) target = $region48
    $region47: #{rru_up_forward.2} parent=5 // pred_region
      %s951 = ssub.s32 %s11, 2
      // Predicated region
      $region49: #{rru_up_forward.2} parent=47 // pred_check
        %p952 = pneg %p150
      $region50: #{rru_up_forward.2} parent=47 // pred_check_branch
        %954 = sbr.rel (%p952) target = $region52
      $region51: #{rru_up_forward.2} parent=47 // pred_region
        %p955 = scmp.lt.s32.totalorder %s17, 1
        %s956 = scalar_select %p955, %s17, 1
        %s957 = smul.addr %s956, 16
        %s958 = smul.addr %s957, 8
        %s959 = scalar_lea.vmem %s5, %s958
      $region52: #{rru_up_forward.2} parent=47 // pred_fallthru
        _
    $region48: #{rru_up_forward.2} parent=5 // pred_fallthru
      _
  $region6: #{rru_up_forward.2} parent=0 // loop_footer
    %s15 = sadd.s32 1, %s11
  $region7: #{rru_up_forward.2} parent=0 // loop_footer_branch
    %10 = sbr.rel target = $region3
  $region8: #{rru_up_forward.2} parent=0 // loop_exit
    _

// kernel: rru_up_forward.3
$region0: #{rru_up_forward.3}
  #allocation0 [shape = 'u32[]', space=smem, size = 0x4, offset = 0x4, fixed_abs, tag = 'smem constant byte address 0x4 - core index']
  #allocation1 [shape = 'u32[72,128]{1,0:T(1,128)}', space=vmem, size = 0x9000, scoped, tag = 'internal scratch']
  #allocation2 [shape = 'bf16[64,512]{1,0:T(8,128)(2,1)}', space=vmem, size = 0x10000, scoped, tag = 'scratch operand']
  %s0 = inlined_call_operand.vmem [shape: f32[2,64,256], index: 0, kind: input, shape index: {}]
  %s1 = inlined_call_operand.vmem [shape: bf16[32,576], index: 1, kind: input, shape index: {}]
  %s2 = inlined_call_operand.vmem [shape: f32[32,1], index: 2, kind: input, shape index: {}]
  %s3 = inlined_call_operand.vmem [shape: f32[32,1], index: 3, kind: input, shape index: {}]
  %s4 = inlined_call_operand.vmem [shape: f32[32,1], index: 4, kind: input, shape index: {}]
  %s5 = inlined_call_operand.vmem [shape: bf16[32,288], index: 5, kind: input, shape index: {}]
  %s6 = inlined_call_operand.vmem [shape: f32[32,1], index: 6, kind: input, shape index: {}]
  %s7 = inlined_call_operand.vmem [shape: f32[32,1], index: 7, kind: input, shape index: {}]
  %s8 = inlined_call_operand.vmem [shape: f32[32,1], index: 8, kind: input, shape index: {}]
  %s9 = inlined_call_operand.vmem [shape: bf16[32,64], index: 9, kind: input, shape index: {}]
  %s10 = inlined_call_operand.vmem [shape: f32[32,1], index: 10, kind: input, shape index: {}]
  %s11 = inlined_call_operand.vmem [shape: f32[32,1], index: 11, kind: input, shape index: {}]
  %s12 = inlined_call_operand.vmem [shape: bf16[64,32], index: 12, kind: input, shape index: {}]
  %s13 = inlined_call_operand.vmem [shape: f32[2,32,256], index: 13, kind: output, shape index: {}]
  %s14 = sld [smem:[#allocation0]]
  $region85: #{rru_up_forward.3} parent=0
    _
  %s16 = ssub.s32 1, %s14
  %s17 = scalar_select 0, %s16, %s14
  loop: start=0, step=1, limit=4
  $region2: #{rru_up_forward.3} parent=0 // loop_pre_header
    _
  $region3: #{rru_up_forward.3} parent=0 // loop_header
    %s19 = sphi 0, %s23
    %p20 = scmp.ge.s32.totalorder %s19, 4
    %s29 = sphi 0, %s31
    %s32 = sphi 0, %s29
    %s33 = sphi 0, %s32
    %s49 = sphi 0, %s33
    %s53 = sphi 0, %s53
    %s55 = sphi 0, %s53
    %s56 = sphi 0, %s55
    %s70 = sphi 0, %s56
    %s74 = sphi 0, %s74
    %s76 = sphi 0, %s74
    %s77 = sphi 0, %s76
    %s91 = sphi 0, %s77
    %s95 = sphi 0, %s95
    %s97 = sphi 0, %s95
    %s98 = sphi 0, %s97
    %s112 = sphi 0, %s98
    %s116 = sphi 0, %s116
    %s118 = sphi 0, %s116
    %s119 = sphi 0, %s118
    %s133 = sphi 0, %s119
    %s137 = sphi 0, %s137
    %s139 = sphi 0, %s137
    %s140 = sphi 0, %s139
    %s154 = sphi 0, %s140
    %s158 = sphi 0, %s158
    %s160 = sphi 0, %s158
    %s161 = sphi 0, %s160
    %s175 = sphi 0, %s161
    %s179 = sphi 0, %s179
    %s181 = sphi 0, %s179
    %s182 = sphi 0, %s181
    %s196 = sphi 0, %s182
    %s200 = sphi 0, %s200
    %s202 = sphi 0, %s200
    %s203 = sphi 0, %s202
    %s217 = sphi 0, %s203
    %s221 = sphi 0, %s221
    %s223 = sphi 0, %s221
    %s224 = sphi 0, %s223
    %s238 = sphi 0, %s224
    %s242 = sphi 0, %s242
    %s244 = sphi 0, %s242
    %s245 = sphi 0, %s244
    %s259 = sphi 0, %s245
    %s263 = sphi 0, %s263
    %s265 = sphi 0, %s263
    %s266 = sphi 0, %s265
    %s280 = sphi 0, %s266
    %s284 = sphi 0, %s284
    %s286 = sphi 0, %s284
    %s287 = sphi 0, %s286
    %s301 = sphi 0, %s287
    %s307 = sphi 0, %s309
    %s310 = sphi 0, %s307
    %s311 = sphi 0, %s310
    %s327 = sphi 0, %s311
  $region4: #{rru_up_forward.3} parent=0 // loop_header_branch
    %22 = sbr.rel (%p20) target = $region8
  $region5: #{rru_up_forward.3} parent=0 // loop_body
    %s24 = ssub.s32 %s19, 1
    %s25 = ssub.s32 %s19, 2
    %s26 = sadd.s32 %s19, 1
    %s27 = ssub.s32 %s19, %s26
    %p28 = scmp.eq.s32.totalorder %s27, 0
    %s30 = sadd.s32 %s29, 1
    %s31 = scalar_select %p28, %s29, %s30
    %p34 = pneg %p28
    %p35 = scmp.eq.s32.totalorder %s19, 1
    %p36 = por %p34, %p35
    %p37 = scmp.ne.s32.totalorder %s29, %s32
    %p38 = scmp.eq.s32.totalorder %s19, 0
    %p39 = por %p37, %p38
    %p40 = scmp.ne.s32.totalorder %s29, %s32
    %p41 = scmp.eq.s32.totalorder %s24, 1
    %p42 = por %p40, %p41
    %p43 = scmp.ne.s32.totalorder %s32, %s33
    %p44 = scmp.eq.s32.totalorder %s24, 0
    %p45 = por %p43, %p44
    %p46 = scmp.ne.s32.totalorder %s32, %s33
    %p47 = scmp.eq.s32.totalorder %s25, 1
    %p48 = por %p46, %p47
    %p50 = scmp.ne.s32.totalorder %s33, %s49
    %p51 = scmp.eq.s32.totalorder %s25, 0
    %p52 = por %p50, %p51
    %s54 = sadd.s32 %s53, 1
    %p57 = scmp.eq.s32.totalorder %s19, 1
    %p58 = scmp.ne.s32.totalorder %s53, %s55
    %p59 = scmp.eq.s32.totalorder %s19, 0
    %p60 = por %p58, %p59
    %p61 = scmp.ne.s32.totalorder %s53, %s55
    %p62 = scmp.eq.s32.totalorder %s24, 1
    %p63 = por %p61, %p62
    %p64 = scmp.ne.s32.totalorder %s55, %s56
    %p65 = scmp.eq.s32.totalorder %s24, 0
    %p66 = por %p64, %p65
    %p67 = scmp.ne.s32.totalorder %s55, %s56
    %p68 = scmp.eq.s32.totalorder %s25, 1
    %p69 = por %p67, %p68
    %p71 = scmp.ne.s32.totalorder %s56, %s70
    %p72 = scmp.eq.s32.totalorder %s25, 0
    %p73 = por %p71, %p72
    %s75 = sadd.s32 %s74, 1
    %p78 = scmp.eq.s32.totalorder %s19, 1
    %p79 = scmp.ne.s32.totalorder %s74, %s76
    %p80 = scmp.eq.s32.totalorder %s19, 0
    %p81 = por %p79, %p80
    %p82 = scmp.ne.s32.totalorder %s74, %s76
    %p83 = scmp.eq.s32.totalorder %s24, 1
    %p84 = por %p82, %p83
    %p85 = scmp.ne.s32.totalorder %s76, %s77
    %p86 = scmp.eq.s32.totalorder %s24, 0
    %p87 = por %p85, %p86
    %p88 = scmp.ne.s32.totalorder %s76, %s77
    %p89 = scmp.eq.s32.totalorder %s25, 1
    %p90 = por %p88, %p89
    %p92 = scmp.ne.s32.totalorder %s77, %s91
    %p93 = scmp.eq.s32.totalorder %s25, 0
    %p94 = por %p92, %p93
    %s96 = sadd.s32 %s95, 1
    %p99 = scmp.eq.s32.totalorder %s19, 1
    %p100 = scmp.ne.s32.totalorder %s95, %s97
    %p101 = scmp.eq.s32.totalorder %s19, 0
    %p102 = por %p100, %p101
    %p103 = scmp.ne.s32.totalorder %s95, %s97
    %p104 = scmp.eq.s32.totalorder %s24, 1
    %p105 = por %p103, %p104
    %p106 = scmp.ne.s32.totalorder %s97, %s98
    %p107 = scmp.eq.s32.totalorder %s24, 0
    %p108 = por %p106, %p107
    %p109 = scmp.ne.s32.totalorder %s97, %s98
    %p110 = scmp.eq.s32.totalorder %s25, 1
    %p111 = por %p109, %p110
    %p113 = scmp.ne.s32.totalorder %s98, %s112
    %p114 = scmp.eq.s32.totalorder %s25, 0
    %p115 = por %p113, %p114
    %s117 = sadd.s32 %s116, 1
    %p120 = scmp.eq.s32.totalorder %s19, 1
    %p121 = scmp.ne.s32.totalorder %s116, %s118
    %p122 = scmp.eq.s32.totalorder %s19, 0
    %p123 = por %p121, %p122
    %p124 = scmp.ne.s32.totalorder %s116, %s118
    %p125 = scmp.eq.s32.totalorder %s24, 1
    %p126 = por %p124, %p125
    %p127 = scmp.ne.s32.totalorder %s118, %s119
    %p128 = scmp.eq.s32.totalorder %s24, 0
    %p129 = por %p127, %p128
    %p130 = scmp.ne.s32.totalorder %s118, %s119
    %p131 = scmp.eq.s32.totalorder %s25, 1
    %p132 = por %p130, %p131
    %p134 = scmp.ne.s32.totalorder %s119, %s133
    %p135 = scmp.eq.s32.totalorder %s25, 0
    %p136 = por %p134, %p135
    %s138 = sadd.s32 %s137, 1
    %p141 = scmp.eq.s32.totalorder %s19, 1
    %p142 = scmp.ne.s32.totalorder %s137, %s139
    %p143 = scmp.eq.s32.totalorder %s19, 0
    %p144 = por %p142, %p143
    %p145 = scmp.ne.s32.totalorder %s137, %s139
    %p146 = scmp.eq.s32.totalorder %s24, 1
    %p147 = por %p145, %p146
    %p148 = scmp.ne.s32.totalorder %s139, %s140
    %p149 = scmp.eq.s32.totalorder %s24, 0
    %p150 = por %p148, %p149
    %p151 = scmp.ne.s32.totalorder %s139, %s140
    %p152 = scmp.eq.s32.totalorder %s25, 1
    %p153 = por %p151, %p152
    %p155 = scmp.ne.s32.totalorder %s140, %s154
    %p156 = scmp.eq.s32.totalorder %s25, 0
    %p157 = por %p155, %p156
    %s159 = sadd.s32 %s158, 1
    %p162 = scmp.eq.s32.totalorder %s19, 1
    %p163 = scmp.ne.s32.totalorder %s158, %s160
    %p164 = scmp.eq.s32.totalorder %s19, 0
    %p165 = por %p163, %p164
    %p166 = scmp.ne.s32.totalorder %s158, %s160
    %p167 = scmp.eq.s32.totalorder %s24, 1
    %p168 = por %p166, %p167
    %p169 = scmp.ne.s32.totalorder %s160, %s161
    %p170 = scmp.eq.s32.totalorder %s24, 0
    %p171 = por %p169, %p170
    %p172 = scmp.ne.s32.totalorder %s160, %s161
    %p173 = scmp.eq.s32.totalorder %s25, 1
    %p174 = por %p172, %p173
    %p176 = scmp.ne.s32.totalorder %s161, %s175
    %p177 = scmp.eq.s32.totalorder %s25, 0
    %p178 = por %p176, %p177
    %s180 = sadd.s32 %s179, 1
    %p183 = scmp.eq.s32.totalorder %s19, 1
    %p184 = scmp.ne.s32.totalorder %s179, %s181
    %p185 = scmp.eq.s32.totalorder %s19, 0
    %p186 = por %p184, %p185
    %p187 = scmp.ne.s32.totalorder %s179, %s181
    %p188 = scmp.eq.s32.totalorder %s24, 1
    %p189 = por %p187, %p188
    %p190 = scmp.ne.s32.totalorder %s181, %s182
    %p191 = scmp.eq.s32.totalorder %s24, 0
    %p192 = por %p190, %p191
    %p193 = scmp.ne.s32.totalorder %s181, %s182
    %p194 = scmp.eq.s32.totalorder %s25, 1
    %p195 = por %p193, %p194
    %p197 = scmp.ne.s32.totalorder %s182, %s196
    %p198 = scmp.eq.s32.totalorder %s25, 0
    %p199 = por %p197, %p198
    %s201 = sadd.s32 %s200, 1
    %p204 = scmp.eq.s32.totalorder %s19, 1
    %p205 = scmp.ne.s32.totalorder %s200, %s202
    %p206 = scmp.eq.s32.totalorder %s19, 0
    %p207 = por %p205, %p206
    %p208 = scmp.ne.s32.totalorder %s200, %s202
    %p209 = scmp.eq.s32.totalorder %s24, 1
    %p210 = por %p208, %p209
    %p211 = scmp.ne.s32.totalorder %s202, %s203
    %p212 = scmp.eq.s32.totalorder %s24, 0
    %p213 = por %p211, %p212
    %p214 = scmp.ne.s32.totalorder %s202, %s203
    %p215 = scmp.eq.s32.totalorder %s25, 1
    %p216 = por %p214, %p215
    %p218 = scmp.ne.s32.totalorder %s203, %s217
    %p219 = scmp.eq.s32.totalorder %s25, 0
    %p220 = por %p218, %p219
    %s222 = sadd.s32 %s221, 1
    %p225 = scmp.eq.s32.totalorder %s19, 1
    %p226 = scmp.ne.s32.totalorder %s221, %s223
    %p227 = scmp.eq.s32.totalorder %s19, 0
    %p228 = por %p226, %p227
    %p229 = scmp.ne.s32.totalorder %s221, %s223
    %p230 = scmp.eq.s32.totalorder %s24, 1
    %p231 = por %p229, %p230
    %p232 = scmp.ne.s32.totalorder %s223, %s224
    %p233 = scmp.eq.s32.totalorder %s24, 0
    %p234 = por %p232, %p233
    %p235 = scmp.ne.s32.totalorder %s223, %s224
    %p236 = scmp.eq.s32.totalorder %s25, 1
    %p237 = por %p235, %p236
    %p239 = scmp.ne.s32.totalorder %s224, %s238
    %p240 = scmp.eq.s32.totalorder %s25, 0
    %p241 = por %p239, %p240
    %s243 = sadd.s32 %s242, 1
    %p246 = scmp.eq.s32.totalorder %s19, 1
    %p247 = scmp.ne.s32.totalorder %s242, %s244
    %p248 = scmp.eq.s32.totalorder %s19, 0
    %p249 = por %p247, %p248
    %p250 = scmp.ne.s32.totalorder %s242, %s244
    %p251 = scmp.eq.s32.totalorder %s24, 1
    %p252 = por %p250, %p251
    %p253 = scmp.ne.s32.totalorder %s244, %s245
    %p254 = scmp.eq.s32.totalorder %s24, 0
    %p255 = por %p253, %p254
    %p256 = scmp.ne.s32.totalorder %s244, %s245
    %p257 = scmp.eq.s32.totalorder %s25, 1
    %p258 = por %p256, %p257
    %p260 = scmp.ne.s32.totalorder %s245, %s259
    %p261 = scmp.eq.s32.totalorder %s25, 0
    %p262 = por %p260, %p261
    %s264 = sadd.s32 %s263, 1
    %p267 = scmp.eq.s32.totalorder %s19, 1
    %p268 = scmp.ne.s32.totalorder %s263, %s265
    %p269 = scmp.eq.s32.totalorder %s19, 0
    %p270 = por %p268, %p269
    %p271 = scmp.ne.s32.totalorder %s263, %s265
    %p272 = scmp.eq.s32.totalorder %s24, 1
    %p273 = por %p271, %p272
    %p274 = scmp.ne.s32.totalorder %s265, %s266
    %p275 = scmp.eq.s32.totalorder %s24, 0
    %p276 = por %p274, %p275
    %p277 = scmp.ne.s32.totalorder %s265, %s266
    %p278 = scmp.eq.s32.totalorder %s25, 1
    %p279 = por %p277, %p278
    %p281 = scmp.ne.s32.totalorder %s266, %s280
    %p282 = scmp.eq.s32.totalorder %s25, 0
    %p283 = por %p281, %p282
    %s285 = sadd.s32 %s284, 1
    %p288 = scmp.eq.s32.totalorder %s19, 1
    %p289 = scmp.ne.s32.totalorder %s284, %s286
    %p290 = scmp.eq.s32.totalorder %s19, 0
    %p291 = por %p289, %p290
    %p292 = scmp.ne.s32.totalorder %s284, %s286
    %p293 = scmp.eq.s32.totalorder %s24, 1
    %p294 = por %p292, %p293
    %p295 = scmp.ne.s32.totalorder %s286, %s287
    %p296 = scmp.eq.s32.totalorder %s24, 0
    %p297 = por %p295, %p296
    %p298 = scmp.ne.s32.totalorder %s286, %s287
    %p299 = scmp.eq.s32.totalorder %s25, 1
    %p300 = por %p298, %p299
    %p302 = scmp.ne.s32.totalorder %s287, %s301
    %p303 = scmp.eq.s32.totalorder %s25, 0
    %p304 = por %p302, %p303
    %s305 = ssub.s32 %s19, %s26
    %p306 = scmp.eq.s32.totalorder %s305, 0
    %s308 = sadd.s32 %s307, 1
    %s309 = scalar_select %p306, %s307, %s308
    %p312 = pneg %p306
    %p313 = scmp.eq.s32.totalorder %s19, 1
    %p314 = por %p312, %p313
    %p315 = scmp.ne.s32.totalorder %s307, %s310
    %p316 = scmp.eq.s32.totalorder %s19, 0
    %p317 = por %p315, %p316
    %p318 = scmp.ne.s32.totalorder %s307, %s310
    %p319 = scmp.eq.s32.totalorder %s24, 1
    %p320 = por %p318, %p319
    %p321 = scmp.ne.s32.totalorder %s310, %s311
    %p322 = scmp.eq.s32.totalorder %s24, 0
    %p323 = por %p321, %p322
    %p324 = scmp.ne.s32.totalorder %s310, %s311
    %p325 = scmp.eq.s32.totalorder %s25, 1
    %p326 = por %p324, %p325
    %p328 = scmp.ne.s32.totalorder %s311, %s327
    %p329 = scmp.eq.s32.totalorder %s25, 0
    %p330 = por %p328, %p329
    %p331 = scmp.le.s32.totalorder 1, %s19
    %p332 = scmp.lt.s32.totalorder %s19, 3
    %p333 = pnand %p331, %p332
    %p334 = pneg %p333
    // Predicated region
    $region9: #{rru_up_forward.3} parent=5 // pred_check
      _
    $region10: #{rru_up_forward.3} parent=5 // pred_check_branch
      %336 = sbr.rel (%p333) target = $region12
    $region11: #{rru_up_forward.3} parent=5 // pred_region
      %s337 = ssub.s32 %s19, 1
      // Predicated region
      $region13: #{rru_up_forward.3} parent=11 // pred_check
        %p338 = pneg %p66
      $region14: #{rru_up_forward.3} parent=11 // pred_check_branch
        %340 = sbr.rel (%p338) target = $region16
      $region15: #{rru_up_forward.3} parent=11 // pred_region
        _
      $region16: #{rru_up_forward.3} parent=11 // pred_fallthru
        _
      // Predicated region
      $region17: #{rru_up_forward.3} parent=11 // pred_check
        %p341 = pneg %p87
      $region18: #{rru_up_forward.3} parent=11 // pred_check_branch
        %343 = sbr.rel (%p341) target = $region20
      $region19: #{rru_up_forward.3} parent=11 // pred_region
        _
      $region20: #{rru_up_forward.3} parent=11 // pred_fallthru
        _
      // Predicated region
      $region21: #{rru_up_forward.3} parent=11 // pred_check
        %p344 = pneg %p108
      $region22: #{rru_up_forward.3} parent=11 // pred_check_branch
        %346 = sbr.rel (%p344) target = $region24
      $region23: #{rru_up_forward.3} parent=11 // pred_region
        _
      $region24: #{rru_up_forward.3} parent=11 // pred_fallthru
        _
      // Predicated region
      $region25: #{rru_up_forward.3} parent=11 // pred_check
        %p347 = pneg %p129
      $region26: #{rru_up_forward.3} parent=11 // pred_check_branch
        %349 = sbr.rel (%p347) target = $region28
      $region27: #{rru_up_forward.3} parent=11 // pred_region
        _
      $region28: #{rru_up_forward.3} parent=11 // pred_fallthru
        _
      // Predicated region
      $region29: #{rru_up_forward.3} parent=11 // pred_check
        %p350 = pneg %p150
      $region30: #{rru_up_forward.3} parent=11 // pred_check_branch
        %352 = sbr.rel (%p350) target = $region32
      $region31: #{rru_up_forward.3} parent=11 // pred_region
        _
      $region32: #{rru_up_forward.3} parent=11 // pred_fallthru
        _
      // Predicated region
      $region33: #{rru_up_forward.3} parent=11 // pred_check
        %p353 = pneg %p171
      $region34: #{rru_up_forward.3} parent=11 // pred_check_branch
        %355 = sbr.rel (%p353) target = $region36
      $region35: #{rru_up_forward.3} parent=11 // pred_region
        _
      $region36: #{rru_up_forward.3} parent=11 // pred_fallthru
        _
      // Predicated region
      $region37: #{rru_up_forward.3} parent=11 // pred_check
        %p356 = pneg %p192
      $region38: #{rru_up_forward.3} parent=11 // pred_check_branch
        %358 = sbr.rel (%p356) target = $region40
      $region39: #{rru_up_forward.3} parent=11 // pred_region
        _
      $region40: #{rru_up_forward.3} parent=11 // pred_fallthru
        _
      // Predicated region
      $region41: #{rru_up_forward.3} parent=11 // pred_check
        %p359 = pneg %p213
      $region42: #{rru_up_forward.3} parent=11 // pred_check_branch
        %361 = sbr.rel (%p359) target = $region44
      $region43: #{rru_up_forward.3} parent=11 // pred_region
        _
      $region44: #{rru_up_forward.3} parent=11 // pred_fallthru
        _
      // Predicated region
      $region45: #{rru_up_forward.3} parent=11 // pred_check
        %p362 = pneg %p234
      $region46: #{rru_up_forward.3} parent=11 // pred_check_branch
        %364 = sbr.rel (%p362) target = $region48
      $region47: #{rru_up_forward.3} parent=11 // pred_region
        _
      $region48: #{rru_up_forward.3} parent=11 // pred_fallthru
        _
      // Predicated region
      $region49: #{rru_up_forward.3} parent=11 // pred_check
        %p365 = pneg %p255
      $region50: #{rru_up_forward.3} parent=11 // pred_check_branch
        %367 = sbr.rel (%p365) target = $region52
      $region51: #{rru_up_forward.3} parent=11 // pred_region
        _
      $region52: #{rru_up_forward.3} parent=11 // pred_fallthru
        _
      // Predicated region
      $region53: #{rru_up_forward.3} parent=11 // pred_check
        %p368 = pneg %p276
      $region54: #{rru_up_forward.3} parent=11 // pred_check_branch
        %370 = sbr.rel (%p368) target = $region56
      $region55: #{rru_up_forward.3} parent=11 // pred_region
        _
      $region56: #{rru_up_forward.3} parent=11 // pred_fallthru
        _
      // Predicated region
      $region57: #{rru_up_forward.3} parent=11 // pred_check
        %p371 = pneg %p297
      $region58: #{rru_up_forward.3} parent=11 // pred_check_branch
        %373 = sbr.rel (%p371) target = $region60
      $region59: #{rru_up_forward.3} parent=11 // pred_region
        _
      $region60: #{rru_up_forward.3} parent=11 // pred_fallthru
        _
    $region12: #{rru_up_forward.3} parent=5 // pred_fallthru
      _
    %p374 = scmp.lt.s32.totalorder %s19, 2
    // Predicated region
    $region61: #{rru_up_forward.3} parent=5 // pred_check
      %p375 = pneg %p374
    $region62: #{rru_up_forward.3} parent=5 // pred_check_branch
      %377 = sbr.rel (%p375) target = $region64
    $region63: #{rru_up_forward.3} parent=5 // pred_region
      // Predicated region
      $region65: #{rru_up_forward.3} parent=63 // pred_check
        %p378 = pneg %p39
      $region66: #{rru_up_forward.3} parent=63 // pred_check_branch
        %380 = sbr.rel (%p378) target = $region68
      $region67: #{rru_up_forward.3} parent=63 // pred_region
        %p381 = scmp.lt.s32.totalorder %s19, 1
        %s382 = scalar_select %p381, %s19, 1
        %s383 = smul.addr %s382, 16
        %s384 = smul.addr %s383, 8
        %s385 = scalar_lea.vmem %s0, %s384
      $region68: #{rru_up_forward.3} parent=63 // pred_fallthru
        _
    $region64: #{rru_up_forward.3} parent=5 // pred_fallthru
      _
    %p386 = scmp.le.s32.totalorder 1, %s19
    %p387 = scmp.lt.s32.totalorder %s19, 3
    %p388 = pnand %p386, %p387
    %p389 = pneg %p388
    // Predicated region
    $region69: #{rru_up_forward.3} parent=5 // pred_check
      _
    $region70: #{rru_up_forward.3} parent=5 // pred_check_branch
      %391 = sbr.rel (%p388) target = $region72
    $region71: #{rru_up_forward.3} parent=5 // pred_region
      %s392 = ssub.s32 %s19, 1
      %p393 = scmp.lt.s32.totalorder %s24, 1
      %s394 = scalar_select %p393, %s24, 1
      %s395 = smul.addr %s394, 16
      %s396 = smul.addr %s395, 8
      %s397 = scalar_lea.vmem %s0, %s396
      %p398 = pneg %p45
      %p399 = pneg %p42
      %p400 = pneg %p66
      %p401 = pneg %p63
      %p402 = pneg %p87
      %p403 = pneg %p84
      %p404 = pneg %p108
      %p405 = pneg %p105
      %p406 = pneg %p129
      %p407 = pneg %p126
      %p408 = pneg %p150
      %p409 = pneg %p147
      %p410 = pneg %p171
      %p411 = pneg %p168
      %p412 = pneg %p192
      %p413 = pneg %p189
      %p414 = pneg %p213
      %p415 = pneg %p210
      %p416 = pneg %p234
      %p417 = pneg %p231
      %p418 = pneg %p255
      %p419 = pneg %p252
      %p420 = pneg %p276
      %p421 = pneg %p273
      %p422 = pneg %p297
      %p423 = pneg %p294
      %p424 = pneg %p323
      %p425 = pneg %p320
      %p426 = scmp.lt.s32.totalorder %s24, 1
      %s427 = scalar_select %p426, %s24, 1
      %s428 = smul.addr %s427, 8
      %s429 = smul.addr %s428, 8
      %s430 = scalar_lea.vmem %s13, %s429
      %p431 = scmp.lt.s32.totalorder %s24, 1
      %s432 = scalar_select %p431, %s24, 1
      %s433 = smul.addr %s432, 16
      %s434 = smul.addr %s433, 8
      %s435 = scalar_lea.vmem %s0, %s434
      %p436 = scmp.lt.s32.totalorder %s24, 1
      %s437 = scalar_select %p436, %s24, 1
      %s438 = smul.addr %s437, 8
      %s439 = smul.addr %s438, 8
      %s440 = scalar_lea.vmem %s13, %s439
      %444 = vst [vmem:[#allocation2] sm:$0xf] 0
      %445 = vst [vmem:[#allocation2 + $0x10] sm:$0xf] 0
      %446 = vst [vmem:[#allocation2 + $0x20] sm:$0xf] 0
      %447 = vst [vmem:[#allocation2 + $0x30] sm:$0xf] 0
      %448 = vst [vmem:[#allocation2 + $0x40] sm:$0xf] 0
      %449 = vst [vmem:[#allocation2 + $0x50] sm:$0xf] 0
      %450 = vst [vmem:[#allocation2 + $0x60] sm:$0xf] 0
      %451 = vst [vmem:[#allocation2 + $0x70] sm:$0xf] 0
      %452 = vst [vmem:[#allocation2 + $0xc] sm:$0xf] 0
      %453 = vst [vmem:[#allocation2 + $0x1c] sm:$0xf] 0
      %454 = vst [vmem:[#allocation2 + $0x2c] sm:$0xf] 0
      %455 = vst [vmem:[#allocation2 + $0x3c] sm:$0xf] 0
      %456 = vst [vmem:[#allocation2 + $0x4c] sm:$0xf] 0
      %457 = vst [vmem:[#allocation2 + $0x5c] sm:$0xf] 0
      %458 = vst [vmem:[#allocation2 + $0x6c] sm:$0xf] 0
      %459 = vst [vmem:[#allocation2 + $0x7c] sm:$0xf] 0
      %v460 = vlaneseq
      %v461 = vand.u32 %v460, 127
      %v462 = vadd.s32 %v461, 128
      %vm463 = vcmp.lt.s32.totalorder %v461, 0
      %v464 = vsub.s32 0, %v461
      %v465 = vsel %vm463, %v464, %v461
      %v466 = vshrl.u32 %v465, 4
      %v467 = vand.u32 %v465, 15
      %v468 = vsub.s32 0, %v467
      %v469 = vsel %vm463, %v468, %v467
      %vm470 = vcmp.lt.s32.totalorder %v462, 0
      %v471 = vsub.s32 0, %v462
      %v472 = vsel %vm470, %v471, %v462
      %v473 = vshrl.u32 %v472, 4
      %v474 = vand.u32 %v472, 15
      %v475 = vsub.s32 0, %v474
      %v476 = vsel %vm470, %v475, %v474
      %vm477 = vcmp.ne.s32.totalorder %v469, 0
      %vm478 = vcmp.ne.s32.totalorder %v476, 0
      %vm479 = vcmp.lt.s32.totalorder %v469, 0
      %vm480 = vcmp.lt.s32.totalorder %v476, 0
      %vm481 = vmand %vm479, %vm477
      %vm482 = vmand %vm480, %vm478
      %v483 = vadd.s32 %v469, 16
      %v484 = vadd.s32 %v476, 16
      %v485 = vsel %vm481, %v483, %v469
      %v486 = vsel %vm482, %v484, %v476
      %vm487 = vcmp.lt.s32.totalorder %v485, 14
      %vm488 = vcmp.lt.s32.totalorder %v486, 14
      %vm489 = vcmp.ge.s32.totalorder %v485, 2
      %vm490 = vcmp.ge.s32.totalorder %v486, 2
      %v491 = vld [vmem:[%s435] sm:$0xff]
      %v492 = vld [vmem:[%s435 + $0x8] sm:$0xff]
      %v493 = vld [vmem:[%s435 + $0x10] sm:$0xff]
      %v494 = vld [vmem:[%s435 + $0x18] sm:$0xff]
      %v495 = vld [vmem:[%s435 + $0x20] sm:$0xff]
      %v496 = vld [vmem:[%s435 + $0x28] sm:$0xff]
      %v497 = vld [vmem:[%s435 + $0x30] sm:$0xff]
      %v498 = vld [vmem:[%s435 + $0x38] sm:$0xff]
      %v499 = vld [vmem:[%s435 + $0x40] sm:$0xff]
      %v500 = vld [vmem:[%s435 + $0x48] sm:$0xff]
      %v501 = vld [vmem:[%s435 + $0x50] sm:$0xff]
      %v502 = vld [vmem:[%s435 + $0x58] sm:$0xff]
      %v503 = vld [vmem:[%s435 + $0x60] sm:$0xff]
      %v504 = vld [vmem:[%s435 + $0x68] sm:$0xff]
      %v505 = vld [vmem:[%s435 + $0x70] sm:$0xff]
      %v506 = vld [vmem:[%s435 + $0x78] sm:$0xff]
      %v507 = vmax.f32 %v491, 0.0
      %v508 = vmax.f32 %v492, 0.0
      %v509 = vmax.f32 %v493, 0.0
      %v510 = vmax.f32 %v494, 0.0
      %v511 = vmax.f32 %v495, 0.0
      %v512 = vmax.f32 %v496, 0.0
      %v513 = vmax.f32 %v497, 0.0
      %v514 = vmax.f32 %v498, 0.0
      %v515 = vmax.f32 %v499, 0.0
      %v516 = vmax.f32 %v500, 0.0
      %v517 = vmax.f32 %v501, 0.0
      %v518 = vmax.f32 %v502, 0.0
      %v519 = vmax.f32 %v503, 0.0
      %v520 = vmax.f32 %v504, 0.0
      %v521 = vmax.f32 %v505, 0.0
      %v522 = vmax.f32 %v506, 0.0
      %v523 = vpack.c.bf16 %v508, %v507
      %v524 = vpack.c.bf16 %v510, %v509
      %v525 = vpack.c.bf16 %v512, %v511
      %v526 = vpack.c.bf16 %v514, %v513
      %v527 = vpack.c.bf16 %v516, %v515
      %v528 = vpack.c.bf16 %v518, %v517
      %v529 = vpack.c.bf16 %v520, %v519
      %v530 = vpack.c.bf16 %v522, %v521
      %v531 = vld [vmem:[%s2] sm:$0xff]
      %v532 = vld [vmem:[%s2 + $0x8] sm:$0xff]
      %v533 = vld [vmem:[%s2 + $0x10] sm:$0xff]
      %v534 = vld [vmem:[%s2 + $0x18] sm:$0xff]
      %535 = vst [vmem:[#allocation2 + $0x4] sm:$0xff] %v523
      %536 = vst [vmem:[#allocation2 + $0x14] sm:$0xff] %v524
      %537 = vst [vmem:[#allocation2 + $0x24] sm:$0xff] %v525
      %538 = vst [vmem:[#allocation2 + $0x34] sm:$0xff] %v526
      %539 = vst [vmem:[#allocation2 + $0x44] sm:$0xff] %v527
      %540 = vst [vmem:[#allocation2 + $0x54] sm:$0xff] %v528
      %541 = vst [vmem:[#allocation2 + $0x64] sm:$0xff] %v529
      %542 = vst [vmem:[#allocation2 + $0x74] sm:$0xff] %v530
      %v543 = vld [vmem:[#allocation2] sm:$0xff]
      %v544 = vld [vmem:[#allocation2 + $0x8] sm:$0xf]
      %v545 = vld [vmem:[#allocation2 + $0x10] sm:$0xff]
      %v546 = vld [vmem:[#allocation2 + $0x18] sm:$0xf]
      %v547 = vld [vmem:[#allocation2 + $0x20] sm:$0xff]
      %v548 = vld [vmem:[#allocation2 + $0x28] sm:$0xf]
      %v549 = vld [vmem:[#allocation2 + $0x30] sm:$0xff]
      %v550 = vld [vmem:[#allocation2 + $0x38] sm:$0xf]
      %v551 = vld [vmem:[#allocation2 + $0x40] sm:$0xff]
      %v552 = vld [vmem:[#allocation2 + $0x48] sm:$0xf]
      %v553 = vld [vmem:[#allocation2 + $0x50] sm:$0xff]
      %v554 = vld [vmem:[#allocation2 + $0x58] sm:$0xf]
      %v555 = vld [vmem:[#allocation2 + $0x60] sm:$0xff]
      %v556 = vld [vmem:[#allocation2 + $0x68] sm:$0xf]
      %v557 = vld [vmem:[#allocation2 + $0x70] sm:$0xff]
      %v558 = vld [vmem:[#allocation2 + $0x78] sm:$0xf]
      %v559 = vsel %vm489, 1, 0
      %v560 = vsel %vm490, 1, 0
      %vm561 = vcmp.eq.s32.totalorder %v559, 1
      %vm562 = vcmp.eq.s32.totalorder %v560, 1
      %vm563 = vmpackc.low %vm562, %vm561
      %v564 = vsel %vm563, 65537, 0
      %565 = vrot.lane.b32.xlu0 %v564, 94
      %v566 = vpop.permute.xlu0 %565
      %v567 = vrot.slane %v566, 4
      %vm568 = vcmask 769024
      %v569 = vsel %vm568, %v567, %v566
      %v570 = vunpack.c.l.b16 %v569
      %v571 = vunpack.c.h.b16 %v569
      %v572 = vunpack.c.l.b16 0
      %v573 = vunpack.c.h.b16 0
      %vm574 = vcmp.ne.s32.totalorder %v570, %v572
      %vm575 = vcmp.ne.s32.totalorder %v571, %v573
      %vm576 = vmpackc.low %vm575, %vm574
      %v577 = vunpack.c.l.b16 %v567
      %v578 = vunpack.c.h.b16 %v567
      %v579 = vunpack.c.l.b16 0
      %v580 = vunpack.c.h.b16 0
      %vm581 = vcmp.ne.s32.totalorder %v577, %v579
      %vm582 = vcmp.ne.s32.totalorder %v578, %v580
      %vm583 = vmpackc.low %vm582, %vm581
      %v584 = vsel %vm576, %v543, 0
      %v585 = vsel %vm583, %v544, 0
      %v586 = vsel %vm576, %v545, 0
      %v587 = vsel %vm583, %v546, 0
      %v588 = vsel %vm576, %v547, 0
      %v589 = vsel %vm583, %v548, 0
      %v590 = vsel %vm576, %v549, 0
      %v591 = vsel %vm583, %v550, 0
      %v592 = vsel %vm576, %v551, 0
      %v593 = vsel %vm583, %v552, 0
      %v594 = vsel %vm576, %v553, 0
      %v595 = vsel %vm583, %v554, 0
      %v596 = vsel %vm576, %v555, 0
      %v597 = vsel %vm583, %v556, 0
      %v598 = vsel %vm576, %v557, 0
      %v599 = vsel %vm583, %v558, 0
      %v600 = vsel %vm487, 1, 0
      %v601 = vsel %vm488, 1, 0
      %vm602 = vcmp.eq.s32.totalorder %v600, 1
      %vm603 = vcmp.eq.s32.totalorder %v601, 1
      %vm604 = vmpackc.low %vm603, %vm602
      %v605 = vsel %vm604, 65537, 0
      %606 = vrot.lane.b32.xlu0 %v605, 98
      %v607 = vpop.permute.xlu0 %606
      %v608 = vrot.slane %v607, 4
      %vm609 = vcmask 801792
      %v610 = vsel %vm609, %v608, %v607
      %v611 = vunpack.c.l.b16 %v610
      %v612 = vunpack.c.h.b16 %v610
      %v613 = vunpack.c.l.b16 0
      %v614 = vunpack.c.h.b16 0
      %vm615 = vcmp.ne.s32.totalorder %v611, %v613
      %vm616 = vcmp.ne.s32.totalorder %v612, %v614
      %vm617 = vmpackc.low %vm616, %vm615
      %v618 = vunpack.c.l.b16 %v608
      %v619 = vunpack.c.h.b16 %v608
      %v620 = vunpack.c.l.b16 0
      %v621 = vunpack.c.h.b16 0
      %vm622 = vcmp.ne.s32.totalorder %v618, %v620
      %vm623 = vcmp.ne.s32.totalorder %v619, %v621
      %vm624 = vmpackc.low %vm623, %vm622
      %v625 = vsel %vm617, %v543, 0
      %v626 = vsel %vm624, %v544, 0
      %v627 = vsel %vm617, %v545, 0
      %v628 = vsel %vm624, %v546, 0
      %v629 = vsel %vm617, %v547, 0
      %v630 = vsel %vm624, %v548, 0
      %v631 = vsel %vm617, %v549, 0
      %v632 = vsel %vm624, %v550, 0
      %v633 = vsel %vm617, %v551, 0
      %v634 = vsel %vm624, %v552, 0
      %v635 = vsel %vm617, %v553, 0
      %v636 = vsel %vm624, %v554, 0
      %v637 = vsel %vm617, %v555, 0
      %v638 = vsel %vm624, %v556, 0
      %v639 = vsel %vm617, %v557, 0
      %v640 = vsel %vm624, %v558, 0
      %641 = vrot.lane.b32.xlu0 %v564, 126
      %v642 = vpop.permute.xlu0 %641
      %v643 = vrot.slane %v642, 4
      %vm644 = vcmask 1031168
      %v645 = vsel %vm644, %v643, %v642
      %v646 = vunpack.c.l.b16 %v645
      %v647 = vunpack.c.h.b16 %v645
      %v648 = vunpack.c.l.b16 0
      %v649 = vunpack.c.h.b16 0
      %vm650 = vcmp.ne.s32.totalorder %v646, %v648
      %vm651 = vcmp.ne.s32.totalorder %v647, %v649
      %vm652 = vmpackc.low %vm651, %vm650
      %v653 = vunpack.c.l.b16 %v643
      %v654 = vunpack.c.h.b16 %v643
      %v655 = vunpack.c.l.b16 0
      %v656 = vunpack.c.h.b16 0
      %vm657 = vcmp.ne.s32.totalorder %v653, %v655
      %vm658 = vcmp.ne.s32.totalorder %v654, %v656
      %vm659 = vmpackc.low %vm658, %vm657
      %v660 = vsel %vm652, %v543, 0
      %v661 = vsel %vm659, %v544, 0
      %v662 = vsel %vm652, %v545, 0
      %v663 = vsel %vm659, %v546, 0
      %v664 = vsel %vm652, %v547, 0
      %v665 = vsel %vm659, %v548, 0
      %v666 = vsel %vm652, %v549, 0
      %v667 = vsel %vm659, %v550, 0
      %v668 = vsel %vm652, %v551, 0
      %v669 = vsel %vm659, %v552, 0
      %v670 = vsel %vm652, %v553, 0
      %v671 = vsel %vm659, %v554, 0
      %v672 = vsel %vm652, %v555, 0
      %v673 = vsel %vm659, %v556, 0
      %v674 = vsel %vm652, %v557, 0
      %v675 = vsel %vm659, %v558, 0
      %v676 = vld [vmem:[#allocation2 + $0x4] sm:$0xff]
      %v677 = vld [vmem:[#allocation2 + $0x14] sm:$0xff]
      %v678 = vld [vmem:[#allocation2 + $0x24] sm:$0xff]
      %v679 = vld [vmem:[#allocation2 + $0x34] sm:$0xff]
      %v680 = vld [vmem:[#allocation2 + $0x44] sm:$0xff]
      %v681 = vld [vmem:[#allocation2 + $0x54] sm:$0xff]
      %v682 = vld [vmem:[#allocation2 + $0x64] sm:$0xff]
      %v683 = vld [vmem:[#allocation2 + $0x74] sm:$0xff]
      %v684 = vld [vmem:[#allocation2 + $0x4] sm:$0xff]
      %v685 = vld [vmem:[#allocation2 + $0xc] sm:$0xf]
      %v686 = vld [vmem:[#allocation2 + $0x14] sm:$0xff]
      %v687 = vld [vmem:[#allocation2 + $0x1c] sm:$0xf]
      %v688 = vld [vmem:[#allocation2 + $0x24] sm:$0xff]
      %v689 = vld [vmem:[#allocation2 + $0x2c] sm:$0xf]
      %v690 = vld [vmem:[#allocation2 + $0x34] sm:$0xff]
      %v691 = vld [vmem:[#allocation2 + $0x3c] sm:$0xf]
      %v692 = vld [vmem:[#allocation2 + $0x44] sm:$0xff]
      %v693 = vld [vmem:[#allocation2 + $0x4c] sm:$0xf]
      %v694 = vld [vmem:[#allocation2 + $0x54] sm:$0xff]
      %v695 = vld [vmem:[#allocation2 + $0x5c] sm:$0xf]
      %v696 = vld [vmem:[#allocation2 + $0x64] sm:$0xff]
      %v697 = vld [vmem:[#allocation2 + $0x6c] sm:$0xf]
      %v698 = vld [vmem:[#allocation2 + $0x74] sm:$0xff]
      %v699 = vld [vmem:[#allocation2 + $0x7c] sm:$0xf]
      %700 = vrot.lane.b32.xlu0 %v605, 2
      %v701 = vpop.permute.xlu0 %700
      %v702 = vrot.slane %v701, 4
      %vm703 = vcmask 15360
      %v704 = vsel %vm703, %v702, %v701
      %v705 = vunpack.c.l.b16 %v704
      %v706 = vunpack.c.h.b16 %v704
      %v707 = vunpack.c.l.b16 0
      %v708 = vunpack.c.h.b16 0
      %vm709 = vcmp.ne.s32.totalorder %v705, %v707
      %vm710 = vcmp.ne.s32.totalorder %v706, %v708
      %vm711 = vmpackc.low %vm710, %vm709
      %v712 = vunpack.c.l.b16 %v702
      %v713 = vunpack.c.h.b16 %v702
      %v714 = vunpack.c.l.b16 0
      %v715 = vunpack.c.h.b16 0
      %vm716 = vcmp.ne.s32.totalorder %v712, %v714
      %vm717 = vcmp.ne.s32.totalorder %v713, %v715
      %vm718 = vmpackc.low %vm717, %vm716
      %v719 = vsel %vm711, %v684, 0
      %v720 = vsel %vm718, %v685, 0
      %v721 = vsel %vm711, %v686, 0
      %v722 = vsel %vm718, %v687, 0
      %v723 = vsel %vm711, %v688, 0
      %v724 = vsel %vm718, %v689, 0
      %v725 = vsel %vm711, %v690, 0
      %v726 = vsel %vm718, %v691, 0
      %v727 = vsel %vm711, %v692, 0
      %v728 = vsel %vm718, %v693, 0
      %v729 = vsel %vm711, %v694, 0
      %v730 = vsel %vm718, %v695, 0
      %v731 = vsel %vm711, %v696, 0
      %v732 = vsel %vm718, %v697, 0
      %v733 = vsel %vm711, %v698, 0
      %v734 = vsel %vm718, %v699, 0
      %735 = vrot.lane.b32.xlu0 %v564, 30
      %v736 = vpop.permute.xlu0 %735
      %v737 = vrot.slane %v736, 4
      %vm738 = vcmask 244736
      %v739 = vsel %vm738, %v737, %v736
      %v740 = vunpack.c.l.b16 %v739
      %v741 = vunpack.c.h.b16 %v739
      %v742 = vunpack.c.l.b16 0
      %v743 = vunpack.c.h.b16 0
      %vm744 = vcmp.ne.s32.totalorder %v740, %v742
      %vm745 = vcmp.ne.s32.totalorder %v741, %v743
      %vm746 = vmpackc.low %vm745, %vm744
      %v747 = vunpack.c.l.b16 %v737
      %v748 = vunpack.c.h.b16 %v737
      %v749 = vunpack.c.l.b16 0
      %v750 = vunpack.c.h.b16 0
      %vm751 = vcmp.ne.s32.totalorder %v747, %v749
      %vm752 = vcmp.ne.s32.totalorder %v748, %v750
      %vm753 = vmpackc.low %vm752, %vm751
      %v754 = vsel %vm746, %v684, 0
      %v755 = vsel %vm753, %v685, 0
      %v756 = vsel %vm746, %v686, 0
      %v757 = vsel %vm753, %v687, 0
      %v758 = vsel %vm746, %v688, 0
      %v759 = vsel %vm753, %v689, 0
      %v760 = vsel %vm746, %v690, 0
      %v761 = vsel %vm753, %v691, 0
      %v762 = vsel %vm746, %v692, 0
      %v763 = vsel %vm753, %v693, 0
      %v764 = vsel %vm746, %v694, 0
      %v765 = vsel %vm753, %v695, 0
      %v766 = vsel %vm746, %v696, 0
      %v767 = vsel %vm753, %v697, 0
      %v768 = vsel %vm746, %v698, 0
      %v769 = vsel %vm753, %v699, 0
      %770 = vrot.lane.b32.xlu0 %v605, 34
      %v771 = vpop.permute.xlu0 %770
      %v772 = vrot.slane %v771, 4
      %vm773 = vcmask 277504
      %v774 = vsel %vm773, %v772, %v771
      %v775 = vunpack.c.l.b16 %v774
      %v776 = vunpack.c.h.b16 %v774
      %v777 = vunpack.c.l.b16 0
      %v778 = vunpack.c.h.b16 0
      %vm779 = vcmp.ne.s32.totalorder %v775, %v777
      %vm780 = vcmp.ne.s32.totalorder %v776, %v778
      %vm781 = vmpackc.low %vm780, %vm779
      %v782 = vunpack.c.l.b16 %v772
      %v783 = vunpack.c.h.b16 %v772
      %v784 = vunpack.c.l.b16 0
      %v785 = vunpack.c.h.b16 0
      %vm786 = vcmp.ne.s32.totalorder %v782, %v784
      %vm787 = vcmp.ne.s32.totalorder %v783, %v785
      %vm788 = vmpackc.low %vm787, %vm786
      %v789 = vsel %vm781, %v684, 0
      %v790 = vsel %vm788, %v685, 0
      %v791 = vsel %vm781, %v686, 0
      %v792 = vsel %vm788, %v687, 0
      %v793 = vsel %vm781, %v688, 0
      %v794 = vsel %vm788, %v689, 0
      %v795 = vsel %vm781, %v690, 0
      %v796 = vsel %vm788, %v691, 0
      %v797 = vsel %vm781, %v692, 0
      %v798 = vsel %vm788, %v693, 0
      %v799 = vsel %vm781, %v694, 0
      %v800 = vsel %vm788, %v695, 0
      %v801 = vsel %vm781, %v696, 0
      %v802 = vsel %vm788, %v697, 0
      %v803 = vsel %vm781, %v698, 0
      %v804 = vsel %vm788, %v699, 0
      %v821 = vunpack.c.l.b16 %v584
      %v822 = vunpack.c.h.b16 %v584
      %v823 = vunpack.c.l.b16 %v585
      %v824 = vunpack.c.l.b16 %v586
      %v825 = vunpack.c.h.b16 %v586
      %v826 = vunpack.c.l.b16 %v587
      %v827 = vunpack.c.l.b16 %v588
      %v828 = vunpack.c.h.b16 %v588
      %v829 = vunpack.c.l.b16 %v589
      %v830 = vunpack.c.l.b16 %v590
      %v831 = vunpack.c.h.b16 %v590
      %v832 = vunpack.c.l.b16 %v591
      %v833 = vunpack.c.l.b16 %v592
      %v834 = vunpack.c.h.b16 %v592
      %v835 = vunpack.c.l.b16 %v593
      %v836 = vunpack.c.l.b16 %v594
      %v837 = vunpack.c.h.b16 %v594
      %v838 = vunpack.c.l.b16 %v595
      %v839 = vunpack.c.l.b16 %v596
      %v840 = vunpack.c.h.b16 %v596
      %v841 = vunpack.c.l.b16 %v597
      %v842 = vunpack.c.l.b16 %v598
      %v843 = vunpack.c.h.b16 %v598
      %v844 = vunpack.c.l.b16 %v599
      %v845 = vpack.c.b16 %v824, %v821
      %v846 = vpack.c.b16 %v825, %v822
      %v847 = vpack.c.b16 %v826, %v823
      %v848 = vpack.c.b16 %v830, %v827
      %v849 = vpack.c.b16 %v831, %v828
      %v850 = vpack.c.b16 %v832, %v829
      %v851 = vpack.c.b16 %v836, %v833
      %v852 = vpack.c.b16 %v837, %v834
      %v853 = vpack.c.b16 %v838, %v835
      %v854 = vpack.c.b16 %v842, %v839
      %v855 = vpack.c.b16 %v843, %v840
      %v856 = vpack.c.b16 %v844, %v841
      %v873 = vunpack.c.l.b16 %v543
      %v874 = vunpack.c.h.b16 %v543
      %v875 = vunpack.c.l.b16 %v544
      %v876 = vunpack.c.l.b16 %v545
      %v877 = vunpack.c.h.b16 %v545
      %v878 = vunpack.c.l.b16 %v546
      %v879 = vunpack.c.l.b16 %v547
      %v880 = vunpack.c.h.b16 %v547
      %v881 = vunpack.c.l.b16 %v548
      %v882 = vunpack.c.l.b16 %v549
      %v883 = vunpack.c.h.b16 %v549
      %v884 = vunpack.c.l.b16 %v550
      %v885 = vunpack.c.l.b16 %v551
      %v886 = vunpack.c.h.b16 %v551
      %v887 = vunpack.c.l.b16 %v552
      %v888 = vunpack.c.l.b16 %v553
      %v889 = vunpack.c.h.b16 %v553
      %v890 = vunpack.c.l.b16 %v554
      %v891 = vunpack.c.l.b16 %v555
      %v892 = vunpack.c.h.b16 %v555
      %v893 = vunpack.c.l.b16 %v556
      %v894 = vunpack.c.l.b16 %v557
      %v895 = vunpack.c.h.b16 %v557
      %v896 = vunpack.c.l.b16 %v558
      %v897 = vpack.c.b16 %v876, %v873
      %v898 = vpack.c.b16 %v877, %v874
      %v899 = vpack.c.b16 %v878, %v875
      %v900 = vpack.c.b16 %v882, %v879
      %v901 = vpack.c.b16 %v883, %v880
      %v902 = vpack.c.b16 %v884, %v881
      %v903 = vpack.c.b16 %v888, %v885
      %v904 = vpack.c.b16 %v889, %v886
      %v905 = vpack.c.b16 %v890, %v887
      %v906 = vpack.c.b16 %v894, %v891
      %v907 = vpack.c.b16 %v895, %v892
      %v908 = vpack.c.b16 %v896, %v893
      %909 = vrot.lane.b32.xlu0 %v897, 126
      %v910 = vpop.permute.xlu0 %909
      %911 = vrot.lane.b32.xlu0 %v898, 126
      %v912 = vpop.permute.xlu0 %911
      %913 = vrot.lane.b32.xlu0 %v899, 126
      %v914 = vpop.permute.xlu0 %913
      %915 = vrot.lane.b32.xlu0 %v900, 126
      %v916 = vpop.permute.xlu0 %915
      %917 = vrot.lane.b32.xlu0 %v901, 126
      %v918 = vpop.permute.xlu0 %917
      %919 = vrot.lane.b32.xlu0 %v902, 126
      %v920 = vpop.permute.xlu0 %919
      %921 = vrot.lane.b32.xlu0 %v903, 126
      %v922 = vpop.permute.xlu0 %921
      %923 = vrot.lane.b32.xlu0 %v904, 126
      %v924 = vpop.permute.xlu0 %923
      %925 = vrot.lane.b32.xlu0 %v905, 126
      %v926 = vpop.permute.xlu0 %925
      %927 = vrot.lane.b32.xlu0 %v906, 126
      %v928 = vpop.permute.xlu0 %927
      %929 = vrot.lane.b32.xlu0 %v907, 126
      %v930 = vpop.permute.xlu0 %929
      %931 = vrot.lane.b32.xlu0 %v908, 126
      %v932 = vpop.permute.xlu0 %931
      %v933 = vsel %vm644, %v910, %v912
      %v934 = vsel %vm644, %v912, %v914
      %v935 = vsel %vm644, %v916, %v918
      %v936 = vsel %vm644, %v918, %v920
      %v937 = vsel %vm644, %v922, %v924
      %v938 = vsel %vm644, %v924, %v926
      %v939 = vsel %vm644, %v928, %v930
      %v940 = vsel %vm644, %v930, %v932
      %v957 = vunpack.c.l.b16 %v625
      %v958 = vunpack.c.h.b16 %v625
      %v959 = vunpack.c.l.b16 %v626
      %v960 = vunpack.c.l.b16 %v627
      %v961 = vunpack.c.h.b16 %v627
      %v962 = vunpack.c.l.b16 %v628
      %v963 = vunpack.c.l.b16 %v629
      %v964 = vunpack.c.h.b16 %v629
      %v965 = vunpack.c.l.b16 %v630
      %v966 = vunpack.c.l.b16 %v631
      %v967 = vunpack.c.h.b16 %v631
      %v968 = vunpack.c.l.b16 %v632
      %v969 = vunpack.c.l.b16 %v633
      %v970 = vunpack.c.h.b16 %v633
      %v971 = vunpack.c.l.b16 %v634
      %v972 = vunpack.c.l.b16 %v635
      %v973 = vunpack.c.h.b16 %v635
      %v974 = vunpack.c.l.b16 %v636
      %v975 = vunpack.c.l.b16 %v637
      %v976 = vunpack.c.h.b16 %v637
      %v977 = vunpack.c.l.b16 %v638
      %v978 = vunpack.c.l.b16 %v639
      %v979 = vunpack.c.h.b16 %v639
      %v980 = vunpack.c.l.b16 %v640
      %v981 = vpack.c.b16 %v960, %v957
      %v982 = vpack.c.b16 %v961, %v958
      %v983 = vpack.c.b16 %v962, %v959
      %v984 = vpack.c.b16 %v966, %v963
      %v985 = vpack.c.b16 %v967, %v964
      %v986 = vpack.c.b16 %v968, %v965
      %v987 = vpack.c.b16 %v972, %v969
      %v988 = vpack.c.b16 %v973, %v970
      %v989 = vpack.c.b16 %v974, %v971
      %v990 = vpack.c.b16 %v978, %v975
      %v991 = vpack.c.b16 %v979, %v976
      %v992 = vpack.c.b16 %v980, %v977
      %993 = vrot.lane.b32.xlu0 %v981, 124
      %v994 = vpop.permute.xlu0 %993
      %995 = vrot.lane.b32.xlu0 %v982, 124
      %v996 = vpop.permute.xlu0 %995
      %997 = vrot.lane.b32.xlu0 %v983, 124
      %v998 = vpop.permute.xlu0 %997
      %999 = vrot.lane.b32.xlu0 %v984, 124
      %v1000 = vpop.permute.xlu0 %999
      %1001 = vrot.lane.b32.xlu0 %v985, 124
      %v1002 = vpop.permute.xlu0 %1001
      %1003 = vrot.lane.b32.xlu0 %v986, 124
      %v1004 = vpop.permute.xlu0 %1003
      %1005 = vrot.lane.b32.xlu0 %v987, 124
      %v1006 = vpop.permute.xlu0 %1005
      %1007 = vrot.lane.b32.xlu0 %v988, 124
      %v1008 = vpop.permute.xlu0 %1007
      %1009 = vrot.lane.b32.xlu0 %v989, 124
      %v1010 = vpop.permute.xlu0 %1009
      %1011 = vrot.lane.b32.xlu0 %v990, 124
      %v1012 = vpop.permute.xlu0 %1011
      %1013 = vrot.lane.b32.xlu0 %v991, 124
      %v1014 = vpop.permute.xlu0 %1013
      %1015 = vrot.lane.b32.xlu0 %v992, 124
      %v1016 = vpop.permute.xlu0 %1015
      %vm1017 = vcmask 1014784
      %v1018 = vsel %vm1017, %v994, %v996
      %v1019 = vsel %vm1017, %v996, %v998
      %v1020 = vsel %vm1017, %v1000, %v1002
      %v1021 = vsel %vm1017, %v1002, %v1004
      %v1022 = vsel %vm1017, %v1006, %v1008
      %v1023 = vsel %vm1017, %v1008, %v1010
      %v1024 = vsel %vm1017, %v1012, %v1014
      %v1025 = vsel %vm1017, %v1014, %v1016
      %v1042 = vunpack.c.l.b16 %v660
      %v1043 = vunpack.c.h.b16 %v660
      %v1044 = vunpack.c.l.b16 %v661
      %v1045 = vunpack.c.l.b16 %v662
      %v1046 = vunpack.c.h.b16 %v662
      %v1047 = vunpack.c.l.b16 %v663
      %v1048 = vunpack.c.l.b16 %v664
      %v1049 = vunpack.c.h.b16 %v664
      %v1050 = vunpack.c.l.b16 %v665
      %v1051 = vunpack.c.l.b16 %v666
      %v1052 = vunpack.c.h.b16 %v666
      %v1053 = vunpack.c.l.b16 %v667
      %v1054 = vunpack.c.l.b16 %v668
      %v1055 = vunpack.c.h.b16 %v668
      %v1056 = vunpack.c.l.b16 %v669
      %v1057 = vunpack.c.l.b16 %v670
      %v1058 = vunpack.c.h.b16 %v670
      %v1059 = vunpack.c.l.b16 %v671
      %v1060 = vunpack.c.l.b16 %v672
      %v1061 = vunpack.c.h.b16 %v672
      %v1062 = vunpack.c.l.b16 %v673
      %v1063 = vunpack.c.l.b16 %v674
      %v1064 = vunpack.c.h.b16 %v674
      %v1065 = vunpack.c.l.b16 %v675
      %v1066 = vpack.c.b16 %v1045, %v1042
      %v1067 = vpack.c.b16 %v1046, %v1043
      %v1068 = vpack.c.b16 %v1047, %v1044
      %v1069 = vpack.c.b16 %v1051, %v1048
      %v1070 = vpack.c.b16 %v1052, %v1049
      %v1071 = vpack.c.b16 %v1053, %v1050
      %v1072 = vpack.c.b16 %v1057, %v1054
      %v1073 = vpack.c.b16 %v1058, %v1055
      %v1074 = vpack.c.b16 %v1059, %v1056
      %v1075 = vpack.c.b16 %v1063, %v1060
      %v1076 = vpack.c.b16 %v1064, %v1061
      %v1077 = vpack.c.b16 %v1065, %v1062
      %1078 = vrot.lane.b32.xlu0 %v1066, 96
      %v1079 = vpop.permute.xlu0 %1078
      %1080 = vrot.lane.b32.xlu0 %v1067, 96
      %v1081 = vpop.permute.xlu0 %1080
      %1082 = vrot.lane.b32.xlu0 %v1068, 96
      %v1083 = vpop.permute.xlu0 %1082
      %1084 = vrot.lane.b32.xlu0 %v1069, 96
      %v1085 = vpop.permute.xlu0 %1084
      %1086 = vrot.lane.b32.xlu0 %v1070, 96
      %v1087 = vpop.permute.xlu0 %1086
      %1088 = vrot.lane.b32.xlu0 %v1071, 96
      %v1089 = vpop.permute.xlu0 %1088
      %1090 = vrot.lane.b32.xlu0 %v1072, 96
      %v1091 = vpop.permute.xlu0 %1090
      %1092 = vrot.lane.b32.xlu0 %v1073, 96
      %v1093 = vpop.permute.xlu0 %1092
      %1094 = vrot.lane.b32.xlu0 %v1074, 96
      %v1095 = vpop.permute.xlu0 %1094
      %1096 = vrot.lane.b32.xlu0 %v1075, 96
      %v1097 = vpop.permute.xlu0 %1096
      %1098 = vrot.lane.b32.xlu0 %v1076, 96
      %v1099 = vpop.permute.xlu0 %1098
      %1100 = vrot.lane.b32.xlu0 %v1077, 96
      %v1101 = vpop.permute.xlu0 %1100
      %vm1102 = vcmask 785408
      %v1103 = vsel %vm1102, %v1079, %v1081
      %v1104 = vsel %vm1102, %v1081, %v1083
      %v1105 = vsel %vm1102, %v1085, %v1087
      %v1106 = vsel %vm1102, %v1087, %v1089
      %v1107 = vsel %vm1102, %v1091, %v1093
      %v1108 = vsel %vm1102, %v1093, %v1095
      %v1109 = vsel %vm1102, %v1097, %v1099
      %v1110 = vsel %vm1102, %v1099, %v1101
      %v1119 = vunpack.c.l.b16 %v676
      %v1120 = vunpack.c.h.b16 %v676
      %v1121 = vunpack.c.l.b16 %v677
      %v1122 = vunpack.c.h.b16 %v677
      %v1123 = vunpack.c.l.b16 %v678
      %v1124 = vunpack.c.h.b16 %v678
      %v1125 = vunpack.c.l.b16 %v679
      %v1126 = vunpack.c.h.b16 %v679
      %v1127 = vunpack.c.l.b16 %v680
      %v1128 = vunpack.c.h.b16 %v680
      %v1129 = vunpack.c.l.b16 %v681
      %v1130 = vunpack.c.h.b16 %v681
      %v1131 = vunpack.c.l.b16 %v682
      %v1132 = vunpack.c.h.b16 %v682
      %v1133 = vunpack.c.l.b16 %v683
      %v1134 = vunpack.c.h.b16 %v683
      %v1135 = vpack.c.b16 %v1121, %v1119
      %v1136 = vpack.c.b16 %v1122, %v1120
      %v1137 = vpack.c.b16 %v1125, %v1123
      %v1138 = vpack.c.b16 %v1126, %v1124
      %v1139 = vpack.c.b16 %v1129, %v1127
      %v1140 = vpack.c.b16 %v1130, %v1128
      %v1141 = vpack.c.b16 %v1133, %v1131
      %v1142 = vpack.c.b16 %v1134, %v1132
      %1143 = vrot.lane.b32.xlu0 %v1135, 94
      %v1144 = vpop.permute.xlu0 %1143
      %1145 = vrot.lane.b32.xlu0 %v1136, 94
      %v1146 = vpop.permute.xlu0 %1145
      %1147 = vrot.lane.b32.xlu0 %v1137, 94
      %v1148 = vpop.permute.xlu0 %1147
      %1149 = vrot.lane.b32.xlu0 %v1138, 94
      %v1150 = vpop.permute.xlu0 %1149
      %1151 = vrot.lane.b32.xlu0 %v1139, 94
      %v1152 = vpop.permute.xlu0 %1151
      %1153 = vrot.lane.b32.xlu0 %v1140, 94
      %v1154 = vpop.permute.xlu0 %1153
      %1155 = vrot.lane.b32.xlu0 %v1141, 94
      %v1156 = vpop.permute.xlu0 %1155
      %1157 = vrot.lane.b32.xlu0 %v1142, 94
      %v1158 = vpop.permute.xlu0 %1157
      %v1159 = vsel %vm568, %v1144, %v1146
      %v1160 = vsel %vm568, %v1148, %v1150
      %v1161 = vsel %vm568, %v1152, %v1154
      %v1162 = vsel %vm568, %v1156, %v1158
      %v1179 = vunpack.c.l.b16 %v719
      %v1180 = vunpack.c.h.b16 %v719
      %v1181 = vunpack.c.l.b16 %v720
      %v1182 = vunpack.c.l.b16 %v721
      %v1183 = vunpack.c.h.b16 %v721
      %v1184 = vunpack.c.l.b16 %v722
      %v1185 = vunpack.c.l.b16 %v723
      %v1186 = vunpack.c.h.b16 %v723
      %v1187 = vunpack.c.l.b16 %v724
      %v1188 = vunpack.c.l.b16 %v725
      %v1189 = vunpack.c.h.b16 %v725
      %v1190 = vunpack.c.l.b16 %v726
      %v1191 = vunpack.c.l.b16 %v727
      %v1192 = vunpack.c.h.b16 %v727
      %v1193 = vunpack.c.l.b16 %v728
      %v1194 = vunpack.c.l.b16 %v729
      %v1195 = vunpack.c.h.b16 %v729
      %v1196 = vunpack.c.l.b16 %v730
      %v1197 = vunpack.c.l.b16 %v731
      %v1198 = vunpack.c.h.b16 %v731
      %v1199 = vunpack.c.l.b16 %v732
      %v1200 = vunpack.c.l.b16 %v733
      %v1201 = vunpack.c.h.b16 %v733
      %v1202 = vunpack.c.l.b16 %v734
      %v1203 = vpack.c.b16 %v1182, %v1179
      %v1204 = vpack.c.b16 %v1183, %v1180
      %v1205 = vpack.c.b16 %v1184, %v1181
      %v1206 = vpack.c.b16 %v1188, %v1185
      %v1207 = vpack.c.b16 %v1189, %v1186
      %v1208 = vpack.c.b16 %v1190, %v1187
      %v1209 = vpack.c.b16 %v1194, %v1191
      %v1210 = vpack.c.b16 %v1195, %v1192
      %v1211 = vpack.c.b16 %v1196, %v1193
      %v1212 = vpack.c.b16 %v1200, %v1197
      %v1213 = vpack.c.b16 %v1201, %v1198
      %v1214 = vpack.c.b16 %v1202, %v1199
      %1215 = vrot.lane.b32.xlu0 %v1203, 92
      %v1216 = vpop.permute.xlu0 %1215
      %1217 = vrot.lane.b32.xlu0 %v1204, 92
      %v1218 = vpop.permute.xlu0 %1217
      %1219 = vrot.lane.b32.xlu0 %v1205, 92
      %v1220 = vpop.permute.xlu0 %1219
      %1221 = vrot.lane.b32.xlu0 %v1206, 92
      %v1222 = vpop.permute.xlu0 %1221
      %1223 = vrot.lane.b32.xlu0 %v1207, 92
      %v1224 = vpop.permute.xlu0 %1223
      %1225 = vrot.lane.b32.xlu0 %v1208, 92
      %v1226 = vpop.permute.xlu0 %1225
      %1227 = vrot.lane.b32.xlu0 %v1209, 92
      %v1228 = vpop.permute.xlu0 %1227
      %1229 = vrot.lane.b32.xlu0 %v1210, 92
      %v1230 = vpop.permute.xlu0 %1229
      %1231 = vrot.lane.b32.xlu0 %v1211, 92
      %v1232 = vpop.permute.xlu0 %1231
      %1233 = vrot.lane.b32.xlu0 %v1212, 92
      %v1234 = vpop.permute.xlu0 %1233
      %1235 = vrot.lane.b32.xlu0 %v1213, 92
      %v1236 = vpop.permute.xlu0 %1235
      %1237 = vrot.lane.b32.xlu0 %v1214, 92
      %v1238 = vpop.permute.xlu0 %1237
      %vm1239 = vcmask 752640
      %v1240 = vsel %vm1239, %v1216, %v1218
      %v1241 = vsel %vm1239, %v1218, %v1220
      %v1242 = vsel %vm1239, %v1222, %v1224
      %v1243 = vsel %vm1239, %v1224, %v1226
      %v1244 = vsel %vm1239, %v1228, %v1230
      %v1245 = vsel %vm1239, %v1230, %v1232
      %v1246 = vsel %vm1239, %v1234, %v1236
      %v1247 = vsel %vm1239, %v1236, %v1238
      %v1264 = vunpack.c.l.b16 %v754
      %v1265 = vunpack.c.h.b16 %v754
      %v1266 = vunpack.c.l.b16 %v755
      %v1267 = vunpack.c.l.b16 %v756
      %v1268 = vunpack.c.h.b16 %v756
      %v1269 = vunpack.c.l.b16 %v757
      %v1270 = vunpack.c.l.b16 %v758
      %v1271 = vunpack.c.h.b16 %v758
      %v1272 = vunpack.c.l.b16 %v759
      %v1273 = vunpack.c.l.b16 %v760
      %v1274 = vunpack.c.h.b16 %v760
      %v1275 = vunpack.c.l.b16 %v761
      %v1276 = vunpack.c.l.b16 %v762
      %v1277 = vunpack.c.h.b16 %v762
      %v1278 = vunpack.c.l.b16 %v763
      %v1279 = vunpack.c.l.b16 %v764
      %v1280 = vunpack.c.h.b16 %v764
      %v1281 = vunpack.c.l.b16 %v765
      %v1282 = vunpack.c.l.b16 %v766
      %v1283 = vunpack.c.h.b16 %v766
      %v1284 = vunpack.c.l.b16 %v767
      %v1285 = vunpack.c.l.b16 %v768
      %v1286 = vunpack.c.h.b16 %v768
      %v1287 = vunpack.c.l.b16 %v769
      %v1288 = vpack.c.b16 %v1267, %v1264
      %v1289 = vpack.c.b16 %v1268, %v1265
      %v1290 = vpack.c.b16 %v1269, %v1266
      %v1291 = vpack.c.b16 %v1273, %v1270
      %v1292 = vpack.c.b16 %v1274, %v1271
      %v1293 = vpack.c.b16 %v1275, %v1272
      %v1294 = vpack.c.b16 %v1279, %v1276
      %v1295 = vpack.c.b16 %v1280, %v1277
      %v1296 = vpack.c.b16 %v1281, %v1278
      %v1297 = vpack.c.b16 %v1285, %v1282
      %v1298 = vpack.c.b16 %v1286, %v1283
      %v1299 = vpack.c.b16 %v1287, %v1284
      %1300 = vrot.lane.b32.xlu0 %v1288, 64
      %v1301 = vpop.permute.xlu0 %1300
      %1302 = vrot.lane.b32.xlu0 %v1289, 64
      %v1303 = vpop.permute.xlu0 %1302
      %1304 = vrot.lane.b32.xlu0 %v1290, 64
      %v1305 = vpop.permute.xlu0 %1304
      %1306 = vrot.lane.b32.xlu0 %v1291, 64
      %v1307 = vpop.permute.xlu0 %1306
      %1308 = vrot.lane.b32.xlu0 %v1292, 64
      %v1309 = vpop.permute.xlu0 %1308
      %1310 = vrot.lane.b32.xlu0 %v1293, 64
      %v1311 = vpop.permute.xlu0 %1310
      %1312 = vrot.lane.b32.xlu0 %v1294, 64
      %v1313 = vpop.permute.xlu0 %1312
      %1314 = vrot.lane.b32.xlu0 %v1295, 64
      %v1315 = vpop.permute.xlu0 %1314
      %1316 = vrot.lane.b32.xlu0 %v1296, 64
      %v1317 = vpop.permute.xlu0 %1316
      %1318 = vrot.lane.b32.xlu0 %v1297, 64
      %v1319 = vpop.permute.xlu0 %1318
      %1320 = vrot.lane.b32.xlu0 %v1298, 64
      %v1321 = vpop.permute.xlu0 %1320
      %1322 = vrot.lane.b32.xlu0 %v1299, 64
      %v1323 = vpop.permute.xlu0 %1322
      %vm1324 = vcmask 523264
      %v1325 = vsel %vm1324, %v1301, %v1303
      %v1326 = vsel %vm1324, %v1303, %v1305
      %v1327 = vsel %vm1324, %v1307, %v1309
      %v1328 = vsel %vm1324, %v1309, %v1311
      %v1329 = vsel %vm1324, %v1313, %v1315
      %v1330 = vsel %vm1324, %v1315, %v1317
      %v1331 = vsel %vm1324, %v1319, %v1321
      %v1332 = vsel %vm1324, %v1321, %v1323
      %v1349 = vunpack.c.l.b16 %v684
      %v1350 = vunpack.c.h.b16 %v684
      %v1351 = vunpack.c.l.b16 %v685
      %v1352 = vunpack.c.l.b16 %v686
      %v1353 = vunpack.c.h.b16 %v686
      %v1354 = vunpack.c.l.b16 %v687
      %v1355 = vunpack.c.l.b16 %v688
      %v1356 = vunpack.c.h.b16 %v688
      %v1357 = vunpack.c.l.b16 %v689
      %v1358 = vunpack.c.l.b16 %v690
      %v1359 = vunpack.c.h.b16 %v690
      %v1360 = vunpack.c.l.b16 %v691
      %v1361 = vunpack.c.l.b16 %v692
      %v1362 = vunpack.c.h.b16 %v692
      %v1363 = vunpack.c.l.b16 %v693
      %v1364 = vunpack.c.l.b16 %v694
      %v1365 = vunpack.c.h.b16 %v694
      %v1366 = vunpack.c.l.b16 %v695
      %v1367 = vunpack.c.l.b16 %v696
      %v1368 = vunpack.c.h.b16 %v696
      %v1369 = vunpack.c.l.b16 %v697
      %v1370 = vunpack.c.l.b16 %v698
      %v1371 = vunpack.c.h.b16 %v698
      %v1372 = vunpack.c.l.b16 %v699
      %v1373 = vpack.c.b16 %v1352, %v1349
      %v1374 = vpack.c.b16 %v1353, %v1350
      %v1375 = vpack.c.b16 %v1354, %v1351
      %v1376 = vpack.c.b16 %v1358, %v1355
      %v1377 = vpack.c.b16 %v1359, %v1356
      %v1378 = vpack.c.b16 %v1360, %v1357
      %v1379 = vpack.c.b16 %v1364, %v1361
      %v1380 = vpack.c.b16 %v1365, %v1362
      %v1381 = vpack.c.b16 %v1366, %v1363
      %v1382 = vpack.c.b16 %v1370, %v1367
      %v1383 = vpack.c.b16 %v1371, %v1368
      %v1384 = vpack.c.b16 %v1372, %v1369
      %1385 = vrot.lane.b32.xlu0 %v1373, 62
      %v1386 = vpop.permute.xlu0 %1385
      %1387 = vrot.lane.b32.xlu0 %v1374, 62
      %v1388 = vpop.permute.xlu0 %1387
      %1389 = vrot.lane.b32.xlu0 %v1375, 62
      %v1390 = vpop.permute.xlu0 %1389
      %1391 = vrot.lane.b32.xlu0 %v1376, 62
      %v1392 = vpop.permute.xlu0 %1391
      %1393 = vrot.lane.b32.xlu0 %v1377, 62
      %v1394 = vpop.permute.xlu0 %1393
      %1395 = vrot.lane.b32.xlu0 %v1378, 62
      %v1396 = vpop.permute.xlu0 %1395
      %1397 = vrot.lane.b32.xlu0 %v1379, 62
      %v1398 = vpop.permute.xlu0 %1397
      %1399 = vrot.lane.b32.xlu0 %v1380, 62
      %v1400 = vpop.permute.xlu0 %1399
      %1401 = vrot.lane.b32.xlu0 %v1381, 62
      %v1402 = vpop.permute.xlu0 %1401
      %1403 = vrot.lane.b32.xlu0 %v1382, 62
      %v1404 = vpop.permute.xlu0 %1403
      %1405 = vrot.lane.b32.xlu0 %v1383, 62
      %v1406 = vpop.permute.xlu0 %1405
      %1407 = vrot.lane.b32.xlu0 %v1384, 62
      %v1408 = vpop.permute.xlu0 %1407
      %vm1409 = vcmask 506880
      %v1410 = vsel %vm1409, %v1386, %v1388
      %v1411 = vsel %vm1409, %v1388, %v1390
      %v1412 = vsel %vm1409, %v1392, %v1394
      %v1413 = vsel %vm1409, %v1394, %v1396
      %v1414 = vsel %vm1409, %v1398, %v1400
      %v1415 = vsel %vm1409, %v1400, %v1402
      %v1416 = vsel %vm1409, %v1404, %v1406
      %v1417 = vsel %vm1409, %v1406, %v1408
      %v1434 = vunpack.c.l.b16 %v789
      %v1435 = vunpack.c.h.b16 %v789
      %v1436 = vunpack.c.l.b16 %v790
      %v1437 = vunpack.c.l.b16 %v791
      %v1438 = vunpack.c.h.b16 %v791
      %v1439 = vunpack.c.l.b16 %v792
      %v1440 = vunpack.c.l.b16 %v793
      %v1441 = vunpack.c.h.b16 %v793
      %v1442 = vunpack.c.l.b16 %v794
      %v1443 = vunpack.c.l.b16 %v795
      %v1444 = vunpack.c.h.b16 %v795
      %v1445 = vunpack.c.l.b16 %v796
      %v1446 = vunpack.c.l.b16 %v797
      %v1447 = vunpack.c.h.b16 %v797
      %v1448 = vunpack.c.l.b16 %v798
      %v1449 = vunpack.c.l.b16 %v799
      %v1450 = vunpack.c.h.b16 %v799
      %v1451 = vunpack.c.l.b16 %v800
      %v1452 = vunpack.c.l.b16 %v801
      %v1453 = vunpack.c.h.b16 %v801
      %v1454 = vunpack.c.l.b16 %v802
      %v1455 = vunpack.c.l.b16 %v803
      %v1456 = vunpack.c.h.b16 %v803
      %v1457 = vunpack.c.l.b16 %v804
      %v1458 = vpack.c.b16 %v1437, %v1434
      %v1459 = vpack.c.b16 %v1438, %v1435
      %v1460 = vpack.c.b16 %v1439, %v1436
      %v1461 = vpack.c.b16 %v1443, %v1440
      %v1462 = vpack.c.b16 %v1444, %v1441
      %v1463 = vpack.c.b16 %v1445, %v1442
      %v1464 = vpack.c.b16 %v1449, %v1446
      %v1465 = vpack.c.b16 %v1450, %v1447
      %v1466 = vpack.c.b16 %v1451, %v1448
      %v1467 = vpack.c.b16 %v1455, %v1452
      %v1468 = vpack.c.b16 %v1456, %v1453
      %v1469 = vpack.c.b16 %v1457, %v1454
      %1470 = vrot.lane.b32.xlu0 %v1458, 60
      %v1471 = vpop.permute.xlu0 %1470
      %1472 = vrot.lane.b32.xlu0 %v1459, 60
      %v1473 = vpop.permute.xlu0 %1472
      %1474 = vrot.lane.b32.xlu0 %v1460, 60
      %v1475 = vpop.permute.xlu0 %1474
      %1476 = vrot.lane.b32.xlu0 %v1461, 60
      %v1477 = vpop.permute.xlu0 %1476
      %1478 = vrot.lane.b32.xlu0 %v1462, 60
      %v1479 = vpop.permute.xlu0 %1478
      %1480 = vrot.lane.b32.xlu0 %v1463, 60
      %v1481 = vpop.permute.xlu0 %1480
      %1482 = vrot.lane.b32.xlu0 %v1464, 60
      %v1483 = vpop.permute.xlu0 %1482
      %1484 = vrot.lane.b32.xlu0 %v1465, 60
      %v1485 = vpop.permute.xlu0 %1484
      %1486 = vrot.lane.b32.xlu0 %v1466, 60
      %v1487 = vpop.permute.xlu0 %1486
      %1488 = vrot.lane.b32.xlu0 %v1467, 60
      %v1489 = vpop.permute.xlu0 %1488
      %1490 = vrot.lane.b32.xlu0 %v1468, 60
      %v1491 = vpop.permute.xlu0 %1490
      %1492 = vrot.lane.b32.xlu0 %v1469, 60
      %v1493 = vpop.permute.xlu0 %1492
      %vm1494 = vcmask 490496
      %v1495 = vsel %vm1494, %v1471, %v1473
      %v1496 = vsel %vm1494, %v1473, %v1475
      %v1497 = vsel %vm1494, %v1477, %v1479
      %v1498 = vsel %vm1494, %v1479, %v1481
      %v1499 = vsel %vm1494, %v1483, %v1485
      %v1500 = vsel %vm1494, %v1485, %v1487
      %v1501 = vsel %vm1494, %v1489, %v1491
      %v1502 = vsel %vm1494, %v1491, %v1493
      %v1503 = vld [vmem:[%s1] sm:$0xff]
      %v1504 = vld [vmem:[%s1 + $0x8] sm:$0xff]
      %v1505 = vld [vmem:[%s1 + $0x10] sm:$0xf]
      %v1506 = vld [vmem:[%s1 + $0x14] sm:$0xff]
      %v1507 = vld [vmem:[%s1 + $0x1c] sm:$0xff]
      %v1508 = vld [vmem:[%s1 + $0x24] sm:$0xf]
      %v1509 = vld [vmem:[%s1 + $0x28] sm:$0xff]
      %v1510 = vld [vmem:[%s1 + $0x30] sm:$0xff]
      %v1511 = vld [vmem:[%s1 + $0x38] sm:$0xf]
      %v1512 = vld [vmem:[%s1 + $0x3c] sm:$0xff]
      %v1513 = vld [vmem:[%s1 + $0x44] sm:$0xff]
      %v1514 = vld [vmem:[%s1 + $0x4c] sm:$0xf]
      %1516 = vset.pattern.permute.xlu0 0
      %1517 = vperm.xlu0 %1516, %v531
      %v1518 = vpop.permute.xlu0 %1517
      %1521 = vset.pattern.permute.xlu0 0
      %1522 = vperm.xlu0 %1521, %v532
      %v1523 = vpop.permute.xlu0 %1522
      %1526 = vset.pattern.permute.xlu0 0
      %1527 = vperm.xlu0 %1526, %v533
      %v1528 = vpop.permute.xlu0 %1527
      %1531 = vset.pattern.permute.xlu0 0
      %1532 = vperm.xlu0 %1531, %v534
      %v1533 = vpop.permute.xlu0 %1532
      %v1547 = vunpack.c.l.b16 %v1503
      %v1548 = vunpack.c.h.b16 %v1503
      %v1549 = vunpack.c.l.b16 %v1504
      %v1550 = vunpack.c.h.b16 %v1504
      %v1551 = vunpack.c.l.b16 %v1505
      %v1552 = vunpack.c.l.b16 %v1506
      %v1553 = vunpack.c.h.b16 %v1506
      %v1554 = vunpack.c.l.b16 %v1507
      %v1555 = vunpack.c.h.b16 %v1507
      %v1556 = vunpack.c.l.b16 %v1508
      %v1557 = vunpack.c.l.b16 %v1509
      %v1558 = vunpack.c.h.b16 %v1509
      %v1559 = vunpack.c.l.b16 %v1510
      %v1560 = vunpack.c.h.b16 %v1510
      %v1561 = vunpack.c.l.b16 %v1511
      %v1562 = vunpack.c.l.b16 %v1512
      %v1563 = vunpack.c.h.b16 %v1512
      %v1564 = vunpack.c.l.b16 %v1513
      %v1565 = vunpack.c.h.b16 %v1513
      %v1566 = vunpack.c.l.b16 %v1514
      %v1567 = vpack.c.b16 %v1552, %v1547
      %v1568 = vpack.c.b16 %v1553, %v1548
      %v1569 = vpack.c.b16 %v1554, %v1549
      %v1570 = vpack.c.b16 %v1555, %v1550
      %v1571 = vpack.c.b16 %v1556, %v1551
      %v1572 = vpack.c.b16 %v1562, %v1557
      %v1573 = vpack.c.b16 %v1563, %v1558
      %v1574 = vpack.c.b16 %v1564, %v1559
      %v1575 = vpack.c.b16 %v1565, %v1560
      %v1576 = vpack.c.b16 %v1566, %v1561
      %1585 = vrot.lane.b32.xlu0 %v845, 34
      %v1586 = vpop.permute.xlu0 %1585
      %1587 = vrot.lane.b32.xlu0 %v846, 34
      %v1588 = vpop.permute.xlu0 %1587
      %1589 = vrot.lane.b32.xlu0 %v847, 34
      %v1590 = vpop.permute.xlu0 %1589
      %1591 = vrot.lane.b32.xlu0 %v848, 34
      %v1592 = vpop.permute.xlu0 %1591
      %1593 = vrot.lane.b32.xlu0 %v849, 34
      %v1594 = vpop.permute.xlu0 %1593
      %1595 = vrot.lane.b32.xlu0 %v850, 34
      %v1596 = vpop.permute.xlu0 %1595
      %1597 = vrot.lane.b32.xlu0 %v851, 34
      %v1598 = vpop.permute.xlu0 %1597
      %1599 = vrot.lane.b32.xlu0 %v852, 34
      %v1600 = vpop.permute.xlu0 %1599
      %1601 = vrot.lane.b32.xlu0 %v853, 34
      %v1602 = vpop.permute.xlu0 %1601
      %1603 = vrot.lane.b32.xlu0 %v854, 34
      %v1604 = vpop.permute.xlu0 %1603
      %1605 = vrot.lane.b32.xlu0 %v855, 34
      %v1606 = vpop.permute.xlu0 %1605
      %1607 = vrot.lane.b32.xlu0 %v856, 34
      %v1608 = vpop.permute.xlu0 %1607
      %1609 = vrot.lane.b32.xlu0 %v933, 34
      %v1610 = vpop.permute.xlu0 %1609
      %1611 = vrot.lane.b32.xlu0 %v934, 34
      %v1612 = vpop.permute.xlu0 %1611
      %1613 = vrot.lane.b32.xlu0 %v914, 34
      %v1614 = vpop.permute.xlu0 %1613
      %1615 = vrot.lane.b32.xlu0 %v935, 34
      %v1616 = vpop.permute.xlu0 %1615
      %1617 = vrot.lane.b32.xlu0 %v936, 34
      %v1618 = vpop.permute.xlu0 %1617
      %1619 = vrot.lane.b32.xlu0 %v920, 34
      %v1620 = vpop.permute.xlu0 %1619
      %1621 = vrot.lane.b32.xlu0 %v937, 34
      %v1622 = vpop.permute.xlu0 %1621
      %1623 = vrot.lane.b32.xlu0 %v938, 34
      %v1624 = vpop.permute.xlu0 %1623
      %1625 = vrot.lane.b32.xlu0 %v926, 34
      %v1626 = vpop.permute.xlu0 %1625
      %1627 = vrot.lane.b32.xlu0 %v939, 34
      %v1628 = vpop.permute.xlu0 %1627
      %1629 = vrot.lane.b32.xlu0 %v940, 34
      %v1630 = vpop.permute.xlu0 %1629
      %1631 = vrot.lane.b32.xlu0 %v932, 34
      %v1632 = vpop.permute.xlu0 %1631
      %1633 = vrot.lane.b32.xlu0 %v1018, 34
      %v1634 = vpop.permute.xlu0 %1633
      %1635 = vrot.lane.b32.xlu0 %v1019, 34
      %v1636 = vpop.permute.xlu0 %1635
      %1637 = vrot.lane.b32.xlu0 %v998, 34
      %v1638 = vpop.permute.xlu0 %1637
      %1639 = vrot.lane.b32.xlu0 %v1020, 34
      %v1640 = vpop.permute.xlu0 %1639
      %1641 = vrot.lane.b32.xlu0 %v1021, 34
      %v1642 = vpop.permute.xlu0 %1641
      %1643 = vrot.lane.b32.xlu0 %v1004, 34
      %v1644 = vpop.permute.xlu0 %1643
      %1645 = vrot.lane.b32.xlu0 %v1022, 34
      %v1646 = vpop.permute.xlu0 %1645
      %1647 = vrot.lane.b32.xlu0 %v1023, 34
      %v1648 = vpop.permute.xlu0 %1647
      %1649 = vrot.lane.b32.xlu0 %v1010, 34
      %v1650 = vpop.permute.xlu0 %1649
      %1651 = vrot.lane.b32.xlu0 %v1024, 34
      %v1652 = vpop.permute.xlu0 %1651
      %1653 = vrot.lane.b32.xlu0 %v1025, 34
      %v1654 = vpop.permute.xlu0 %1653
      %1655 = vrot.lane.b32.xlu0 %v1016, 34
      %v1656 = vpop.permute.xlu0 %1655
      %1657 = vrot.lane.b32.xlu0 %v1103, 34
      %v1658 = vpop.permute.xlu0 %1657
      %1659 = vrot.lane.b32.xlu0 %v1104, 34
      %v1660 = vpop.permute.xlu0 %1659
      %1661 = vrot.lane.b32.xlu0 %v1083, 34
      %v1662 = vpop.permute.xlu0 %1661
      %1663 = vrot.lane.b32.xlu0 %v1105, 34
      %v1664 = vpop.permute.xlu0 %1663
      %1665 = vrot.lane.b32.xlu0 %v1106, 34
      %v1666 = vpop.permute.xlu0 %1665
      %1667 = vrot.lane.b32.xlu0 %v1089, 34
      %v1668 = vpop.permute.xlu0 %1667
      %1669 = vrot.lane.b32.xlu0 %v1107, 34
      %v1670 = vpop.permute.xlu0 %1669
      %1671 = vrot.lane.b32.xlu0 %v1108, 34
      %v1672 = vpop.permute.xlu0 %1671
      %1673 = vrot.lane.b32.xlu0 %v1095, 34
      %v1674 = vpop.permute.xlu0 %1673
      %1675 = vrot.lane.b32.xlu0 %v1109, 34
      %v1676 = vpop.permute.xlu0 %1675
      %1677 = vrot.lane.b32.xlu0 %v1110, 34
      %v1678 = vpop.permute.xlu0 %1677
      %1679 = vrot.lane.b32.xlu0 %v1101, 34
      %v1680 = vpop.permute.xlu0 %1679
      %1681 = vrot.lane.b32.xlu0 %v1144, 34
      %v1682 = vpop.permute.xlu0 %1681
      %1683 = vrot.lane.b32.xlu0 %v1159, 34
      %v1684 = vpop.permute.xlu0 %1683
      %1685 = vrot.lane.b32.xlu0 %v1146, 34
      %v1686 = vpop.permute.xlu0 %1685
      %1687 = vrot.lane.b32.xlu0 %v1148, 34
      %v1688 = vpop.permute.xlu0 %1687
      %1689 = vrot.lane.b32.xlu0 %v1160, 34
      %v1690 = vpop.permute.xlu0 %1689
      %1691 = vrot.lane.b32.xlu0 %v1150, 34
      %v1692 = vpop.permute.xlu0 %1691
      %1693 = vrot.lane.b32.xlu0 %v1152, 34
      %v1694 = vpop.permute.xlu0 %1693
      %1695 = vrot.lane.b32.xlu0 %v1161, 34
      %v1696 = vpop.permute.xlu0 %1695
      %1697 = vrot.lane.b32.xlu0 %v1154, 34
      %v1698 = vpop.permute.xlu0 %1697
      %1699 = vrot.lane.b32.xlu0 %v1156, 34
      %v1700 = vpop.permute.xlu0 %1699
      %1701 = vrot.lane.b32.xlu0 %v1162, 34
      %v1702 = vpop.permute.xlu0 %1701
      %1703 = vrot.lane.b32.xlu0 %v1158, 34
      %v1704 = vpop.permute.xlu0 %1703
      %1705 = vrot.lane.b32.xlu0 %v1216, 34
      %v1706 = vpop.permute.xlu0 %1705
      %1707 = vrot.lane.b32.xlu0 %v1240, 34
      %v1708 = vpop.permute.xlu0 %1707
      %1709 = vrot.lane.b32.xlu0 %v1241, 34
      %v1710 = vpop.permute.xlu0 %1709
      %1711 = vrot.lane.b32.xlu0 %v1222, 34
      %v1712 = vpop.permute.xlu0 %1711
      %1713 = vrot.lane.b32.xlu0 %v1242, 34
      %v1714 = vpop.permute.xlu0 %1713
      %1715 = vrot.lane.b32.xlu0 %v1243, 34
      %v1716 = vpop.permute.xlu0 %1715
      %1717 = vrot.lane.b32.xlu0 %v1228, 34
      %v1718 = vpop.permute.xlu0 %1717
      %1719 = vrot.lane.b32.xlu0 %v1244, 34
      %v1720 = vpop.permute.xlu0 %1719
      %1721 = vrot.lane.b32.xlu0 %v1245, 34
      %v1722 = vpop.permute.xlu0 %1721
      %1723 = vrot.lane.b32.xlu0 %v1234, 34
      %v1724 = vpop.permute.xlu0 %1723
      %1725 = vrot.lane.b32.xlu0 %v1246, 34
      %v1726 = vpop.permute.xlu0 %1725
      %1727 = vrot.lane.b32.xlu0 %v1247, 34
      %v1728 = vpop.permute.xlu0 %1727
      %1729 = vrot.lane.b32.xlu0 %v1301, 34
      %v1730 = vpop.permute.xlu0 %1729
      %1731 = vrot.lane.b32.xlu0 %v1325, 34
      %v1732 = vpop.permute.xlu0 %1731
      %1733 = vrot.lane.b32.xlu0 %v1326, 34
      %v1734 = vpop.permute.xlu0 %1733
      %1735 = vrot.lane.b32.xlu0 %v1307, 34
      %v1736 = vpop.permute.xlu0 %1735
      %1737 = vrot.lane.b32.xlu0 %v1327, 34
      %v1738 = vpop.permute.xlu0 %1737
      %1739 = vrot.lane.b32.xlu0 %v1328, 34
      %v1740 = vpop.permute.xlu0 %1739
      %1741 = vrot.lane.b32.xlu0 %v1313, 34
      %v1742 = vpop.permute.xlu0 %1741
      %1743 = vrot.lane.b32.xlu0 %v1329, 34
      %v1744 = vpop.permute.xlu0 %1743
      %1745 = vrot.lane.b32.xlu0 %v1330, 34
      %v1746 = vpop.permute.xlu0 %1745
      %1747 = vrot.lane.b32.xlu0 %v1319, 34
      %v1748 = vpop.permute.xlu0 %1747
      %1749 = vrot.lane.b32.xlu0 %v1331, 34
      %v1750 = vpop.permute.xlu0 %1749
      %1751 = vrot.lane.b32.xlu0 %v1332, 34
      %v1752 = vpop.permute.xlu0 %1751
      %1753 = vrot.lane.b32.xlu0 %v1386, 34
      %v1754 = vpop.permute.xlu0 %1753
      %1755 = vrot.lane.b32.xlu0 %v1410, 34
      %v1756 = vpop.permute.xlu0 %1755
      %1757 = vrot.lane.b32.xlu0 %v1411, 34
      %v1758 = vpop.permute.xlu0 %1757
      %1759 = vrot.lane.b32.xlu0 %v1392, 34
      %v1760 = vpop.permute.xlu0 %1759
      %1761 = vrot.lane.b32.xlu0 %v1412, 34
      %v1762 = vpop.permute.xlu0 %1761
      %1763 = vrot.lane.b32.xlu0 %v1413, 34
      %v1764 = vpop.permute.xlu0 %1763
      %1765 = vrot.lane.b32.xlu0 %v1398, 34
      %v1766 = vpop.permute.xlu0 %1765
      %1767 = vrot.lane.b32.xlu0 %v1414, 34
      %v1768 = vpop.permute.xlu0 %1767
      %1769 = vrot.lane.b32.xlu0 %v1415, 34
      %v1770 = vpop.permute.xlu0 %1769
      %1771 = vrot.lane.b32.xlu0 %v1404, 34
      %v1772 = vpop.permute.xlu0 %1771
      %1773 = vrot.lane.b32.xlu0 %v1416, 34
      %v1774 = vpop.permute.xlu0 %1773
      %1775 = vrot.lane.b32.xlu0 %v1417, 34
      %v1776 = vpop.permute.xlu0 %1775
      %1777 = vrot.lane.b32.xlu0 %v1471, 34
      %v1778 = vpop.permute.xlu0 %1777
      %1779 = vrot.lane.b32.xlu0 %v1495, 34
      %v1780 = vpop.permute.xlu0 %1779
      %1781 = vrot.lane.b32.xlu0 %v1496, 34
      %v1782 = vpop.permute.xlu0 %1781
      %1783 = vrot.lane.b32.xlu0 %v1477, 34
      %v1784 = vpop.permute.xlu0 %1783
      %1785 = vrot.lane.b32.xlu0 %v1497, 34
      %v1786 = vpop.permute.xlu0 %1785
      %1787 = vrot.lane.b32.xlu0 %v1498, 34
      %v1788 = vpop.permute.xlu0 %1787
      %1789 = vrot.lane.b32.xlu0 %v1483, 34
      %v1790 = vpop.permute.xlu0 %1789
      %1791 = vrot.lane.b32.xlu0 %v1499, 34
      %v1792 = vpop.permute.xlu0 %1791
      %1793 = vrot.lane.b32.xlu0 %v1500, 34
      %v1794 = vpop.permute.xlu0 %1793
      %1795 = vrot.lane.b32.xlu0 %v1489, 34
      %v1796 = vpop.permute.xlu0 %1795
      %1797 = vrot.lane.b32.xlu0 %v1501, 34
      %v1798 = vpop.permute.xlu0 %1797
      %1799 = vrot.lane.b32.xlu0 %v1502, 34
      %v1800 = vpop.permute.xlu0 %1799
      %v1801 = vsel %vm773, %v1586, %v1588
      %v1802 = vsel %vm773, %v1588, %v1590
      %v1803 = vsel %vm773, %v1592, %v1594
      %v1804 = vsel %vm773, %v1594, %v1596
      %v1805 = vsel %vm773, %v1598, %v1600
      %v1806 = vsel %vm773, %v1600, %v1602
      %v1807 = vsel %vm773, %v1604, %v1606
      %v1808 = vsel %vm773, %v1606, %v1608
      %v1809 = vsel %vm773, %v1610, %v1612
      %v1810 = vsel %vm773, %v1612, %v1614
      %v1811 = vsel %vm773, %v1616, %v1618
      %v1812 = vsel %vm773, %v1618, %v1620
      %v1813 = vsel %vm773, %v1622, %v1624
      %v1814 = vsel %vm773, %v1624, %v1626
      %v1815 = vsel %vm773, %v1628, %v1630
      %v1816 = vsel %vm773, %v1630, %v1632
      %v1817 = vsel %vm773, %v1634, %v1636
      %v1818 = vsel %vm773, %v1636, %v1638
      %v1819 = vsel %vm773, %v1640, %v1642
      %v1820 = vsel %vm773, %v1642, %v1644
      %v1821 = vsel %vm773, %v1646, %v1648
      %v1822 = vsel %vm773, %v1648, %v1650
      %v1823 = vsel %vm773, %v1652, %v1654
      %v1824 = vsel %vm773, %v1654, %v1656
      %v1825 = vsel %vm773, %v1658, %v1660
      %v1826 = vsel %vm773, %v1660, %v1662
      %v1827 = vsel %vm773, %v1664, %v1666
      %v1828 = vsel %vm773, %v1666, %v1668
      %v1829 = vsel %vm773, %v1670, %v1672
      %v1830 = vsel %vm773, %v1672, %v1674
      %v1831 = vsel %vm773, %v1676, %v1678
      %v1832 = vsel %vm773, %v1678, %v1680
      %v1833 = vsel %vm773, %v1682, %v1684
      %v1834 = vsel %vm773, %v1684, %v1686
      %v1835 = vsel %vm773, %v1688, %v1690
      %v1836 = vsel %vm773, %v1690, %v1692
      %v1837 = vsel %vm773, %v1694, %v1696
      %v1838 = vsel %vm773, %v1696, %v1698
      %v1839 = vsel %vm773, %v1700, %v1702
      %v1840 = vsel %vm773, %v1702, %v1704
      %v1841 = vsel %vm773, %v1706, %v1708
      %v1842 = vsel %vm773, %v1708, %v1710
      %v1843 = vsel %vm773, %v1712, %v1714
      %v1844 = vsel %vm773, %v1714, %v1716
      %v1845 = vsel %vm773, %v1718, %v1720
      %v1846 = vsel %vm773, %v1720, %v1722
      %v1847 = vsel %vm773, %v1724, %v1726
      %v1848 = vsel %vm773, %v1726, %v1728
      %v1849 = vsel %vm773, %v1730, %v1732
      %v1850 = vsel %vm773, %v1732, %v1734
      %v1851 = vsel %vm773, %v1736, %v1738
      %v1852 = vsel %vm773, %v1738, %v1740
      %v1853 = vsel %vm773, %v1742, %v1744
      %v1854 = vsel %vm773, %v1744, %v1746
      %v1855 = vsel %vm773, %v1748, %v1750
      %v1856 = vsel %vm773, %v1750, %v1752
      %v1857 = vsel %vm773, %v1754, %v1756
      %v1858 = vsel %vm773, %v1756, %v1758
      %v1859 = vsel %vm773, %v1760, %v1762
      %v1860 = vsel %vm773, %v1762, %v1764
      %v1861 = vsel %vm773, %v1766, %v1768
      %v1862 = vsel %vm773, %v1768, %v1770
      %v1863 = vsel %vm773, %v1772, %v1774
      %v1864 = vsel %vm773, %v1774, %v1776
      %v1865 = vsel %vm773, %v1778, %v1780
      %v1866 = vsel %vm773, %v1780, %v1782
      %v1867 = vsel %vm773, %v1784, %v1786
      %v1868 = vsel %vm773, %v1786, %v1788
      %v1869 = vsel %vm773, %v1790, %v1792
      %v1870 = vsel %vm773, %v1792, %v1794
      %v1871 = vsel %vm773, %v1796, %v1798
      %v1872 = vsel %vm773, %v1798, %v1800
      %vm1945 = vcmask 523264
      %v1947 = vsel %vm1945, %v1571, 0
      %v1950 = vsel %vm1945, %v1576, 0
      %1952 = vmatpush.bf16.msra.mxu0 %v1815
      %1953 = vmatpush.bf16.msra.mxu0 %v1813
      %1954 = vmatpush.bf16.msra.mxu0 %v1811
      %1955 = vmatpush.bf16.msra.mxu0 %v1809
      %1956 = vmatpush.bf16.msra.mxu0 %v1807
      %1957 = vmatpush.bf16.msra.mxu0 %v1805
      %1958 = vmatpush.bf16.msra.mxu0 %v1803
      %1959 = vmatpush.bf16.msra.mxu0 %v1801
      %1960 = vmatmul.bf16.gmra.mxu0 %v1567
      %v1961 = vpop.f32.mrf.mxu0
      %v1962 = vadd.f32 %v1518, %v1961
      %v1963 = vpop.f32.mrf.mxu0
      %v1964 = vadd.f32 %v1523, %v1963
      %1965 = vmatmul.bf16.gmra.mxu0 %v1572
      %v1966 = vpop.f32.mrf.mxu0
      %v1967 = vadd.f32 %v1528, %v1966
      %v1968 = vpop.f32.mrf.mxu0
      %v1969 = vadd.f32 %v1533, %v1968
      %1970 = vdwg.mxu0
      %1971 = vmatpush.bf16.msra.mxu0 %v1831
      %1972 = vmatpush.bf16.msra.mxu0 %v1829
      %1973 = vmatpush.bf16.msra.mxu0 %v1827
      %1974 = vmatpush.bf16.msra.mxu0 %v1825
      %1975 = vmatpush.bf16.msra.mxu0 %v1823
      %1976 = vmatpush.bf16.msra.mxu0 %v1821
      %1977 = vmatpush.bf16.msra.mxu0 %v1819
      %1978 = vmatpush.bf16.msra.mxu0 %v1817
      %1979 = vmatmul.bf16.gmra.mxu0 %v1568
      %v1980 = vpop.f32.mrf.mxu0
      %v1981 = vadd.f32 %v1962, %v1980
      %v1982 = vpop.f32.mrf.mxu0
      %v1983 = vadd.f32 %v1964, %v1982
      %1984 = vmatmul.bf16.gmra.mxu0 %v1573
      %v1985 = vpop.f32.mrf.mxu0
      %v1986 = vadd.f32 %v1967, %v1985
      %v1987 = vpop.f32.mrf.mxu0
      %v1988 = vadd.f32 %v1969, %v1987
      %1989 = vdwg.mxu0
      %1990 = vmatpush.bf16.msra.mxu0 %v1847
      %1991 = vmatpush.bf16.msra.mxu0 %v1845
      %1992 = vmatpush.bf16.msra.mxu0 %v1843
      %1993 = vmatpush.bf16.msra.mxu0 %v1841
      %1994 = vmatpush.bf16.msra.mxu0 %v1839
      %1995 = vmatpush.bf16.msra.mxu0 %v1837
      %1996 = vmatpush.bf16.msra.mxu0 %v1835
      %1997 = vmatpush.bf16.msra.mxu0 %v1833
      %1998 = vmatmul.bf16.gmra.mxu0 %v1569
      %v1999 = vpop.f32.mrf.mxu0
      %v2000 = vadd.f32 %v1981, %v1999
      %v2001 = vpop.f32.mrf.mxu0
      %v2002 = vadd.f32 %v1983, %v2001
      %2003 = vmatmul.bf16.gmra.mxu0 %v1574
      %v2004 = vpop.f32.mrf.mxu0
      %v2005 = vadd.f32 %v1986, %v2004
      %v2006 = vpop.f32.mrf.mxu0
      %v2007 = vadd.f32 %v1988, %v2006
      %2008 = vdwg.mxu0
      %2009 = vmatpush.bf16.msra.mxu0 %v1863
      %2010 = vmatpush.bf16.msra.mxu0 %v1861
      %2011 = vmatpush.bf16.msra.mxu0 %v1859
      %2012 = vmatpush.bf16.msra.mxu0 %v1857
      %2013 = vmatpush.bf16.msra.mxu0 %v1855
      %2014 = vmatpush.bf16.msra.mxu0 %v1853
      %2015 = vmatpush.bf16.msra.mxu0 %v1851
      %2016 = vmatpush.bf16.msra.mxu0 %v1849
      %2017 = vmatmul.bf16.gmra.mxu0 %v1570
      %v2018 = vpop.f32.mrf.mxu0
      %v2019 = vadd.f32 %v2000, %v2018
      %v2020 = vpop.f32.mrf.mxu0
      %v2021 = vadd.f32 %v2002, %v2020
      %2022 = vmatmul.bf16.gmra.mxu0 %v1575
      %v2023 = vpop.f32.mrf.mxu0
      %v2024 = vadd.f32 %v2005, %v2023
      %v2025 = vpop.f32.mrf.mxu0
      %v2026 = vadd.f32 %v2007, %v2025
      %2027 = vdwg.mxu0
      %2028 = vmatpush.bf16.msra.mxu0 0
      %2029 = vmatpush.bf16.msra.mxu0 0
      %2030 = vmatpush.bf16.msra.mxu0 0
      %2031 = vmatpush.bf16.msra.mxu0 0
      %2032 = vmatpush.bf16.msra.mxu0 %v1871
      %2033 = vmatpush.bf16.msra.mxu0 %v1869
      %2034 = vmatpush.bf16.msra.mxu0 %v1867
      %2035 = vmatpush.bf16.msra.mxu0 %v1865
      %2036 = vmatmul.bf16.gmra.mxu0 %v1947
      %v2037 = vpop.f32.mrf.mxu0
      %v2038 = vadd.f32 %v2019, %v2037
      %v2039 = vpop.f32.mrf.mxu0
      %v2040 = vadd.f32 %v2021, %v2039
      %2041 = vmatmul.bf16.gmra.mxu0 %v1950
      %v2042 = vpop.f32.mrf.mxu0
      %v2043 = vadd.f32 %v2024, %v2042
      %v2044 = vpop.f32.mrf.mxu0
      %v2045 = vadd.f32 %v2026, %v2044
      %2046 = vdwg.mxu0
      %2047 = vmatpush.bf16.msra.mxu0 %v1816
      %2048 = vmatpush.bf16.msra.mxu0 %v1814
      %2049 = vmatpush.bf16.msra.mxu0 %v1812
      %2050 = vmatpush.bf16.msra.mxu0 %v1810
      %2051 = vmatpush.bf16.msra.mxu0 %v1808
      %2052 = vmatpush.bf16.msra.mxu0 %v1806
      %2053 = vmatpush.bf16.msra.mxu0 %v1804
      %2054 = vmatpush.bf16.msra.mxu0 %v1802
      %2055 = vmatmul.bf16.gmra.mxu0 %v1567
      %v2056 = vpop.f32.mrf.mxu0
      %v2057 = vadd.f32 %v1518, %v2056
      %v2058 = vpop.f32.mrf.mxu0
      %v2059 = vadd.f32 %v1523, %v2058
      %2060 = vmatmul.bf16.gmra.mxu0 %v1572
      %v2061 = vpop.f32.mrf.mxu0
      %v2062 = vadd.f32 %v1528, %v2061
      %v2063 = vpop.f32.mrf.mxu0
      %v2064 = vadd.f32 %v1533, %v2063
      %2065 = vdwg.mxu0
      %2066 = vmatpush.bf16.msra.mxu0 %v1832
      %2067 = vmatpush.bf16.msra.mxu0 %v1830
      %2068 = vmatpush.bf16.msra.mxu0 %v1828
      %2069 = vmatpush.bf16.msra.mxu0 %v1826
      %2070 = vmatpush.bf16.msra.mxu0 %v1824
      %2071 = vmatpush.bf16.msra.mxu0 %v1822
      %2072 = vmatpush.bf16.msra.mxu0 %v1820
      %2073 = vmatpush.bf16.msra.mxu0 %v1818
      %2074 = vmatmul.bf16.gmra.mxu0 %v1568
      %v2075 = vpop.f32.mrf.mxu0
      %v2076 = vadd.f32 %v2057, %v2075
      %v2077 = vpop.f32.mrf.mxu0
      %v2078 = vadd.f32 %v2059, %v2077
      %2079 = vmatmul.bf16.gmra.mxu0 %v1573
      %v2080 = vpop.f32.mrf.mxu0
      %v2081 = vadd.f32 %v2062, %v2080
      %v2082 = vpop.f32.mrf.mxu0
      %v2083 = vadd.f32 %v2064, %v2082
      %2084 = vdwg.mxu0
      %2085 = vmatpush.bf16.msra.mxu0 %v1848
      %2086 = vmatpush.bf16.msra.mxu0 %v1846
      %2087 = vmatpush.bf16.msra.mxu0 %v1844
      %2088 = vmatpush.bf16.msra.mxu0 %v1842
      %2089 = vmatpush.bf16.msra.mxu0 %v1840
      %2090 = vmatpush.bf16.msra.mxu0 %v1838
      %2091 = vmatpush.bf16.msra.mxu0 %v1836
      %2092 = vmatpush.bf16.msra.mxu0 %v1834
      %2093 = vmatmul.bf16.gmra.mxu0 %v1569
      %v2094 = vpop.f32.mrf.mxu0
      %v2095 = vadd.f32 %v2076, %v2094
      %v2096 = vpop.f32.mrf.mxu0
      %v2097 = vadd.f32 %v2078, %v2096
      %2098 = vmatmul.bf16.gmra.mxu0 %v1574
      %v2099 = vpop.f32.mrf.mxu0
      %v2100 = vadd.f32 %v2081, %v2099
      %v2101 = vpop.f32.mrf.mxu0
      %v2102 = vadd.f32 %v2083, %v2101
      %2103 = vdwg.mxu0
      %2104 = vmatpush.bf16.msra.mxu0 %v1864
      %2105 = vmatpush.bf16.msra.mxu0 %v1862
      %2106 = vmatpush.bf16.msra.mxu0 %v1860
      %2107 = vmatpush.bf16.msra.mxu0 %v1858
      %2108 = vmatpush.bf16.msra.mxu0 %v1856
      %2109 = vmatpush.bf16.msra.mxu0 %v1854
      %2110 = vmatpush.bf16.msra.mxu0 %v1852
      %2111 = vmatpush.bf16.msra.mxu0 %v1850
      %2112 = vmatmul.bf16.gmra.mxu0 %v1570
      %v2113 = vpop.f32.mrf.mxu0
      %v2114 = vadd.f32 %v2095, %v2113
      %v2115 = vpop.f32.mrf.mxu0
      %v2116 = vadd.f32 %v2097, %v2115
      %2117 = vmatmul.bf16.gmra.mxu0 %v1575
      %v2118 = vpop.f32.mrf.mxu0
      %v2119 = vadd.f32 %v2100, %v2118
      %v2120 = vpop.f32.mrf.mxu0
      %v2121 = vadd.f32 %v2102, %v2120
      %2122 = vdwg.mxu0
      %2123 = vmatpush.bf16.msra.mxu0 0
      %2124 = vmatpush.bf16.msra.mxu0 0
      %2125 = vmatpush.bf16.msra.mxu0 0
      %2126 = vmatpush.bf16.msra.mxu0 0
      %2127 = vmatpush.bf16.msra.mxu0 %v1872
      %2128 = vmatpush.bf16.msra.mxu0 %v1870
      %2129 = vmatpush.bf16.msra.mxu0 %v1868
      %2130 = vmatpush.bf16.msra.mxu0 %v1866
      %2131 = vmatmul.bf16.gmra.mxu0 %v1947
      %v2132 = vpop.f32.mrf.mxu0
      %v2133 = vadd.f32 %v2114, %v2132
      %v2134 = vpop.f32.mrf.mxu0
      %v2135 = vadd.f32 %v2116, %v2134
      %2136 = vmatmul.bf16.gmra.mxu0 %v1950
      %v2137 = vpop.f32.mrf.mxu0
      %v2138 = vadd.f32 %v2119, %v2137
      %v2139 = vpop.f32.mrf.mxu0
      %v2140 = vadd.f32 %v2121, %v2139
      %2141 = vdwg.mxu0
      %v2142 = vld [vmem:[%s3] sm:$0xff]
      %v2143 = vld [vmem:[%s3 + $0x8] sm:$0xff]
      %v2144 = vld [vmem:[%s3 + $0x10] sm:$0xff]
      %v2145 = vld [vmem:[%s3 + $0x18] sm:$0xff]
      %v2146 = vld [vmem:[%s4] sm:$0xff]
      %v2147 = vld [vmem:[%s4 + $0x8] sm:$0xff]
      %v2148 = vld [vmem:[%s4 + $0x10] sm:$0xff]
      %v2149 = vld [vmem:[%s4 + $0x18] sm:$0xff]
      %v2150 = vadd.f32 %v2038, %v2133
      %2151 = vadd.xlane.f32.xlu0 %v2150
      %v2152 = vpop.xlane.xlu0 %2151
      %v2153 = vadd.f32 %v2040, %v2135
      %2154 = vadd.xlane.f32.xlu0 %v2153
      %v2155 = vpop.xlane.xlu0 %2154
      %v2156 = vadd.f32 %v2043, %v2138
      %2157 = vadd.xlane.f32.xlu0 %v2156
      %v2158 = vpop.xlane.xlu0 %2157
      %v2159 = vadd.f32 %v2045, %v2140
      %2160 = vadd.xlane.f32.xlu0 %v2159
      %v2161 = vpop.xlane.xlu0 %2160
      %v2162 = vmul.f32 %v2152, 0.00390625
      %v2163 = vmul.f32 %v2155, 0.00390625
      %v2164 = vmul.f32 %v2158, 0.00390625
      %v2165 = vmul.f32 %v2161, 0.00390625
      %v2166 = vsub.f32 %v2038, %v2162
      %v2167 = vsub.f32 %v2133, %v2162
      %v2168 = vsub.f32 %v2040, %v2163
      %v2169 = vsub.f32 %v2135, %v2163
      %v2170 = vsub.f32 %v2043, %v2164
      %v2171 = vsub.f32 %v2138, %v2164
      %v2172 = vsub.f32 %v2045, %v2165
      %v2173 = vsub.f32 %v2140, %v2165
      %v2174 = vmul.f32 %v2166, %v2166
      %v2175 = vmul.f32 %v2167, %v2167
      %v2176 = vmul.f32 %v2168, %v2168
      %v2177 = vmul.f32 %v2169, %v2169
      %v2178 = vmul.f32 %v2170, %v2170
      %v2179 = vmul.f32 %v2171, %v2171
      %v2180 = vmul.f32 %v2172, %v2172
      %v2181 = vmul.f32 %v2173, %v2173
      %v2182 = vadd.f32 %v2174, %v2175
      %2183 = vadd.xlane.f32.xlu0 %v2182
      %v2184 = vpop.xlane.xlu0 %2183
      %v2185 = vadd.f32 %v2176, %v2177
      %2186 = vadd.xlane.f32.xlu0 %v2185
      %v2187 = vpop.xlane.xlu0 %2186
      %v2188 = vadd.f32 %v2178, %v2179
      %2189 = vadd.xlane.f32.xlu0 %v2188
      %v2190 = vpop.xlane.xlu0 %2189
      %v2191 = vadd.f32 %v2180, %v2181
      %2192 = vadd.xlane.f32.xlu0 %v2191
      %v2193 = vpop.xlane.xlu0 %2192
      %v2194 = vmul.f32 %v2184, 0.00390625
      %v2195 = vmul.f32 %v2187, 0.00390625
      %v2196 = vmul.f32 %v2190, 0.00390625
      %v2197 = vmul.f32 %v2193, 0.00390625
      %v2198 = vadd.f32 %v2194, 1e-05
      %v2199 = vadd.f32 %v2195, 1e-05
      %v2200 = vadd.f32 %v2196, 1e-05
      %v2201 = vadd.f32 %v2197, 1e-05
      %v2202 = vrsqrt.pop %v2198
      %v2203 = vmul.f32 %v2202, %v2198
      %v2204 = vmul.f32 %v2203, %v2202
      %v2205 = vmul.f32 0.5, %v2204
      %v2206 = vsub.f32 1.5, %v2205
      %v2207 = vmul.f32 %v2202, %v2206
      %vm2208 = vweird.f32 %v2198
      %vm2209 = vweird.f32 %v2202
      %vm2210 = vmor %vm2208, %vm2209
      %v2211 = vsel %vm2210, %v2202, %v2207
      %v2212 = vrsqrt.pop %v2199
      %v2213 = vmul.f32 %v2212, %v2199
      %v2214 = vmul.f32 %v2213, %v2212
      %v2215 = vmul.f32 0.5, %v2214
      %v2216 = vsub.f32 1.5, %v2215
      %v2217 = vmul.f32 %v2212, %v2216
      %vm2218 = vweird.f32 %v2199
      %vm2219 = vweird.f32 %v2212
      %vm2220 = vmor %vm2218, %vm2219
      %v2221 = vsel %vm2220, %v2212, %v2217
      %v2222 = vrsqrt.pop %v2200
      %v2223 = vmul.f32 %v2222, %v2200
      %v2224 = vmul.f32 %v2223, %v2222
      %v2225 = vmul.f32 0.5, %v2224
      %v2226 = vsub.f32 1.5, %v2225
      %v2227 = vmul.f32 %v2222, %v2226
      %vm2228 = vweird.f32 %v2200
      %vm2229 = vweird.f32 %v2222
      %vm2230 = vmor %vm2228, %vm2229
      %v2231 = vsel %vm2230, %v2222, %v2227
      %v2232 = vrsqrt.pop %v2201
      %v2233 = vmul.f32 %v2232, %v2201
      %v2234 = vmul.f32 %v2233, %v2232
      %v2235 = vmul.f32 0.5, %v2234
      %v2236 = vsub.f32 1.5, %v2235
      %v2237 = vmul.f32 %v2232, %v2236
      %vm2238 = vweird.f32 %v2201
      %vm2239 = vweird.f32 %v2232
      %vm2240 = vmor %vm2238, %vm2239
      %v2241 = vsel %vm2240, %v2232, %v2237
      %v2242 = vmul.f32 %v2211, %v2142
      %v2243 = vmul.f32 %v2221, %v2143
      %v2244 = vmul.f32 %v2231, %v2144
      %v2245 = vmul.f32 %v2241, %v2145
      %2247 = vset.pattern.permute.xlu0 0
      %2248 = vperm.xlu0 %2247, %v2242
      %v2249 = vpop.permute.xlu0 %2248
      %2252 = vset.pattern.permute.xlu0 0
      %2253 = vperm.xlu0 %2252, %v2243
      %v2254 = vpop.permute.xlu0 %2253
      %2257 = vset.pattern.permute.xlu0 0
      %2258 = vperm.xlu0 %2257, %v2244
      %v2259 = vpop.permute.xlu0 %2258
      %2262 = vset.pattern.permute.xlu0 0
      %2263 = vperm.xlu0 %2262, %v2245
      %v2264 = vpop.permute.xlu0 %2263
      %v2266 = vmul.f32 %v2166, %v2249
      %v2267 = vmul.f32 %v2167, %v2249
      %v2268 = vmul.f32 %v2168, %v2254
      %v2269 = vmul.f32 %v2169, %v2254
      %v2270 = vmul.f32 %v2170, %v2259
      %v2271 = vmul.f32 %v2171, %v2259
      %v2272 = vmul.f32 %v2172, %v2264
      %v2273 = vmul.f32 %v2173, %v2264
      %2275 = vset.pattern.permute.xlu0 0
      %2276 = vperm.xlu0 %2275, %v2146
      %v2277 = vpop.permute.xlu0 %2276
      %2280 = vset.pattern.permute.xlu0 0
      %2281 = vperm.xlu0 %2280, %v2147
      %v2282 = vpop.permute.xlu0 %2281
      %2285 = vset.pattern.permute.xlu0 0
      %2286 = vperm.xlu0 %2285, %v2148
      %v2287 = vpop.permute.xlu0 %2286
      %2290 = vset.pattern.permute.xlu0 0
      %2291 = vperm.xlu0 %2290, %v2149
      %v2292 = vpop.permute.xlu0 %2291
      %v2294 = vadd.f32 %v2266, %v2277
      %v2295 = vadd.f32 %v2267, %v2277
      %v2296 = vadd.f32 %v2268, %v2282
      %v2297 = vadd.f32 %v2269, %v2282
      %v2298 = vadd.f32 %v2270, %v2287
      %v2299 = vadd.f32 %v2271, %v2287
      %v2300 = vadd.f32 %v2272, %v2292
      %v2301 = vadd.f32 %v2273, %v2292
      %v2302 = vmax.f32 %v2294, 0.0
      %v2303 = vmax.f32 %v2295, 0.0
      %v2304 = vmax.f32 %v2296, 0.0
      %v2305 = vmax.f32 %v2297, 0.0
      %v2306 = vmax.f32 %v2298, 0.0
      %v2307 = vmax.f32 %v2299, 0.0
      %v2308 = vmax.f32 %v2300, 0.0
      %v2309 = vmax.f32 %v2301, 0.0
      %v2310 = vld [vmem:[%s6] sm:$0xff]
      %v2311 = vld [vmem:[%s6 + $0x8] sm:$0xff]
      %v2312 = vld [vmem:[%s6 + $0x10] sm:$0xff]
      %v2313 = vld [vmem:[%s6 + $0x18] sm:$0xff]
      %v2314 = vpack.c.bf16 %v2303, %v2302
      %v2315 = vpack.c.bf16 %v2305, %v2304
      %v2316 = vpack.c.bf16 %v2307, %v2306
      %v2317 = vpack.c.bf16 %v2309, %v2308
      %2318 = vst [vmem:[#allocation2 + $0x4] sm:$0xff] %v2314
      %2319 = vst [vmem:[#allocation2 + $0x14] sm:$0xff] %v2315
      %2320 = vst [vmem:[#allocation2 + $0x24] sm:$0xff] %v2316
      %2321 = vst [vmem:[#allocation2 + $0x34] sm:$0xff] %v2317
      %v2322 = vld [vmem:[#allocation2] sm:$0xff]
      %v2323 = vld [vmem:[#allocation2 + $0x8] sm:$0xf]
      %v2324 = vld [vmem:[#allocation2 + $0x10] sm:$0xff]
      %v2325 = vld [vmem:[#allocation2 + $0x18] sm:$0xf]
      %v2326 = vld [vmem:[#allocation2 + $0x20] sm:$0xff]
      %v2327 = vld [vmem:[#allocation2 + $0x28] sm:$0xf]
      %v2328 = vld [vmem:[#allocation2 + $0x30] sm:$0xff]
      %v2329 = vld [vmem:[#allocation2 + $0x38] sm:$0xf]
      %v2330 = vsel %vm576, %v2322, 0
      %v2331 = vsel %vm583, %v2323, 0
      %v2332 = vsel %vm576, %v2324, 0
      %v2333 = vsel %vm583, %v2325, 0
      %v2334 = vsel %vm576, %v2326, 0
      %v2335 = vsel %vm583, %v2327, 0
      %v2336 = vsel %vm576, %v2328, 0
      %v2337 = vsel %vm583, %v2329, 0
      %v2338 = vsel %vm617, %v2322, 0
      %v2339 = vsel %vm624, %v2323, 0
      %v2340 = vsel %vm617, %v2324, 0
      %v2341 = vsel %vm624, %v2325, 0
      %v2342 = vsel %vm617, %v2326, 0
      %v2343 = vsel %vm624, %v2327, 0
      %v2344 = vsel %vm617, %v2328, 0
      %v2345 = vsel %vm624, %v2329, 0
      %v2346 = vsel %vm652, %v2322, 0
      %v2347 = vsel %vm659, %v2323, 0
      %v2348 = vsel %vm652, %v2324, 0
      %v2349 = vsel %vm659, %v2325, 0
      %v2350 = vsel %vm652, %v2326, 0
      %v2351 = vsel %vm659, %v2327, 0
      %v2352 = vsel %vm652, %v2328, 0
      %v2353 = vsel %vm659, %v2329, 0
      %v2354 = vld [vmem:[#allocation2 + $0x4] sm:$0xff]
      %v2355 = vld [vmem:[#allocation2 + $0x14] sm:$0xff]
      %v2356 = vld [vmem:[#allocation2 + $0x24] sm:$0xff]
      %v2357 = vld [vmem:[#allocation2 + $0x34] sm:$0xff]
      %v2358 = vld [vmem:[#allocation2 + $0xc] sm:$0xf]
      %v2359 = vld [vmem:[#allocation2 + $0x1c] sm:$0xf]
      %v2360 = vld [vmem:[#allocation2 + $0x2c] sm:$0xf]
      %v2361 = vld [vmem:[#allocation2 + $0x3c] sm:$0xf]
      %v2362 = vsel %vm711, %v2354, 0
      %v2363 = vsel %vm718, %v2358, 0
      %v2364 = vsel %vm711, %v2355, 0
      %v2365 = vsel %vm718, %v2359, 0
      %v2366 = vsel %vm711, %v2356, 0
      %v2367 = vsel %vm718, %v2360, 0
      %v2368 = vsel %vm711, %v2357, 0
      %v2369 = vsel %vm718, %v2361, 0
      %v2370 = vsel %vm746, %v2354, 0
      %v2371 = vsel %vm753, %v2358, 0
      %v2372 = vsel %vm746, %v2355, 0
      %v2373 = vsel %vm753, %v2359, 0
      %v2374 = vsel %vm746, %v2356, 0
      %v2375 = vsel %vm753, %v2360, 0
      %v2376 = vsel %vm746, %v2357, 0
      %v2377 = vsel %vm753, %v2361, 0
      %v2378 = vsel %vm781, %v2354, 0
      %v2379 = vsel %vm788, %v2358, 0
      %v2380 = vsel %vm781, %v2355, 0
      %v2381 = vsel %vm788, %v2359, 0
      %v2382 = vsel %vm781, %v2356, 0
      %v2383 = vsel %vm788, %v2360, 0
      %v2384 = vsel %vm781, %v2357, 0
      %v2385 = vsel %vm788, %v2361, 0
      %v2394 = vunpack.c.l.b16 %v2330
      %v2395 = vunpack.c.h.b16 %v2330
      %v2396 = vunpack.c.l.b16 %v2331
      %v2397 = vunpack.c.l.b16 %v2332
      %v2398 = vunpack.c.h.b16 %v2332
      %v2399 = vunpack.c.l.b16 %v2333
      %v2400 = vunpack.c.l.b16 %v2334
      %v2401 = vunpack.c.h.b16 %v2334
      %v2402 = vunpack.c.l.b16 %v2335
      %v2403 = vunpack.c.l.b16 %v2336
      %v2404 = vunpack.c.h.b16 %v2336
      %v2405 = vunpack.c.l.b16 %v2337
      %v2406 = vpack.c.b16 %v2397, %v2394
      %v2407 = vpack.c.b16 %v2398, %v2395
      %v2408 = vpack.c.b16 %v2399, %v2396
      %v2409 = vpack.c.b16 %v2403, %v2400
      %v2410 = vpack.c.b16 %v2404, %v2401
      %v2411 = vpack.c.b16 %v2405, %v2402
      %v2420 = vunpack.c.l.b16 %v2322
      %v2421 = vunpack.c.h.b16 %v2322
      %v2422 = vunpack.c.l.b16 %v2323
      %v2423 = vunpack.c.l.b16 %v2324
      %v2424 = vunpack.c.h.b16 %v2324
      %v2425 = vunpack.c.l.b16 %v2325
      %v2426 = vunpack.c.l.b16 %v2326
      %v2427 = vunpack.c.h.b16 %v2326
      %v2428 = vunpack.c.l.b16 %v2327
      %v2429 = vunpack.c.l.b16 %v2328
      %v2430 = vunpack.c.h.b16 %v2328
      %v2431 = vunpack.c.l.b16 %v2329
      %v2432 = vpack.c.b16 %v2423, %v2420
      %v2433 = vpack.c.b16 %v2424, %v2421
      %v2434 = vpack.c.b16 %v2425, %v2422
      %v2435 = vpack.c.b16 %v2429, %v2426
      %v2436 = vpack.c.b16 %v2430, %v2427
      %v2437 = vpack.c.b16 %v2431, %v2428
      %2438 = vrot.lane.b32.xlu0 %v2432, 126
      %v2439 = vpop.permute.xlu0 %2438
      %2440 = vrot.lane.b32.xlu0 %v2433, 126
      %v2441 = vpop.permute.xlu0 %2440
      %2442 = vrot.lane.b32.xlu0 %v2434, 126
      %v2443 = vpop.permute.xlu0 %2442
      %2444 = vrot.lane.b32.xlu0 %v2435, 126
      %v2445 = vpop.permute.xlu0 %2444
      %2446 = vrot.lane.b32.xlu0 %v2436, 126
      %v2447 = vpop.permute.xlu0 %2446
      %2448 = vrot.lane.b32.xlu0 %v2437, 126
      %v2449 = vpop.permute.xlu0 %2448
      %v2450 = vsel %vm644, %v2439, %v2441
      %v2451 = vsel %vm644, %v2441, %v2443
      %v2452 = vsel %vm644, %v2445, %v2447
      %v2453 = vsel %vm644, %v2447, %v2449
      %v2462 = vunpack.c.l.b16 %v2338
      %v2463 = vunpack.c.h.b16 %v2338
      %v2464 = vunpack.c.l.b16 %v2339
      %v2465 = vunpack.c.l.b16 %v2340
      %v2466 = vunpack.c.h.b16 %v2340
      %v2467 = vunpack.c.l.b16 %v2341
      %v2468 = vunpack.c.l.b16 %v2342
      %v2469 = vunpack.c.h.b16 %v2342
      %v2470 = vunpack.c.l.b16 %v2343
      %v2471 = vunpack.c.l.b16 %v2344
      %v2472 = vunpack.c.h.b16 %v2344
      %v2473 = vunpack.c.l.b16 %v2345
      %v2474 = vpack.c.b16 %v2465, %v2462
      %v2475 = vpack.c.b16 %v2466, %v2463
      %v2476 = vpack.c.b16 %v2467, %v2464
      %v2477 = vpack.c.b16 %v2471, %v2468
      %v2478 = vpack.c.b16 %v2472, %v2469
      %v2479 = vpack.c.b16 %v2473, %v2470
      %2480 = vrot.lane.b32.xlu0 %v2474, 124
      %v2481 = vpop.permute.xlu0 %2480
      %2482 = vrot.lane.b32.xlu0 %v2475, 124
      %v2483 = vpop.permute.xlu0 %2482
      %2484 = vrot.lane.b32.xlu0 %v2476, 124
      %v2485 = vpop.permute.xlu0 %2484
      %2486 = vrot.lane.b32.xlu0 %v2477, 124
      %v2487 = vpop.permute.xlu0 %2486
      %2488 = vrot.lane.b32.xlu0 %v2478, 124
      %v2489 = vpop.permute.xlu0 %2488
      %2490 = vrot.lane.b32.xlu0 %v2479, 124
      %v2491 = vpop.permute.xlu0 %2490
      %v2492 = vsel %vm1017, %v2481, %v2483
      %v2493 = vsel %vm1017, %v2483, %v2485
      %v2494 = vsel %vm1017, %v2487, %v2489
      %v2495 = vsel %vm1017, %v2489, %v2491
      %v2504 = vunpack.c.l.b16 %v2346
      %v2505 = vunpack.c.h.b16 %v2346
      %v2506 = vunpack.c.l.b16 %v2347
      %v2507 = vunpack.c.l.b16 %v2348
      %v2508 = vunpack.c.h.b16 %v2348
      %v2509 = vunpack.c.l.b16 %v2349
      %v2510 = vunpack.c.l.b16 %v2350
      %v2511 = vunpack.c.h.b16 %v2350
      %v2512 = vunpack.c.l.b16 %v2351
      %v2513 = vunpack.c.l.b16 %v2352
      %v2514 = vunpack.c.h.b16 %v2352
      %v2515 = vunpack.c.l.b16 %v2353
      %v2516 = vpack.c.b16 %v2507, %v2504
      %v2517 = vpack.c.b16 %v2508, %v2505
      %v2518 = vpack.c.b16 %v2509, %v2506
      %v2519 = vpack.c.b16 %v2513, %v2510
      %v2520 = vpack.c.b16 %v2514, %v2511
      %v2521 = vpack.c.b16 %v2515, %v2512
      %2522 = vrot.lane.b32.xlu0 %v2516, 96
      %v2523 = vpop.permute.xlu0 %2522
      %2524 = vrot.lane.b32.xlu0 %v2517, 96
      %v2525 = vpop.permute.xlu0 %2524
      %2526 = vrot.lane.b32.xlu0 %v2518, 96
      %v2527 = vpop.permute.xlu0 %2526
      %2528 = vrot.lane.b32.xlu0 %v2519, 96
      %v2529 = vpop.permute.xlu0 %2528
      %2530 = vrot.lane.b32.xlu0 %v2520, 96
      %v2531 = vpop.permute.xlu0 %2530
      %2532 = vrot.lane.b32.xlu0 %v2521, 96
      %v2533 = vpop.permute.xlu0 %2532
      %v2534 = vsel %vm1102, %v2523, %v2525
      %v2535 = vsel %vm1102, %v2525, %v2527
      %v2536 = vsel %vm1102, %v2529, %v2531
      %v2537 = vsel %vm1102, %v2531, %v2533
      %v2542 = vunpack.c.l.b16 %v2354
      %v2543 = vunpack.c.h.b16 %v2354
      %v2544 = vunpack.c.l.b16 %v2355
      %v2545 = vunpack.c.h.b16 %v2355
      %v2546 = vunpack.c.l.b16 %v2356
      %v2547 = vunpack.c.h.b16 %v2356
      %v2548 = vunpack.c.l.b16 %v2357
      %v2549 = vunpack.c.h.b16 %v2357
      %v2550 = vpack.c.b16 %v2544, %v2542
      %v2551 = vpack.c.b16 %v2545, %v2543
      %v2552 = vpack.c.b16 %v2548, %v2546
      %v2553 = vpack.c.b16 %v2549, %v2547
      %2554 = vrot.lane.b32.xlu0 %v2550, 94
      %v2555 = vpop.permute.xlu0 %2554
      %2556 = vrot.lane.b32.xlu0 %v2551, 94
      %v2557 = vpop.permute.xlu0 %2556
      %2558 = vrot.lane.b32.xlu0 %v2552, 94
      %v2559 = vpop.permute.xlu0 %2558
      %2560 = vrot.lane.b32.xlu0 %v2553, 94
      %v2561 = vpop.permute.xlu0 %2560
      %v2562 = vsel %vm568, %v2555, %v2557
      %v2563 = vsel %vm568, %v2559, %v2561
      %v2572 = vunpack.c.l.b16 %v2362
      %v2573 = vunpack.c.h.b16 %v2362
      %v2574 = vunpack.c.l.b16 %v2363
      %v2575 = vunpack.c.l.b16 %v2364
      %v2576 = vunpack.c.h.b16 %v2364
      %v2577 = vunpack.c.l.b16 %v2365
      %v2578 = vunpack.c.l.b16 %v2366
      %v2579 = vunpack.c.h.b16 %v2366
      %v2580 = vunpack.c.l.b16 %v2367
      %v2581 = vunpack.c.l.b16 %v2368
      %v2582 = vunpack.c.h.b16 %v2368
      %v2583 = vunpack.c.l.b16 %v2369
      %v2584 = vpack.c.b16 %v2575, %v2572
      %v2585 = vpack.c.b16 %v2576, %v2573
      %v2586 = vpack.c.b16 %v2577, %v2574
      %v2587 = vpack.c.b16 %v2581, %v2578
      %v2588 = vpack.c.b16 %v2582, %v2579
      %v2589 = vpack.c.b16 %v2583, %v2580
      %2590 = vrot.lane.b32.xlu0 %v2584, 92
      %v2591 = vpop.permute.xlu0 %2590
      %2592 = vrot.lane.b32.xlu0 %v2585, 92
      %v2593 = vpop.permute.xlu0 %2592
      %2594 = vrot.lane.b32.xlu0 %v2586, 92
      %v2595 = vpop.permute.xlu0 %2594
      %2596 = vrot.lane.b32.xlu0 %v2587, 92
      %v2597 = vpop.permute.xlu0 %2596
      %2598 = vrot.lane.b32.xlu0 %v2588, 92
      %v2599 = vpop.permute.xlu0 %2598
      %2600 = vrot.lane.b32.xlu0 %v2589, 92
      %v2601 = vpop.permute.xlu0 %2600
      %v2602 = vsel %vm1239, %v2591, %v2593
      %v2603 = vsel %vm1239, %v2593, %v2595
      %v2604 = vsel %vm1239, %v2597, %v2599
      %v2605 = vsel %vm1239, %v2599, %v2601
      %v2614 = vunpack.c.l.b16 %v2370
      %v2615 = vunpack.c.h.b16 %v2370
      %v2616 = vunpack.c.l.b16 %v2371
      %v2617 = vunpack.c.l.b16 %v2372
      %v2618 = vunpack.c.h.b16 %v2372
      %v2619 = vunpack.c.l.b16 %v2373
      %v2620 = vunpack.c.l.b16 %v2374
      %v2621 = vunpack.c.h.b16 %v2374
      %v2622 = vunpack.c.l.b16 %v2375
      %v2623 = vunpack.c.l.b16 %v2376
      %v2624 = vunpack.c.h.b16 %v2376
      %v2625 = vunpack.c.l.b16 %v2377
      %v2626 = vpack.c.b16 %v2617, %v2614
      %v2627 = vpack.c.b16 %v2618, %v2615
      %v2628 = vpack.c.b16 %v2619, %v2616
      %v2629 = vpack.c.b16 %v2623, %v2620
      %v2630 = vpack.c.b16 %v2624, %v2621
      %v2631 = vpack.c.b16 %v2625, %v2622
      %2632 = vrot.lane.b32.xlu0 %v2626, 64
      %v2633 = vpop.permute.xlu0 %2632
      %2634 = vrot.lane.b32.xlu0 %v2627, 64
      %v2635 = vpop.permute.xlu0 %2634
      %2636 = vrot.lane.b32.xlu0 %v2628, 64
      %v2637 = vpop.permute.xlu0 %2636
      %2638 = vrot.lane.b32.xlu0 %v2629, 64
      %v2639 = vpop.permute.xlu0 %2638
      %2640 = vrot.lane.b32.xlu0 %v2630, 64
      %v2641 = vpop.permute.xlu0 %2640
      %2642 = vrot.lane.b32.xlu0 %v2631, 64
      %v2643 = vpop.permute.xlu0 %2642
      %v2644 = vsel %vm1324, %v2633, %v2635
      %v2645 = vsel %vm1324, %v2635, %v2637
      %v2646 = vsel %vm1324, %v2639, %v2641
      %v2647 = vsel %vm1324, %v2641, %v2643
      %v2652 = vunpack.c.l.b16 %v2358
      %v2653 = vunpack.c.l.b16 %v2359
      %v2654 = vunpack.c.l.b16 %v2360
      %v2655 = vunpack.c.l.b16 %v2361
      %v2656 = vpack.c.b16 %v2653, %v2652
      %v2657 = vpack.c.b16 %v2655, %v2654
      %2658 = vrot.lane.b32.xlu0 %v2550, 62
      %v2659 = vpop.permute.xlu0 %2658
      %2660 = vrot.lane.b32.xlu0 %v2551, 62
      %v2661 = vpop.permute.xlu0 %2660
      %2662 = vrot.lane.b32.xlu0 %v2656, 62
      %v2663 = vpop.permute.xlu0 %2662
      %2664 = vrot.lane.b32.xlu0 %v2552, 62
      %v2665 = vpop.permute.xlu0 %2664
      %2666 = vrot.lane.b32.xlu0 %v2553, 62
      %v2667 = vpop.permute.xlu0 %2666
      %2668 = vrot.lane.b32.xlu0 %v2657, 62
      %v2669 = vpop.permute.xlu0 %2668
      %v2670 = vsel %vm1409, %v2659, %v2661
      %v2671 = vsel %vm1409, %v2661, %v2663
      %v2672 = vsel %vm1409, %v2665, %v2667
      %v2673 = vsel %vm1409, %v2667, %v2669
      %v2682 = vunpack.c.l.b16 %v2378
      %v2683 = vunpack.c.h.b16 %v2378
      %v2684 = vunpack.c.l.b16 %v2379
      %v2685 = vunpack.c.l.b16 %v2380
      %v2686 = vunpack.c.h.b16 %v2380
      %v2687 = vunpack.c.l.b16 %v2381
      %v2688 = vunpack.c.l.b16 %v2382
      %v2689 = vunpack.c.h.b16 %v2382
      %v2690 = vunpack.c.l.b16 %v2383
      %v2691 = vunpack.c.l.b16 %v2384
      %v2692 = vunpack.c.h.b16 %v2384
      %v2693 = vunpack.c.l.b16 %v2385
      %v2694 = vpack.c.b16 %v2685, %v2682
      %v2695 = vpack.c.b16 %v2686, %v2683
      %v2696 = vpack.c.b16 %v2687, %v2684
      %v2697 = vpack.c.b16 %v2691, %v2688
      %v2698 = vpack.c.b16 %v2692, %v2689
      %v2699 = vpack.c.b16 %v2693, %v2690
      %2700 = vrot.lane.b32.xlu0 %v2694, 60
      %v2701 = vpop.permute.xlu0 %2700
      %2702 = vrot.lane.b32.xlu0 %v2695, 60
      %v2703 = vpop.permute.xlu0 %2702
      %2704 = vrot.lane.b32.xlu0 %v2696, 60
      %v2705 = vpop.permute.xlu0 %2704
      %2706 = vrot.lane.b32.xlu0 %v2697, 60
      %v2707 = vpop.permute.xlu0 %2706
      %2708 = vrot.lane.b32.xlu0 %v2698, 60
      %v2709 = vpop.permute.xlu0 %2708
      %2710 = vrot.lane.b32.xlu0 %v2699, 60
      %v2711 = vpop.permute.xlu0 %2710
      %v2712 = vsel %vm1494, %v2701, %v2703
      %v2713 = vsel %vm1494, %v2703, %v2705
      %v2714 = vsel %vm1494, %v2707, %v2709
      %v2715 = vsel %vm1494, %v2709, %v2711
      %v2716 = vld [vmem:[%s5] sm:$0xff]
      %v2717 = vld [vmem:[%s5 + $0x8] sm:$0xf]
      %v2718 = vld [vmem:[%s5 + $0xc] sm:$0xff]
      %v2719 = vld [vmem:[%s5 + $0x14] sm:$0xf]
      %v2720 = vld [vmem:[%s5 + $0x18] sm:$0xff]
      %v2721 = vld [vmem:[%s5 + $0x20] sm:$0xf]
      %v2722 = vld [vmem:[%s5 + $0x24] sm:$0xff]
      %v2723 = vld [vmem:[%s5 + $0x2c] sm:$0xf]
      %2725 = vset.pattern.permute.xlu0 0
      %2726 = vperm.xlu0 %2725, %v2310
      %v2727 = vpop.permute.xlu0 %2726
      %2730 = vset.pattern.permute.xlu0 0
      %2731 = vperm.xlu0 %2730, %v2311
      %v2732 = vpop.permute.xlu0 %2731
      %2735 = vset.pattern.permute.xlu0 0
      %2736 = vperm.xlu0 %2735, %v2312
      %v2737 = vpop.permute.xlu0 %2736
      %2740 = vset.pattern.permute.xlu0 0
      %2741 = vperm.xlu0 %2740, %v2313
      %v2742 = vpop.permute.xlu0 %2741
      %v2752 = vunpack.c.l.b16 %v2716
      %v2753 = vunpack.c.h.b16 %v2716
      %v2754 = vunpack.c.l.b16 %v2717
      %v2755 = vunpack.c.l.b16 %v2718
      %v2756 = vunpack.c.h.b16 %v2718
      %v2757 = vunpack.c.l.b16 %v2719
      %v2758 = vunpack.c.l.b16 %v2720
      %v2759 = vunpack.c.h.b16 %v2720
      %v2760 = vunpack.c.l.b16 %v2721
      %v2761 = vunpack.c.l.b16 %v2722
      %v2762 = vunpack.c.h.b16 %v2722
      %v2763 = vunpack.c.l.b16 %v2723
      %v2764 = vpack.c.b16 %v2755, %v2752
      %v2765 = vpack.c.b16 %v2756, %v2753
      %v2766 = vpack.c.b16 %v2757, %v2754
      %v2767 = vpack.c.b16 %v2761, %v2758
      %v2768 = vpack.c.b16 %v2762, %v2759
      %v2769 = vpack.c.b16 %v2763, %v2760
      %2774 = vrot.lane.b32.xlu0 %v2406, 34
      %v2775 = vpop.permute.xlu0 %2774
      %2776 = vrot.lane.b32.xlu0 %v2407, 34
      %v2777 = vpop.permute.xlu0 %2776
      %2778 = vrot.lane.b32.xlu0 %v2408, 34
      %v2779 = vpop.permute.xlu0 %2778
      %2780 = vrot.lane.b32.xlu0 %v2409, 34
      %v2781 = vpop.permute.xlu0 %2780
      %2782 = vrot.lane.b32.xlu0 %v2410, 34
      %v2783 = vpop.permute.xlu0 %2782
      %2784 = vrot.lane.b32.xlu0 %v2411, 34
      %v2785 = vpop.permute.xlu0 %2784
      %2786 = vrot.lane.b32.xlu0 %v2450, 34
      %v2787 = vpop.permute.xlu0 %2786
      %2788 = vrot.lane.b32.xlu0 %v2451, 34
      %v2789 = vpop.permute.xlu0 %2788
      %2790 = vrot.lane.b32.xlu0 %v2443, 34
      %v2791 = vpop.permute.xlu0 %2790
      %2792 = vrot.lane.b32.xlu0 %v2452, 34
      %v2793 = vpop.permute.xlu0 %2792
      %2794 = vrot.lane.b32.xlu0 %v2453, 34
      %v2795 = vpop.permute.xlu0 %2794
      %2796 = vrot.lane.b32.xlu0 %v2449, 34
      %v2797 = vpop.permute.xlu0 %2796
      %2798 = vrot.lane.b32.xlu0 %v2492, 34
      %v2799 = vpop.permute.xlu0 %2798
      %2800 = vrot.lane.b32.xlu0 %v2493, 34
      %v2801 = vpop.permute.xlu0 %2800
      %2802 = vrot.lane.b32.xlu0 %v2485, 34
      %v2803 = vpop.permute.xlu0 %2802
      %2804 = vrot.lane.b32.xlu0 %v2494, 34
      %v2805 = vpop.permute.xlu0 %2804
      %2806 = vrot.lane.b32.xlu0 %v2495, 34
      %v2807 = vpop.permute.xlu0 %2806
      %2808 = vrot.lane.b32.xlu0 %v2491, 34
      %v2809 = vpop.permute.xlu0 %2808
      %2810 = vrot.lane.b32.xlu0 %v2534, 34
      %v2811 = vpop.permute.xlu0 %2810
      %2812 = vrot.lane.b32.xlu0 %v2535, 34
      %v2813 = vpop.permute.xlu0 %2812
      %2814 = vrot.lane.b32.xlu0 %v2527, 34
      %v2815 = vpop.permute.xlu0 %2814
      %2816 = vrot.lane.b32.xlu0 %v2536, 34
      %v2817 = vpop.permute.xlu0 %2816
      %2818 = vrot.lane.b32.xlu0 %v2537, 34
      %v2819 = vpop.permute.xlu0 %2818
      %2820 = vrot.lane.b32.xlu0 %v2533, 34
      %v2821 = vpop.permute.xlu0 %2820
      %2822 = vrot.lane.b32.xlu0 %v2555, 34
      %v2823 = vpop.permute.xlu0 %2822
      %2824 = vrot.lane.b32.xlu0 %v2562, 34
      %v2825 = vpop.permute.xlu0 %2824
      %2826 = vrot.lane.b32.xlu0 %v2557, 34
      %v2827 = vpop.permute.xlu0 %2826
      %2828 = vrot.lane.b32.xlu0 %v2559, 34
      %v2829 = vpop.permute.xlu0 %2828
      %2830 = vrot.lane.b32.xlu0 %v2563, 34
      %v2831 = vpop.permute.xlu0 %2830
      %2832 = vrot.lane.b32.xlu0 %v2561, 34
      %v2833 = vpop.permute.xlu0 %2832
      %2834 = vrot.lane.b32.xlu0 %v2591, 34
      %v2835 = vpop.permute.xlu0 %2834
      %2836 = vrot.lane.b32.xlu0 %v2602, 34
      %v2837 = vpop.permute.xlu0 %2836
      %2838 = vrot.lane.b32.xlu0 %v2603, 34
      %v2839 = vpop.permute.xlu0 %2838
      %2840 = vrot.lane.b32.xlu0 %v2597, 34
      %v2841 = vpop.permute.xlu0 %2840
      %2842 = vrot.lane.b32.xlu0 %v2604, 34
      %v2843 = vpop.permute.xlu0 %2842
      %2844 = vrot.lane.b32.xlu0 %v2605, 34
      %v2845 = vpop.permute.xlu0 %2844
      %2846 = vrot.lane.b32.xlu0 %v2633, 34
      %v2847 = vpop.permute.xlu0 %2846
      %2848 = vrot.lane.b32.xlu0 %v2644, 34
      %v2849 = vpop.permute.xlu0 %2848
      %2850 = vrot.lane.b32.xlu0 %v2645, 34
      %v2851 = vpop.permute.xlu0 %2850
      %2852 = vrot.lane.b32.xlu0 %v2639, 34
      %v2853 = vpop.permute.xlu0 %2852
      %2854 = vrot.lane.b32.xlu0 %v2646, 34
      %v2855 = vpop.permute.xlu0 %2854
      %2856 = vrot.lane.b32.xlu0 %v2647, 34
      %v2857 = vpop.permute.xlu0 %2856
      %2858 = vrot.lane.b32.xlu0 %v2659, 34
      %v2859 = vpop.permute.xlu0 %2858
      %2860 = vrot.lane.b32.xlu0 %v2670, 34
      %v2861 = vpop.permute.xlu0 %2860
      %2862 = vrot.lane.b32.xlu0 %v2671, 34
      %v2863 = vpop.permute.xlu0 %2862
      %2864 = vrot.lane.b32.xlu0 %v2665, 34
      %v2865 = vpop.permute.xlu0 %2864
      %2866 = vrot.lane.b32.xlu0 %v2672, 34
      %v2867 = vpop.permute.xlu0 %2866
      %2868 = vrot.lane.b32.xlu0 %v2673, 34
      %v2869 = vpop.permute.xlu0 %2868
      %2870 = vrot.lane.b32.xlu0 %v2701, 34
      %v2871 = vpop.permute.xlu0 %2870
      %2872 = vrot.lane.b32.xlu0 %v2712, 34
      %v2873 = vpop.permute.xlu0 %2872
      %2874 = vrot.lane.b32.xlu0 %v2713, 34
      %v2875 = vpop.permute.xlu0 %2874
      %2876 = vrot.lane.b32.xlu0 %v2707, 34
      %v2877 = vpop.permute.xlu0 %2876
      %2878 = vrot.lane.b32.xlu0 %v2714, 34
      %v2879 = vpop.permute.xlu0 %2878
      %2880 = vrot.lane.b32.xlu0 %v2715, 34
      %v2881 = vpop.permute.xlu0 %2880
      %v2882 = vsel %vm773, %v2775, %v2777
      %v2883 = vsel %vm773, %v2777, %v2779
      %v2884 = vsel %vm773, %v2781, %v2783
      %v2885 = vsel %vm773, %v2783, %v2785
      %v2886 = vsel %vm773, %v2787, %v2789
      %v2887 = vsel %vm773, %v2789, %v2791
      %v2888 = vsel %vm773, %v2793, %v2795
      %v2889 = vsel %vm773, %v2795, %v2797
      %v2890 = vsel %vm773, %v2799, %v2801
      %v2891 = vsel %vm773, %v2801, %v2803
      %v2892 = vsel %vm773, %v2805, %v2807
      %v2893 = vsel %vm773, %v2807, %v2809
      %v2894 = vsel %vm773, %v2811, %v2813
      %v2895 = vsel %vm773, %v2813, %v2815
      %v2896 = vsel %vm773, %v2817, %v2819
      %v2897 = vsel %vm773, %v2819, %v2821
      %v2898 = vsel %vm773, %v2823, %v2825
      %v2899 = vsel %vm773, %v2825, %v2827
      %v2900 = vsel %vm773, %v2829, %v2831
      %v2901 = vsel %vm773, %v2831, %v2833
      %v2902 = vsel %vm773, %v2835, %v2837
      %v2903 = vsel %vm773, %v2837, %v2839
      %v2904 = vsel %vm773, %v2841, %v2843
      %v2905 = vsel %vm773, %v2843, %v2845
      %v2906 = vsel %vm773, %v2847, %v2849
      %v2907 = vsel %vm773, %v2849, %v2851
      %v2908 = vsel %vm773, %v2853, %v2855
      %v2909 = vsel %vm773, %v2855, %v2857
      %v2910 = vsel %vm773, %v2859, %v2861
      %v2911 = vsel %vm773, %v2861, %v2863
      %v2912 = vsel %vm773, %v2865, %v2867
      %v2913 = vsel %vm773, %v2867, %v2869
      %v2914 = vsel %vm773, %v2871, %v2873
      %v2915 = vsel %vm773, %v2873, %v2875
      %v2916 = vsel %vm773, %v2877, %v2879
      %v2917 = vsel %vm773, %v2879, %v2881
      %vm2954 = vcmask 261120
      %v2956 = vsel %vm2954, %v2766, 0
      %v2959 = vsel %vm2954, %v2769, 0
      %2961 = vmatpush.bf16.msra.mxu0 %v2896
      %2962 = vmatpush.bf16.msra.mxu0 %v2894
      %2963 = vmatpush.bf16.msra.mxu0 %v2892
      %2964 = vmatpush.bf16.msra.mxu0 %v2890
      %2965 = vmatpush.bf16.msra.mxu0 %v2888
      %2966 = vmatpush.bf16.msra.mxu0 %v2886
      %2967 = vmatpush.bf16.msra.mxu0 %v2884
      %2968 = vmatpush.bf16.msra.mxu0 %v2882
      %2969 = vmatmul.bf16.gmra.mxu0 %v2764
      %v2970 = vpop.f32.mrf.mxu0
      %v2971 = vadd.f32 %v2727, %v2970
      %v2972 = vpop.f32.mrf.mxu0
      %v2973 = vadd.f32 %v2732, %v2972
      %2974 = vmatmul.bf16.gmra.mxu0 %v2767
      %v2975 = vpop.f32.mrf.mxu0
      %v2976 = vadd.f32 %v2737, %v2975
      %v2977 = vpop.f32.mrf.mxu0
      %v2978 = vadd.f32 %v2742, %v2977
      %2979 = vdwg.mxu0
      %2980 = vmatpush.bf16.msra.mxu0 %v2912
      %2981 = vmatpush.bf16.msra.mxu0 %v2910
      %2982 = vmatpush.bf16.msra.mxu0 %v2908
      %2983 = vmatpush.bf16.msra.mxu0 %v2906
      %2984 = vmatpush.bf16.msra.mxu0 %v2904
      %2985 = vmatpush.bf16.msra.mxu0 %v2902
      %2986 = vmatpush.bf16.msra.mxu0 %v2900
      %2987 = vmatpush.bf16.msra.mxu0 %v2898
      %2988 = vmatmul.bf16.gmra.mxu0 %v2765
      %v2989 = vpop.f32.mrf.mxu0
      %v2990 = vadd.f32 %v2971, %v2989
      %v2991 = vpop.f32.mrf.mxu0
      %v2992 = vadd.f32 %v2973, %v2991
      %2993 = vmatmul.bf16.gmra.mxu0 %v2768
      %v2994 = vpop.f32.mrf.mxu0
      %v2995 = vadd.f32 %v2976, %v2994
      %v2996 = vpop.f32.mrf.mxu0
      %v2997 = vadd.f32 %v2978, %v2996
      %2998 = vdwg.mxu0
      %2999 = vmatpush.bf16.msra.mxu0 0
      %3000 = vmatpush.bf16.msra.mxu0 0
      %3001 = vmatpush.bf16.msra.mxu0 0
      %3002 = vmatpush.bf16.msra.mxu0 0
      %3003 = vmatpush.bf16.msra.mxu0 0
      %3004 = vmatpush.bf16.msra.mxu0 0
      %3005 = vmatpush.bf16.msra.mxu0 %v2916
      %3006 = vmatpush.bf16.msra.mxu0 %v2914
      %3007 = vmatmul.bf16.gmra.mxu0 %v2956
      %v3008 = vpop.f32.mrf.mxu0
      %v3009 = vadd.f32 %v2990, %v3008
      %v3010 = vpop.f32.mrf.mxu0
      %v3011 = vadd.f32 %v2992, %v3010
      %3012 = vmatmul.bf16.gmra.mxu0 %v2959
      %v3013 = vpop.f32.mrf.mxu0
      %v3014 = vadd.f32 %v2995, %v3013
      %v3015 = vpop.f32.mrf.mxu0
      %v3016 = vadd.f32 %v2997, %v3015
      %3017 = vdwg.mxu0
      %3018 = vmatpush.bf16.msra.mxu0 %v2897
      %3019 = vmatpush.bf16.msra.mxu0 %v2895
      %3020 = vmatpush.bf16.msra.mxu0 %v2893
      %3021 = vmatpush.bf16.msra.mxu0 %v2891
      %3022 = vmatpush.bf16.msra.mxu0 %v2889
      %3023 = vmatpush.bf16.msra.mxu0 %v2887
      %3024 = vmatpush.bf16.msra.mxu0 %v2885
      %3025 = vmatpush.bf16.msra.mxu0 %v2883
      %3026 = vmatmul.bf16.gmra.mxu0 %v2764
      %v3027 = vpop.f32.mrf.mxu0
      %v3028 = vadd.f32 %v2727, %v3027
      %v3029 = vpop.f32.mrf.mxu0
      %v3030 = vadd.f32 %v2732, %v3029
      %3031 = vmatmul.bf16.gmra.mxu0 %v2767
      %v3032 = vpop.f32.mrf.mxu0
      %v3033 = vadd.f32 %v2737, %v3032
      %v3034 = vpop.f32.mrf.mxu0
      %v3035 = vadd.f32 %v2742, %v3034
      %3036 = vdwg.mxu0
      %3037 = vmatpush.bf16.msra.mxu0 %v2913
      %3038 = vmatpush.bf16.msra.mxu0 %v2911
      %3039 = vmatpush.bf16.msra.mxu0 %v2909
      %3040 = vmatpush.bf16.msra.mxu0 %v2907
      %3041 = vmatpush.bf16.msra.mxu0 %v2905
      %3042 = vmatpush.bf16.msra.mxu0 %v2903
      %3043 = vmatpush.bf16.msra.mxu0 %v2901
      %3044 = vmatpush.bf16.msra.mxu0 %v2899
      %3045 = vmatmul.bf16.gmra.mxu0 %v2765
      %v3046 = vpop.f32.mrf.mxu0
      %v3047 = vadd.f32 %v3028, %v3046
      %v3048 = vpop.f32.mrf.mxu0
      %v3049 = vadd.f32 %v3030, %v3048
      %3050 = vmatmul.bf16.gmra.mxu0 %v2768
      %v3051 = vpop.f32.mrf.mxu0
      %v3052 = vadd.f32 %v3033, %v3051
      %v3053 = vpop.f32.mrf.mxu0
      %v3054 = vadd.f32 %v3035, %v3053
      %3055 = vdwg.mxu0
      %3056 = vmatpush.bf16.msra.mxu0 0
      %3057 = vmatpush.bf16.msra.mxu0 0
      %3058 = vmatpush.bf16.msra.mxu0 0
      %3059 = vmatpush.bf16.msra.mxu0 0
      %3060 = vmatpush.bf16.msra.mxu0 0
      %3061 = vmatpush.bf16.msra.mxu0 0
      %3062 = vmatpush.bf16.msra.mxu0 %v2917
      %3063 = vmatpush.bf16.msra.mxu0 %v2915
      %3064 = vmatmul.bf16.gmra.mxu0 %v2956
      %v3065 = vpop.f32.mrf.mxu0
      %v3066 = vadd.f32 %v3047, %v3065
      %v3067 = vpop.f32.mrf.mxu0
      %v3068 = vadd.f32 %v3049, %v3067
      %3069 = vmatmul.bf16.gmra.mxu0 %v2959
      %v3070 = vpop.f32.mrf.mxu0
      %v3071 = vadd.f32 %v3052, %v3070
      %v3072 = vpop.f32.mrf.mxu0
      %v3073 = vadd.f32 %v3054, %v3072
      %3074 = vdwg.mxu0
      %v3075 = vld [vmem:[%s7] sm:$0xff]
      %v3076 = vld [vmem:[%s7 + $0x8] sm:$0xff]
      %v3077 = vld [vmem:[%s7 + $0x10] sm:$0xff]
      %v3078 = vld [vmem:[%s7 + $0x18] sm:$0xff]
      %v3079 = vld [vmem:[%s8] sm:$0xff]
      %v3080 = vld [vmem:[%s8 + $0x8] sm:$0xff]
      %v3081 = vld [vmem:[%s8 + $0x10] sm:$0xff]
      %v3082 = vld [vmem:[%s8 + $0x18] sm:$0xff]
      %v3083 = vadd.f32 %v3009, %v3066
      %3084 = vadd.xlane.f32.xlu0 %v3083
      %v3085 = vpop.xlane.xlu0 %3084
      %v3086 = vadd.f32 %v3011, %v3068
      %3087 = vadd.xlane.f32.xlu0 %v3086
      %v3088 = vpop.xlane.xlu0 %3087
      %v3089 = vadd.f32 %v3014, %v3071
      %3090 = vadd.xlane.f32.xlu0 %v3089
      %v3091 = vpop.xlane.xlu0 %3090
      %v3092 = vadd.f32 %v3016, %v3073
      %3093 = vadd.xlane.f32.xlu0 %v3092
      %v3094 = vpop.xlane.xlu0 %3093
      %v3095 = vmul.f32 %v3085, 0.00390625
      %v3096 = vmul.f32 %v3088, 0.00390625
      %v3097 = vmul.f32 %v3091, 0.00390625
      %v3098 = vmul.f32 %v3094, 0.00390625
      %v3099 = vsub.f32 %v3009, %v3095
      %v3100 = vsub.f32 %v3066, %v3095
      %v3101 = vsub.f32 %v3011, %v3096
      %v3102 = vsub.f32 %v3068, %v3096
      %v3103 = vsub.f32 %v3014, %v3097
      %v3104 = vsub.f32 %v3071, %v3097
      %v3105 = vsub.f32 %v3016, %v3098
      %v3106 = vsub.f32 %v3073, %v3098
      %v3107 = vmul.f32 %v3099, %v3099
      %v3108 = vmul.f32 %v3100, %v3100
      %v3109 = vmul.f32 %v3101, %v3101
      %v3110 = vmul.f32 %v3102, %v3102
      %v3111 = vmul.f32 %v3103, %v3103
      %v3112 = vmul.f32 %v3104, %v3104
      %v3113 = vmul.f32 %v3105, %v3105
      %v3114 = vmul.f32 %v3106, %v3106
      %v3115 = vadd.f32 %v3107, %v3108
      %3116 = vadd.xlane.f32.xlu0 %v3115
      %v3117 = vpop.xlane.xlu0 %3116
      %v3118 = vadd.f32 %v3109, %v3110
      %3119 = vadd.xlane.f32.xlu0 %v3118
      %v3120 = vpop.xlane.xlu0 %3119
      %v3121 = vadd.f32 %v3111, %v3112
      %3122 = vadd.xlane.f32.xlu0 %v3121
      %v3123 = vpop.xlane.xlu0 %3122
      %v3124 = vadd.f32 %v3113, %v3114
      %3125 = vadd.xlane.f32.xlu0 %v3124
      %v3126 = vpop.xlane.xlu0 %3125
      %v3127 = vmul.f32 %v3117, 0.00390625
      %v3128 = vmul.f32 %v3120, 0.00390625
      %v3129 = vmul.f32 %v3123, 0.00390625
      %v3130 = vmul.f32 %v3126, 0.00390625
      %v3131 = vadd.f32 %v3127, 1e-05
      %v3132 = vadd.f32 %v3128, 1e-05
      %v3133 = vadd.f32 %v3129, 1e-05
      %v3134 = vadd.f32 %v3130, 1e-05
      %v3135 = vrsqrt.pop %v3131
      %v3136 = vmul.f32 %v3135, %v3131
      %v3137 = vmul.f32 %v3136, %v3135
      %v3138 = vmul.f32 0.5, %v3137
      %v3139 = vsub.f32 1.5, %v3138
      %v3140 = vmul.f32 %v3135, %v3139
      %vm3141 = vweird.f32 %v3131
      %vm3142 = vweird.f32 %v3135
      %vm3143 = vmor %vm3141, %vm3142
      %v3144 = vsel %vm3143, %v3135, %v3140
      %v3145 = vrsqrt.pop %v3132
      %v3146 = vmul.f32 %v3145, %v3132
      %v3147 = vmul.f32 %v3146, %v3145
      %v3148 = vmul.f32 0.5, %v3147
      %v3149 = vsub.f32 1.5, %v3148
      %v3150 = vmul.f32 %v3145, %v3149
      %vm3151 = vweird.f32 %v3132
      %vm3152 = vweird.f32 %v3145
      %vm3153 = vmor %vm3151, %vm3152
      %v3154 = vsel %vm3153, %v3145, %v3150
      %v3155 = vrsqrt.pop %v3133
      %v3156 = vmul.f32 %v3155, %v3133
      %v3157 = vmul.f32 %v3156, %v3155
      %v3158 = vmul.f32 0.5, %v3157
      %v3159 = vsub.f32 1.5, %v3158
      %v3160 = vmul.f32 %v3155, %v3159
      %vm3161 = vweird.f32 %v3133
      %vm3162 = vweird.f32 %v3155
      %vm3163 = vmor %vm3161, %vm3162
      %v3164 = vsel %vm3163, %v3155, %v3160
      %v3165 = vrsqrt.pop %v3134
      %v3166 = vmul.f32 %v3165, %v3134
      %v3167 = vmul.f32 %v3166, %v3165
      %v3168 = vmul.f32 0.5, %v3167
      %v3169 = vsub.f32 1.5, %v3168
      %v3170 = vmul.f32 %v3165, %v3169
      %vm3171 = vweird.f32 %v3134
      %vm3172 = vweird.f32 %v3165
      %vm3173 = vmor %vm3171, %vm3172
      %v3174 = vsel %vm3173, %v3165, %v3170
      %v3175 = vmul.f32 %v3144, %v3075
      %v3176 = vmul.f32 %v3154, %v3076
      %v3177 = vmul.f32 %v3164, %v3077
      %v3178 = vmul.f32 %v3174, %v3078
      %3180 = vset.pattern.permute.xlu0 0
      %3181 = vperm.xlu0 %3180, %v3175
      %v3182 = vpop.permute.xlu0 %3181
      %3185 = vset.pattern.permute.xlu0 0
      %3186 = vperm.xlu0 %3185, %v3176
      %v3187 = vpop.permute.xlu0 %3186
      %3190 = vset.pattern.permute.xlu0 0
      %3191 = vperm.xlu0 %3190, %v3177
      %v3192 = vpop.permute.xlu0 %3191
      %3195 = vset.pattern.permute.xlu0 0
      %3196 = vperm.xlu0 %3195, %v3178
      %v3197 = vpop.permute.xlu0 %3196
      %v3199 = vmul.f32 %v3099, %v3182
      %v3200 = vmul.f32 %v3100, %v3182
      %v3201 = vmul.f32 %v3101, %v3187
      %v3202 = vmul.f32 %v3102, %v3187
      %v3203 = vmul.f32 %v3103, %v3192
      %v3204 = vmul.f32 %v3104, %v3192
      %v3205 = vmul.f32 %v3105, %v3197
      %v3206 = vmul.f32 %v3106, %v3197
      %3208 = vset.pattern.permute.xlu0 0
      %3209 = vperm.xlu0 %3208, %v3079
      %v3210 = vpop.permute.xlu0 %3209
      %3213 = vset.pattern.permute.xlu0 0
      %3214 = vperm.xlu0 %3213, %v3080
      %v3215 = vpop.permute.xlu0 %3214
      %3218 = vset.pattern.permute.xlu0 0
      %3219 = vperm.xlu0 %3218, %v3081
      %v3220 = vpop.permute.xlu0 %3219
      %3223 = vset.pattern.permute.xlu0 0
      %3224 = vperm.xlu0 %3223, %v3082
      %v3225 = vpop.permute.xlu0 %3224
      %v3227 = vadd.f32 %v3199, %v3210
      %v3228 = vadd.f32 %v3200, %v3210
      %v3229 = vadd.f32 %v3201, %v3215
      %v3230 = vadd.f32 %v3202, %v3215
      %v3231 = vadd.f32 %v3203, %v3220
      %v3232 = vadd.f32 %v3204, %v3220
      %v3233 = vadd.f32 %v3205, %v3225
      %v3234 = vadd.f32 %v3206, %v3225
      %v3235 = vld [vmem:[%s9] sm:$0xf]
      %v3236 = vld [vmem:[%s9 + $0x4] sm:$0xf]
      %v3237 = vld [vmem:[%s9 + $0x8] sm:$0xf]
      %v3238 = vld [vmem:[%s9 + $0xc] sm:$0xf]
      %v3243 = vunpack.c.l.b16 %v3235
      %v3244 = vunpack.c.l.b16 %v3236
      %v3245 = vunpack.c.l.b16 %v3237
      %v3246 = vunpack.c.l.b16 %v3238
      %v3247 = vpack.c.b16 %v3244, %v3243
      %v3248 = vpack.c.b16 %v3246, %v3245
      %v3257 = vunpack.c.l.b16 %v523
      %v3258 = vunpack.c.h.b16 %v523
      %v3259 = vunpack.c.l.b16 %v524
      %v3260 = vunpack.c.h.b16 %v524
      %v3261 = vunpack.c.l.b16 %v525
      %v3262 = vunpack.c.h.b16 %v525
      %v3263 = vunpack.c.l.b16 %v526
      %v3264 = vunpack.c.h.b16 %v526
      %v3265 = vunpack.c.l.b16 %v527
      %v3266 = vunpack.c.h.b16 %v527
      %v3267 = vunpack.c.l.b16 %v528
      %v3268 = vunpack.c.h.b16 %v528
      %v3269 = vunpack.c.l.b16 %v529
      %v3270 = vunpack.c.h.b16 %v529
      %v3271 = vunpack.c.l.b16 %v530
      %v3272 = vunpack.c.h.b16 %v530
      %v3273 = vpack.c.b16 %v3259, %v3257
      %v3274 = vpack.c.b16 %v3260, %v3258
      %v3275 = vpack.c.b16 %v3263, %v3261
      %v3276 = vpack.c.b16 %v3264, %v3262
      %v3277 = vpack.c.b16 %v3267, %v3265
      %v3278 = vpack.c.b16 %v3268, %v3266
      %v3279 = vpack.c.b16 %v3271, %v3269
      %v3280 = vpack.c.b16 %v3272, %v3270
      %v3290 = vsel %vm1945, %v3247, 0
      %v3293 = vsel %vm1945, %v3248, 0
      %3295 = vmatpush.bf16.msra.mxu0 0
      %3296 = vmatpush.bf16.msra.mxu0 0
      %3297 = vmatpush.bf16.msra.mxu0 0
      %3298 = vmatpush.bf16.msra.mxu0 0
      %3299 = vmatpush.bf16.msra.mxu0 %v3279
      %3300 = vmatpush.bf16.msra.mxu0 %v3277
      %3301 = vmatpush.bf16.msra.mxu0 %v3275
      %3302 = vmatpush.bf16.msra.mxu0 %v3273
      %3303 = vmatmul.bf16.gmra.mxu0 %v3290
      %v3304 = vpop.f32.mrf.mxu0
      %v3305 = vadd.f32 0.0, %v3304
      %v3306 = vpop.f32.mrf.mxu0
      %v3307 = vadd.f32 0.0, %v3306
      %3308 = vmatmul.bf16.gmra.mxu0 %v3293
      %v3309 = vpop.f32.mrf.mxu0
      %v3310 = vadd.f32 0.0, %v3309
      %v3311 = vpop.f32.mrf.mxu0
      %v3312 = vadd.f32 0.0, %v3311
      %3313 = vdwg.mxu0
      %3314 = vmatpush.bf16.msra.mxu0 0
      %3315 = vmatpush.bf16.msra.mxu0 0
      %3316 = vmatpush.bf16.msra.mxu0 0
      %3317 = vmatpush.bf16.msra.mxu0 0
      %3318 = vmatpush.bf16.msra.mxu0 %v3280
      %3319 = vmatpush.bf16.msra.mxu0 %v3278
      %3320 = vmatpush.bf16.msra.mxu0 %v3276
      %3321 = vmatpush.bf16.msra.mxu0 %v3274
      %3322 = vmatmul.bf16.gmra.mxu0 %v3290
      %v3323 = vpop.f32.mrf.mxu0
      %v3324 = vadd.f32 0.0, %v3323
      %v3325 = vpop.f32.mrf.mxu0
      %v3326 = vadd.f32 0.0, %v3325
      %3327 = vmatmul.bf16.gmra.mxu0 %v3293
      %v3328 = vpop.f32.mrf.mxu0
      %v3329 = vadd.f32 0.0, %v3328
      %v3330 = vpop.f32.mrf.mxu0
      %v3331 = vadd.f32 0.0, %v3330
      %3332 = vdwg.mxu0
      %v3333 = vld [vmem:[%s10] sm:$0xff]
      %v3334 = vld [vmem:[%s10 + $0x8] sm:$0xff]
      %v3335 = vld [vmem:[%s10 + $0x10] sm:$0xff]
      %v3336 = vld [vmem:[%s10 + $0x18] sm:$0xff]
      %v3337 = vld [vmem:[%s11] sm:$0xff]
      %v3338 = vld [vmem:[%s11 + $0x8] sm:$0xff]
      %v3339 = vld [vmem:[%s11 + $0x10] sm:$0xff]
      %v3340 = vld [vmem:[%s11 + $0x18] sm:$0xff]
      %v3341 = vadd.f32 %v3305, %v3324
      %3342 = vadd.xlane.f32.xlu0 %v3341
      %v3343 = vpop.xlane.xlu0 %3342
      %v3344 = vadd.f32 %v3307, %v3326
      %3345 = vadd.xlane.f32.xlu0 %v3344
      %v3346 = vpop.xlane.xlu0 %3345
      %v3347 = vadd.f32 %v3310, %v3329
      %3348 = vadd.xlane.f32.xlu0 %v3347
      %v3349 = vpop.xlane.xlu0 %3348
      %v3350 = vadd.f32 %v3312, %v3331
      %3351 = vadd.xlane.f32.xlu0 %v3350
      %v3352 = vpop.xlane.xlu0 %3351
      %v3353 = vmul.f32 %v3343, 0.00390625
      %v3354 = vmul.f32 %v3346, 0.00390625
      %v3355 = vmul.f32 %v3349, 0.00390625
      %v3356 = vmul.f32 %v3352, 0.00390625
      %v3357 = vsub.f32 %v3305, %v3353
      %v3358 = vsub.f32 %v3324, %v3353
      %v3359 = vsub.f32 %v3307, %v3354
      %v3360 = vsub.f32 %v3326, %v3354
      %v3361 = vsub.f32 %v3310, %v3355
      %v3362 = vsub.f32 %v3329, %v3355
      %v3363 = vsub.f32 %v3312, %v3356
      %v3364 = vsub.f32 %v3331, %v3356
      %v3365 = vmul.f32 %v3357, %v3357
      %v3366 = vmul.f32 %v3358, %v3358
      %v3367 = vmul.f32 %v3359, %v3359
      %v3368 = vmul.f32 %v3360, %v3360
      %v3369 = vmul.f32 %v3361, %v3361
      %v3370 = vmul.f32 %v3362, %v3362
      %v3371 = vmul.f32 %v3363, %v3363
      %v3372 = vmul.f32 %v3364, %v3364
      %v3373 = vadd.f32 %v3365, %v3366
      %3374 = vadd.xlane.f32.xlu0 %v3373
      %v3375 = vpop.xlane.xlu0 %3374
      %v3376 = vadd.f32 %v3367, %v3368
      %3377 = vadd.xlane.f32.xlu0 %v3376
      %v3378 = vpop.xlane.xlu0 %3377
      %v3379 = vadd.f32 %v3369, %v3370
      %3380 = vadd.xlane.f32.xlu0 %v3379
      %v3381 = vpop.xlane.xlu0 %3380
      %v3382 = vadd.f32 %v3371, %v3372
      %3383 = vadd.xlane.f32.xlu0 %v3382
      %v3384 = vpop.xlane.xlu0 %3383
      %v3385 = vmul.f32 %v3375, 0.00390625
      %v3386 = vmul.f32 %v3378, 0.00390625
      %v3387 = vmul.f32 %v3381, 0.00390625
      %v3388 = vmul.f32 %v3384, 0.00390625
      %v3389 = vadd.f32 %v3385, 1e-05
      %v3390 = vadd.f32 %v3386, 1e-05
      %v3391 = vadd.f32 %v3387, 1e-05
      %v3392 = vadd.f32 %v3388, 1e-05
      %v3393 = vrsqrt.pop %v3389
      %v3394 = vmul.f32 %v3393, %v3389
      %v3395 = vmul.f32 %v3394, %v3393
      %v3396 = vmul.f32 0.5, %v3395
      %v3397 = vsub.f32 1.5, %v3396
      %v3398 = vmul.f32 %v3393, %v3397
      %vm3399 = vweird.f32 %v3389
      %vm3400 = vweird.f32 %v3393
      %vm3401 = vmor %vm3399, %vm3400
      %v3402 = vsel %vm3401, %v3393, %v3398
      %v3403 = vrsqrt.pop %v3390
      %v3404 = vmul.f32 %v3403, %v3390
      %v3405 = vmul.f32 %v3404, %v3403
      %v3406 = vmul.f32 0.5, %v3405
      %v3407 = vsub.f32 1.5, %v3406
      %v3408 = vmul.f32 %v3403, %v3407
      %vm3409 = vweird.f32 %v3390
      %vm3410 = vweird.f32 %v3403
      %vm3411 = vmor %vm3409, %vm3410
      %v3412 = vsel %vm3411, %v3403, %v3408
      %v3413 = vrsqrt.pop %v3391
      %v3414 = vmul.f32 %v3413, %v3391
      %v3415 = vmul.f32 %v3414, %v3413
      %v3416 = vmul.f32 0.5, %v3415
      %v3417 = vsub.f32 1.5, %v3416
      %v3418 = vmul.f32 %v3413, %v3417
      %vm3419 = vweird.f32 %v3391
      %vm3420 = vweird.f32 %v3413
      %vm3421 = vmor %vm3419, %vm3420
      %v3422 = vsel %vm3421, %v3413, %v3418
      %v3423 = vrsqrt.pop %v3392
      %v3424 = vmul.f32 %v3423, %v3392
      %v3425 = vmul.f32 %v3424, %v3423
      %v3426 = vmul.f32 0.5, %v3425
      %v3427 = vsub.f32 1.5, %v3426
      %v3428 = vmul.f32 %v3423, %v3427
      %vm3429 = vweird.f32 %v3392
      %vm3430 = vweird.f32 %v3423
      %vm3431 = vmor %vm3429, %vm3430
      %v3432 = vsel %vm3431, %v3423, %v3428
      %v3433 = vmul.f32 %v3402, %v3333
      %v3434 = vmul.f32 %v3412, %v3334
      %v3435 = vmul.f32 %v3422, %v3335
      %v3436 = vmul.f32 %v3432, %v3336
      %3438 = vset.pattern.permute.xlu0 0
      %3439 = vperm.xlu0 %3438, %v3433
      %v3440 = vpop.permute.xlu0 %3439
      %3443 = vset.pattern.permute.xlu0 0
      %3444 = vperm.xlu0 %3443, %v3434
      %v3445 = vpop.permute.xlu0 %3444
      %3448 = vset.pattern.permute.xlu0 0
      %3449 = vperm.xlu0 %3448, %v3435
      %v3450 = vpop.permute.xlu0 %3449
      %3453 = vset.pattern.permute.xlu0 0
      %3454 = vperm.xlu0 %3453, %v3436
      %v3455 = vpop.permute.xlu0 %3454
      %v3457 = vmul.f32 %v3357, %v3440
      %v3458 = vmul.f32 %v3358, %v3440
      %v3459 = vmul.f32 %v3359, %v3445
      %v3460 = vmul.f32 %v3360, %v3445
      %v3461 = vmul.f32 %v3361, %v3450
      %v3462 = vmul.f32 %v3362, %v3450
      %v3463 = vmul.f32 %v3363, %v3455
      %v3464 = vmul.f32 %v3364, %v3455
      %3466 = vset.pattern.permute.xlu0 0
      %3467 = vperm.xlu0 %3466, %v3337
      %v3468 = vpop.permute.xlu0 %3467
      %3471 = vset.pattern.permute.xlu0 0
      %3472 = vperm.xlu0 %3471, %v3338
      %v3473 = vpop.permute.xlu0 %3472
      %3476 = vset.pattern.permute.xlu0 0
      %3477 = vperm.xlu0 %3476, %v3339
      %v3478 = vpop.permute.xlu0 %3477
      %3481 = vset.pattern.permute.xlu0 0
      %3482 = vperm.xlu0 %3481, %v3340
      %v3483 = vpop.permute.xlu0 %3482
      %v3485 = vadd.f32 %v3457, %v3468
      %v3486 = vadd.f32 %v3458, %v3468
      %v3487 = vadd.f32 %v3459, %v3473
      %v3488 = vadd.f32 %v3460, %v3473
      %v3489 = vadd.f32 %v3461, %v3478
      %v3490 = vadd.f32 %v3462, %v3478
      %v3491 = vadd.f32 %v3463, %v3483
      %v3492 = vadd.f32 %v3464, %v3483
      %v3493 = vadd.f32 %v3227, %v3485
      %v3494 = vadd.f32 %v3228, %v3486
      %v3495 = vadd.f32 %v3229, %v3487
      %v3496 = vadd.f32 %v3230, %v3488
      %v3497 = vadd.f32 %v3231, %v3489
      %v3498 = vadd.f32 %v3232, %v3490
      %v3499 = vadd.f32 %v3233, %v3491
      %v3500 = vadd.f32 %v3234, %v3492
      %v3501 = vmax.f32 %v3493, 0.0
      %v3502 = vmax.f32 %v3494, 0.0
      %v3503 = vmax.f32 %v3495, 0.0
      %v3504 = vmax.f32 %v3496, 0.0
      %v3505 = vmax.f32 %v3497, 0.0
      %v3506 = vmax.f32 %v3498, 0.0
      %v3507 = vmax.f32 %v3499, 0.0
      %v3508 = vmax.f32 %v3500, 0.0
      %v3509 = vld [vmem:[%s12] sm:$0xf]
      %v3510 = vld [vmem:[%s12 + $0x4] sm:$0xf]
      %v3511 = vld [vmem:[%s12 + $0x8] sm:$0xf]
      %v3512 = vld [vmem:[%s12 + $0xc] sm:$0xf]
      %v3513 = vld [vmem:[%s12 + $0x10] sm:$0xf]
      %v3514 = vld [vmem:[%s12 + $0x14] sm:$0xf]
      %v3515 = vld [vmem:[%s12 + $0x18] sm:$0xf]
      %v3516 = vld [vmem:[%s12 + $0x1c] sm:$0xf]
      %v3517 = vpack.c.bf16 %v3503, %v3501
      %v3518 = vpack.c.bf16 %v3504, %v3502
      %v3519 = vpack.c.bf16 %v3507, %v3505
      %v3520 = vpack.c.bf16 %v3508, %v3506
      %v3529 = vunpack.c.l.b16 %v3509
      %v3530 = vunpack.c.l.b16 %v3510
      %v3531 = vunpack.c.l.b16 %v3511
      %v3532 = vunpack.c.l.b16 %v3512
      %v3533 = vunpack.c.l.b16 %v3513
      %v3534 = vunpack.c.l.b16 %v3514
      %v3535 = vunpack.c.l.b16 %v3515
      %v3536 = vunpack.c.l.b16 %v3516
      %v3537 = vpack.c.b16 %v3530, %v3529
      %v3538 = vpack.c.b16 %v3532, %v3531
      %v3539 = vpack.c.b16 %v3534, %v3533
      %v3540 = vpack.c.b16 %v3536, %v3535
      %v3542 = vsel %vm2954, %v3537, 0
      %v3545 = vsel %vm2954, %v3538, 0
      %v3548 = vsel %vm2954, %v3539, 0
      %v3551 = vsel %vm2954, %v3540, 0
      %3553 = vmatpush.bf16.msra.mxu0 0
      %3554 = vmatpush.bf16.msra.mxu0 0
      %3555 = vmatpush.bf16.msra.mxu0 0
      %3556 = vmatpush.bf16.msra.mxu0 0
      %3557 = vmatpush.bf16.msra.mxu0 0
      %3558 = vmatpush.bf16.msra.mxu0 0
      %3559 = vmatpush.bf16.msra.mxu0 %v3519
      %3560 = vmatpush.bf16.msra.mxu0 %v3517
      %3561 = vmatmul.bf16.gmra.mxu0 %v3542
      %v3562 = vpop.f32.mrf.mxu0
      %v3563 = vadd.f32 0.0, %v3562
      %v3564 = vpop.f32.mrf.mxu0
      %v3565 = vadd.f32 0.0, %v3564
      %3566 = vmatmul.bf16.gmra.mxu0 %v3545
      %v3567 = vpop.f32.mrf.mxu0
      %v3568 = vadd.f32 0.0, %v3567
      %v3569 = vpop.f32.mrf.mxu0
      %v3570 = vadd.f32 0.0, %v3569
      %3571 = vmatmul.bf16.gmra.mxu0 %v3548
      %v3572 = vpop.f32.mrf.mxu0
      %v3573 = vadd.f32 0.0, %v3572
      %v3574 = vpop.f32.mrf.mxu0
      %v3575 = vadd.f32 0.0, %v3574
      %3576 = vmatmul.bf16.gmra.mxu0 %v3551
      %v3577 = vpop.f32.mrf.mxu0
      %v3578 = vadd.f32 0.0, %v3577
      %v3579 = vpop.f32.mrf.mxu0
      %v3580 = vadd.f32 0.0, %v3579
      %3581 = vdwg.mxu0
      %3582 = vmatpush.bf16.msra.mxu0 0
      %3583 = vmatpush.bf16.msra.mxu0 0
      %3584 = vmatpush.bf16.msra.mxu0 0
      %3585 = vmatpush.bf16.msra.mxu0 0
      %3586 = vmatpush.bf16.msra.mxu0 0
      %3587 = vmatpush.bf16.msra.mxu0 0
      %3588 = vmatpush.bf16.msra.mxu0 %v3520
      %3589 = vmatpush.bf16.msra.mxu0 %v3518
      %3590 = vmatmul.bf16.gmra.mxu0 %v3542
      %v3591 = vpop.f32.mrf.mxu0
      %v3592 = vadd.f32 0.0, %v3591
      %v3593 = vpop.f32.mrf.mxu0
      %v3594 = vadd.f32 0.0, %v3593
      %3595 = vmatmul.bf16.gmra.mxu0 %v3545
      %v3596 = vpop.f32.mrf.mxu0
      %v3597 = vadd.f32 0.0, %v3596
      %v3598 = vpop.f32.mrf.mxu0
      %v3599 = vadd.f32 0.0, %v3598
      %3600 = vmatmul.bf16.gmra.mxu0 %v3548
      %v3601 = vpop.f32.mrf.mxu0
      %v3602 = vadd.f32 0.0, %v3601
      %v3603 = vpop.f32.mrf.mxu0
      %v3604 = vadd.f32 0.0, %v3603
      %3605 = vmatmul.bf16.gmra.mxu0 %v3551
      %v3606 = vpop.f32.mrf.mxu0
      %v3607 = vadd.f32 0.0, %v3606
      %v3608 = vpop.f32.mrf.mxu0
      %v3609 = vadd.f32 0.0, %v3608
      %3610 = vdwg.mxu0
      %v3611 = vxor.u32 %v3563, 2147483648
      %v3612 = vxor.u32 %v3592, 2147483648
      %v3613 = vxor.u32 %v3565, 2147483648
      %v3614 = vxor.u32 %v3594, 2147483648
      %v3615 = vxor.u32 %v3568, 2147483648
      %v3616 = vxor.u32 %v3597, 2147483648
      %v3617 = vxor.u32 %v3570, 2147483648
      %v3618 = vxor.u32 %v3599, 2147483648
      %v3619 = vxor.u32 %v3573, 2147483648
      %v3620 = vxor.u32 %v3602, 2147483648
      %v3621 = vxor.u32 %v3575, 2147483648
      %v3622 = vxor.u32 %v3604, 2147483648
      %v3623 = vxor.u32 %v3578, 2147483648
      %v3624 = vxor.u32 %v3607, 2147483648
      %v3625 = vxor.u32 %v3580, 2147483648
      %v3626 = vxor.u32 %v3609, 2147483648
      %v3627 = vmul.f32 %v3611, 1.442695
      %v3628 = vpow.pop %v3627
      %v3629 = vmul.f32 %v3612, 1.442695
      %v3630 = vpow.pop %v3629
      %v3631 = vmul.f32 %v3613, 1.442695
      %v3632 = vpow.pop %v3631
      %v3633 = vmul.f32 %v3614, 1.442695
      %v3634 = vpow.pop %v3633
      %v3635 = vmul.f32 %v3615, 1.442695
      %v3636 = vpow.pop %v3635
      %v3637 = vmul.f32 %v3616, 1.442695
      %v3638 = vpow.pop %v3637
      %v3639 = vmul.f32 %v3617, 1.442695
      %v3640 = vpow.pop %v3639
      %v3641 = vmul.f32 %v3618, 1.442695
      %v3642 = vpow.pop %v3641
      %v3643 = vmul.f32 %v3619, 1.442695
      %v3644 = vpow.pop %v3643
      %v3645 = vmul.f32 %v3620, 1.442695
      %v3646 = vpow.pop %v3645
      %v3647 = vmul.f32 %v3621, 1.442695
      %v3648 = vpow.pop %v3647
      %v3649 = vmul.f32 %v3622, 1.442695
      %v3650 = vpow.pop %v3649
      %v3651 = vmul.f32 %v3623, 1.442695
      %v3652 = vpow.pop %v3651
      %v3653 = vmul.f32 %v3624, 1.442695
      %v3654 = vpow.pop %v3653
      %v3655 = vmul.f32 %v3625, 1.442695
      %v3656 = vpow.pop %v3655
      %v3657 = vmul.f32 %v3626, 1.442695
      %v3658 = vpow.pop %v3657
      %v3659 = vadd.f32 %v3628, 1.0
      %v3660 = vadd.f32 %v3630, 1.0
      %v3661 = vadd.f32 %v3632, 1.0
      %v3662 = vadd.f32 %v3634, 1.0
      %v3663 = vadd.f32 %v3636, 1.0
      %v3664 = vadd.f32 %v3638, 1.0
      %v3665 = vadd.f32 %v3640, 1.0
      %v3666 = vadd.f32 %v3642, 1.0
      %v3667 = vadd.f32 %v3644, 1.0
      %v3668 = vadd.f32 %v3646, 1.0
      %v3669 = vadd.f32 %v3648, 1.0
      %v3670 = vadd.f32 %v3650, 1.0
      %v3671 = vadd.f32 %v3652, 1.0
      %v3672 = vadd.f32 %v3654, 1.0
      %v3673 = vadd.f32 %v3656, 1.0
      %v3674 = vadd.f32 %v3658, 1.0
      %v3675 = vrcp.pop %v3659
      %v3676 = vmul.f32 %v3659, %v3675
      %v3677 = vsub.f32 1.0, %v3676
      %v3678 = vmul.f32 %v3675, %v3677
      %v3679 = vadd.f32 %v3675, %v3678
      %vm3680 = vweird.f32 %v3659
      %vm3681 = vweird.f32 %v3675
      %vm3682 = vmor %vm3680, %vm3681
      %v3683 = vsel %vm3682, %v3675, %v3679
      %v3684 = vand.u32 2147483647, %v3659
      %vm3685 = vcmp.eq.f32.partialorder %v3684, 8.507059e+37
      %v3686 = vand.u32 %v3659, 2147483648
      %v3687 = vor.u32 1.1754944e-38, %v3686
      %v3688 = vsel %vm3685, %v3687, %v3683
      %v3689 = vmul.f32 1.0, %v3688
      %v3690 = vrcp.pop %v3660
      %v3691 = vmul.f32 %v3660, %v3690
      %v3692 = vsub.f32 1.0, %v3691
      %v3693 = vmul.f32 %v3690, %v3692
      %v3694 = vadd.f32 %v3690, %v3693
      %vm3695 = vweird.f32 %v3660
      %vm3696 = vweird.f32 %v3690
      %vm3697 = vmor %vm3695, %vm3696
      %v3698 = vsel %vm3697, %v3690, %v3694
      %v3699 = vand.u32 2147483647, %v3660
      %vm3700 = vcmp.eq.f32.partialorder %v3699, 8.507059e+37
      %v3701 = vand.u32 %v3660, 2147483648
      %v3702 = vor.u32 1.1754944e-38, %v3701
      %v3703 = vsel %vm3700, %v3702, %v3698
      %v3704 = vmul.f32 1.0, %v3703
      %v3705 = vrcp.pop %v3661
      %v3706 = vmul.f32 %v3661, %v3705
      %v3707 = vsub.f32 1.0, %v3706
      %v3708 = vmul.f32 %v3705, %v3707
      %v3709 = vadd.f32 %v3705, %v3708
      %vm3710 = vweird.f32 %v3661
      %vm3711 = vweird.f32 %v3705
      %vm3712 = vmor %vm3710, %vm3711
      %v3713 = vsel %vm3712, %v3705, %v3709
      %v3714 = vand.u32 2147483647, %v3661
      %vm3715 = vcmp.eq.f32.partialorder %v3714, 8.507059e+37
      %v3716 = vand.u32 %v3661, 2147483648
      %v3717 = vor.u32 1.1754944e-38, %v3716
      %v3718 = vsel %vm3715, %v3717, %v3713
      %v3719 = vmul.f32 1.0, %v3718
      %v3720 = vrcp.pop %v3662
      %v3721 = vmul.f32 %v3662, %v3720
      %v3722 = vsub.f32 1.0, %v3721
      %v3723 = vmul.f32 %v3720, %v3722
      %v3724 = vadd.f32 %v3720, %v3723
      %vm3725 = vweird.f32 %v3662
      %vm3726 = vweird.f32 %v3720
      %vm3727 = vmor %vm3725, %vm3726
      %v3728 = vsel %vm3727, %v3720, %v3724
      %v3729 = vand.u32 2147483647, %v3662
      %vm3730 = vcmp.eq.f32.partialorder %v3729, 8.507059e+37
      %v3731 = vand.u32 %v3662, 2147483648
      %v3732 = vor.u32 1.1754944e-38, %v3731
      %v3733 = vsel %vm3730, %v3732, %v3728
      %v3734 = vmul.f32 1.0, %v3733
      %v3735 = vrcp.pop %v3663
      %v3736 = vmul.f32 %v3663, %v3735
      %v3737 = vsub.f32 1.0, %v3736
      %v3738 = vmul.f32 %v3735, %v3737
      %v3739 = vadd.f32 %v3735, %v3738
      %vm3740 = vweird.f32 %v3663
      %vm3741 = vweird.f32 %v3735
      %vm3742 = vmor %vm3740, %vm3741
      %v3743 = vsel %vm3742, %v3735, %v3739
      %v3744 = vand.u32 2147483647, %v3663
      %vm3745 = vcmp.eq.f32.partialorder %v3744, 8.507059e+37
      %v3746 = vand.u32 %v3663, 2147483648
      %v3747 = vor.u32 1.1754944e-38, %v3746
      %v3748 = vsel %vm3745, %v3747, %v3743
      %v3749 = vmul.f32 1.0, %v3748
      %v3750 = vrcp.pop %v3664
      %v3751 = vmul.f32 %v3664, %v3750
      %v3752 = vsub.f32 1.0, %v3751
      %v3753 = vmul.f32 %v3750, %v3752
      %v3754 = vadd.f32 %v3750, %v3753
      %vm3755 = vweird.f32 %v3664
      %vm3756 = vweird.f32 %v3750
      %vm3757 = vmor %vm3755, %vm3756
      %v3758 = vsel %vm3757, %v3750, %v3754
      %v3759 = vand.u32 2147483647, %v3664
      %vm3760 = vcmp.eq.f32.partialorder %v3759, 8.507059e+37
      %v3761 = vand.u32 %v3664, 2147483648
      %v3762 = vor.u32 1.1754944e-38, %v3761
      %v3763 = vsel %vm3760, %v3762, %v3758
      %v3764 = vmul.f32 1.0, %v3763
      %v3765 = vrcp.pop %v3665
      %v3766 = vmul.f32 %v3665, %v3765
      %v3767 = vsub.f32 1.0, %v3766
      %v3768 = vmul.f32 %v3765, %v3767
      %v3769 = vadd.f32 %v3765, %v3768
      %vm3770 = vweird.f32 %v3665
      %vm3771 = vweird.f32 %v3765
      %vm3772 = vmor %vm3770, %vm3771
      %v3773 = vsel %vm3772, %v3765, %v3769
      %v3774 = vand.u32 2147483647, %v3665
      %vm3775 = vcmp.eq.f32.partialorder %v3774, 8.507059e+37
      %v3776 = vand.u32 %v3665, 2147483648
      %v3777 = vor.u32 1.1754944e-38, %v3776
      %v3778 = vsel %vm3775, %v3777, %v3773
      %v3779 = vmul.f32 1.0, %v3778
      %v3780 = vrcp.pop %v3666
      %v3781 = vmul.f32 %v3666, %v3780
      %v3782 = vsub.f32 1.0, %v3781
      %v3783 = vmul.f32 %v3780, %v3782
      %v3784 = vadd.f32 %v3780, %v3783
      %vm3785 = vweird.f32 %v3666
      %vm3786 = vweird.f32 %v3780
      %vm3787 = vmor %vm3785, %vm3786
      %v3788 = vsel %vm3787, %v3780, %v3784
      %v3789 = vand.u32 2147483647, %v3666
      %vm3790 = vcmp.eq.f32.partialorder %v3789, 8.507059e+37
      %v3791 = vand.u32 %v3666, 2147483648
      %v3792 = vor.u32 1.1754944e-38, %v3791
      %v3793 = vsel %vm3790, %v3792, %v3788
      %v3794 = vmul.f32 1.0, %v3793
      %v3795 = vrcp.pop %v3667
      %v3796 = vmul.f32 %v3667, %v3795
      %v3797 = vsub.f32 1.0, %v3796
      %v3798 = vmul.f32 %v3795, %v3797
      %v3799 = vadd.f32 %v3795, %v3798
      %vm3800 = vweird.f32 %v3667
      %vm3801 = vweird.f32 %v3795
      %vm3802 = vmor %vm3800, %vm3801
      %v3803 = vsel %vm3802, %v3795, %v3799
      %v3804 = vand.u32 2147483647, %v3667
      %vm3805 = vcmp.eq.f32.partialorder %v3804, 8.507059e+37
      %v3806 = vand.u32 %v3667, 2147483648
      %v3807 = vor.u32 1.1754944e-38, %v3806
      %v3808 = vsel %vm3805, %v3807, %v3803
      %v3809 = vmul.f32 1.0, %v3808
      %v3810 = vrcp.pop %v3668
      %v3811 = vmul.f32 %v3668, %v3810
      %v3812 = vsub.f32 1.0, %v3811
      %v3813 = vmul.f32 %v3810, %v3812
      %v3814 = vadd.f32 %v3810, %v3813
      %vm3815 = vweird.f32 %v3668
      %vm3816 = vweird.f32 %v3810
      %vm3817 = vmor %vm3815, %vm3816
      %v3818 = vsel %vm3817, %v3810, %v3814
      %v3819 = vand.u32 2147483647, %v3668
      %vm3820 = vcmp.eq.f32.partialorder %v3819, 8.507059e+37
      %v3821 = vand.u32 %v3668, 2147483648
      %v3822 = vor.u32 1.1754944e-38, %v3821
      %v3823 = vsel %vm3820, %v3822, %v3818
      %v3824 = vmul.f32 1.0, %v3823
      %v3825 = vrcp.pop %v3669
      %v3826 = vmul.f32 %v3669, %v3825
      %v3827 = vsub.f32 1.0, %v3826
      %v3828 = vmul.f32 %v3825, %v3827
      %v3829 = vadd.f32 %v3825, %v3828
      %vm3830 = vweird.f32 %v3669
      %vm3831 = vweird.f32 %v3825
      %vm3832 = vmor %vm3830, %vm3831
      %v3833 = vsel %vm3832, %v3825, %v3829
      %v3834 = vand.u32 2147483647, %v3669
      %vm3835 = vcmp.eq.f32.partialorder %v3834, 8.507059e+37
      %v3836 = vand.u32 %v3669, 2147483648
      %v3837 = vor.u32 1.1754944e-38, %v3836
      %v3838 = vsel %vm3835, %v3837, %v3833
      %v3839 = vmul.f32 1.0, %v3838
      %v3840 = vrcp.pop %v3670
      %v3841 = vmul.f32 %v3670, %v3840
      %v3842 = vsub.f32 1.0, %v3841
      %v3843 = vmul.f32 %v3840, %v3842
      %v3844 = vadd.f32 %v3840, %v3843
      %vm3845 = vweird.f32 %v3670
      %vm3846 = vweird.f32 %v3840
      %vm3847 = vmor %vm3845, %vm3846
      %v3848 = vsel %vm3847, %v3840, %v3844
      %v3849 = vand.u32 2147483647, %v3670
      %vm3850 = vcmp.eq.f32.partialorder %v3849, 8.507059e+37
      %v3851 = vand.u32 %v3670, 2147483648
      %v3852 = vor.u32 1.1754944e-38, %v3851
      %v3853 = vsel %vm3850, %v3852, %v3848
      %v3854 = vmul.f32 1.0, %v3853
      %v3855 = vrcp.pop %v3671
      %v3856 = vmul.f32 %v3671, %v3855
      %v3857 = vsub.f32 1.0, %v3856
      %v3858 = vmul.f32 %v3855, %v3857
      %v3859 = vadd.f32 %v3855, %v3858
      %vm3860 = vweird.f32 %v3671
      %vm3861 = vweird.f32 %v3855
      %vm3862 = vmor %vm3860, %vm3861
      %v3863 = vsel %vm3862, %v3855, %v3859
      %v3864 = vand.u32 2147483647, %v3671
      %vm3865 = vcmp.eq.f32.partialorder %v3864, 8.507059e+37
      %v3866 = vand.u32 %v3671, 2147483648
      %v3867 = vor.u32 1.1754944e-38, %v3866
      %v3868 = vsel %vm3865, %v3867, %v3863
      %v3869 = vmul.f32 1.0, %v3868
      %v3870 = vrcp.pop %v3672
      %v3871 = vmul.f32 %v3672, %v3870
      %v3872 = vsub.f32 1.0, %v3871
      %v3873 = vmul.f32 %v3870, %v3872
      %v3874 = vadd.f32 %v3870, %v3873
      %vm3875 = vweird.f32 %v3672
      %vm3876 = vweird.f32 %v3870
      %vm3877 = vmor %vm3875, %vm3876
      %v3878 = vsel %vm3877, %v3870, %v3874
      %v3879 = vand.u32 2147483647, %v3672
      %vm3880 = vcmp.eq.f32.partialorder %v3879, 8.507059e+37
      %v3881 = vand.u32 %v3672, 2147483648
      %v3882 = vor.u32 1.1754944e-38, %v3881
      %v3883 = vsel %vm3880, %v3882, %v3878
      %v3884 = vmul.f32 1.0, %v3883
      %v3885 = vrcp.pop %v3673
      %v3886 = vmul.f32 %v3673, %v3885
      %v3887 = vsub.f32 1.0, %v3886
      %v3888 = vmul.f32 %v3885, %v3887
      %v3889 = vadd.f32 %v3885, %v3888
      %vm3890 = vweird.f32 %v3673
      %vm3891 = vweird.f32 %v3885
      %vm3892 = vmor %vm3890, %vm3891
      %v3893 = vsel %vm3892, %v3885, %v3889
      %v3894 = vand.u32 2147483647, %v3673
      %vm3895 = vcmp.eq.f32.partialorder %v3894, 8.507059e+37
      %v3896 = vand.u32 %v3673, 2147483648
      %v3897 = vor.u32 1.1754944e-38, %v3896
      %v3898 = vsel %vm3895, %v3897, %v3893
      %v3899 = vmul.f32 1.0, %v3898
      %v3900 = vrcp.pop %v3674
      %v3901 = vmul.f32 %v3674, %v3900
      %v3902 = vsub.f32 1.0, %v3901
      %v3903 = vmul.f32 %v3900, %v3902
      %v3904 = vadd.f32 %v3900, %v3903
      %vm3905 = vweird.f32 %v3674
      %vm3906 = vweird.f32 %v3900
      %vm3907 = vmor %vm3905, %vm3906
      %v3908 = vsel %vm3907, %v3900, %v3904
      %v3909 = vand.u32 2147483647, %v3674
      %vm3910 = vcmp.eq.f32.partialorder %v3909, 8.507059e+37
      %v3911 = vand.u32 %v3674, 2147483648
      %v3912 = vor.u32 1.1754944e-38, %v3911
      %v3913 = vsel %vm3910, %v3912, %v3908
      %v3914 = vmul.f32 1.0, %v3913
      %v3915 = vadd.f32 %v3689, 1.0
      %v3916 = vadd.f32 %v3704, 1.0
      %v3917 = vadd.f32 %v3719, 1.0
      %v3918 = vadd.f32 %v3734, 1.0
      %v3919 = vadd.f32 %v3749, 1.0
      %v3920 = vadd.f32 %v3764, 1.0
      %v3921 = vadd.f32 %v3779, 1.0
      %v3922 = vadd.f32 %v3794, 1.0
      %v3923 = vadd.f32 %v3809, 1.0
      %v3924 = vadd.f32 %v3824, 1.0
      %v3925 = vadd.f32 %v3839, 1.0
      %v3926 = vadd.f32 %v3854, 1.0
      %v3927 = vadd.f32 %v3869, 1.0
      %v3928 = vadd.f32 %v3884, 1.0
      %v3929 = vadd.f32 %v3899, 1.0
      %v3930 = vadd.f32 %v3914, 1.0
      %v3931 = vmul.f32 %v3915, %v507
      %v3932 = vmul.f32 %v3916, %v508
      %v3933 = vmul.f32 %v3917, %v509
      %v3934 = vmul.f32 %v3918, %v510
      %v3935 = vmul.f32 %v3919, %v511
      %v3936 = vmul.f32 %v3920, %v512
      %v3937 = vmul.f32 %v3921, %v513
      %v3938 = vmul.f32 %v3922, %v514
      %v3939 = vmul.f32 %v3923, %v515
      %v3940 = vmul.f32 %v3924, %v516
      %v3941 = vmul.f32 %v3925, %v517
      %v3942 = vmul.f32 %v3926, %v518
      %v3943 = vmul.f32 %v3927, %v519
      %v3944 = vmul.f32 %v3928, %v520
      %v3945 = vmul.f32 %v3929, %v521
      %v3946 = vmul.f32 %v3930, %v522
      %v3947 = vpack.c.bf16 %v3932, %v3931
      %v3948 = vpack.c.bf16 %v3934, %v3933
      %v3949 = vpack.c.bf16 %v3936, %v3935
      %v3950 = vpack.c.bf16 %v3938, %v3937
      %v3951 = vpack.c.bf16 %v3940, %v3939
      %v3952 = vpack.c.bf16 %v3942, %v3941
      %v3953 = vpack.c.bf16 %v3944, %v3943
      %v3954 = vpack.c.bf16 %v3946, %v3945
      %v3955 = vld [vmem:[%s2] sm:$0xff]
      %v3956 = vld [vmem:[%s2 + $0x8] sm:$0xff]
      %v3957 = vld [vmem:[%s2 + $0x10] sm:$0xff]
      %v3958 = vld [vmem:[%s2 + $0x18] sm:$0xff]
      %3959 = vst [vmem:[#allocation2 + $0x4] sm:$0xff] %v3947
      %3960 = vst [vmem:[#allocation2 + $0x14] sm:$0xff] %v3948
      %3961 = vst [vmem:[#allocation2 + $0x24] sm:$0xff] %v3949
      %3962 = vst [vmem:[#allocation2 + $0x34] sm:$0xff] %v3950
      %3963 = vst [vmem:[#allocation2 + $0x44] sm:$0xff] %v3951
      %3964 = vst [vmem:[#allocation2 + $0x54] sm:$0xff] %v3952
      %3965 = vst [vmem:[#allocation2 + $0x64] sm:$0xff] %v3953
      %3966 = vst [vmem:[#allocation2 + $0x74] sm:$0xff] %v3954
      %v3967 = vld [vmem:[#allocation2] sm:$0xff]
      %v3968 = vld [vmem:[#allocation2 + $0x8] sm:$0xf]
      %v3969 = vld [vmem:[#allocation2 + $0x10] sm:$0xff]
      %v3970 = vld [vmem:[#allocation2 + $0x18] sm:$0xf]
      %v3971 = vld [vmem:[#allocation2 + $0x20] sm:$0xff]
      %v3972 = vld [vmem:[#allocation2 + $0x28] sm:$0xf]
      %v3973 = vld [vmem:[#allocation2 + $0x30] sm:$0xff]
      %v3974 = vld [vmem:[#allocation2 + $0x38] sm:$0xf]
      %v3975 = vld [vmem:[#allocation2 + $0x40] sm:$0xff]
      %v3976 = vld [vmem:[#allocation2 + $0x48] sm:$0xf]
      %v3977 = vld [vmem:[#allocation2 + $0x50] sm:$0xff]
      %v3978 = vld [vmem:[#allocation2 + $0x58] sm:$0xf]
      %v3979 = vld [vmem:[#allocation2 + $0x60] sm:$0xff]
      %v3980 = vld [vmem:[#allocation2 + $0x68] sm:$0xf]
      %v3981 = vld [vmem:[#allocation2 + $0x70] sm:$0xff]
      %v3982 = vld [vmem:[#allocation2 + $0x78] sm:$0xf]
      %v3983 = vsel %vm576, %v3967, 0
      %v3984 = vsel %vm583, %v3968, 0
      %v3985 = vsel %vm576, %v3969, 0
      %v3986 = vsel %vm583, %v3970, 0
      %v3987 = vsel %vm576, %v3971, 0
      %v3988 = vsel %vm583, %v3972, 0
      %v3989 = vsel %vm576, %v3973, 0
      %v3990 = vsel %vm583, %v3974, 0
      %v3991 = vsel %vm576, %v3975, 0
      %v3992 = vsel %vm583, %v3976, 0
      %v3993 = vsel %vm576, %v3977, 0
      %v3994 = vsel %vm583, %v3978, 0
      %v3995 = vsel %vm576, %v3979, 0
      %v3996 = vsel %vm583, %v3980, 0
      %v3997 = vsel %vm576, %v3981, 0
      %v3998 = vsel %vm583, %v3982, 0
      %v3999 = vsel %vm617, %v3967, 0
      %v4000 = vsel %vm624, %v3968, 0
      %v4001 = vsel %vm617, %v3969, 0
      %v4002 = vsel %vm624, %v3970, 0
      %v4003 = vsel %vm617, %v3971, 0
      %v4004 = vsel %vm624, %v3972, 0
      %v4005 = vsel %vm617, %v3973, 0
      %v4006 = vsel %vm624, %v3974, 0
      %v4007 = vsel %vm617, %v3975, 0
      %v4008 = vsel %vm624, %v3976, 0
      %v4009 = vsel %vm617, %v3977, 0
      %v4010 = vsel %vm624, %v3978, 0
      %v4011 = vsel %vm617, %v3979, 0
      %v4012 = vsel %vm624, %v3980, 0
      %v4013 = vsel %vm617, %v3981, 0
      %v4014 = vsel %vm624, %v3982, 0
      %v4015 = vsel %vm652, %v3967, 0
      %v4016 = vsel %vm659, %v3968, 0
      %v4017 = vsel %vm652, %v3969, 0
      %v4018 = vsel %vm659, %v3970, 0
      %v4019 = vsel %vm652, %v3971, 0
      %v4020 = vsel %vm659, %v3972, 0
      %v4021 = vsel %vm652, %v3973, 0
      %v4022 = vsel %vm659, %v3974, 0
      %v4023 = vsel %vm652, %v3975, 0
      %v4024 = vsel %vm659, %v3976, 0
      %v4025 = vsel %vm652, %v3977, 0
      %v4026 = vsel %vm659, %v3978, 0
      %v4027 = vsel %vm652, %v3979, 0
      %v4028 = vsel %vm659, %v3980, 0
      %v4029 = vsel %vm652, %v3981, 0
      %v4030 = vsel %vm659, %v3982, 0
      %v4031 = vld [vmem:[#allocation2 + $0x4] sm:$0xff]
      %v4032 = vld [vmem:[#allocation2 + $0x14] sm:$0xff]
      %v4033 = vld [vmem:[#allocation2 + $0x24] sm:$0xff]
      %v4034 = vld [vmem:[#allocation2 + $0x34] sm:$0xff]
      %v4035 = vld [vmem:[#allocation2 + $0x44] sm:$0xff]
      %v4036 = vld [vmem:[#allocation2 + $0x54] sm:$0xff]
      %v4037 = vld [vmem:[#allocation2 + $0x64] sm:$0xff]
      %v4038 = vld [vmem:[#allocation2 + $0x74] sm:$0xff]
      %v4039 = vld [vmem:[#allocation2 + $0x4] sm:$0xff]
      %v4040 = vld [vmem:[#allocation2 + $0xc] sm:$0xf]
      %v4041 = vld [vmem:[#allocation2 + $0x14] sm:$0xff]
      %v4042 = vld [vmem:[#allocation2 + $0x1c] sm:$0xf]
      %v4043 = vld [vmem:[#allocation2 + $0x24] sm:$0xff]
      %v4044 = vld [vmem:[#allocation2 + $0x2c] sm:$0xf]
      %v4045 = vld [vmem:[#allocation2 + $0x34] sm:$0xff]
      %v4046 = vld [vmem:[#allocation2 + $0x3c] sm:$0xf]
      %v4047 = vld [vmem:[#allocation2 + $0x44] sm:$0xff]
      %v4048 = vld [vmem:[#allocation2 + $0x4c] sm:$0xf]
      %v4049 = vld [vmem:[#allocation2 + $0x54] sm:$0xff]
      %v4050 = vld [vmem:[#allocation2 + $0x5c] sm:$0xf]
      %v4051 = vld [vmem:[#allocation2 + $0x64] sm:$0xff]
      %v4052 = vld [vmem:[#allocation2 + $0x6c] sm:$0xf]
      %v4053 = vld [vmem:[#allocation2 + $0x74] sm:$0xff]
      %v4054 = vld [vmem:[#allocation2 + $0x7c] sm:$0xf]
      %v4055 = vsel %vm711, %v4039, 0
      %v4056 = vsel %vm718, %v4040, 0
      %v4057 = vsel %vm711, %v4041, 0
      %v4058 = vsel %vm718, %v4042, 0
      %v4059 = vsel %vm711, %v4043, 0
      %v4060 = vsel %vm718, %v4044, 0
      %v4061 = vsel %vm711, %v4045, 0
      %v4062 = vsel %vm718, %v4046, 0
      %v4063 = vsel %vm711, %v4047, 0
      %v4064 = vsel %vm718, %v4048, 0
      %v4065 = vsel %vm711, %v4049, 0
      %v4066 = vsel %vm718, %v4050, 0
      %v4067 = vsel %vm711, %v4051, 0
      %v4068 = vsel %vm718, %v4052, 0
      %v4069 = vsel %vm711, %v4053, 0
      %v4070 = vsel %vm718, %v4054, 0
      %v4071 = vsel %vm746, %v4039, 0
      %v4072 = vsel %vm753, %v4040, 0
      %v4073 = vsel %vm746, %v4041, 0
      %v4074 = vsel %vm753, %v4042, 0
      %v4075 = vsel %vm746, %v4043, 0
      %v4076 = vsel %vm753, %v4044, 0
      %v4077 = vsel %vm746, %v4045, 0
      %v4078 = vsel %vm753, %v4046, 0
      %v4079 = vsel %vm746, %v4047, 0
      %v4080 = vsel %vm753, %v4048, 0
      %v4081 = vsel %vm746, %v4049, 0
      %v4082 = vsel %vm753, %v4050, 0
      %v4083 = vsel %vm746, %v4051, 0
      %v4084 = vsel %vm753, %v4052, 0
      %v4085 = vsel %vm746, %v4053, 0
      %v4086 = vsel %vm753, %v4054, 0
      %v4087 = vsel %vm781, %v4039, 0
      %v4088 = vsel %vm788, %v4040, 0
      %v4089 = vsel %vm781, %v4041, 0
      %v4090 = vsel %vm788, %v4042, 0
      %v4091 = vsel %vm781, %v4043, 0
      %v4092 = vsel %vm788, %v4044, 0
      %v4093 = vsel %vm781, %v4045, 0
      %v4094 = vsel %vm788, %v4046, 0
      %v4095 = vsel %vm781, %v4047, 0
      %v4096 = vsel %vm788, %v4048, 0
      %v4097 = vsel %vm781, %v4049, 0
      %v4098 = vsel %vm788, %v4050, 0
      %v4099 = vsel %vm781, %v4051, 0
      %v4100 = vsel %vm788, %v4052, 0
      %v4101 = vsel %vm781, %v4053, 0
      %v4102 = vsel %vm788, %v4054, 0
      %v4119 = vunpack.c.l.b16 %v3983
      %v4120 = vunpack.c.h.b16 %v3983
      %v4121 = vunpack.c.l.b16 %v3984
      %v4122 = vunpack.c.l.b16 %v3985
      %v4123 = vunpack.c.h.b16 %v3985
      %v4124 = vunpack.c.l.b16 %v3986
      %v4125 = vunpack.c.l.b16 %v3987
      %v4126 = vunpack.c.h.b16 %v3987
      %v4127 = vunpack.c.l.b16 %v3988
      %v4128 = vunpack.c.l.b16 %v3989
      %v4129 = vunpack.c.h.b16 %v3989
      %v4130 = vunpack.c.l.b16 %v3990
      %v4131 = vunpack.c.l.b16 %v3991
      %v4132 = vunpack.c.h.b16 %v3991
      %v4133 = vunpack.c.l.b16 %v3992
      %v4134 = vunpack.c.l.b16 %v3993
      %v4135 = vunpack.c.h.b16 %v3993
      %v4136 = vunpack.c.l.b16 %v3994
      %v4137 = vunpack.c.l.b16 %v3995
      %v4138 = vunpack.c.h.b16 %v3995
      %v4139 = vunpack.c.l.b16 %v3996
      %v4140 = vunpack.c.l.b16 %v3997
      %v4141 = vunpack.c.h.b16 %v3997
      %v4142 = vunpack.c.l.b16 %v3998
      %v4143 = vpack.c.b16 %v4122, %v4119
      %v4144 = vpack.c.b16 %v4123, %v4120
      %v4145 = vpack.c.b16 %v4124, %v4121
      %v4146 = vpack.c.b16 %v4128, %v4125
      %v4147 = vpack.c.b16 %v4129, %v4126
      %v4148 = vpack.c.b16 %v4130, %v4127
      %v4149 = vpack.c.b16 %v4134, %v4131
      %v4150 = vpack.c.b16 %v4135, %v4132
      %v4151 = vpack.c.b16 %v4136, %v4133
      %v4152 = vpack.c.b16 %v4140, %v4137
      %v4153 = vpack.c.b16 %v4141, %v4138
      %v4154 = vpack.c.b16 %v4142, %v4139
      %v4171 = vunpack.c.l.b16 %v3967
      %v4172 = vunpack.c.h.b16 %v3967
      %v4173 = vunpack.c.l.b16 %v3968
      %v4174 = vunpack.c.l.b16 %v3969
      %v4175 = vunpack.c.h.b16 %v3969
      %v4176 = vunpack.c.l.b16 %v3970
      %v4177 = vunpack.c.l.b16 %v3971
      %v4178 = vunpack.c.h.b16 %v3971
      %v4179 = vunpack.c.l.b16 %v3972
      %v4180 = vunpack.c.l.b16 %v3973
      %v4181 = vunpack.c.h.b16 %v3973
      %v4182 = vunpack.c.l.b16 %v3974
      %v4183 = vunpack.c.l.b16 %v3975
      %v4184 = vunpack.c.h.b16 %v3975
      %v4185 = vunpack.c.l.b16 %v3976
      %v4186 = vunpack.c.l.b16 %v3977
      %v4187 = vunpack.c.h.b16 %v3977
      %v4188 = vunpack.c.l.b16 %v3978
      %v4189 = vunpack.c.l.b16 %v3979
      %v4190 = vunpack.c.h.b16 %v3979
      %v4191 = vunpack.c.l.b16 %v3980
      %v4192 = vunpack.c.l.b16 %v3981
      %v4193 = vunpack.c.h.b16 %v3981
      %v4194 = vunpack.c.l.b16 %v3982
      %v4195 = vpack.c.b16 %v4174, %v4171
      %v4196 = vpack.c.b16 %v4175, %v4172
      %v4197 = vpack.c.b16 %v4176, %v4173
      %v4198 = vpack.c.b16 %v4180, %v4177
      %v4199 = vpack.c.b16 %v4181, %v4178
      %v4200 = vpack.c.b16 %v4182, %v4179
      %v4201 = vpack.c.b16 %v4186, %v4183
      %v4202 = vpack.c.b16 %v4187, %v4184
      %v4203 = vpack.c.b16 %v4188, %v4185
      %v4204 = vpack.c.b16 %v4192, %v4189
      %v4205 = vpack.c.b16 %v4193, %v4190
      %v4206 = vpack.c.b16 %v4194, %v4191
      %4207 = vrot.lane.b32.xlu0 %v4195, 126
      %v4208 = vpop.permute.xlu0 %4207
      %4209 = vrot.lane.b32.xlu0 %v4196, 126
      %v4210 = vpop.permute.xlu0 %4209
      %4211 = vrot.lane.b32.xlu0 %v4197, 126
      %v4212 = vpop.permute.xlu0 %4211
      %4213 = vrot.lane.b32.xlu0 %v4198, 126
      %v4214 = vpop.permute.xlu0 %4213
      %4215 = vrot.lane.b32.xlu0 %v4199, 126
      %v4216 = vpop.permute.xlu0 %4215
      %4217 = vrot.lane.b32.xlu0 %v4200, 126
      %v4218 = vpop.permute.xlu0 %4217
      %4219 = vrot.lane.b32.xlu0 %v4201, 126
      %v4220 = vpop.permute.xlu0 %4219
      %4221 = vrot.lane.b32.xlu0 %v4202, 126
      %v4222 = vpop.permute.xlu0 %4221
      %4223 = vrot.lane.b32.xlu0 %v4203, 126
      %v4224 = vpop.permute.xlu0 %4223
      %4225 = vrot.lane.b32.xlu0 %v4204, 126
      %v4226 = vpop.permute.xlu0 %4225
      %4227 = vrot.lane.b32.xlu0 %v4205, 126
      %v4228 = vpop.permute.xlu0 %4227
      %4229 = vrot.lane.b32.xlu0 %v4206, 126
      %v4230 = vpop.permute.xlu0 %4229
      %v4231 = vsel %vm644, %v4208, %v4210
      %v4232 = vsel %vm644, %v4210, %v4212
      %v4233 = vsel %vm644, %v4214, %v4216
      %v4234 = vsel %vm644, %v4216, %v4218
      %v4235 = vsel %vm644, %v4220, %v4222
      %v4236 = vsel %vm644, %v4222, %v4224
      %v4237 = vsel %vm644, %v4226, %v4228
      %v4238 = vsel %vm644, %v4228, %v4230
      %v4255 = vunpack.c.l.b16 %v3999
      %v4256 = vunpack.c.h.b16 %v3999
      %v4257 = vunpack.c.l.b16 %v4000
      %v4258 = vunpack.c.l.b16 %v4001
      %v4259 = vunpack.c.h.b16 %v4001
      %v4260 = vunpack.c.l.b16 %v4002
      %v4261 = vunpack.c.l.b16 %v4003
      %v4262 = vunpack.c.h.b16 %v4003
      %v4263 = vunpack.c.l.b16 %v4004
      %v4264 = vunpack.c.l.b16 %v4005
      %v4265 = vunpack.c.h.b16 %v4005
      %v4266 = vunpack.c.l.b16 %v4006
      %v4267 = vunpack.c.l.b16 %v4007
      %v4268 = vunpack.c.h.b16 %v4007
      %v4269 = vunpack.c.l.b16 %v4008
      %v4270 = vunpack.c.l.b16 %v4009
      %v4271 = vunpack.c.h.b16 %v4009
      %v4272 = vunpack.c.l.b16 %v4010
      %v4273 = vunpack.c.l.b16 %v4011
      %v4274 = vunpack.c.h.b16 %v4011
      %v4275 = vunpack.c.l.b16 %v4012
      %v4276 = vunpack.c.l.b16 %v4013
      %v4277 = vunpack.c.h.b16 %v4013
      %v4278 = vunpack.c.l.b16 %v4014
      %v4279 = vpack.c.b16 %v4258, %v4255
      %v4280 = vpack.c.b16 %v4259, %v4256
      %v4281 = vpack.c.b16 %v4260, %v4257
      %v4282 = vpack.c.b16 %v4264, %v4261
      %v4283 = vpack.c.b16 %v4265, %v4262
      %v4284 = vpack.c.b16 %v4266, %v4263
      %v4285 = vpack.c.b16 %v4270, %v4267
      %v4286 = vpack.c.b16 %v4271, %v4268
      %v4287 = vpack.c.b16 %v4272, %v4269
      %v4288 = vpack.c.b16 %v4276, %v4273
      %v4289 = vpack.c.b16 %v4277, %v4274
      %v4290 = vpack.c.b16 %v4278, %v4275
      %4291 = vrot.lane.b32.xlu0 %v4279, 124
      %v4292 = vpop.permute.xlu0 %4291
      %4293 = vrot.lane.b32.xlu0 %v4280, 124
      %v4294 = vpop.permute.xlu0 %4293
      %4295 = vrot.lane.b32.xlu0 %v4281, 124
      %v4296 = vpop.permute.xlu0 %4295
      %4297 = vrot.lane.b32.xlu0 %v4282, 124
      %v4298 = vpop.permute.xlu0 %4297
      %4299 = vrot.lane.b32.xlu0 %v4283, 124
      %v4300 = vpop.permute.xlu0 %4299
      %4301 = vrot.lane.b32.xlu0 %v4284, 124
      %v4302 = vpop.permute.xlu0 %4301
      %4303 = vrot.lane.b32.xlu0 %v4285, 124
      %v4304 = vpop.permute.xlu0 %4303
      %4305 = vrot.lane.b32.xlu0 %v4286, 124
      %v4306 = vpop.permute.xlu0 %4305
      %4307 = vrot.lane.b32.xlu0 %v4287, 124
      %v4308 = vpop.permute.xlu0 %4307
      %4309 = vrot.lane.b32.xlu0 %v4288, 124
      %v4310 = vpop.permute.xlu0 %4309
      %4311 = vrot.lane.b32.xlu0 %v4289, 124
      %v4312 = vpop.permute.xlu0 %4311
      %4313 = vrot.lane.b32.xlu0 %v4290, 124
      %v4314 = vpop.permute.xlu0 %4313
      %v4315 = vsel %vm1017, %v4292, %v4294
      %v4316 = vsel %vm1017, %v4294, %v4296
      %v4317 = vsel %vm1017, %v4298, %v4300
      %v4318 = vsel %vm1017, %v4300, %v4302
      %v4319 = vsel %vm1017, %v4304, %v4306
      %v4320 = vsel %vm1017, %v4306, %v4308
      %v4321 = vsel %vm1017, %v4310, %v4312
      %v4322 = vsel %vm1017, %v4312, %v4314
      %v4339 = vunpack.c.l.b16 %v4015
      %v4340 = vunpack.c.h.b16 %v4015
      %v4341 = vunpack.c.l.b16 %v4016
      %v4342 = vunpack.c.l.b16 %v4017
      %v4343 = vunpack.c.h.b16 %v4017
      %v4344 = vunpack.c.l.b16 %v4018
      %v4345 = vunpack.c.l.b16 %v4019
      %v4346 = vunpack.c.h.b16 %v4019
      %v4347 = vunpack.c.l.b16 %v4020
      %v4348 = vunpack.c.l.b16 %v4021
      %v4349 = vunpack.c.h.b16 %v4021
      %v4350 = vunpack.c.l.b16 %v4022
      %v4351 = vunpack.c.l.b16 %v4023
      %v4352 = vunpack.c.h.b16 %v4023
      %v4353 = vunpack.c.l.b16 %v4024
      %v4354 = vunpack.c.l.b16 %v4025
      %v4355 = vunpack.c.h.b16 %v4025
      %v4356 = vunpack.c.l.b16 %v4026
      %v4357 = vunpack.c.l.b16 %v4027
      %v4358 = vunpack.c.h.b16 %v4027
      %v4359 = vunpack.c.l.b16 %v4028
      %v4360 = vunpack.c.l.b16 %v4029
      %v4361 = vunpack.c.h.b16 %v4029
      %v4362 = vunpack.c.l.b16 %v4030
      %v4363 = vpack.c.b16 %v4342, %v4339
      %v4364 = vpack.c.b16 %v4343, %v4340
      %v4365 = vpack.c.b16 %v4344, %v4341
      %v4366 = vpack.c.b16 %v4348, %v4345
      %v4367 = vpack.c.b16 %v4349, %v4346
      %v4368 = vpack.c.b16 %v4350, %v4347
      %v4369 = vpack.c.b16 %v4354, %v4351
      %v4370 = vpack.c.b16 %v4355, %v4352
      %v4371 = vpack.c.b16 %v4356, %v4353
      %v4372 = vpack.c.b16 %v4360, %v4357
      %v4373 = vpack.c.b16 %v4361, %v4358
      %v4374 = vpack.c.b16 %v4362, %v4359
      %4375 = vrot.lane.b32.xlu0 %v4363, 96
      %v4376 = vpop.permute.xlu0 %4375
      %4377 = vrot.lane.b32.xlu0 %v4364, 96
      %v4378 = vpop.permute.xlu0 %4377
      %4379 = vrot.lane.b32.xlu0 %v4365, 96
      %v4380 = vpop.permute.xlu0 %4379
      %4381 = vrot.lane.b32.xlu0 %v4366, 96
      %v4382 = vpop.permute.xlu0 %4381
      %4383 = vrot.lane.b32.xlu0 %v4367, 96
      %v4384 = vpop.permute.xlu0 %4383
      %4385 = vrot.lane.b32.xlu0 %v4368, 96
      %v4386 = vpop.permute.xlu0 %4385
      %4387 = vrot.lane.b32.xlu0 %v4369, 96
      %v4388 = vpop.permute.xlu0 %4387
      %4389 = vrot.lane.b32.xlu0 %v4370, 96
      %v4390 = vpop.permute.xlu0 %4389
      %4391 = vrot.lane.b32.xlu0 %v4371, 96
      %v4392 = vpop.permute.xlu0 %4391
      %4393 = vrot.lane.b32.xlu0 %v4372, 96
      %v4394 = vpop.permute.xlu0 %4393
      %4395 = vrot.lane.b32.xlu0 %v4373, 96
      %v4396 = vpop.permute.xlu0 %4395
      %4397 = vrot.lane.b32.xlu0 %v4374, 96
      %v4398 = vpop.permute.xlu0 %4397
      %v4399 = vsel %vm1102, %v4376, %v4378
      %v4400 = vsel %vm1102, %v4378, %v4380
      %v4401 = vsel %vm1102, %v4382, %v4384
      %v4402 = vsel %vm1102, %v4384, %v4386
      %v4403 = vsel %vm1102, %v4388, %v4390
      %v4404 = vsel %vm1102, %v4390, %v4392
      %v4405 = vsel %vm1102, %v4394, %v4396
      %v4406 = vsel %vm1102, %v4396, %v4398
      %v4415 = vunpack.c.l.b16 %v4031
      %v4416 = vunpack.c.h.b16 %v4031
      %v4417 = vunpack.c.l.b16 %v4032
      %v4418 = vunpack.c.h.b16 %v4032
      %v4419 = vunpack.c.l.b16 %v4033
      %v4420 = vunpack.c.h.b16 %v4033
      %v4421 = vunpack.c.l.b16 %v4034
      %v4422 = vunpack.c.h.b16 %v4034
      %v4423 = vunpack.c.l.b16 %v4035
      %v4424 = vunpack.c.h.b16 %v4035
      %v4425 = vunpack.c.l.b16 %v4036
      %v4426 = vunpack.c.h.b16 %v4036
      %v4427 = vunpack.c.l.b16 %v4037
      %v4428 = vunpack.c.h.b16 %v4037
      %v4429 = vunpack.c.l.b16 %v4038
      %v4430 = vunpack.c.h.b16 %v4038
      %v4431 = vpack.c.b16 %v4417, %v4415
      %v4432 = vpack.c.b16 %v4418, %v4416
      %v4433 = vpack.c.b16 %v4421, %v4419
      %v4434 = vpack.c.b16 %v4422, %v4420
      %v4435 = vpack.c.b16 %v4425, %v4423
      %v4436 = vpack.c.b16 %v4426, %v4424
      %v4437 = vpack.c.b16 %v4429, %v4427
      %v4438 = vpack.c.b16 %v4430, %v4428
      %4439 = vrot.lane.b32.xlu0 %v4431, 94
      %v4440 = vpop.permute.xlu0 %4439
      %4441 = vrot.lane.b32.xlu0 %v4432, 94
      %v4442 = vpop.permute.xlu0 %4441
      %4443 = vrot.lane.b32.xlu0 %v4433, 94
      %v4444 = vpop.permute.xlu0 %4443
      %4445 = vrot.lane.b32.xlu0 %v4434, 94
      %v4446 = vpop.permute.xlu0 %4445
      %4447 = vrot.lane.b32.xlu0 %v4435, 94
      %v4448 = vpop.permute.xlu0 %4447
      %4449 = vrot.lane.b32.xlu0 %v4436, 94
      %v4450 = vpop.permute.xlu0 %4449
      %4451 = vrot.lane.b32.xlu0 %v4437, 94
      %v4452 = vpop.permute.xlu0 %4451
      %4453 = vrot.lane.b32.xlu0 %v4438, 94
      %v4454 = vpop.permute.xlu0 %4453
      %v4455 = vsel %vm568, %v4440, %v4442
      %v4456 = vsel %vm568, %v4444, %v4446
      %v4457 = vsel %vm568, %v4448, %v4450
      %v4458 = vsel %vm568, %v4452, %v4454
      %v4475 = vunpack.c.l.b16 %v4055
      %v4476 = vunpack.c.h.b16 %v4055
      %v4477 = vunpack.c.l.b16 %v4056
      %v4478 = vunpack.c.l.b16 %v4057
      %v4479 = vunpack.c.h.b16 %v4057
      %v4480 = vunpack.c.l.b16 %v4058
      %v4481 = vunpack.c.l.b16 %v4059
      %v4482 = vunpack.c.h.b16 %v4059
      %v4483 = vunpack.c.l.b16 %v4060
      %v4484 = vunpack.c.l.b16 %v4061
      %v4485 = vunpack.c.h.b16 %v4061
      %v4486 = vunpack.c.l.b16 %v4062
      %v4487 = vunpack.c.l.b16 %v4063
      %v4488 = vunpack.c.h.b16 %v4063
      %v4489 = vunpack.c.l.b16 %v4064
      %v4490 = vunpack.c.l.b16 %v4065
      %v4491 = vunpack.c.h.b16 %v4065
      %v4492 = vunpack.c.l.b16 %v4066
      %v4493 = vunpack.c.l.b16 %v4067
      %v4494 = vunpack.c.h.b16 %v4067
      %v4495 = vunpack.c.l.b16 %v4068
      %v4496 = vunpack.c.l.b16 %v4069
      %v4497 = vunpack.c.h.b16 %v4069
      %v4498 = vunpack.c.l.b16 %v4070
      %v4499 = vpack.c.b16 %v4478, %v4475
      %v4500 = vpack.c.b16 %v4479, %v4476
      %v4501 = vpack.c.b16 %v4480, %v4477
      %v4502 = vpack.c.b16 %v4484, %v4481
      %v4503 = vpack.c.b16 %v4485, %v4482
      %v4504 = vpack.c.b16 %v4486, %v4483
      %v4505 = vpack.c.b16 %v4490, %v4487
      %v4506 = vpack.c.b16 %v4491, %v4488
      %v4507 = vpack.c.b16 %v4492, %v4489
      %v4508 = vpack.c.b16 %v4496, %v4493
      %v4509 = vpack.c.b16 %v4497, %v4494
      %v4510 = vpack.c.b16 %v4498, %v4495
      %4511 = vrot.lane.b32.xlu0 %v4499, 92
      %v4512 = vpop.permute.xlu0 %4511
      %4513 = vrot.lane.b32.xlu0 %v4500, 92
      %v4514 = vpop.permute.xlu0 %4513
      %4515 = vrot.lane.b32.xlu0 %v4501, 92
      %v4516 = vpop.permute.xlu0 %4515
      %4517 = vrot.lane.b32.xlu0 %v4502, 92
      %v4518 = vpop.permute.xlu0 %4517
      %4519 = vrot.lane.b32.xlu0 %v4503, 92
      %v4520 = vpop.permute.xlu0 %4519
      %4521 = vrot.lane.b32.xlu0 %v4504, 92
      %v4522 = vpop.permute.xlu0 %4521
      %4523 = vrot.lane.b32.xlu0 %v4505, 92
      %v4524 = vpop.permute.xlu0 %4523
      %4525 = vrot.lane.b32.xlu0 %v4506, 92
      %v4526 = vpop.permute.xlu0 %4525
      %4527 = vrot.lane.b32.xlu0 %v4507, 92
      %v4528 = vpop.permute.xlu0 %4527
      %4529 = vrot.lane.b32.xlu0 %v4508, 92
      %v4530 = vpop.permute.xlu0 %4529
      %4531 = vrot.lane.b32.xlu0 %v4509, 92
      %v4532 = vpop.permute.xlu0 %4531
      %4533 = vrot.lane.b32.xlu0 %v4510, 92
      %v4534 = vpop.permute.xlu0 %4533
      %v4535 = vsel %vm1239, %v4512, %v4514
      %v4536 = vsel %vm1239, %v4514, %v4516
      %v4537 = vsel %vm1239, %v4518, %v4520
      %v4538 = vsel %vm1239, %v4520, %v4522
      %v4539 = vsel %vm1239, %v4524, %v4526
      %v4540 = vsel %vm1239, %v4526, %v4528
      %v4541 = vsel %vm1239, %v4530, %v4532
      %v4542 = vsel %vm1239, %v4532, %v4534
      %v4559 = vunpack.c.l.b16 %v4071
      %v4560 = vunpack.c.h.b16 %v4071
      %v4561 = vunpack.c.l.b16 %v4072
      %v4562 = vunpack.c.l.b16 %v4073
      %v4563 = vunpack.c.h.b16 %v4073
      %v4564 = vunpack.c.l.b16 %v4074
      %v4565 = vunpack.c.l.b16 %v4075
      %v4566 = vunpack.c.h.b16 %v4075
      %v4567 = vunpack.c.l.b16 %v4076
      %v4568 = vunpack.c.l.b16 %v4077
      %v4569 = vunpack.c.h.b16 %v4077
      %v4570 = vunpack.c.l.b16 %v4078
      %v4571 = vunpack.c.l.b16 %v4079
      %v4572 = vunpack.c.h.b16 %v4079
      %v4573 = vunpack.c.l.b16 %v4080
      %v4574 = vunpack.c.l.b16 %v4081
      %v4575 = vunpack.c.h.b16 %v4081
      %v4576 = vunpack.c.l.b16 %v4082
      %v4577 = vunpack.c.l.b16 %v4083
      %v4578 = vunpack.c.h.b16 %v4083
      %v4579 = vunpack.c.l.b16 %v4084
      %v4580 = vunpack.c.l.b16 %v4085
      %v4581 = vunpack.c.h.b16 %v4085
      %v4582 = vunpack.c.l.b16 %v4086
      %v4583 = vpack.c.b16 %v4562, %v4559
      %v4584 = vpack.c.b16 %v4563, %v4560
      %v4585 = vpack.c.b16 %v4564, %v4561
      %v4586 = vpack.c.b16 %v4568, %v4565
      %v4587 = vpack.c.b16 %v4569, %v4566
      %v4588 = vpack.c.b16 %v4570, %v4567
      %v4589 = vpack.c.b16 %v4574, %v4571
      %v4590 = vpack.c.b16 %v4575, %v4572
      %v4591 = vpack.c.b16 %v4576, %v4573
      %v4592 = vpack.c.b16 %v4580, %v4577
      %v4593 = vpack.c.b16 %v4581, %v4578
      %v4594 = vpack.c.b16 %v4582, %v4579
      %4595 = vrot.lane.b32.xlu0 %v4583, 64
      %v4596 = vpop.permute.xlu0 %4595
      %4597 = vrot.lane.b32.xlu0 %v4584, 64
      %v4598 = vpop.permute.xlu0 %4597
      %4599 = vrot.lane.b32.xlu0 %v4585, 64
      %v4600 = vpop.permute.xlu0 %4599
      %4601 = vrot.lane.b32.xlu0 %v4586, 64
      %v4602 = vpop.permute.xlu0 %4601
      %4603 = vrot.lane.b32.xlu0 %v4587, 64
      %v4604 = vpop.permute.xlu0 %4603
      %4605 = vrot.lane.b32.xlu0 %v4588, 64
      %v4606 = vpop.permute.xlu0 %4605
      %4607 = vrot.lane.b32.xlu0 %v4589, 64
      %v4608 = vpop.permute.xlu0 %4607
      %4609 = vrot.lane.b32.xlu0 %v4590, 64
      %v4610 = vpop.permute.xlu0 %4609
      %4611 = vrot.lane.b32.xlu0 %v4591, 64
      %v4612 = vpop.permute.xlu0 %4611
      %4613 = vrot.lane.b32.xlu0 %v4592, 64
      %v4614 = vpop.permute.xlu0 %4613
      %4615 = vrot.lane.b32.xlu0 %v4593, 64
      %v4616 = vpop.permute.xlu0 %4615
      %4617 = vrot.lane.b32.xlu0 %v4594, 64
      %v4618 = vpop.permute.xlu0 %4617
      %v4619 = vsel %vm1324, %v4596, %v4598
      %v4620 = vsel %vm1324, %v4598, %v4600
      %v4621 = vsel %vm1324, %v4602, %v4604
      %v4622 = vsel %vm1324, %v4604, %v4606
      %v4623 = vsel %vm1324, %v4608, %v4610
      %v4624 = vsel %vm1324, %v4610, %v4612
      %v4625 = vsel %vm1324, %v4614, %v4616
      %v4626 = vsel %vm1324, %v4616, %v4618
      %v4643 = vunpack.c.l.b16 %v4039
      %v4644 = vunpack.c.h.b16 %v4039
      %v4645 = vunpack.c.l.b16 %v4040
      %v4646 = vunpack.c.l.b16 %v4041
      %v4647 = vunpack.c.h.b16 %v4041
      %v4648 = vunpack.c.l.b16 %v4042
      %v4649 = vunpack.c.l.b16 %v4043
      %v4650 = vunpack.c.h.b16 %v4043
      %v4651 = vunpack.c.l.b16 %v4044
      %v4652 = vunpack.c.l.b16 %v4045
      %v4653 = vunpack.c.h.b16 %v4045
      %v4654 = vunpack.c.l.b16 %v4046
      %v4655 = vunpack.c.l.b16 %v4047
      %v4656 = vunpack.c.h.b16 %v4047
      %v4657 = vunpack.c.l.b16 %v4048
      %v4658 = vunpack.c.l.b16 %v4049
      %v4659 = vunpack.c.h.b16 %v4049
      %v4660 = vunpack.c.l.b16 %v4050
      %v4661 = vunpack.c.l.b16 %v4051
      %v4662 = vunpack.c.h.b16 %v4051
      %v4663 = vunpack.c.l.b16 %v4052
      %v4664 = vunpack.c.l.b16 %v4053
      %v4665 = vunpack.c.h.b16 %v4053
      %v4666 = vunpack.c.l.b16 %v4054
      %v4667 = vpack.c.b16 %v4646, %v4643
      %v4668 = vpack.c.b16 %v4647, %v4644
      %v4669 = vpack.c.b16 %v4648, %v4645
      %v4670 = vpack.c.b16 %v4652, %v4649
      %v4671 = vpack.c.b16 %v4653, %v4650
      %v4672 = vpack.c.b16 %v4654, %v4651
      %v4673 = vpack.c.b16 %v4658, %v4655
      %v4674 = vpack.c.b16 %v4659, %v4656
      %v4675 = vpack.c.b16 %v4660, %v4657
      %v4676 = vpack.c.b16 %v4664, %v4661
      %v4677 = vpack.c.b16 %v4665, %v4662
      %v4678 = vpack.c.b16 %v4666, %v4663
      %4679 = vrot.lane.b32.xlu0 %v4667, 62
      %v4680 = vpop.permute.xlu0 %4679
      %4681 = vrot.lane.b32.xlu0 %v4668, 62
      %v4682 = vpop.permute.xlu0 %4681
      %4683 = vrot.lane.b32.xlu0 %v4669, 62
      %v4684 = vpop.permute.xlu0 %4683
      %4685 = vrot.lane.b32.xlu0 %v4670, 62
      %v4686 = vpop.permute.xlu0 %4685
      %4687 = vrot.lane.b32.xlu0 %v4671, 62
      %v4688 = vpop.permute.xlu0 %4687
      %4689 = vrot.lane.b32.xlu0 %v4672, 62
      %v4690 = vpop.permute.xlu0 %4689
      %4691 = vrot.lane.b32.xlu0 %v4673, 62
      %v4692 = vpop.permute.xlu0 %4691
      %4693 = vrot.lane.b32.xlu0 %v4674, 62
      %v4694 = vpop.permute.xlu0 %4693
      %4695 = vrot.lane.b32.xlu0 %v4675, 62
      %v4696 = vpop.permute.xlu0 %4695
      %4697 = vrot.lane.b32.xlu0 %v4676, 62
      %v4698 = vpop.permute.xlu0 %4697
      %4699 = vrot.lane.b32.xlu0 %v4677, 62
      %v4700 = vpop.permute.xlu0 %4699
      %4701 = vrot.lane.b32.xlu0 %v4678, 62
      %v4702 = vpop.permute.xlu0 %4701
      %v4703 = vsel %vm1409, %v4680, %v4682
      %v4704 = vsel %vm1409, %v4682, %v4684
      %v4705 = vsel %vm1409, %v4686, %v4688
      %v4706 = vsel %vm1409, %v4688, %v4690
      %v4707 = vsel %vm1409, %v4692, %v4694
      %v4708 = vsel %vm1409, %v4694, %v4696
      %v4709 = vsel %vm1409, %v4698, %v4700
      %v4710 = vsel %vm1409, %v4700, %v4702
      %v4727 = vunpack.c.l.b16 %v4087
      %v4728 = vunpack.c.h.b16 %v4087
      %v4729 = vunpack.c.l.b16 %v4088
      %v4730 = vunpack.c.l.b16 %v4089
      %v4731 = vunpack.c.h.b16 %v4089
      %v4732 = vunpack.c.l.b16 %v4090
      %v4733 = vunpack.c.l.b16 %v4091
      %v4734 = vunpack.c.h.b16 %v4091
      %v4735 = vunpack.c.l.b16 %v4092
      %v4736 = vunpack.c.l.b16 %v4093
      %v4737 = vunpack.c.h.b16 %v4093
      %v4738 = vunpack.c.l.b16 %v4094
      %v4739 = vunpack.c.l.b16 %v4095
      %v4740 = vunpack.c.h.b16 %v4095
      %v4741 = vunpack.c.l.b16 %v4096
      %v4742 = vunpack.c.l.b16 %v4097
      %v4743 = vunpack.c.h.b16 %v4097
      %v4744 = vunpack.c.l.b16 %v4098
      %v4745 = vunpack.c.l.b16 %v4099
      %v4746 = vunpack.c.h.b16 %v4099
      %v4747 = vunpack.c.l.b16 %v4100
      %v4748 = vunpack.c.l.b16 %v4101
      %v4749 = vunpack.c.h.b16 %v4101
      %v4750 = vunpack.c.l.b16 %v4102
      %v4751 = vpack.c.b16 %v4730, %v4727
      %v4752 = vpack.c.b16 %v4731, %v4728
      %v4753 = vpack.c.b16 %v4732, %v4729
      %v4754 = vpack.c.b16 %v4736, %v4733
      %v4755 = vpack.c.b16 %v4737, %v4734
      %v4756 = vpack.c.b16 %v4738, %v4735
      %v4757 = vpack.c.b16 %v4742, %v4739
      %v4758 = vpack.c.b16 %v4743, %v4740
      %v4759 = vpack.c.b16 %v4744, %v4741
      %v4760 = vpack.c.b16 %v4748, %v4745
      %v4761 = vpack.c.b16 %v4749, %v4746
      %v4762 = vpack.c.b16 %v4750, %v4747
      %4763 = vrot.lane.b32.xlu0 %v4751, 60
      %v4764 = vpop.permute.xlu0 %4763
      %4765 = vrot.lane.b32.xlu0 %v4752, 60
      %v4766 = vpop.permute.xlu0 %4765
      %4767 = vrot.lane.b32.xlu0 %v4753, 60
      %v4768 = vpop.permute.xlu0 %4767
      %4769 = vrot.lane.b32.xlu0 %v4754, 60
      %v4770 = vpop.permute.xlu0 %4769
      %4771 = vrot.lane.b32.xlu0 %v4755, 60
      %v4772 = vpop.permute.xlu0 %4771
      %4773 = vrot.lane.b32.xlu0 %v4756, 60
      %v4774 = vpop.permute.xlu0 %4773
      %4775 = vrot.lane.b32.xlu0 %v4757, 60
      %v4776 = vpop.permute.xlu0 %4775
      %4777 = vrot.lane.b32.xlu0 %v4758, 60
      %v4778 = vpop.permute.xlu0 %4777
      %4779 = vrot.lane.b32.xlu0 %v4759, 60
      %v4780 = vpop.permute.xlu0 %4779
      %4781 = vrot.lane.b32.xlu0 %v4760, 60
      %v4782 = vpop.permute.xlu0 %4781
      %4783 = vrot.lane.b32.xlu0 %v4761, 60
      %v4784 = vpop.permute.xlu0 %4783
      %4785 = vrot.lane.b32.xlu0 %v4762, 60
      %v4786 = vpop.permute.xlu0 %4785
      %v4787 = vsel %vm1494, %v4764, %v4766
      %v4788 = vsel %vm1494, %v4766, %v4768
      %v4789 = vsel %vm1494, %v4770, %v4772
      %v4790 = vsel %vm1494, %v4772, %v4774
      %v4791 = vsel %vm1494, %v4776, %v4778
      %v4792 = vsel %vm1494, %v4778, %v4780
      %v4793 = vsel %vm1494, %v4782, %v4784
      %v4794 = vsel %vm1494, %v4784, %v4786
      %v4795 = vld [vmem:[%s1] sm:$0xff]
      %v4796 = vld [vmem:[%s1 + $0x8] sm:$0xff]
      %v4797 = vld [vmem:[%s1 + $0x10] sm:$0xf]
      %v4798 = vld [vmem:[%s1 + $0x14] sm:$0xff]
      %v4799 = vld [vmem:[%s1 + $0x1c] sm:$0xff]
      %v4800 = vld [vmem:[%s1 + $0x24] sm:$0xf]
      %v4801 = vld [vmem:[%s1 + $0x28] sm:$0xff]
      %v4802 = vld [vmem:[%s1 + $0x30] sm:$0xff]
      %v4803 = vld [vmem:[%s1 + $0x38] sm:$0xf]
      %v4804 = vld [vmem:[%s1 + $0x3c] sm:$0xff]
      %v4805 = vld [vmem:[%s1 + $0x44] sm:$0xff]
      %v4806 = vld [vmem:[%s1 + $0x4c] sm:$0xf]
      %4808 = vset.pattern.permute.xlu0 0
      %4809 = vperm.xlu0 %4808, %v3955
      %v4810 = vpop.permute.xlu0 %4809
      %4813 = vset.pattern.permute.xlu0 0
      %4814 = vperm.xlu0 %4813, %v3956
      %v4815 = vpop.permute.xlu0 %4814
      %4818 = vset.pattern.permute.xlu0 0
      %4819 = vperm.xlu0 %4818, %v3957
      %v4820 = vpop.permute.xlu0 %4819
      %4823 = vset.pattern.permute.xlu0 0
      %4824 = vperm.xlu0 %4823, %v3958
      %v4825 = vpop.permute.xlu0 %4824
      %v4839 = vunpack.c.l.b16 %v4795
      %v4840 = vunpack.c.h.b16 %v4795
      %v4841 = vunpack.c.l.b16 %v4796
      %v4842 = vunpack.c.h.b16 %v4796
      %v4843 = vunpack.c.l.b16 %v4797
      %v4844 = vunpack.c.l.b16 %v4798
      %v4845 = vunpack.c.h.b16 %v4798
      %v4846 = vunpack.c.l.b16 %v4799
      %v4847 = vunpack.c.h.b16 %v4799
      %v4848 = vunpack.c.l.b16 %v4800
      %v4849 = vunpack.c.l.b16 %v4801
      %v4850 = vunpack.c.h.b16 %v4801
      %v4851 = vunpack.c.l.b16 %v4802
      %v4852 = vunpack.c.h.b16 %v4802
      %v4853 = vunpack.c.l.b16 %v4803
      %v4854 = vunpack.c.l.b16 %v4804
      %v4855 = vunpack.c.h.b16 %v4804
      %v4856 = vunpack.c.l.b16 %v4805
      %v4857 = vunpack.c.h.b16 %v4805
      %v4858 = vunpack.c.l.b16 %v4806
      %v4859 = vpack.c.b16 %v4844, %v4839
      %v4860 = vpack.c.b16 %v4845, %v4840
      %v4861 = vpack.c.b16 %v4846, %v4841
      %v4862 = vpack.c.b16 %v4847, %v4842
      %v4863 = vpack.c.b16 %v4848, %v4843
      %v4864 = vpack.c.b16 %v4854, %v4849
      %v4865 = vpack.c.b16 %v4855, %v4850
      %v4866 = vpack.c.b16 %v4856, %v4851
      %v4867 = vpack.c.b16 %v4857, %v4852
      %v4868 = vpack.c.b16 %v4858, %v4853
      %4877 = vrot.lane.b32.xlu0 %v4143, 34
      %v4878 = vpop.permute.xlu0 %4877
      %4879 = vrot.lane.b32.xlu0 %v4144, 34
      %v4880 = vpop.permute.xlu0 %4879
      %4881 = vrot.lane.b32.xlu0 %v4145, 34
      %v4882 = vpop.permute.xlu0 %4881
      %4883 = vrot.lane.b32.xlu0 %v4146, 34
      %v4884 = vpop.permute.xlu0 %4883
      %4885 = vrot.lane.b32.xlu0 %v4147, 34
      %v4886 = vpop.permute.xlu0 %4885
      %4887 = vrot.lane.b32.xlu0 %v4148, 34
      %v4888 = vpop.permute.xlu0 %4887
      %4889 = vrot.lane.b32.xlu0 %v4149, 34
      %v4890 = vpop.permute.xlu0 %4889
      %4891 = vrot.lane.b32.xlu0 %v4150, 34
      %v4892 = vpop.permute.xlu0 %4891
      %4893 = vrot.lane.b32.xlu0 %v4151, 34
      %v4894 = vpop.permute.xlu0 %4893
      %4895 = vrot.lane.b32.xlu0 %v4152, 34
      %v4896 = vpop.permute.xlu0 %4895
      %4897 = vrot.lane.b32.xlu0 %v4153, 34
      %v4898 = vpop.permute.xlu0 %4897
      %4899 = vrot.lane.b32.xlu0 %v4154, 34
      %v4900 = vpop.permute.xlu0 %4899
      %4901 = vrot.lane.b32.xlu0 %v4231, 34
      %v4902 = vpop.permute.xlu0 %4901
      %4903 = vrot.lane.b32.xlu0 %v4232, 34
      %v4904 = vpop.permute.xlu0 %4903
      %4905 = vrot.lane.b32.xlu0 %v4212, 34
      %v4906 = vpop.permute.xlu0 %4905
      %4907 = vrot.lane.b32.xlu0 %v4233, 34
      %v4908 = vpop.permute.xlu0 %4907
      %4909 = vrot.lane.b32.xlu0 %v4234, 34
      %v4910 = vpop.permute.xlu0 %4909
      %4911 = vrot.lane.b32.xlu0 %v4218, 34
      %v4912 = vpop.permute.xlu0 %4911
      %4913 = vrot.lane.b32.xlu0 %v4235, 34
      %v4914 = vpop.permute.xlu0 %4913
      %4915 = vrot.lane.b32.xlu0 %v4236, 34
      %v4916 = vpop.permute.xlu0 %4915
      %4917 = vrot.lane.b32.xlu0 %v4224, 34
      %v4918 = vpop.permute.xlu0 %4917
      %4919 = vrot.lane.b32.xlu0 %v4237, 34
      %v4920 = vpop.permute.xlu0 %4919
      %4921 = vrot.lane.b32.xlu0 %v4238, 34
      %v4922 = vpop.permute.xlu0 %4921
      %4923 = vrot.lane.b32.xlu0 %v4230, 34
      %v4924 = vpop.permute.xlu0 %4923
      %4925 = vrot.lane.b32.xlu0 %v4315, 34
      %v4926 = vpop.permute.xlu0 %4925
      %4927 = vrot.lane.b32.xlu0 %v4316, 34
      %v4928 = vpop.permute.xlu0 %4927
      %4929 = vrot.lane.b32.xlu0 %v4296, 34
      %v4930 = vpop.permute.xlu0 %4929
      %4931 = vrot.lane.b32.xlu0 %v4317, 34
      %v4932 = vpop.permute.xlu0 %4931
      %4933 = vrot.lane.b32.xlu0 %v4318, 34
      %v4934 = vpop.permute.xlu0 %4933
      %4935 = vrot.lane.b32.xlu0 %v4302, 34
      %v4936 = vpop.permute.xlu0 %4935
      %4937 = vrot.lane.b32.xlu0 %v4319, 34
      %v4938 = vpop.permute.xlu0 %4937
      %4939 = vrot.lane.b32.xlu0 %v4320, 34
      %v4940 = vpop.permute.xlu0 %4939
      %4941 = vrot.lane.b32.xlu0 %v4308, 34
      %v4942 = vpop.permute.xlu0 %4941
      %4943 = vrot.lane.b32.xlu0 %v4321, 34
      %v4944 = vpop.permute.xlu0 %4943
      %4945 = vrot.lane.b32.xlu0 %v4322, 34
      %v4946 = vpop.permute.xlu0 %4945
      %4947 = vrot.lane.b32.xlu0 %v4314, 34
      %v4948 = vpop.permute.xlu0 %4947
      %4949 = vrot.lane.b32.xlu0 %v4399, 34
      %v4950 = vpop.permute.xlu0 %4949
      %4951 = vrot.lane.b32.xlu0 %v4400, 34
      %v4952 = vpop.permute.xlu0 %4951
      %4953 = vrot.lane.b32.xlu0 %v4380, 34
      %v4954 = vpop.permute.xlu0 %4953
      %4955 = vrot.lane.b32.xlu0 %v4401, 34
      %v4956 = vpop.permute.xlu0 %4955
      %4957 = vrot.lane.b32.xlu0 %v4402, 34
      %v4958 = vpop.permute.xlu0 %4957
      %4959 = vrot.lane.b32.xlu0 %v4386, 34
      %v4960 = vpop.permute.xlu0 %4959
      %4961 = vrot.lane.b32.xlu0 %v4403, 34
      %v4962 = vpop.permute.xlu0 %4961
      %4963 = vrot.lane.b32.xlu0 %v4404, 34
      %v4964 = vpop.permute.xlu0 %4963
      %4965 = vrot.lane.b32.xlu0 %v4392, 34
      %v4966 = vpop.permute.xlu0 %4965
      %4967 = vrot.lane.b32.xlu0 %v4405, 34
      %v4968 = vpop.permute.xlu0 %4967
      %4969 = vrot.lane.b32.xlu0 %v4406, 34
      %v4970 = vpop.permute.xlu0 %4969
      %4971 = vrot.lane.b32.xlu0 %v4398, 34
      %v4972 = vpop.permute.xlu0 %4971
      %4973 = vrot.lane.b32.xlu0 %v4440, 34
      %v4974 = vpop.permute.xlu0 %4973
      %4975 = vrot.lane.b32.xlu0 %v4455, 34
      %v4976 = vpop.permute.xlu0 %4975
      %4977 = vrot.lane.b32.xlu0 %v4442, 34
      %v4978 = vpop.permute.xlu0 %4977
      %4979 = vrot.lane.b32.xlu0 %v4444, 34
      %v4980 = vpop.permute.xlu0 %4979
      %4981 = vrot.lane.b32.xlu0 %v4456, 34
      %v4982 = vpop.permute.xlu0 %4981
      %4983 = vrot.lane.b32.xlu0 %v4446, 34
      %v4984 = vpop.permute.xlu0 %4983
      %4985 = vrot.lane.b32.xlu0 %v4448, 34
      %v4986 = vpop.permute.xlu0 %4985
      %4987 = vrot.lane.b32.xlu0 %v4457, 34
      %v4988 = vpop.permute.xlu0 %4987
      %4989 = vrot.lane.b32.xlu0 %v4450, 34
      %v4990 = vpop.permute.xlu0 %4989
      %4991 = vrot.lane.b32.xlu0 %v4452, 34
      %v4992 = vpop.permute.xlu0 %4991
      %4993 = vrot.lane.b32.xlu0 %v4458, 34
      %v4994 = vpop.permute.xlu0 %4993
      %4995 = vrot.lane.b32.xlu0 %v4454, 34
      %v4996 = vpop.permute.xlu0 %4995
      %4997 = vrot.lane.b32.xlu0 %v4512, 34
      %v4998 = vpop.permute.xlu0 %4997
      %4999 = vrot.lane.b32.xlu0 %v4535, 34
      %v5000 = vpop.permute.xlu0 %4999
      %5001 = vrot.lane.b32.xlu0 %v4536, 34
      %v5002 = vpop.permute.xlu0 %5001
      %5003 = vrot.lane.b32.xlu0 %v4518, 34
      %v5004 = vpop.permute.xlu0 %5003
      %5005 = vrot.lane.b32.xlu0 %v4537, 34
      %v5006 = vpop.permute.xlu0 %5005
      %5007 = vrot.lane.b32.xlu0 %v4538, 34
      %v5008 = vpop.permute.xlu0 %5007
      %5009 = vrot.lane.b32.xlu0 %v4524, 34
      %v5010 = vpop.permute.xlu0 %5009
      %5011 = vrot.lane.b32.xlu0 %v4539, 34
      %v5012 = vpop.permute.xlu0 %5011
      %5013 = vrot.lane.b32.xlu0 %v4540, 34
      %v5014 = vpop.permute.xlu0 %5013
      %5015 = vrot.lane.b32.xlu0 %v4530, 34
      %v5016 = vpop.permute.xlu0 %5015
      %5017 = vrot.lane.b32.xlu0 %v4541, 34
      %v5018 = vpop.permute.xlu0 %5017
      %5019 = vrot.lane.b32.xlu0 %v4542, 34
      %v5020 = vpop.permute.xlu0 %5019
      %5021 = vrot.lane.b32.xlu0 %v4596, 34
      %v5022 = vpop.permute.xlu0 %5021
      %5023 = vrot.lane.b32.xlu0 %v4619, 34
      %v5024 = vpop.permute.xlu0 %5023
      %5025 = vrot.lane.b32.xlu0 %v4620, 34
      %v5026 = vpop.permute.xlu0 %5025
      %5027 = vrot.lane.b32.xlu0 %v4602, 34
      %v5028 = vpop.permute.xlu0 %5027
      %5029 = vrot.lane.b32.xlu0 %v4621, 34
      %v5030 = vpop.permute.xlu0 %5029
      %5031 = vrot.lane.b32.xlu0 %v4622, 34
      %v5032 = vpop.permute.xlu0 %5031
      %5033 = vrot.lane.b32.xlu0 %v4608, 34
      %v5034 = vpop.permute.xlu0 %5033
      %5035 = vrot.lane.b32.xlu0 %v4623, 34
      %v5036 = vpop.permute.xlu0 %5035
      %5037 = vrot.lane.b32.xlu0 %v4624, 34
      %v5038 = vpop.permute.xlu0 %5037
      %5039 = vrot.lane.b32.xlu0 %v4614, 34
      %v5040 = vpop.permute.xlu0 %5039
      %5041 = vrot.lane.b32.xlu0 %v4625, 34
      %v5042 = vpop.permute.xlu0 %5041
      %5043 = vrot.lane.b32.xlu0 %v4626, 34
      %v5044 = vpop.permute.xlu0 %5043
      %5045 = vrot.lane.b32.xlu0 %v4680, 34
      %v5046 = vpop.permute.xlu0 %5045
      %5047 = vrot.lane.b32.xlu0 %v4703, 34
      %v5048 = vpop.permute.xlu0 %5047
      %5049 = vrot.lane.b32.xlu0 %v4704, 34
      %v5050 = vpop.permute.xlu0 %5049
      %5051 = vrot.lane.b32.xlu0 %v4686, 34
      %v5052 = vpop.permute.xlu0 %5051
      %5053 = vrot.lane.b32.xlu0 %v4705, 34
      %v5054 = vpop.permute.xlu0 %5053
      %5055 = vrot.lane.b32.xlu0 %v4706, 34
      %v5056 = vpop.permute.xlu0 %5055
      %5057 = vrot.lane.b32.xlu0 %v4692, 34
      %v5058 = vpop.permute.xlu0 %5057
      %5059 = vrot.lane.b32.xlu0 %v4707, 34
      %v5060 = vpop.permute.xlu0 %5059
      %5061 = vrot.lane.b32.xlu0 %v4708, 34
      %v5062 = vpop.permute.xlu0 %5061
      %5063 = vrot.lane.b32.xlu0 %v4698, 34
      %v5064 = vpop.permute.xlu0 %5063
      %5065 = vrot.lane.b32.xlu0 %v4709, 34
      %v5066 = vpop.permute.xlu0 %5065
      %5067 = vrot.lane.b32.xlu0 %v4710, 34
      %v5068 = vpop.permute.xlu0 %5067
      %5069 = vrot.lane.b32.xlu0 %v4764, 34
      %v5070 = vpop.permute.xlu0 %5069
      %5071 = vrot.lane.b32.xlu0 %v4787, 34
      %v5072 = vpop.permute.xlu0 %5071
      %5073 = vrot.lane.b32.xlu0 %v4788, 34
      %v5074 = vpop.permute.xlu0 %5073
      %5075 = vrot.lane.b32.xlu0 %v4770, 34
      %v5076 = vpop.permute.xlu0 %5075
      %5077 = vrot.lane.b32.xlu0 %v4789, 34
      %v5078 = vpop.permute.xlu0 %5077
      %5079 = vrot.lane.b32.xlu0 %v4790, 34
      %v5080 = vpop.permute.xlu0 %5079
      %5081 = vrot.lane.b32.xlu0 %v4776, 34
      %v5082 = vpop.permute.xlu0 %5081
      %5083 = vrot.lane.b32.xlu0 %v4791, 34
      %v5084 = vpop.permute.xlu0 %5083
      %5085 = vrot.lane.b32.xlu0 %v4792, 34
      %v5086 = vpop.permute.xlu0 %5085
      %5087 = vrot.lane.b32.xlu0 %v4782, 34
      %v5088 = vpop.permute.xlu0 %5087
      %5089 = vrot.lane.b32.xlu0 %v4793, 34
      %v5090 = vpop.permute.xlu0 %5089
      %5091 = vrot.lane.b32.xlu0 %v4794, 34
      %v5092 = vpop.permute.xlu0 %5091
      %v5093 = vsel %vm773, %v4878, %v4880
      %v5094 = vsel %vm773, %v4880, %v4882
      %v5095 = vsel %vm773, %v4884, %v4886
      %v5096 = vsel %vm773, %v4886, %v4888
      %v5097 = vsel %vm773, %v4890, %v4892
      %v5098 = vsel %vm773, %v4892, %v4894
      %v5099 = vsel %vm773, %v4896, %v4898
      %v5100 = vsel %vm773, %v4898, %v4900
      %v5101 = vsel %vm773, %v4902, %v4904
      %v5102 = vsel %vm773, %v4904, %v4906
      %v5103 = vsel %vm773, %v4908, %v4910
      %v5104 = vsel %vm773, %v4910, %v4912
      %v5105 = vsel %vm773, %v4914, %v4916
      %v5106 = vsel %vm773, %v4916, %v4918
      %v5107 = vsel %vm773, %v4920, %v4922
      %v5108 = vsel %vm773, %v4922, %v4924
      %v5109 = vsel %vm773, %v4926, %v4928
      %v5110 = vsel %vm773, %v4928, %v4930
      %v5111 = vsel %vm773, %v4932, %v4934
      %v5112 = vsel %vm773, %v4934, %v4936
      %v5113 = vsel %vm773, %v4938, %v4940
      %v5114 = vsel %vm773, %v4940, %v4942
      %v5115 = vsel %vm773, %v4944, %v4946
      %v5116 = vsel %vm773, %v4946, %v4948
      %v5117 = vsel %vm773, %v4950, %v4952
      %v5118 = vsel %vm773, %v4952, %v4954
      %v5119 = vsel %vm773, %v4956, %v4958
      %v5120 = vsel %vm773, %v4958, %v4960
      %v5121 = vsel %vm773, %v4962, %v4964
      %v5122 = vsel %vm773, %v4964, %v4966
      %v5123 = vsel %vm773, %v4968, %v4970
      %v5124 = vsel %vm773, %v4970, %v4972
      %v5125 = vsel %vm773, %v4974, %v4976
      %v5126 = vsel %vm773, %v4976, %v4978
      %v5127 = vsel %vm773, %v4980, %v4982
      %v5128 = vsel %vm773, %v4982, %v4984
      %v5129 = vsel %vm773, %v4986, %v4988
      %v5130 = vsel %vm773, %v4988, %v4990
      %v5131 = vsel %vm773, %v4992, %v4994
      %v5132 = vsel %vm773, %v4994, %v4996
      %v5133 = vsel %vm773, %v4998, %v5000
      %v5134 = vsel %vm773, %v5000, %v5002
      %v5135 = vsel %vm773, %v5004, %v5006
      %v5136 = vsel %vm773, %v5006, %v5008
      %v5137 = vsel %vm773, %v5010, %v5012
      %v5138 = vsel %vm773, %v5012, %v5014
      %v5139 = vsel %vm773, %v5016, %v5018
      %v5140 = vsel %vm773, %v5018, %v5020
      %v5141 = vsel %vm773, %v5022, %v5024
      %v5142 = vsel %vm773, %v5024, %v5026
      %v5143 = vsel %vm773, %v5028, %v5030
      %v5144 = vsel %vm773, %v5030, %v5032
      %v5145 = vsel %vm773, %v5034, %v5036
      %v5146 = vsel %vm773, %v5036, %v5038
      %v5147 = vsel %vm773, %v5040, %v5042
      %v5148 = vsel %vm773, %v5042, %v5044
      %v5149 = vsel %vm773, %v5046, %v5048
      %v5150 = vsel %vm773, %v5048, %v5050
      %v5151 = vsel %vm773, %v5052, %v5054
      %v5152 = vsel %vm773, %v5054, %v5056
      %v5153 = vsel %vm773, %v5058, %v5060
      %v5154 = vsel %vm773, %v5060, %v5062
      %v5155 = vsel %vm773, %v5064, %v5066
      %v5156 = vsel %vm773, %v5066, %v5068
      %v5157 = vsel %vm773, %v5070, %v5072
      %v5158 = vsel %vm773, %v5072, %v5074
      %v5159 = vsel %vm773, %v5076, %v5078
      %v5160 = vsel %vm773, %v5078, %v5080
      %v5161 = vsel %vm773, %v5082, %v5084
      %v5162 = vsel %vm773, %v5084, %v5086
      %v5163 = vsel %vm773, %v5088, %v5090
      %v5164 = vsel %vm773, %v5090, %v5092
      %v5238 = vsel %vm1945, %v4863, 0
      %v5241 = vsel %vm1945, %v4868, 0
      %5243 = vmatpush.bf16.msra.mxu0 %v5107
      %5244 = vmatpush.bf16.msra.mxu0 %v5105
      %5245 = vmatpush.bf16.msra.mxu0 %v5103
      %5246 = vmatpush.bf16.msra.mxu0 %v5101
      %5247 = vmatpush.bf16.msra.mxu0 %v5099
      %5248 = vmatpush.bf16.msra.mxu0 %v5097
      %5249 = vmatpush.bf16.msra.mxu0 %v5095
      %5250 = vmatpush.bf16.msra.mxu0 %v5093
      %5251 = vmatmul.bf16.gmra.mxu0 %v4859
      %v5252 = vpop.f32.mrf.mxu0
      %v5253 = vadd.f32 %v4810, %v5252
      %v5254 = vpop.f32.mrf.mxu0
      %v5255 = vadd.f32 %v4815, %v5254
      %5256 = vmatmul.bf16.gmra.mxu0 %v4864
      %v5257 = vpop.f32.mrf.mxu0
      %v5258 = vadd.f32 %v4820, %v5257
      %v5259 = vpop.f32.mrf.mxu0
      %v5260 = vadd.f32 %v4825, %v5259
      %5261 = vdwg.mxu0
      %5262 = vmatpush.bf16.msra.mxu0 %v5123
      %5263 = vmatpush.bf16.msra.mxu0 %v5121
      %5264 = vmatpush.bf16.msra.mxu0 %v5119
      %5265 = vmatpush.bf16.msra.mxu0 %v5117
      %5266 = vmatpush.bf16.msra.mxu0 %v5115
      %5267 = vmatpush.bf16.msra.mxu0 %v5113
      %5268 = vmatpush.bf16.msra.mxu0 %v5111
      %5269 = vmatpush.bf16.msra.mxu0 %v5109
      %5270 = vmatmul.bf16.gmra.mxu0 %v4860
      %v5271 = vpop.f32.mrf.mxu0
      %v5272 = vadd.f32 %v5253, %v5271
      %v5273 = vpop.f32.mrf.mxu0
      %v5274 = vadd.f32 %v5255, %v5273
      %5275 = vmatmul.bf16.gmra.mxu0 %v4865
      %v5276 = vpop.f32.mrf.mxu0
      %v5277 = vadd.f32 %v5258, %v5276
      %v5278 = vpop.f32.mrf.mxu0
      %v5279 = vadd.f32 %v5260, %v5278
      %5280 = vdwg.mxu0
      %5281 = vmatpush.bf16.msra.mxu0 %v5139
      %5282 = vmatpush.bf16.msra.mxu0 %v5137
      %5283 = vmatpush.bf16.msra.mxu0 %v5135
      %5284 = vmatpush.bf16.msra.mxu0 %v5133
      %5285 = vmatpush.bf16.msra.mxu0 %v5131
      %5286 = vmatpush.bf16.msra.mxu0 %v5129
      %5287 = vmatpush.bf16.msra.mxu0 %v5127
      %5288 = vmatpush.bf16.msra.mxu0 %v5125
      %5289 = vmatmul.bf16.gmra.mxu0 %v4861
      %v5290 = vpop.f32.mrf.mxu0
      %v5291 = vadd.f32 %v5272, %v5290
      %v5292 = vpop.f32.mrf.mxu0
      %v5293 = vadd.f32 %v5274, %v5292
      %5294 = vmatmul.bf16.gmra.mxu0 %v4866
      %v5295 = vpop.f32.mrf.mxu0
      %v5296 = vadd.f32 %v5277, %v5295
      %v5297 = vpop.f32.mrf.mxu0
      %v5298 = vadd.f32 %v5279, %v5297
      %5299 = vdwg.mxu0
      %5300 = vmatpush.bf16.msra.mxu0 %v5155
      %5301 = vmatpush.bf16.msra.mxu0 %v5153
      %5302 = vmatpush.bf16.msra.mxu0 %v5151
      %5303 = vmatpush.bf16.msra.mxu0 %v5149
      %5304 = vmatpush.bf16.msra.mxu0 %v5147
      %5305 = vmatpush.bf16.msra.mxu0 %v5145
      %5306 = vmatpush.bf16.msra.mxu0 %v5143
      %5307 = vmatpush.bf16.msra.mxu0 %v5141
      %5308 = vmatmul.bf16.gmra.mxu0 %v4862
      %v5309 = vpop.f32.mrf.mxu0
      %v5310 = vadd.f32 %v5291, %v5309
      %v5311 = vpop.f32.mrf.mxu0
      %v5312 = vadd.f32 %v5293, %v5311
      %5313 = vmatmul.bf16.gmra.mxu0 %v4867
      %v5314 = vpop.f32.mrf.mxu0
      %v5315 = vadd.f32 %v5296, %v5314
      %v5316 = vpop.f32.mrf.mxu0
      %v5317 = vadd.f32 %v5298, %v5316
      %5318 = vdwg.mxu0
      %5319 = vmatpush.bf16.msra.mxu0 0
      %5320 = vmatpush.bf16.msra.mxu0 0
      %5321 = vmatpush.bf16.msra.mxu0 0
      %5322 = vmatpush.bf16.msra.mxu0 0
      %5323 = vmatpush.bf16.msra.mxu0 %v5163
      %5324 = vmatpush.bf16.msra.mxu0 %v5161
      %5325 = vmatpush.bf16.msra.mxu0 %v5159
      %5326 = vmatpush.bf16.msra.mxu0 %v5157
      %5327 = vmatmul.bf16.gmra.mxu0 %v5238
      %v5328 = vpop.f32.mrf.mxu0
      %v5329 = vadd.f32 %v5310, %v5328
      %v5330 = vpop.f32.mrf.mxu0
      %v5331 = vadd.f32 %v5312, %v5330
      %5332 = vmatmul.bf16.gmra.mxu0 %v5241
      %v5333 = vpop.f32.mrf.mxu0
      %v5334 = vadd.f32 %v5315, %v5333
      %v5335 = vpop.f32.mrf.mxu0
      %v5336 = vadd.f32 %v5317, %v5335
      %5337 = vdwg.mxu0
      %5338 = vmatpush.bf16.msra.mxu0 %v5108
      %5339 = vmatpush.bf16.msra.mxu0 %v5106
      %5340 = vmatpush.bf16.msra.mxu0 %v5104
      %5341 = vmatpush.bf16.msra.mxu0 %v5102
      %5342 = vmatpush.bf16.msra.mxu0 %v5100
      %5343 = vmatpush.bf16.msra.mxu0 %v5098
      %5344 = vmatpush.bf16.msra.mxu0 %v5096
      %5345 = vmatpush.bf16.msra.mxu0 %v5094
      %5346 = vmatmul.bf16.gmra.mxu0 %v4859
      %v5347 = vpop.f32.mrf.mxu0
      %v5348 = vadd.f32 %v4810, %v5347
      %v5349 = vpop.f32.mrf.mxu0
      %v5350 = vadd.f32 %v4815, %v5349
      %5351 = vmatmul.bf16.gmra.mxu0 %v4864
      %v5352 = vpop.f32.mrf.mxu0
      %v5353 = vadd.f32 %v4820, %v5352
      %v5354 = vpop.f32.mrf.mxu0
      %v5355 = vadd.f32 %v4825, %v5354
      %5356 = vdwg.mxu0
      %5357 = vmatpush.bf16.msra.mxu0 %v5124
      %5358 = vmatpush.bf16.msra.mxu0 %v5122
      %5359 = vmatpush.bf16.msra.mxu0 %v5120
      %5360 = vmatpush.bf16.msra.mxu0 %v5118
      %5361 = vmatpush.bf16.msra.mxu0 %v5116
      %5362 = vmatpush.bf16.msra.mxu0 %v5114
      %5363 = vmatpush.bf16.msra.mxu0 %v5112
      %5364 = vmatpush.bf16.msra.mxu0 %v5110
      %5365 = vmatmul.bf16.gmra.mxu0 %v4860
      %v5366 = vpop.f32.mrf.mxu0
      %v5367 = vadd.f32 %v5348, %v5366
      %v5368 = vpop.f32.mrf.mxu0
      %v5369 = vadd.f32 %v5350, %v5368
      %5370 = vmatmul.bf16.gmra.mxu0 %v4865
      %v5371 = vpop.f32.mrf.mxu0
      %v5372 = vadd.f32 %v5353, %v5371
      %v5373 = vpop.f32.mrf.mxu0
      %v5374 = vadd.f32 %v5355, %v5373
      %5375 = vdwg.mxu0
      %5376 = vmatpush.bf16.msra.mxu0 %v5140
      %5377 = vmatpush.bf16.msra.mxu0 %v5138
      %5378 = vmatpush.bf16.msra.mxu0 %v5136
      %5379 = vmatpush.bf16.msra.mxu0 %v5134
      %5380 = vmatpush.bf16.msra.mxu0 %v5132
      %5381 = vmatpush.bf16.msra.mxu0 %v5130
      %5382 = vmatpush.bf16.msra.mxu0 %v5128
      %5383 = vmatpush.bf16.msra.mxu0 %v5126
      %5384 = vmatmul.bf16.gmra.mxu0 %v4861
      %v5385 = vpop.f32.mrf.mxu0
      %v5386 = vadd.f32 %v5367, %v5385
      %v5387 = vpop.f32.mrf.mxu0
      %v5388 = vadd.f32 %v5369, %v5387
      %5389 = vmatmul.bf16.gmra.mxu0 %v4866
      %v5390 = vpop.f32.mrf.mxu0
      %v5391 = vadd.f32 %v5372, %v5390
      %v5392 = vpop.f32.mrf.mxu0
      %v5393 = vadd.f32 %v5374, %v5392
      %5394 = vdwg.mxu0
      %5395 = vmatpush.bf16.msra.mxu0 %v5156
      %5396 = vmatpush.bf16.msra.mxu0 %v5154
      %5397 = vmatpush.bf16.msra.mxu0 %v5152
      %5398 = vmatpush.bf16.msra.mxu0 %v5150
      %5399 = vmatpush.bf16.msra.mxu0 %v5148
      %5400 = vmatpush.bf16.msra.mxu0 %v5146
      %5401 = vmatpush.bf16.msra.mxu0 %v5144
      %5402 = vmatpush.bf16.msra.mxu0 %v5142
      %5403 = vmatmul.bf16.gmra.mxu0 %v4862
      %v5404 = vpop.f32.mrf.mxu0
      %v5405 = vadd.f32 %v5386, %v5404
      %v5406 = vpop.f32.mrf.mxu0
      %v5407 = vadd.f32 %v5388, %v5406
      %5408 = vmatmul.bf16.gmra.mxu0 %v4867
      %v5409 = vpop.f32.mrf.mxu0
      %v5410 = vadd.f32 %v5391, %v5409
      %v5411 = vpop.f32.mrf.mxu0
      %v5412 = vadd.f32 %v5393, %v5411
      %5413 = vdwg.mxu0
      %5414 = vmatpush.bf16.msra.mxu0 0
      %5415 = vmatpush.bf16.msra.mxu0 0
      %5416 = vmatpush.bf16.msra.mxu0 0
      %5417 = vmatpush.bf16.msra.mxu0 0
      %5418 = vmatpush.bf16.msra.mxu0 %v5164
      %5419 = vmatpush.bf16.msra.mxu0 %v5162
      %5420 = vmatpush.bf16.msra.mxu0 %v5160
      %5421 = vmatpush.bf16.msra.mxu0 %v5158
      %5422 = vmatmul.bf16.gmra.mxu0 %v5238
      %v5423 = vpop.f32.mrf.mxu0
      %v5424 = vadd.f32 %v5405, %v5423
      %v5425 = vpop.f32.mrf.mxu0
      %v5426 = vadd.f32 %v5407, %v5425
      %5427 = vmatmul.bf16.gmra.mxu0 %v5241
      %v5428 = vpop.f32.mrf.mxu0
      %v5429 = vadd.f32 %v5410, %v5428
      %v5430 = vpop.f32.mrf.mxu0
      %v5431 = vadd.f32 %v5412, %v5430
      %5432 = vdwg.mxu0
      %v5433 = vld [vmem:[%s3] sm:$0xff]
      %v5434 = vld [vmem:[%s3 + $0x8] sm:$0xff]
      %v5435 = vld [vmem:[%s3 + $0x10] sm:$0xff]
      %v5436 = vld [vmem:[%s3 + $0x18] sm:$0xff]
      %v5437 = vld [vmem:[%s4] sm:$0xff]
      %v5438 = vld [vmem:[%s4 + $0x8] sm:$0xff]
      %v5439 = vld [vmem:[%s4 + $0x10] sm:$0xff]
      %v5440 = vld [vmem:[%s4 + $0x18] sm:$0xff]
      %v5441 = vadd.f32 %v5329, %v5424
      %5442 = vadd.xlane.f32.xlu0 %v5441
      %v5443 = vpop.xlane.xlu0 %5442
      %v5444 = vadd.f32 %v5331, %v5426
      %5445 = vadd.xlane.f32.xlu0 %v5444
      %v5446 = vpop.xlane.xlu0 %5445
      %v5447 = vadd.f32 %v5334, %v5429
      %5448 = vadd.xlane.f32.xlu0 %v5447
      %v5449 = vpop.xlane.xlu0 %5448
      %v5450 = vadd.f32 %v5336, %v5431
      %5451 = vadd.xlane.f32.xlu0 %v5450
      %v5452 = vpop.xlane.xlu0 %5451
      %v5453 = vmul.f32 %v5443, 0.00390625
      %v5454 = vmul.f32 %v5446, 0.00390625
      %v5455 = vmul.f32 %v5449, 0.00390625
      %v5456 = vmul.f32 %v5452, 0.00390625
      %v5457 = vsub.f32 %v5329, %v5453
      %v5458 = vsub.f32 %v5424, %v5453
      %v5459 = vsub.f32 %v5331, %v5454
      %v5460 = vsub.f32 %v5426, %v5454
      %v5461 = vsub.f32 %v5334, %v5455
      %v5462 = vsub.f32 %v5429, %v5455
      %v5463 = vsub.f32 %v5336, %v5456
      %v5464 = vsub.f32 %v5431, %v5456
      %v5465 = vmul.f32 %v5457, %v5457
      %v5466 = vmul.f32 %v5458, %v5458
      %v5467 = vmul.f32 %v5459, %v5459
      %v5468 = vmul.f32 %v5460, %v5460
      %v5469 = vmul.f32 %v5461, %v5461
      %v5470 = vmul.f32 %v5462, %v5462
      %v5471 = vmul.f32 %v5463, %v5463
      %v5472 = vmul.f32 %v5464, %v5464
      %v5473 = vadd.f32 %v5465, %v5466
      %5474 = vadd.xlane.f32.xlu0 %v5473
      %v5475 = vpop.xlane.xlu0 %5474
      %v5476 = vadd.f32 %v5467, %v5468
      %5477 = vadd.xlane.f32.xlu0 %v5476
      %v5478 = vpop.xlane.xlu0 %5477
      %v5479 = vadd.f32 %v5469, %v5470
      %5480 = vadd.xlane.f32.xlu0 %v5479
      %v5481 = vpop.xlane.xlu0 %5480
      %v5482 = vadd.f32 %v5471, %v5472
      %5483 = vadd.xlane.f32.xlu0 %v5482
      %v5484 = vpop.xlane.xlu0 %5483
      %v5485 = vmul.f32 %v5475, 0.00390625
      %v5486 = vmul.f32 %v5478, 0.00390625
      %v5487 = vmul.f32 %v5481, 0.00390625
      %v5488 = vmul.f32 %v5484, 0.00390625
      %v5489 = vadd.f32 %v5485, 1e-05
      %v5490 = vadd.f32 %v5486, 1e-05
      %v5491 = vadd.f32 %v5487, 1e-05
      %v5492 = vadd.f32 %v5488, 1e-05
      %v5493 = vrsqrt.pop %v5489
      %v5494 = vmul.f32 %v5493, %v5489
      %v5495 = vmul.f32 %v5494, %v5493
      %v5496 = vmul.f32 0.5, %v5495
      %v5497 = vsub.f32 1.5, %v5496
      %v5498 = vmul.f32 %v5493, %v5497
      %vm5499 = vweird.f32 %v5489
      %vm5500 = vweird.f32 %v5493
      %vm5501 = vmor %vm5499, %vm5500
      %v5502 = vsel %vm5501, %v5493, %v5498
      %v5503 = vrsqrt.pop %v5490
      %v5504 = vmul.f32 %v5503, %v5490
      %v5505 = vmul.f32 %v5504, %v5503
      %v5506 = vmul.f32 0.5, %v5505
      %v5507 = vsub.f32 1.5, %v5506
      %v5508 = vmul.f32 %v5503, %v5507
      %vm5509 = vweird.f32 %v5490
      %vm5510 = vweird.f32 %v5503
      %vm5511 = vmor %vm5509, %vm5510
      %v5512 = vsel %vm5511, %v5503, %v5508
      %v5513 = vrsqrt.pop %v5491
      %v5514 = vmul.f32 %v5513, %v5491
      %v5515 = vmul.f32 %v5514, %v5513
      %v5516 = vmul.f32 0.5, %v5515
      %v5517 = vsub.f32 1.5, %v5516
      %v5518 = vmul.f32 %v5513, %v5517
      %vm5519 = vweird.f32 %v5491
      %vm5520 = vweird.f32 %v5513
      %vm5521 = vmor %vm5519, %vm5520
      %v5522 = vsel %vm5521, %v5513, %v5518
      %v5523 = vrsqrt.pop %v5492
      %v5524 = vmul.f32 %v5523, %v5492
      %v5525 = vmul.f32 %v5524, %v5523
      %v5526 = vmul.f32 0.5, %v5525
      %v5527 = vsub.f32 1.5, %v5526
      %v5528 = vmul.f32 %v5523, %v5527
      %vm5529 = vweird.f32 %v5492
      %vm5530 = vweird.f32 %v5523
      %vm5531 = vmor %vm5529, %vm5530
      %v5532 = vsel %vm5531, %v5523, %v5528
      %v5533 = vmul.f32 %v5502, %v5433
      %v5534 = vmul.f32 %v5512, %v5434
      %v5535 = vmul.f32 %v5522, %v5435
      %v5536 = vmul.f32 %v5532, %v5436
      %5538 = vset.pattern.permute.xlu0 0
      %5539 = vperm.xlu0 %5538, %v5533
      %v5540 = vpop.permute.xlu0 %5539
      %5543 = vset.pattern.permute.xlu0 0
      %5544 = vperm.xlu0 %5543, %v5534
      %v5545 = vpop.permute.xlu0 %5544
      %5548 = vset.pattern.permute.xlu0 0
      %5549 = vperm.xlu0 %5548, %v5535
      %v5550 = vpop.permute.xlu0 %5549
      %5553 = vset.pattern.permute.xlu0 0
      %5554 = vperm.xlu0 %5553, %v5536
      %v5555 = vpop.permute.xlu0 %5554
      %v5557 = vmul.f32 %v5457, %v5540
      %v5558 = vmul.f32 %v5458, %v5540
      %v5559 = vmul.f32 %v5459, %v5545
      %v5560 = vmul.f32 %v5460, %v5545
      %v5561 = vmul.f32 %v5461, %v5550
      %v5562 = vmul.f32 %v5462, %v5550
      %v5563 = vmul.f32 %v5463, %v5555
      %v5564 = vmul.f32 %v5464, %v5555
      %5566 = vset.pattern.permute.xlu0 0
      %5567 = vperm.xlu0 %5566, %v5437
      %v5568 = vpop.permute.xlu0 %5567
      %5571 = vset.pattern.permute.xlu0 0
      %5572 = vperm.xlu0 %5571, %v5438
      %v5573 = vpop.permute.xlu0 %5572
      %5576 = vset.pattern.permute.xlu0 0
      %5577 = vperm.xlu0 %5576, %v5439
      %v5578 = vpop.permute.xlu0 %5577
      %5581 = vset.pattern.permute.xlu0 0
      %5582 = vperm.xlu0 %5581, %v5440
      %v5583 = vpop.permute.xlu0 %5582
      %v5585 = vadd.f32 %v5557, %v5568
      %v5586 = vadd.f32 %v5558, %v5568
      %v5587 = vadd.f32 %v5559, %v5573
      %v5588 = vadd.f32 %v5560, %v5573
      %v5589 = vadd.f32 %v5561, %v5578
      %v5590 = vadd.f32 %v5562, %v5578
      %v5591 = vadd.f32 %v5563, %v5583
      %v5592 = vadd.f32 %v5564, %v5583
      %v5593 = vmax.f32 %v5585, 0.0
      %v5594 = vmax.f32 %v5586, 0.0
      %v5595 = vmax.f32 %v5587, 0.0
      %v5596 = vmax.f32 %v5588, 0.0
      %v5597 = vmax.f32 %v5589, 0.0
      %v5598 = vmax.f32 %v5590, 0.0
      %v5599 = vmax.f32 %v5591, 0.0
      %v5600 = vmax.f32 %v5592, 0.0
      %v5601 = vld [vmem:[%s6] sm:$0xff]
      %v5602 = vld [vmem:[%s6 + $0x8] sm:$0xff]
      %v5603 = vld [vmem:[%s6 + $0x10] sm:$0xff]
      %v5604 = vld [vmem:[%s6 + $0x18] sm:$0xff]
      %v5605 = vpack.c.bf16 %v5594, %v5593
      %v5606 = vpack.c.bf16 %v5596, %v5595
      %v5607 = vpack.c.bf16 %v5598, %v5597
      %v5608 = vpack.c.bf16 %v5600, %v5599
      %5609 = vst [vmem:[#allocation2 + $0x4] sm:$0xff] %v5605
      %5610 = vst [vmem:[#allocation2 + $0x14] sm:$0xff] %v5606
      %5611 = vst [vmem:[#allocation2 + $0x24] sm:$0xff] %v5607
      %5612 = vst [vmem:[#allocation2 + $0x34] sm:$0xff] %v5608
      %v5613 = vld [vmem:[#allocation2] sm:$0xff]
      %v5614 = vld [vmem:[#allocation2 + $0x8] sm:$0xf]
      %v5615 = vld [vmem:[#allocation2 + $0x10] sm:$0xff]
      %v5616 = vld [vmem:[#allocation2 + $0x18] sm:$0xf]
      %v5617 = vld [vmem:[#allocation2 + $0x20] sm:$0xff]
      %v5618 = vld [vmem:[#allocation2 + $0x28] sm:$0xf]
      %v5619 = vld [vmem:[#allocation2 + $0x30] sm:$0xff]
      %v5620 = vld [vmem:[#allocation2 + $0x38] sm:$0xf]
      %v5621 = vsel %vm576, %v5613, 0
      %v5622 = vsel %vm583, %v5614, 0
      %v5623 = vsel %vm576, %v5615, 0
      %v5624 = vsel %vm583, %v5616, 0
      %v5625 = vsel %vm576, %v5617, 0
      %v5626 = vsel %vm583, %v5618, 0
      %v5627 = vsel %vm576, %v5619, 0
      %v5628 = vsel %vm583, %v5620, 0
      %v5629 = vsel %vm617, %v5613, 0
      %v5630 = vsel %vm624, %v5614, 0
      %v5631 = vsel %vm617, %v5615, 0
      %v5632 = vsel %vm624, %v5616, 0
      %v5633 = vsel %vm617, %v5617, 0
      %v5634 = vsel %vm624, %v5618, 0
      %v5635 = vsel %vm617, %v5619, 0
      %v5636 = vsel %vm624, %v5620, 0
      %v5637 = vsel %vm652, %v5613, 0
      %v5638 = vsel %vm659, %v5614, 0
      %v5639 = vsel %vm652, %v5615, 0
      %v5640 = vsel %vm659, %v5616, 0
      %v5641 = vsel %vm652, %v5617, 0
      %v5642 = vsel %vm659, %v5618, 0
      %v5643 = vsel %vm652, %v5619, 0
      %v5644 = vsel %vm659, %v5620, 0
      %v5645 = vld [vmem:[#allocation2 + $0x4] sm:$0xff]
      %v5646 = vld [vmem:[#allocation2 + $0x14] sm:$0xff]
      %v5647 = vld [vmem:[#allocation2 + $0x24] sm:$0xff]
      %v5648 = vld [vmem:[#allocation2 + $0x34] sm:$0xff]
      %v5649 = vld [vmem:[#allocation2 + $0xc] sm:$0xf]
      %v5650 = vld [vmem:[#allocation2 + $0x1c] sm:$0xf]
      %v5651 = vld [vmem:[#allocation2 + $0x2c] sm:$0xf]
      %v5652 = vld [vmem:[#allocation2 + $0x3c] sm:$0xf]
      %v5653 = vsel %vm711, %v5645, 0
      %v5654 = vsel %vm718, %v5649, 0
      %v5655 = vsel %vm711, %v5646, 0
      %v5656 = vsel %vm718, %v5650, 0
      %v5657 = vsel %vm711, %v5647, 0
      %v5658 = vsel %vm718, %v5651, 0
      %v5659 = vsel %vm711, %v5648, 0
      %v5660 = vsel %vm718, %v5652, 0
      %v5661 = vsel %vm746, %v5645, 0
      %v5662 = vsel %vm753, %v5649, 0
      %v5663 = vsel %vm746, %v5646, 0
      %v5664 = vsel %vm753, %v5650, 0
      %v5665 = vsel %vm746, %v5647, 0
      %v5666 = vsel %vm753, %v5651, 0
      %v5667 = vsel %vm746, %v5648, 0
      %v5668 = vsel %vm753, %v5652, 0
      %v5669 = vsel %vm781, %v5645, 0
      %v5670 = vsel %vm788, %v5649, 0
      %v5671 = vsel %vm781, %v5646, 0
      %v5672 = vsel %vm788, %v5650, 0
      %v5673 = vsel %vm781, %v5647, 0
      %v5674 = vsel %vm788, %v5651, 0
      %v5675 = vsel %vm781, %v5648, 0
      %v5676 = vsel %vm788, %v5652, 0
      %v5685 = vunpack.c.l.b16 %v5621
      %v5686 = vunpack.c.h.b16 %v5621
      %v5687 = vunpack.c.l.b16 %v5622
      %v5688 = vunpack.c.l.b16 %v5623
      %v5689 = vunpack.c.h.b16 %v5623
      %v5690 = vunpack.c.l.b16 %v5624
      %v5691 = vunpack.c.l.b16 %v5625
      %v5692 = vunpack.c.h.b16 %v5625
      %v5693 = vunpack.c.l.b16 %v5626
      %v5694 = vunpack.c.l.b16 %v5627
      %v5695 = vunpack.c.h.b16 %v5627
      %v5696 = vunpack.c.l.b16 %v5628
      %v5697 = vpack.c.b16 %v5688, %v5685
      %v5698 = vpack.c.b16 %v5689, %v5686
      %v5699 = vpack.c.b16 %v5690, %v5687
      %v5700 = vpack.c.b16 %v5694, %v5691
      %v5701 = vpack.c.b16 %v5695, %v5692
      %v5702 = vpack.c.b16 %v5696, %v5693
      %v5711 = vunpack.c.l.b16 %v5613
      %v5712 = vunpack.c.h.b16 %v5613
      %v5713 = vunpack.c.l.b16 %v5614
      %v5714 = vunpack.c.l.b16 %v5615
      %v5715 = vunpack.c.h.b16 %v5615
      %v5716 = vunpack.c.l.b16 %v5616
      %v5717 = vunpack.c.l.b16 %v5617
      %v5718 = vunpack.c.h.b16 %v5617
      %v5719 = vunpack.c.l.b16 %v5618
      %v5720 = vunpack.c.l.b16 %v5619
      %v5721 = vunpack.c.h.b16 %v5619
      %v5722 = vunpack.c.l.b16 %v5620
      %v5723 = vpack.c.b16 %v5714, %v5711
      %v5724 = vpack.c.b16 %v5715, %v5712
      %v5725 = vpack.c.b16 %v5716, %v5713
      %v5726 = vpack.c.b16 %v5720, %v5717
      %v5727 = vpack.c.b16 %v5721, %v5718
      %v5728 = vpack.c.b16 %v5722, %v5719
      %5729 = vrot.lane.b32.xlu0 %v5723, 126
      %v5730 = vpop.permute.xlu0 %5729
      %5731 = vrot.lane.b32.xlu0 %v5724, 126
      %v5732 = vpop.permute.xlu0 %5731
      %5733 = vrot.lane.b32.xlu0 %v5725, 126
      %v5734 = vpop.permute.xlu0 %5733
      %5735 = vrot.lane.b32.xlu0 %v5726, 126
      %v5736 = vpop.permute.xlu0 %5735
      %5737 = vrot.lane.b32.xlu0 %v5727, 126
      %v5738 = vpop.permute.xlu0 %5737
      %5739 = vrot.lane.b32.xlu0 %v5728, 126
      %v5740 = vpop.permute.xlu0 %5739
      %v5741 = vsel %vm644, %v5730, %v5732
      %v5742 = vsel %vm644, %v5732, %v5734
      %v5743 = vsel %vm644, %v5736, %v5738
      %v5744 = vsel %vm644, %v5738, %v5740
      %v5753 = vunpack.c.l.b16 %v5629
      %v5754 = vunpack.c.h.b16 %v5629
      %v5755 = vunpack.c.l.b16 %v5630
      %v5756 = vunpack.c.l.b16 %v5631
      %v5757 = vunpack.c.h.b16 %v5631
      %v5758 = vunpack.c.l.b16 %v5632
      %v5759 = vunpack.c.l.b16 %v5633
      %v5760 = vunpack.c.h.b16 %v5633
      %v5761 = vunpack.c.l.b16 %v5634
      %v5762 = vunpack.c.l.b16 %v5635
      %v5763 = vunpack.c.h.b16 %v5635
      %v5764 = vunpack.c.l.b16 %v5636
      %v5765 = vpack.c.b16 %v5756, %v5753
      %v5766 = vpack.c.b16 %v5757, %v5754
      %v5767 = vpack.c.b16 %v5758, %v5755
      %v5768 = vpack.c.b16 %v5762, %v5759
      %v5769 = vpack.c.b16 %v5763, %v5760
      %v5770 = vpack.c.b16 %v5764, %v5761
      %5771 = vrot.lane.b32.xlu0 %v5765, 124
      %v5772 = vpop.permute.xlu0 %5771
      %5773 = vrot.lane.b32.xlu0 %v5766, 124
      %v5774 = vpop.permute.xlu0 %5773
      %5775 = vrot.lane.b32.xlu0 %v5767, 124
      %v5776 = vpop.permute.xlu0 %5775
      %5777 = vrot.lane.b32.xlu0 %v5768, 124
      %v5778 = vpop.permute.xlu0 %5777
      %5779 = vrot.lane.b32.xlu0 %v5769, 124
      %v5780 = vpop.permute.xlu0 %5779
      %5781 = vrot.lane.b32.xlu0 %v5770, 124
      %v5782 = vpop.permute.xlu0 %5781
      %v5783 = vsel %vm1017, %v5772, %v5774
      %v5784 = vsel %vm1017, %v5774, %v5776
      %v5785 = vsel %vm1017, %v5778, %v5780
      %v5786 = vsel %vm1017, %v5780, %v5782
      %v5795 = vunpack.c.l.b16 %v5637
      %v5796 = vunpack.c.h.b16 %v5637
      %v5797 = vunpack.c.l.b16 %v5638
      %v5798 = vunpack.c.l.b16 %v5639
      %v5799 = vunpack.c.h.b16 %v5639
      %v5800 = vunpack.c.l.b16 %v5640
      %v5801 = vunpack.c.l.b16 %v5641
      %v5802 = vunpack.c.h.b16 %v5641
      %v5803 = vunpack.c.l.b16 %v5642
      %v5804 = vunpack.c.l.b16 %v5643
      %v5805 = vunpack.c.h.b16 %v5643
      %v5806 = vunpack.c.l.b16 %v5644
      %v5807 = vpack.c.b16 %v5798, %v5795
      %v5808 = vpack.c.b16 %v5799, %v5796
      %v5809 = vpack.c.b16 %v5800, %v5797
      %v5810 = vpack.c.b16 %v5804, %v5801
      %v5811 = vpack.c.b16 %v5805, %v5802
      %v5812 = vpack.c.b16 %v5806, %v5803
      %5813 = vrot.lane.b32.xlu0 %v5807, 96
      %v5814 = vpop.permute.xlu0 %5813
      %5815 = vrot.lane.b32.xlu0 %v5808, 96
      %v5816 = vpop.permute.xlu0 %5815
      %5817 = vrot.lane.b32.xlu0 %v5809, 96
      %v5818 = vpop.permute.xlu0 %5817
      %5819 = vrot.lane.b32.xlu0 %v5810, 96
      %v5820 = vpop.permute.xlu0 %5819
      %5821 = vrot.lane.b32.xlu0 %v5811, 96
      %v5822 = vpop.permute.xlu0 %5821
      %5823 = vrot.lane.b32.xlu0 %v5812, 96
      %v5824 = vpop.permute.xlu0 %5823
      %v5825 = vsel %vm1102, %v5814, %v5816
      %v5826 = vsel %vm1102, %v5816, %v5818
      %v5827 = vsel %vm1102, %v5820, %v5822
      %v5828 = vsel %vm1102, %v5822, %v5824
      %v5833 = vunpack.c.l.b16 %v5645
      %v5834 = vunpack.c.h.b16 %v5645
      %v5835 = vunpack.c.l.b16 %v5646
      %v5836 = vunpack.c.h.b16 %v5646
      %v5837 = vunpack.c.l.b16 %v5647
      %v5838 = vunpack.c.h.b16 %v5647
      %v5839 = vunpack.c.l.b16 %v5648
      %v5840 = vunpack.c.h.b16 %v5648
      %v5841 = vpack.c.b16 %v5835, %v5833
      %v5842 = vpack.c.b16 %v5836, %v5834
      %v5843 = vpack.c.b16 %v5839, %v5837
      %v5844 = vpack.c.b16 %v5840, %v5838
      %5845 = vrot.lane.b32.xlu0 %v5841, 94
      %v5846 = vpop.permute.xlu0 %5845
      %5847 = vrot.lane.b32.xlu0 %v5842, 94
      %v5848 = vpop.permute.xlu0 %5847
      %5849 = vrot.lane.b32.xlu0 %v5843, 94
      %v5850 = vpop.permute.xlu0 %5849
      %5851 = vrot.lane.b32.xlu0 %v5844, 94
      %v5852 = vpop.permute.xlu0 %5851
      %v5853 = vsel %vm568, %v5846, %v5848
      %v5854 = vsel %vm568, %v5850, %v5852
      %v5863 = vunpack.c.l.b16 %v5653
      %v5864 = vunpack.c.h.b16 %v5653
      %v5865 = vunpack.c.l.b16 %v5654
      %v5866 = vunpack.c.l.b16 %v5655
      %v5867 = vunpack.c.h.b16 %v5655
      %v5868 = vunpack.c.l.b16 %v5656
      %v5869 = vunpack.c.l.b16 %v5657
      %v5870 = vunpack.c.h.b16 %v5657
      %v5871 = vunpack.c.l.b16 %v5658
      %v5872 = vunpack.c.l.b16 %v5659
      %v5873 = vunpack.c.h.b16 %v5659
      %v5874 = vunpack.c.l.b16 %v5660
      %v5875 = vpack.c.b16 %v5866, %v5863
      %v5876 = vpack.c.b16 %v5867, %v5864
      %v5877 = vpack.c.b16 %v5868, %v5865
      %v5878 = vpack.c.b16 %v5872, %v5869
      %v5879 = vpack.c.b16 %v5873, %v5870
      %v5880 = vpack.c.b16 %v5874, %v5871
      %5881 = vrot.lane.b32.xlu0 %v5875, 92
      %v5882 = vpop.permute.xlu0 %5881
      %5883 = vrot.lane.b32.xlu0 %v5876, 92
      %v5884 = vpop.permute.xlu0 %5883
      %5885 = vrot.lane.b32.xlu0 %v5877, 92
      %v5886 = vpop.permute.xlu0 %5885
      %5887 = vrot.lane.b32.xlu0 %v5878, 92
      %v5888 = vpop.permute.xlu0 %5887
      %5889 = vrot.lane.b32.xlu0 %v5879, 92
      %v5890 = vpop.permute.xlu0 %5889
      %5891 = vrot.lane.b32.xlu0 %v5880, 92
      %v5892 = vpop.permute.xlu0 %5891
      %v5893 = vsel %vm1239, %v5882, %v5884
      %v5894 = vsel %vm1239, %v5884, %v5886
      %v5895 = vsel %vm1239, %v5888, %v5890
      %v5896 = vsel %vm1239, %v5890, %v5892
      %v5905 = vunpack.c.l.b16 %v5661
      %v5906 = vunpack.c.h.b16 %v5661
      %v5907 = vunpack.c.l.b16 %v5662
      %v5908 = vunpack.c.l.b16 %v5663
      %v5909 = vunpack.c.h.b16 %v5663
      %v5910 = vunpack.c.l.b16 %v5664
      %v5911 = vunpack.c.l.b16 %v5665
      %v5912 = vunpack.c.h.b16 %v5665
      %v5913 = vunpack.c.l.b16 %v5666
      %v5914 = vunpack.c.l.b16 %v5667
      %v5915 = vunpack.c.h.b16 %v5667
      %v5916 = vunpack.c.l.b16 %v5668
      %v5917 = vpack.c.b16 %v5908, %v5905
      %v5918 = vpack.c.b16 %v5909, %v5906
      %v5919 = vpack.c.b16 %v5910, %v5907
      %v5920 = vpack.c.b16 %v5914, %v5911
      %v5921 = vpack.c.b16 %v5915, %v5912
      %v5922 = vpack.c.b16 %v5916, %v5913
      %5923 = vrot.lane.b32.xlu0 %v5917, 64
      %v5924 = vpop.permute.xlu0 %5923
      %5925 = vrot.lane.b32.xlu0 %v5918, 64
      %v5926 = vpop.permute.xlu0 %5925
      %5927 = vrot.lane.b32.xlu0 %v5919, 64
      %v5928 = vpop.permute.xlu0 %5927
      %5929 = vrot.lane.b32.xlu0 %v5920, 64
      %v5930 = vpop.permute.xlu0 %5929
      %5931 = vrot.lane.b32.xlu0 %v5921, 64
      %v5932 = vpop.permute.xlu0 %5931
      %5933 = vrot.lane.b32.xlu0 %v5922, 64
      %v5934 = vpop.permute.xlu0 %5933
      %v5935 = vsel %vm1324, %v5924, %v5926
      %v5936 = vsel %vm1324, %v5926, %v5928
      %v5937 = vsel %vm1324, %v5930, %v5932
      %v5938 = vsel %vm1324, %v5932, %v5934
      %v5943 = vunpack.c.l.b16 %v5649
      %v5944 = vunpack.c.l.b16 %v5650
      %v5945 = vunpack.c.l.b16 %v5651
      %v5946 = vunpack.c.l.b16 %v5652
      %v5947 = vpack.c.b16 %v5944, %v5943
      %v5948 = vpack.c.b16 %v5946, %v5945
      %5949 = vrot.lane.b32.xlu0 %v5841, 62
      %v5950 = vpop.permute.xlu0 %5949
      %5951 = vrot.lane.b32.xlu0 %v5842, 62
      %v5952 = vpop.permute.xlu0 %5951
      %5953 = vrot.lane.b32.xlu0 %v5947, 62
      %v5954 = vpop.permute.xlu0 %5953
      %5955 = vrot.lane.b32.xlu0 %v5843, 62
      %v5956 = vpop.permute.xlu0 %5955
      %5957 = vrot.lane.b32.xlu0 %v5844, 62
      %v5958 = vpop.permute.xlu0 %5957
      %5959 = vrot.lane.b32.xlu0 %v5948, 62
      %v5960 = vpop.permute.xlu0 %5959
      %v5961 = vsel %vm1409, %v5950, %v5952
      %v5962 = vsel %vm1409, %v5952, %v5954
      %v5963 = vsel %vm1409, %v5956, %v5958
      %v5964 = vsel %vm1409, %v5958, %v5960
      %v5973 = vunpack.c.l.b16 %v5669
      %v5974 = vunpack.c.h.b16 %v5669
      %v5975 = vunpack.c.l.b16 %v5670
      %v5976 = vunpack.c.l.b16 %v5671
      %v5977 = vunpack.c.h.b16 %v5671
      %v5978 = vunpack.c.l.b16 %v5672
      %v5979 = vunpack.c.l.b16 %v5673
      %v5980 = vunpack.c.h.b16 %v5673
      %v5981 = vunpack.c.l.b16 %v5674
      %v5982 = vunpack.c.l.b16 %v5675
      %v5983 = vunpack.c.h.b16 %v5675
      %v5984 = vunpack.c.l.b16 %v5676
      %v5985 = vpack.c.b16 %v5976, %v5973
      %v5986 = vpack.c.b16 %v5977, %v5974
      %v5987 = vpack.c.b16 %v5978, %v5975
      %v5988 = vpack.c.b16 %v5982, %v5979
      %v5989 = vpack.c.b16 %v5983, %v5980
      %v5990 = vpack.c.b16 %v5984, %v5981
      %5991 = vrot.lane.b32.xlu0 %v5985, 60
      %v5992 = vpop.permute.xlu0 %5991
      %5993 = vrot.lane.b32.xlu0 %v5986, 60
      %v5994 = vpop.permute.xlu0 %5993
      %5995 = vrot.lane.b32.xlu0 %v5987, 60
      %v5996 = vpop.permute.xlu0 %5995
      %5997 = vrot.lane.b32.xlu0 %v5988, 60
      %v5998 = vpop.permute.xlu0 %5997
      %5999 = vrot.lane.b32.xlu0 %v5989, 60
      %v6000 = vpop.permute.xlu0 %5999
      %6001 = vrot.lane.b32.xlu0 %v5990, 60
      %v6002 = vpop.permute.xlu0 %6001
      %v6003 = vsel %vm1494, %v5992, %v5994
      %v6004 = vsel %vm1494, %v5994, %v5996
      %v6005 = vsel %vm1494, %v5998, %v6000
      %v6006 = vsel %vm1494, %v6000, %v6002
      %v6007 = vld [vmem:[%s5] sm:$0xff]
      %v6008 = vld [vmem:[%s5 + $0x8] sm:$0xf]
      %v6009 = vld [vmem:[%s5 + $0xc] sm:$0xff]
      %v6010 = vld [vmem:[%s5 + $0x14] sm:$0xf]
      %v6011 = vld [vmem:[%s5 + $0x18] sm:$0xff]
      %v6012 = vld [vmem:[%s5 + $0x20] sm:$0xf]
      %v6013 = vld [vmem:[%s5 + $0x24] sm:$0xff]
      %v6014 = vld [vmem:[%s5 + $0x2c] sm:$0xf]
      %6016 = vset.pattern.permute.xlu0 0
      %6017 = vperm.xlu0 %6016, %v5601
      %v6018 = vpop.permute.xlu0 %6017
      %6021 = vset.pattern.permute.xlu0 0
      %6022 = vperm.xlu0 %6021, %v5602
      %v6023 = vpop.permute.xlu0 %6022
      %6026 = vset.pattern.permute.xlu0 0
      %6027 = vperm.xlu0 %6026, %v5603
      %v6028 = vpop.permute.xlu0 %6027
      %6031 = vset.pattern.permute.xlu0 0
      %6032 = vperm.xlu0 %6031, %v5604
      %v6033 = vpop.permute.xlu0 %6032
      %v6043 = vunpack.c.l.b16 %v6007
      %v6044 = vunpack.c.h.b16 %v6007
      %v6045 = vunpack.c.l.b16 %v6008
      %v6046 = vunpack.c.l.b16 %v6009
      %v6047 = vunpack.c.h.b16 %v6009
      %v6048 = vunpack.c.l.b16 %v6010
      %v6049 = vunpack.c.l.b16 %v6011
      %v6050 = vunpack.c.h.b16 %v6011
      %v6051 = vunpack.c.l.b16 %v6012
      %v6052 = vunpack.c.l.b16 %v6013
      %v6053 = vunpack.c.h.b16 %v6013
      %v6054 = vunpack.c.l.b16 %v6014
      %v6055 = vpack.c.b16 %v6046, %v6043
      %v6056 = vpack.c.b16 %v6047, %v6044
      %v6057 = vpack.c.b16 %v6048, %v6045
      %v6058 = vpack.c.b16 %v6052, %v6049
      %v6059 = vpack.c.b16 %v6053, %v6050
      %v6060 = vpack.c.b16 %v6054, %v6051
      %6065 = vrot.lane.b32.xlu0 %v5697, 34
      %v6066 = vpop.permute.xlu0 %6065
      %6067 = vrot.lane.b32.xlu0 %v5698, 34
      %v6068 = vpop.permute.xlu0 %6067
      %6069 = vrot.lane.b32.xlu0 %v5699, 34
      %v6070 = vpop.permute.xlu0 %6069
      %6071 = vrot.lane.b32.xlu0 %v5700, 34
      %v6072 = vpop.permute.xlu0 %6071
      %6073 = vrot.lane.b32.xlu0 %v5701, 34
      %v6074 = vpop.permute.xlu0 %6073
      %6075 = vrot.lane.b32.xlu0 %v5702, 34
      %v6076 = vpop.permute.xlu0 %6075
      %6077 = vrot.lane.b32.xlu0 %v5741, 34
      %v6078 = vpop.permute.xlu0 %6077
      %6079 = vrot.lane.b32.xlu0 %v5742, 34
      %v6080 = vpop.permute.xlu0 %6079
      %6081 = vrot.lane.b32.xlu0 %v5734, 34
      %v6082 = vpop.permute.xlu0 %6081
      %6083 = vrot.lane.b32.xlu0 %v5743, 34
      %v6084 = vpop.permute.xlu0 %6083
      %6085 = vrot.lane.b32.xlu0 %v5744, 34
      %v6086 = vpop.permute.xlu0 %6085
      %6087 = vrot.lane.b32.xlu0 %v5740, 34
      %v6088 = vpop.permute.xlu0 %6087
      %6089 = vrot.lane.b32.xlu0 %v5783, 34
      %v6090 = vpop.permute.xlu0 %6089
      %6091 = vrot.lane.b32.xlu0 %v5784, 34
      %v6092 = vpop.permute.xlu0 %6091
      %6093 = vrot.lane.b32.xlu0 %v5776, 34
      %v6094 = vpop.permute.xlu0 %6093
      %6095 = vrot.lane.b32.xlu0 %v5785, 34
      %v6096 = vpop.permute.xlu0 %6095
      %6097 = vrot.lane.b32.xlu0 %v5786, 34
      %v6098 = vpop.permute.xlu0 %6097
      %6099 = vrot.lane.b32.xlu0 %v5782, 34
      %v6100 = vpop.permute.xlu0 %6099
      %6101 = vrot.lane.b32.xlu0 %v5825, 34
      %v6102 = vpop.permute.xlu0 %6101
      %6103 = vrot.lane.b32.xlu0 %v5826, 34
      %v6104 = vpop.permute.xlu0 %6103
      %6105 = vrot.lane.b32.xlu0 %v5818, 34
      %v6106 = vpop.permute.xlu0 %6105
      %6107 = vrot.lane.b32.xlu0 %v5827, 34
      %v6108 = vpop.permute.xlu0 %6107
      %6109 = vrot.lane.b32.xlu0 %v5828, 34
      %v6110 = vpop.permute.xlu0 %6109
      %6111 = vrot.lane.b32.xlu0 %v5824, 34
      %v6112 = vpop.permute.xlu0 %6111
      %6113 = vrot.lane.b32.xlu0 %v5846, 34
      %v6114 = vpop.permute.xlu0 %6113
      %6115 = vrot.lane.b32.xlu0 %v5853, 34
      %v6116 = vpop.permute.xlu0 %6115
      %6117 = vrot.lane.b32.xlu0 %v5848, 34
      %v6118 = vpop.permute.xlu0 %6117
      %6119 = vrot.lane.b32.xlu0 %v5850, 34
      %v6120 = vpop.permute.xlu0 %6119
      %6121 = vrot.lane.b32.xlu0 %v5854, 34
      %v6122 = vpop.permute.xlu0 %6121
      %6123 = vrot.lane.b32.xlu0 %v5852, 34
      %v6124 = vpop.permute.xlu0 %6123
      %6125 = vrot.lane.b32.xlu0 %v5882, 34
      %v6126 = vpop.permute.xlu0 %6125
      %6127 = vrot.lane.b32.xlu0 %v5893, 34
      %v6128 = vpop.permute.xlu0 %6127
      %6129 = vrot.lane.b32.xlu0 %v5894, 34
      %v6130 = vpop.permute.xlu0 %6129
      %6131 = vrot.lane.b32.xlu0 %v5888, 34
      %v6132 = vpop.permute.xlu0 %6131
      %6133 = vrot.lane.b32.xlu0 %v5895, 34
      %v6134 = vpop.permute.xlu0 %6133
      %6135 = vrot.lane.b32.xlu0 %v5896, 34
      %v6136 = vpop.permute.xlu0 %6135
      %6137 = vrot.lane.b32.xlu0 %v5924, 34
      %v6138 = vpop.permute.xlu0 %6137
      %6139 = vrot.lane.b32.xlu0 %v5935, 34
      %v6140 = vpop.permute.xlu0 %6139
      %6141 = vrot.lane.b32.xlu0 %v5936, 34
      %v6142 = vpop.permute.xlu0 %6141
      %6143 = vrot.lane.b32.xlu0 %v5930, 34
      %v6144 = vpop.permute.xlu0 %6143
      %6145 = vrot.lane.b32.xlu0 %v5937, 34
      %v6146 = vpop.permute.xlu0 %6145
      %6147 = vrot.lane.b32.xlu0 %v5938, 34
      %v6148 = vpop.permute.xlu0 %6147
      %6149 = vrot.lane.b32.xlu0 %v5950, 34
      %v6150 = vpop.permute.xlu0 %6149
      %6151 = vrot.lane.b32.xlu0 %v5961, 34
      %v6152 = vpop.permute.xlu0 %6151
      %6153 = vrot.lane.b32.xlu0 %v5962, 34
      %v6154 = vpop.permute.xlu0 %6153
      %6155 = vrot.lane.b32.xlu0 %v5956, 34
      %v6156 = vpop.permute.xlu0 %6155
      %6157 = vrot.lane.b32.xlu0 %v5963, 34
      %v6158 = vpop.permute.xlu0 %6157
      %6159 = vrot.lane.b32.xlu0 %v5964, 34
      %v6160 = vpop.permute.xlu0 %6159
      %6161 = vrot.lane.b32.xlu0 %v5992, 34
      %v6162 = vpop.permute.xlu0 %6161
      %6163 = vrot.lane.b32.xlu0 %v6003, 34
      %v6164 = vpop.permute.xlu0 %6163
      %6165 = vrot.lane.b32.xlu0 %v6004, 34
      %v6166 = vpop.permute.xlu0 %6165
      %6167 = vrot.lane.b32.xlu0 %v5998, 34
      %v6168 = vpop.permute.xlu0 %6167
      %6169 = vrot.lane.b32.xlu0 %v6005, 34
      %v6170 = vpop.permute.xlu0 %6169
      %6171 = vrot.lane.b32.xlu0 %v6006, 34
      %v6172 = vpop.permute.xlu0 %6171
      %v6173 = vsel %vm773, %v6066, %v6068
      %v6174 = vsel %vm773, %v6068, %v6070
      %v6175 = vsel %vm773, %v6072, %v6074
      %v6176 = vsel %vm773, %v6074, %v6076
      %v6177 = vsel %vm773, %v6078, %v6080
      %v6178 = vsel %vm773, %v6080, %v6082
      %v6179 = vsel %vm773, %v6084, %v6086
      %v6180 = vsel %vm773, %v6086, %v6088
      %v6181 = vsel %vm773, %v6090, %v6092
      %v6182 = vsel %vm773, %v6092, %v6094
      %v6183 = vsel %vm773, %v6096, %v6098
      %v6184 = vsel %vm773, %v6098, %v6100
      %v6185 = vsel %vm773, %v6102, %v6104
      %v6186 = vsel %vm773, %v6104, %v6106
      %v6187 = vsel %vm773, %v6108, %v6110
      %v6188 = vsel %vm773, %v6110, %v6112
      %v6189 = vsel %vm773, %v6114, %v6116
      %v6190 = vsel %vm773, %v6116, %v6118
      %v6191 = vsel %vm773, %v6120, %v6122
      %v6192 = vsel %vm773, %v6122, %v6124
      %v6193 = vsel %vm773, %v6126, %v6128
      %v6194 = vsel %vm773, %v6128, %v6130
      %v6195 = vsel %vm773, %v6132, %v6134
      %v6196 = vsel %vm773, %v6134, %v6136
      %v6197 = vsel %vm773, %v6138, %v6140
      %v6198 = vsel %vm773, %v6140, %v6142
      %v6199 = vsel %vm773, %v6144, %v6146
      %v6200 = vsel %vm773, %v6146, %v6148
      %v6201 = vsel %vm773, %v6150, %v6152
      %v6202 = vsel %vm773, %v6152, %v6154
      %v6203 = vsel %vm773, %v6156, %v6158
      %v6204 = vsel %vm773, %v6158, %v6160
      %v6205 = vsel %vm773, %v6162, %v6164
      %v6206 = vsel %vm773, %v6164, %v6166
      %v6207 = vsel %vm773, %v6168, %v6170
      %v6208 = vsel %vm773, %v6170, %v6172
      %v6246 = vsel %vm2954, %v6057, 0
      %v6249 = vsel %vm2954, %v6060, 0
      %6251 = vmatpush.bf16.msra.mxu0 %v6187
      %6252 = vmatpush.bf16.msra.mxu0 %v6185
      %6253 = vmatpush.bf16.msra.mxu0 %v6183
      %6254 = vmatpush.bf16.msra.mxu0 %v6181
      %6255 = vmatpush.bf16.msra.mxu0 %v6179
      %6256 = vmatpush.bf16.msra.mxu0 %v6177
      %6257 = vmatpush.bf16.msra.mxu0 %v6175
      %6258 = vmatpush.bf16.msra.mxu0 %v6173
      %6259 = vmatmul.bf16.gmra.mxu0 %v6055
      %v6260 = vpop.f32.mrf.mxu0
      %v6261 = vadd.f32 %v6018, %v6260
      %v6262 = vpop.f32.mrf.mxu0
      %v6263 = vadd.f32 %v6023, %v6262
      %6264 = vmatmul.bf16.gmra.mxu0 %v6058
      %v6265 = vpop.f32.mrf.mxu0
      %v6266 = vadd.f32 %v6028, %v6265
      %v6267 = vpop.f32.mrf.mxu0
      %v6268 = vadd.f32 %v6033, %v6267
      %6269 = vdwg.mxu0
      %6270 = vmatpush.bf16.msra.mxu0 %v6203
      %6271 = vmatpush.bf16.msra.mxu0 %v6201
      %6272 = vmatpush.bf16.msra.mxu0 %v6199
      %6273 = vmatpush.bf16.msra.mxu0 %v6197
      %6274 = vmatpush.bf16.msra.mxu0 %v6195
      %6275 = vmatpush.bf16.msra.mxu0 %v6193
      %6276 = vmatpush.bf16.msra.mxu0 %v6191
      %6277 = vmatpush.bf16.msra.mxu0 %v6189
      %6278 = vmatmul.bf16.gmra.mxu0 %v6056
      %v6279 = vpop.f32.mrf.mxu0
      %v6280 = vadd.f32 %v6261, %v6279
      %v6281 = vpop.f32.mrf.mxu0
      %v6282 = vadd.f32 %v6263, %v6281
      %6283 = vmatmul.bf16.gmra.mxu0 %v6059
      %v6284 = vpop.f32.mrf.mxu0
      %v6285 = vadd.f32 %v6266, %v6284
      %v6286 = vpop.f32.mrf.mxu0
      %v6287 = vadd.f32 %v6268, %v6286
      %6288 = vdwg.mxu0
      %6289 = vmatpush.bf16.msra.mxu0 0
      %6290 = vmatpush.bf16.msra.mxu0 0
      %6291 = vmatpush.bf16.msra.mxu0 0
      %6292 = vmatpush.bf16.msra.mxu0 0
      %6293 = vmatpush.bf16.msra.mxu0 0
      %6294 = vmatpush.bf16.msra.mxu0 0
      %6295 = vmatpush.bf16.msra.mxu0 %v6207
      %6296 = vmatpush.bf16.msra.mxu0 %v6205
      %6297 = vmatmul.bf16.gmra.mxu0 %v6246
      %v6298 = vpop.f32.mrf.mxu0
      %v6299 = vadd.f32 %v6280, %v6298
      %v6300 = vpop.f32.mrf.mxu0
      %v6301 = vadd.f32 %v6282, %v6300
      %6302 = vmatmul.bf16.gmra.mxu0 %v6249
      %v6303 = vpop.f32.mrf.mxu0
      %v6304 = vadd.f32 %v6285, %v6303
      %v6305 = vpop.f32.mrf.mxu0
      %v6306 = vadd.f32 %v6287, %v6305
      %6307 = vdwg.mxu0
      %6308 = vmatpush.bf16.msra.mxu0 %v6188
      %6309 = vmatpush.bf16.msra.mxu0 %v6186
      %6310 = vmatpush.bf16.msra.mxu0 %v6184
      %6311 = vmatpush.bf16.msra.mxu0 %v6182
      %6312 = vmatpush.bf16.msra.mxu0 %v6180
      %6313 = vmatpush.bf16.msra.mxu0 %v6178
      %6314 = vmatpush.bf16.msra.mxu0 %v6176
      %6315 = vmatpush.bf16.msra.mxu0 %v6174
      %6316 = vmatmul.bf16.gmra.mxu0 %v6055
      %v6317 = vpop.f32.mrf.mxu0
      %v6318 = vadd.f32 %v6018, %v6317
      %v6319 = vpop.f32.mrf.mxu0
      %v6320 = vadd.f32 %v6023, %v6319
      %6321 = vmatmul.bf16.gmra.mxu0 %v6058
      %v6322 = vpop.f32.mrf.mxu0
      %v6323 = vadd.f32 %v6028, %v6322
      %v6324 = vpop.f32.mrf.mxu0
      %v6325 = vadd.f32 %v6033, %v6324
      %6326 = vdwg.mxu0
      %6327 = vmatpush.bf16.msra.mxu0 %v6204
      %6328 = vmatpush.bf16.msra.mxu0 %v6202
      %6329 = vmatpush.bf16.msra.mxu0 %v6200
      %6330 = vmatpush.bf16.msra.mxu0 %v6198
      %6331 = vmatpush.bf16.msra.mxu0 %v6196
      %6332 = vmatpush.bf16.msra.mxu0 %v6194
      %6333 = vmatpush.bf16.msra.mxu0 %v6192
      %6334 = vmatpush.bf16.msra.mxu0 %v6190
      %6335 = vmatmul.bf16.gmra.mxu0 %v6056
      %v6336 = vpop.f32.mrf.mxu0
      %v6337 = vadd.f32 %v6318, %v6336
      %v6338 = vpop.f32.mrf.mxu0
      %v6339 = vadd.f32 %v6320, %v6338
      %6340 = vmatmul.bf16.gmra.mxu0 %v6059
      %v6341 = vpop.f32.mrf.mxu0
      %v6342 = vadd.f32 %v6323, %v6341
      %v6343 = vpop.f32.mrf.mxu0
      %v6344 = vadd.f32 %v6325, %v6343
      %6345 = vdwg.mxu0
      %6346 = vmatpush.bf16.msra.mxu0 0
      %6347 = vmatpush.bf16.msra.mxu0 0
      %6348 = vmatpush.bf16.msra.mxu0 0
      %6349 = vmatpush.bf16.msra.mxu0 0
      %6350 = vmatpush.bf16.msra.mxu0 0
      %6351 = vmatpush.bf16.msra.mxu0 0
      %6352 = vmatpush.bf16.msra.mxu0 %v6208
      %6353 = vmatpush.bf16.msra.mxu0 %v6206
      %6354 = vmatmul.bf16.gmra.mxu0 %v6246
      %v6355 = vpop.f32.mrf.mxu0
      %v6356 = vadd.f32 %v6337, %v6355
      %v6357 = vpop.f32.mrf.mxu0
      %v6358 = vadd.f32 %v6339, %v6357
      %6359 = vmatmul.bf16.gmra.mxu0 %v6249
      %v6360 = vpop.f32.mrf.mxu0
      %v6361 = vadd.f32 %v6342, %v6360
      %v6362 = vpop.f32.mrf.mxu0
      %v6363 = vadd.f32 %v6344, %v6362
      %6364 = vdwg.mxu0
      %v6365 = vld [vmem:[%s7] sm:$0xff]
      %v6366 = vld [vmem:[%s7 + $0x8] sm:$0xff]
      %v6367 = vld [vmem:[%s7 + $0x10] sm:$0xff]
      %v6368 = vld [vmem:[%s7 + $0x18] sm:$0xff]
      %v6369 = vld [vmem:[%s8] sm:$0xff]
      %v6370 = vld [vmem:[%s8 + $0x8] sm:$0xff]
      %v6371 = vld [vmem:[%s8 + $0x10] sm:$0xff]
      %v6372 = vld [vmem:[%s8 + $0x18] sm:$0xff]
      %v6373 = vadd.f32 %v6299, %v6356
      %6374 = vadd.xlane.f32.xlu0 %v6373
      %v6375 = vpop.xlane.xlu0 %6374
      %v6376 = vadd.f32 %v6301, %v6358
      %6377 = vadd.xlane.f32.xlu0 %v6376
      %v6378 = vpop.xlane.xlu0 %6377
      %v6379 = vadd.f32 %v6304, %v6361
      %6380 = vadd.xlane.f32.xlu0 %v6379
      %v6381 = vpop.xlane.xlu0 %6380
      %v6382 = vadd.f32 %v6306, %v6363
      %6383 = vadd.xlane.f32.xlu0 %v6382
      %v6384 = vpop.xlane.xlu0 %6383
      %v6385 = vmul.f32 %v6375, 0.00390625
      %v6386 = vmul.f32 %v6378, 0.00390625
      %v6387 = vmul.f32 %v6381, 0.00390625
      %v6388 = vmul.f32 %v6384, 0.00390625
      %v6389 = vsub.f32 %v6299, %v6385
      %v6390 = vsub.f32 %v6356, %v6385
      %v6391 = vsub.f32 %v6301, %v6386
      %v6392 = vsub.f32 %v6358, %v6386
      %v6393 = vsub.f32 %v6304, %v6387
      %v6394 = vsub.f32 %v6361, %v6387
      %v6395 = vsub.f32 %v6306, %v6388
      %v6396 = vsub.f32 %v6363, %v6388
      %v6397 = vmul.f32 %v6389, %v6389
      %v6398 = vmul.f32 %v6390, %v6390
      %v6399 = vmul.f32 %v6391, %v6391
      %v6400 = vmul.f32 %v6392, %v6392
      %v6401 = vmul.f32 %v6393, %v6393
      %v6402 = vmul.f32 %v6394, %v6394
      %v6403 = vmul.f32 %v6395, %v6395
      %v6404 = vmul.f32 %v6396, %v6396
      %v6405 = vadd.f32 %v6397, %v6398
      %6406 = vadd.xlane.f32.xlu0 %v6405
      %v6407 = vpop.xlane.xlu0 %6406
      %v6408 = vadd.f32 %v6399, %v6400
      %6409 = vadd.xlane.f32.xlu0 %v6408
      %v6410 = vpop.xlane.xlu0 %6409
      %v6411 = vadd.f32 %v6401, %v6402
      %6412 = vadd.xlane.f32.xlu0 %v6411
      %v6413 = vpop.xlane.xlu0 %6412
      %v6414 = vadd.f32 %v6403, %v6404
      %6415 = vadd.xlane.f32.xlu0 %v6414
      %v6416 = vpop.xlane.xlu0 %6415
      %v6417 = vmul.f32 %v6407, 0.00390625
      %v6418 = vmul.f32 %v6410, 0.00390625
      %v6419 = vmul.f32 %v6413, 0.00390625
      %v6420 = vmul.f32 %v6416, 0.00390625
      %v6421 = vadd.f32 %v6417, 1e-05
      %v6422 = vadd.f32 %v6418, 1e-05
      %v6423 = vadd.f32 %v6419, 1e-05
      %v6424 = vadd.f32 %v6420, 1e-05
      %v6425 = vrsqrt.pop %v6421
      %v6426 = vmul.f32 %v6425, %v6421
      %v6427 = vmul.f32 %v6426, %v6425
      %v6428 = vmul.f32 0.5, %v6427
      %v6429 = vsub.f32 1.5, %v6428
      %v6430 = vmul.f32 %v6425, %v6429
      %vm6431 = vweird.f32 %v6421
      %vm6432 = vweird.f32 %v6425
      %vm6433 = vmor %vm6431, %vm6432
      %v6434 = vsel %vm6433, %v6425, %v6430
      %v6435 = vrsqrt.pop %v6422
      %v6436 = vmul.f32 %v6435, %v6422
      %v6437 = vmul.f32 %v6436, %v6435
      %v6438 = vmul.f32 0.5, %v6437
      %v6439 = vsub.f32 1.5, %v6438
      %v6440 = vmul.f32 %v6435, %v6439
      %vm6441 = vweird.f32 %v6422
      %vm6442 = vweird.f32 %v6435
      %vm6443 = vmor %vm6441, %vm6442
      %v6444 = vsel %vm6443, %v6435, %v6440
      %v6445 = vrsqrt.pop %v6423
      %v6446 = vmul.f32 %v6445, %v6423
      %v6447 = vmul.f32 %v6446, %v6445
      %v6448 = vmul.f32 0.5, %v6447
      %v6449 = vsub.f32 1.5, %v6448
      %v6450 = vmul.f32 %v6445, %v6449
      %vm6451 = vweird.f32 %v6423
      %vm6452 = vweird.f32 %v6445
      %vm6453 = vmor %vm6451, %vm6452
      %v6454 = vsel %vm6453, %v6445, %v6450
      %v6455 = vrsqrt.pop %v6424
      %v6456 = vmul.f32 %v6455, %v6424
      %v6457 = vmul.f32 %v6456, %v6455
      %v6458 = vmul.f32 0.5, %v6457
      %v6459 = vsub.f32 1.5, %v6458
      %v6460 = vmul.f32 %v6455, %v6459
      %vm6461 = vweird.f32 %v6424
      %vm6462 = vweird.f32 %v6455
      %vm6463 = vmor %vm6461, %vm6462
      %v6464 = vsel %vm6463, %v6455, %v6460
      %v6465 = vmul.f32 %v6434, %v6365
      %v6466 = vmul.f32 %v6444, %v6366
      %v6467 = vmul.f32 %v6454, %v6367
      %v6468 = vmul.f32 %v6464, %v6368
      %6470 = vset.pattern.permute.xlu0 0
      %6471 = vperm.xlu0 %6470, %v6465
      %v6472 = vpop.permute.xlu0 %6471
      %6475 = vset.pattern.permute.xlu0 0
      %6476 = vperm.xlu0 %6475, %v6466
      %v6477 = vpop.permute.xlu0 %6476
      %6480 = vset.pattern.permute.xlu0 0
      %6481 = vperm.xlu0 %6480, %v6467
      %v6482 = vpop.permute.xlu0 %6481
      %6485 = vset.pattern.permute.xlu0 0
      %6486 = vperm.xlu0 %6485, %v6468
      %v6487 = vpop.permute.xlu0 %6486
      %v6489 = vmul.f32 %v6389, %v6472
      %v6490 = vmul.f32 %v6390, %v6472
      %v6491 = vmul.f32 %v6391, %v6477
      %v6492 = vmul.f32 %v6392, %v6477
      %v6493 = vmul.f32 %v6393, %v6482
      %v6494 = vmul.f32 %v6394, %v6482
      %v6495 = vmul.f32 %v6395, %v6487
      %v6496 = vmul.f32 %v6396, %v6487
      %6498 = vset.pattern.permute.xlu0 0
      %6499 = vperm.xlu0 %6498, %v6369
      %v6500 = vpop.permute.xlu0 %6499
      %6503 = vset.pattern.permute.xlu0 0
      %6504 = vperm.xlu0 %6503, %v6370
      %v6505 = vpop.permute.xlu0 %6504
      %6508 = vset.pattern.permute.xlu0 0
      %6509 = vperm.xlu0 %6508, %v6371
      %v6510 = vpop.permute.xlu0 %6509
      %6513 = vset.pattern.permute.xlu0 0
      %6514 = vperm.xlu0 %6513, %v6372
      %v6515 = vpop.permute.xlu0 %6514
      %v6517 = vadd.f32 %v6489, %v6500
      %v6518 = vadd.f32 %v6490, %v6500
      %v6519 = vadd.f32 %v6491, %v6505
      %v6520 = vadd.f32 %v6492, %v6505
      %v6521 = vadd.f32 %v6493, %v6510
      %v6522 = vadd.f32 %v6494, %v6510
      %v6523 = vadd.f32 %v6495, %v6515
      %v6524 = vadd.f32 %v6496, %v6515
      %v6525 = vld [vmem:[%s9] sm:$0xf]
      %v6526 = vld [vmem:[%s9 + $0x4] sm:$0xf]
      %v6527 = vld [vmem:[%s9 + $0x8] sm:$0xf]
      %v6528 = vld [vmem:[%s9 + $0xc] sm:$0xf]
      %v6533 = vunpack.c.l.b16 %v6525
      %v6534 = vunpack.c.l.b16 %v6526
      %v6535 = vunpack.c.l.b16 %v6527
      %v6536 = vunpack.c.l.b16 %v6528
      %v6537 = vpack.c.b16 %v6534, %v6533
      %v6538 = vpack.c.b16 %v6536, %v6535
      %v6547 = vunpack.c.l.b16 %v3947
      %v6548 = vunpack.c.h.b16 %v3947
      %v6549 = vunpack.c.l.b16 %v3948
      %v6550 = vunpack.c.h.b16 %v3948
      %v6551 = vunpack.c.l.b16 %v3949
      %v6552 = vunpack.c.h.b16 %v3949
      %v6553 = vunpack.c.l.b16 %v3950
      %v6554 = vunpack.c.h.b16 %v3950
      %v6555 = vunpack.c.l.b16 %v3951
      %v6556 = vunpack.c.h.b16 %v3951
      %v6557 = vunpack.c.l.b16 %v3952
      %v6558 = vunpack.c.h.b16 %v3952
      %v6559 = vunpack.c.l.b16 %v3953
      %v6560 = vunpack.c.h.b16 %v3953
      %v6561 = vunpack.c.l.b16 %v3954
      %v6562 = vunpack.c.h.b16 %v3954
      %v6563 = vpack.c.b16 %v6549, %v6547
      %v6564 = vpack.c.b16 %v6550, %v6548
      %v6565 = vpack.c.b16 %v6553, %v6551
      %v6566 = vpack.c.b16 %v6554, %v6552
      %v6567 = vpack.c.b16 %v6557, %v6555
      %v6568 = vpack.c.b16 %v6558, %v6556
      %v6569 = vpack.c.b16 %v6561, %v6559
      %v6570 = vpack.c.b16 %v6562, %v6560
      %v6580 = vsel %vm1945, %v6537, 0
      %v6583 = vsel %vm1945, %v6538, 0
      %6585 = vmatpush.bf16.msra.mxu0 0
      %6586 = vmatpush.bf16.msra.mxu0 0
      %6587 = vmatpush.bf16.msra.mxu0 0
      %6588 = vmatpush.bf16.msra.mxu0 0
      %6589 = vmatpush.bf16.msra.mxu0 %v6569
      %6590 = vmatpush.bf16.msra.mxu0 %v6567
      %6591 = vmatpush.bf16.msra.mxu0 %v6565
      %6592 = vmatpush.bf16.msra.mxu0 %v6563
      %6593 = vmatmul.bf16.gmra.mxu0 %v6580
      %v6594 = vpop.f32.mrf.mxu0
      %v6595 = vadd.f32 0.0, %v6594
      %v6596 = vpop.f32.mrf.mxu0
      %v6597 = vadd.f32 0.0, %v6596
      %6598 = vmatmul.bf16.gmra.mxu0 %v6583
      %v6599 = vpop.f32.mrf.mxu0
      %v6600 = vadd.f32 0.0, %v6599
      %v6601 = vpop.f32.mrf.mxu0
      %v6602 = vadd.f32 0.0, %v6601
      %6603 = vdwg.mxu0
      %6604 = vmatpush.bf16.msra.mxu0 0
      %6605 = vmatpush.bf16.msra.mxu0 0
      %6606 = vmatpush.bf16.msra.mxu0 0
      %6607 = vmatpush.bf16.msra.mxu0 0
      %6608 = vmatpush.bf16.msra.mxu0 %v6570
      %6609 = vmatpush.bf16.msra.mxu0 %v6568
      %6610 = vmatpush.bf16.msra.mxu0 %v6566
      %6611 = vmatpush.bf16.msra.mxu0 %v6564
      %6612 = vmatmul.bf16.gmra.mxu0 %v6580
      %v6613 = vpop.f32.mrf.mxu0
      %v6614 = vadd.f32 0.0, %v6613
      %v6615 = vpop.f32.mrf.mxu0
      %v6616 = vadd.f32 0.0, %v6615
      %6617 = vmatmul.bf16.gmra.mxu0 %v6583
      %v6618 = vpop.f32.mrf.mxu0
      %v6619 = vadd.f32 0.0, %v6618
      %v6620 = vpop.f32.mrf.mxu0
      %v6621 = vadd.f32 0.0, %v6620
      %6622 = vdwg.mxu0
      %v6623 = vld [vmem:[%s10] sm:$0xff]
      %v6624 = vld [vmem:[%s10 + $0x8] sm:$0xff]
      %v6625 = vld [vmem:[%s10 + $0x10] sm:$0xff]
      %v6626 = vld [vmem:[%s10 + $0x18] sm:$0xff]
      %v6627 = vld [vmem:[%s11] sm:$0xff]
      %v6628 = vld [vmem:[%s11 + $0x8] sm:$0xff]
      %v6629 = vld [vmem:[%s11 + $0x10] sm:$0xff]
      %v6630 = vld [vmem:[%s11 + $0x18] sm:$0xff]
      %v6631 = vadd.f32 %v6595, %v6614
      %6632 = vadd.xlane.f32.xlu0 %v6631
      %v6633 = vpop.xlane.xlu0 %6632
      %v6634 = vadd.f32 %v6597, %v6616
      %6635 = vadd.xlane.f32.xlu0 %v6634
      %v6636 = vpop.xlane.xlu0 %6635
      %v6637 = vadd.f32 %v6600, %v6619
      %6638 = vadd.xlane.f32.xlu0 %v6637
      %v6639 = vpop.xlane.xlu0 %6638
      %v6640 = vadd.f32 %v6602, %v6621
      %6641 = vadd.xlane.f32.xlu0 %v6640
      %v6642 = vpop.xlane.xlu0 %6641
      %v6643 = vmul.f32 %v6633, 0.00390625
      %v6644 = vmul.f32 %v6636, 0.00390625
      %v6645 = vmul.f32 %v6639, 0.00390625
      %v6646 = vmul.f32 %v6642, 0.00390625
      %v6647 = vsub.f32 %v6595, %v6643
      %v6648 = vsub.f32 %v6614, %v6643
      %v6649 = vsub.f32 %v6597, %v6644
      %v6650 = vsub.f32 %v6616, %v6644
      %v6651 = vsub.f32 %v6600, %v6645
      %v6652 = vsub.f32 %v6619, %v6645
      %v6653 = vsub.f32 %v6602, %v6646
      %v6654 = vsub.f32 %v6621, %v6646
      %v6655 = vmul.f32 %v6647, %v6647
      %v6656 = vmul.f32 %v6648, %v6648
      %v6657 = vmul.f32 %v6649, %v6649
      %v6658 = vmul.f32 %v6650, %v6650
      %v6659 = vmul.f32 %v6651, %v6651
      %v6660 = vmul.f32 %v6652, %v6652
      %v6661 = vmul.f32 %v6653, %v6653
      %v6662 = vmul.f32 %v6654, %v6654
      %v6663 = vadd.f32 %v6655, %v6656
      %6664 = vadd.xlane.f32.xlu0 %v6663
      %v6665 = vpop.xlane.xlu0 %6664
      %v6666 = vadd.f32 %v6657, %v6658
      %6667 = vadd.xlane.f32.xlu0 %v6666
      %v6668 = vpop.xlane.xlu0 %6667
      %v6669 = vadd.f32 %v6659, %v6660
      %6670 = vadd.xlane.f32.xlu0 %v6669
      %v6671 = vpop.xlane.xlu0 %6670
      %v6672 = vadd.f32 %v6661, %v6662
      %6673 = vadd.xlane.f32.xlu0 %v6672
      %v6674 = vpop.xlane.xlu0 %6673
      %v6675 = vmul.f32 %v6665, 0.00390625
      %v6676 = vmul.f32 %v6668, 0.00390625
      %v6677 = vmul.f32 %v6671, 0.00390625
      %v6678 = vmul.f32 %v6674, 0.00390625
      %v6679 = vadd.f32 %v6675, 1e-05
      %v6680 = vadd.f32 %v6676, 1e-05
      %v6681 = vadd.f32 %v6677, 1e-05
      %v6682 = vadd.f32 %v6678, 1e-05
      %v6683 = vrsqrt.pop %v6679
      %v6684 = vmul.f32 %v6683, %v6679
      %v6685 = vmul.f32 %v6684, %v6683
      %v6686 = vmul.f32 0.5, %v6685
      %v6687 = vsub.f32 1.5, %v6686
      %v6688 = vmul.f32 %v6683, %v6687
      %vm6689 = vweird.f32 %v6679
      %vm6690 = vweird.f32 %v6683
      %vm6691 = vmor %vm6689, %vm6690
      %v6692 = vsel %vm6691, %v6683, %v6688
      %v6693 = vrsqrt.pop %v6680
      %v6694 = vmul.f32 %v6693, %v6680
      %v6695 = vmul.f32 %v6694, %v6693
      %v6696 = vmul.f32 0.5, %v6695
      %v6697 = vsub.f32 1.5, %v6696
      %v6698 = vmul.f32 %v6693, %v6697
      %vm6699 = vweird.f32 %v6680
      %vm6700 = vweird.f32 %v6693
      %vm6701 = vmor %vm6699, %vm6700
      %v6702 = vsel %vm6701, %v6693, %v6698
      %v6703 = vrsqrt.pop %v6681
      %v6704 = vmul.f32 %v6703, %v6681
      %v6705 = vmul.f32 %v6704, %v6703
      %v6706 = vmul.f32 0.5, %v6705
      %v6707 = vsub.f32 1.5, %v6706
      %v6708 = vmul.f32 %v6703, %v6707
      %vm6709 = vweird.f32 %v6681
      %vm6710 = vweird.f32 %v6703
      %vm6711 = vmor %vm6709, %vm6710
      %v6712 = vsel %vm6711, %v6703, %v6708
      %v6713 = vrsqrt.pop %v6682
      %v6714 = vmul.f32 %v6713, %v6682
      %v6715 = vmul.f32 %v6714, %v6713
      %v6716 = vmul.f32 0.5, %v6715
      %v6717 = vsub.f32 1.5, %v6716
      %v6718 = vmul.f32 %v6713, %v6717
      %vm6719 = vweird.f32 %v6682
      %vm6720 = vweird.f32 %v6713
      %vm6721 = vmor %vm6719, %vm6720
      %v6722 = vsel %vm6721, %v6713, %v6718
      %v6723 = vmul.f32 %v6692, %v6623
      %v6724 = vmul.f32 %v6702, %v6624
      %v6725 = vmul.f32 %v6712, %v6625
      %v6726 = vmul.f32 %v6722, %v6626
      %6728 = vset.pattern.permute.xlu0 0
      %6729 = vperm.xlu0 %6728, %v6723
      %v6730 = vpop.permute.xlu0 %6729
      %6733 = vset.pattern.permute.xlu0 0
      %6734 = vperm.xlu0 %6733, %v6724
      %v6735 = vpop.permute.xlu0 %6734
      %6738 = vset.pattern.permute.xlu0 0
      %6739 = vperm.xlu0 %6738, %v6725
      %v6740 = vpop.permute.xlu0 %6739
      %6743 = vset.pattern.permute.xlu0 0
      %6744 = vperm.xlu0 %6743, %v6726
      %v6745 = vpop.permute.xlu0 %6744
      %v6747 = vmul.f32 %v6647, %v6730
      %v6748 = vmul.f32 %v6648, %v6730
      %v6749 = vmul.f32 %v6649, %v6735
      %v6750 = vmul.f32 %v6650, %v6735
      %v6751 = vmul.f32 %v6651, %v6740
      %v6752 = vmul.f32 %v6652, %v6740
      %v6753 = vmul.f32 %v6653, %v6745
      %v6754 = vmul.f32 %v6654, %v6745
      %6756 = vset.pattern.permute.xlu0 0
      %6757 = vperm.xlu0 %6756, %v6627
      %v6758 = vpop.permute.xlu0 %6757
      %6761 = vset.pattern.permute.xlu0 0
      %6762 = vperm.xlu0 %6761, %v6628
      %v6763 = vpop.permute.xlu0 %6762
      %6766 = vset.pattern.permute.xlu0 0
      %6767 = vperm.xlu0 %6766, %v6629
      %v6768 = vpop.permute.xlu0 %6767
      %6771 = vset.pattern.permute.xlu0 0
      %6772 = vperm.xlu0 %6771, %v6630
      %v6773 = vpop.permute.xlu0 %6772
      %v6775 = vadd.f32 %v6747, %v6758
      %v6776 = vadd.f32 %v6748, %v6758
      %v6777 = vadd.f32 %v6749, %v6763
      %v6778 = vadd.f32 %v6750, %v6763
      %v6779 = vadd.f32 %v6751, %v6768
      %v6780 = vadd.f32 %v6752, %v6768
      %v6781 = vadd.f32 %v6753, %v6773
      %v6782 = vadd.f32 %v6754, %v6773
      %v6783 = vadd.f32 %v6517, %v6775
      %v6784 = vadd.f32 %v6518, %v6776
      %v6785 = vadd.f32 %v6519, %v6777
      %v6786 = vadd.f32 %v6520, %v6778
      %v6787 = vadd.f32 %v6521, %v6779
      %v6788 = vadd.f32 %v6522, %v6780
      %v6789 = vadd.f32 %v6523, %v6781
      %v6790 = vadd.f32 %v6524, %v6782
      %v6791 = vmax.f32 %v6783, 0.0
      %v6792 = vmax.f32 %v6784, 0.0
      %v6793 = vmax.f32 %v6785, 0.0
      %v6794 = vmax.f32 %v6786, 0.0
      %v6795 = vmax.f32 %v6787, 0.0
      %v6796 = vmax.f32 %v6788, 0.0
      %v6797 = vmax.f32 %v6789, 0.0
      %v6798 = vmax.f32 %v6790, 0.0
      %6799 = vst [vmem:[%s440] sm:$0xff] %v6791
      %6800 = vst [vmem:[%s440 + $0x8] sm:$0xff] %v6792
      %6801 = vst [vmem:[%s440 + $0x10] sm:$0xff] %v6793
      %6802 = vst [vmem:[%s440 + $0x18] sm:$0xff] %v6794
      %6803 = vst [vmem:[%s440 + $0x20] sm:$0xff] %v6795
      %6804 = vst [vmem:[%s440 + $0x28] sm:$0xff] %v6796
      %6805 = vst [vmem:[%s440 + $0x30] sm:$0xff] %v6797
      %6806 = vst [vmem:[%s440 + $0x38] sm:$0xff] %v6798
      %p6807 = scmp.lt.s32.totalorder %s24, 1
      %s6808 = scalar_select %p6807, %s24, 1
      %s6809 = smul.addr %s6808, 8
      %s6810 = smul.addr %s6809, 8
      %s6811 = scalar_lea.vmem %s13, %s6810
      // Predicated region
      $region73: #{rru_up_forward.3} parent=71 // pred_check
        %p6812 = pneg %p320
      $region74: #{rru_up_forward.3} parent=71 // pred_check_branch
        %6814 = sbr.rel (%p6812) target = $region76
      $region75: #{rru_up_forward.3} parent=71 // pred_region
        _
      $region76: #{rru_up_forward.3} parent=71 // pred_fallthru
        _
    $region72: #{rru_up_forward.3} parent=5 // pred_fallthru
      _
    %p6815 = scmp.le.s32.totalorder 2, %s19
    // Predicated region
    $region77: #{rru_up_forward.3} parent=5 // pred_check
      %p6816 = pneg %p6815
    $region78: #{rru_up_forward.3} parent=5 // pred_check_branch
      %6818 = sbr.rel (%p6816) target = $region80
    $region79: #{rru_up_forward.3} parent=5 // pred_region
      %s6819 = ssub.s32 %s19, 2
      // Predicated region
      $region81: #{rru_up_forward.3} parent=79 // pred_check
        %p6820 = pneg %p326
      $region82: #{rru_up_forward.3} parent=79 // pred_check_branch
        %6822 = sbr.rel (%p6820) target = $region84
      $region83: #{rru_up_forward.3} parent=79 // pred_region
        %p6823 = scmp.lt.s32.totalorder %s25, 1
        %s6824 = scalar_select %p6823, %s25, 1
        %s6825 = smul.addr %s6824, 8
        %s6826 = smul.addr %s6825, 8
        %s6827 = scalar_lea.vmem %s13, %s6826
      $region84: #{rru_up_forward.3} parent=79 // pred_fallthru
        _
    $region80: #{rru_up_forward.3} parent=5 // pred_fallthru
      _
  $region6: #{rru_up_forward.3} parent=0 // loop_footer
    %s23 = sadd.s32 1, %s19
  $region7: #{rru_up_forward.3} parent=0 // loop_footer_branch
    %18 = sbr.rel target = $region3
  $region8: #{rru_up_forward.3} parent=0 // loop_exit
    _

</llo_original>
